<compile_context>
chip_gen: v7x
topology: tpu7x:2x2x1
jax: 0.10.0
libtpu: 0.0.40
codegen_flags: <defaults>
</compile_context>

<pallas_src>
import math
import jax
import jax.numpy as jnp
from jax.experimental import pallas as pl
from jax.experimental.pallas import tpu as pltpu

EMBED_DIM = 64
NUM_HEADS = 4
HEAD_DIM = EMBED_DIM // NUM_HEADS            # 16
IMG_SIZE = 28
PATCH_SIZE = 7
IN_CHANS = 1
NUM_PATCHES = (IMG_SIZE // PATCH_SIZE) ** 2  # 16
SEQ = NUM_PATCHES + 1                        # 17 (cls + patches)
SEQ_PAD = 24                                 # padded to a multiple of 8 sublanes
PATCH_DIM = PATCH_SIZE * PATCH_SIZE * IN_CHANS  # 49
PATCH_PAD = 64                               # zero-padded K for the patch projection
MLP_DIM = EMBED_DIM * 4                      # 256
NUM_CLASSES = 10
NUM_CLASSES_PAD = 128                        # lane-dense logits, sliced in the wrapper
NUM_LAYERS = 3
LN_EPS = 1e-5
MM_DTYPE = jnp.bfloat16                      # matmul operand dtype (f32 accumulation)


# ---------------------------------------------------------------------------
# kernel helpers (all f32)
# ---------------------------------------------------------------------------
def _layernorm(v, g, b):
    mu = jnp.mean(v, axis=-1, keepdims=True)
    var = jnp.mean((v - mu) ** 2, axis=-1, keepdims=True)
    return (v - mu) * jax.lax.rsqrt(var + LN_EPS) * g + b


def _gelu_exact(x):
    # matches torch.nn.GELU() (erf form)
    return 0.5 * x * (1.0 + jax.lax.erf(x * (1.0 / math.sqrt(2.0))))


# ---------------------------------------------------------------------------
# single fused kernel: patch embed + NUM_LAYERS encoder blocks + final LN + head
# ---------------------------------------------------------------------------
def vit_kernel(patch_ref, proj_w_ref, pos_ref, misc_ref,
               wqkv_ref, wo_ref, w1_ref, w2_ref, lvec_ref, head_w_ref,
               o_ref, x_scr):
    TB = patch_ref.shape[0]
    M = TB * SEQ_PAD
    scale = 1.0 / math.sqrt(HEAD_DIM)

    proj_b = misc_ref[0:1, 0:EMBED_DIM]
    cls    = misc_ref[1:2, 0:EMBED_DIM]
    norm_g = misc_ref[2:3, 0:EMBED_DIM]
    norm_b = misc_ref[3:4, 0:EMBED_DIM]
    head_b = misc_ref[4:5, :]                                         # (1, 128)

    # ---- patch projection: (TB*16, 64) @ (64, 64) ----
    p = patch_ref[...].reshape(TB * NUM_PATCHES, PATCH_PAD).astype(MM_DTYPE)
    emb = jnp.dot(p, proj_w_ref[...], preferred_element_type=jnp.float32) + proj_b
    emb = emb.reshape(TB, NUM_PATCHES, EMBED_DIM)

    # ---- assemble [cls | patches | pad] + pos directly into VMEM scratch (no concat) ----
    x_scr[:, 0:1, :] = jnp.broadcast_to(
        (cls + pos_ref[0:1, :]).reshape(1, 1, EMBED_DIM), (TB, 1, EMBED_DIM))
    x_scr[:, 1:SEQ, :] = emb + pos_ref[1:SEQ, :][None, :, :]
    x_scr[:, SEQ:SEQ_PAD, :] = jnp.zeros((TB, SEQ_PAD - SEQ, EMBED_DIM), jnp.float32)
    x = x_scr[...].reshape(M, EMBED_DIM)                              # residual stream, f32

    # key-padding mask for the padded token columns (>= SEQ)
    col = jax.lax.broadcasted_iota(jnp.int32, (1, 1, SEQ_PAD), 2)
    key_mask = jnp.where(col < SEQ, 0.0, -1e30).astype(jnp.float32)

    for l in range(NUM_LAYERS):                                       # unrolled (static)
        lv = lvec_ref[l]                                              # (8, 256) packed vectors
        g1   = lv[0:1, 0:EMBED_DIM]
        b1   = lv[1:2, 0:EMBED_DIM]
        bqkv = lv[2:3, 0:3 * EMBED_DIM]
        bo   = lv[3:4, 0:EMBED_DIM]
        g2   = lv[4:5, 0:EMBED_DIM]
        b2   = lv[5:6, 0:EMBED_DIM]
        mb1  = lv[6:7, 0:MLP_DIM]
        mb2  = lv[7:8, 0:EMBED_DIM]

        # --- multi-head self attention ---
        xn = _layernorm(x, g1, b1)
        qkv = jnp.dot(xn.astype(MM_DTYPE), wqkv_ref[l],
                      preferred_element_type=jnp.float32) + bqkv      # (M, 192)
        q3 = qkv[:, 0:EMBED_DIM].reshape(TB, SEQ_PAD, EMBED_DIM).astype(MM_DTYPE)
        k3 = qkv[:, EMBED_DIM:2 * EMBED_DIM].reshape(TB, SEQ_PAD, EMBED_DIM).astype(MM_DTYPE)
        v3 = qkv[:, 2 * EMBED_DIM:3 * EMBED_DIM].reshape(TB, SEQ_PAD, EMBED_DIM).astype(MM_DTYPE)

        heads = []
        for h in range(NUM_HEADS):
            lo, hi = h * HEAD_DIM, (h + 1) * HEAD_DIM
            qh, kh, vh = q3[:, :, lo:hi], k3[:, :, lo:hi], v3[:, :, lo:hi]
            s = jnp.einsum('bqd,bkd->bqk', qh, kh,
                           preferred_element_type=jnp.float32) * scale      # (TB, S, S)
            s = s + key_mask
            s = s - jnp.max(s, axis=-1, keepdims=True)
            pr = jnp.exp(s)
            pr = pr / jnp.sum(pr, axis=-1, keepdims=True)
            ho = jnp.einsum('bqk,bkd->bqd', pr.astype(MM_DTYPE), vh,
                            preferred_element_type=jnp.float32)             # (TB, S, D)
            heads.append(ho.reshape(M, HEAD_DIM))
        attn = jnp.concatenate(heads, axis=-1)                              # (M, 64)
        attn = jnp.dot(attn.astype(MM_DTYPE), wo_ref[l],
                       preferred_element_type=jnp.float32) + bo
        x = x + attn

        # --- MLP ---
        xn2 = _layernorm(x, g2, b2)
        h1 = jnp.dot(xn2.astype(MM_DTYPE), w1_ref[l],
                     preferred_element_type=jnp.float32) + mb1              # (M, 256)
        h1 = _gelu_exact(h1)
        h2 = jnp.dot(h1.astype(MM_DTYPE), w2_ref[l],
                     preferred_element_type=jnp.float32) + mb2              # (M, 64)
        x = x + h2

    # --- final LayerNorm + classifier head for every row (cls rows picked in wrapper).
    #     LN is per-token so this equals norming the sequence and selecting cls. ---
    xf = _layernorm(x, norm_g, norm_b)
    logits = jnp.dot(xf.astype(MM_DTYPE), head_w_ref[...],
                     preferred_element_type=jnp.float32) + head_b           # (M, 128)
    o_ref[...] = logits


# ---------------------------------------------------------------------------
# wrappers
# ---------------------------------------------------------------------------
def _const_spec(shape):
    n = len(shape)
    return pl.BlockSpec(shape, lambda b, _n=n: (0,) * _n)


def extract_patches(x):
    """NCHW [B,1,28,28] -> [B,16,49]; matches torch unfold(2,ps,ps).unfold(3,ps,ps)."""
    B, C, H, W = x.shape
    gh, gw = H // PATCH_SIZE, W // PATCH_SIZE
    p = x.reshape(B, C, gh, PATCH_SIZE, gw, PATCH_SIZE)
    p = p.transpose(0, 1, 2, 4, 3, 5)                    # B, C, gh, gw, ps, ps
    p = p.reshape(B, C, gh * gw, PATCH_SIZE, PATCH_SIZE)
    p = p.transpose(0, 2, 1, 3, 4)                       # B, num_patches, C, ps, ps
    return p.reshape(B, gh * gw, C * PATCH_SIZE * PATCH_SIZE)


def vit_forward(x_img, params, batch_tile=8):
    # batch_tile=8 targets v5e (8*17 rows ~ one 128-row MXU pass); use 16 on v6e/v7x.
    B = x_img.shape[0]
    TB = min(batch_tile, B)
    nb = pl.cdiv(B, TB)
    B_pad = nb * TB

    patches = extract_patches(x_img.astype(jnp.float32))              # (B, 16, 49)
    patches = jnp.pad(patches,
                      ((0, B_pad - B), (0, 0), (0, PATCH_PAD - PATCH_DIM)))

    out = pl.pallas_call(
        vit_kernel,
        grid=(nb,),
        in_specs=[
            pl.BlockSpec((TB, NUM_PATCHES, PATCH_PAD), lambda b: (b, 0, 0)),   # patches
            _const_spec((PATCH_PAD, EMBED_DIM)),                               # proj_w
            _const_spec((SEQ, EMBED_DIM)),                                     # pos
            _const_spec((8, NUM_CLASSES_PAD)),                                 # misc vectors
            _const_spec((NUM_LAYERS, EMBED_DIM, 3 * EMBED_DIM)),               # wqkv
            _const_spec((NUM_LAYERS, EMBED_DIM, EMBED_DIM)),                   # wo
            _const_spec((NUM_LAYERS, EMBED_DIM, MLP_DIM)),                     # w1
            _const_spec((NUM_LAYERS, MLP_DIM, EMBED_DIM)),                     # w2
            _const_spec((NUM_LAYERS, 8, 256)),                                 # packed layer vecs
            _const_spec((EMBED_DIM, NUM_CLASSES_PAD)),                         # head_w
        ],
        out_specs=pl.BlockSpec((TB * SEQ_PAD, NUM_CLASSES_PAD), lambda b: (b, 0)),
        out_shape=jax.ShapeDtypeStruct((B_pad * SEQ_PAD, NUM_CLASSES_PAD), jnp.float32),
        scratch_shapes=[pltpu.VMEM((TB, SEQ_PAD, EMBED_DIM), jnp.float32)],
        compiler_params=pltpu.CompilerParams(dimension_semantics=("parallel",)),
    )(patches, params["proj_w"], params["pos"], params["misc"],
      params["wqkv"], params["wo"], params["w1"], params["w2"],
      params["lvec"], params["head_w"])

    logits = out.reshape(B_pad, SEQ_PAD, NUM_CLASSES_PAD)[:B, 0, :NUM_CLASSES]
    return logits                                                     # (B, num_classes)


# ---------------------------------------------------------------------------
# deterministic parameter init (synthetic; nn.Linear weights stored pre-transposed (in, out))
# ---------------------------------------------------------------------------
def init_params(key):
    def nrm(k, shape, std=0.02):
        return jax.random.normal(k, shape, jnp.float32) * std

    keys = iter(jax.random.split(key, 6 + NUM_LAYERS * 8))

    proj_w = nrm(next(keys), (PATCH_DIM, EMBED_DIM))
    proj_b = nrm(next(keys), (EMBED_DIM,))
    cls    = nrm(next(keys), (EMBED_DIM,))
    pos    = nrm(next(keys), (SEQ, EMBED_DIM))
    head_w = nrm(next(keys), (EMBED_DIM, NUM_CLASSES))
    head_b = nrm(next(keys), (NUM_CLASSES,))

    misc = jnp.zeros((8, NUM_CLASSES_PAD), jnp.float32)
    misc = misc.at[0, :EMBED_DIM].set(proj_b)
    misc = misc.at[1, :EMBED_DIM].set(cls)
    misc = misc.at[2, :EMBED_DIM].set(jnp.ones((EMBED_DIM,), jnp.float32))   # final LN gamma
    # row 3: final LN beta (zeros)
    misc = misc.at[4, :NUM_CLASSES].set(head_b)

    proj_w_pad = jnp.zeros((PATCH_PAD, EMBED_DIM), jnp.float32).at[:PATCH_DIM, :].set(proj_w)
    head_w_pad = jnp.zeros((EMBED_DIM, NUM_CLASSES_PAD), jnp.float32).at[:, :NUM_CLASSES].set(head_w)

    wqkv_l, wo_l, w1_l, w2_l, lvec_l = [], [], [], [], []
    for _ in range(NUM_LAYERS):
        wqkv = nrm(next(keys), (EMBED_DIM, 3 * EMBED_DIM))
        wo   = nrm(next(keys), (EMBED_DIM, EMBED_DIM))
        w1   = nrm(next(keys), (EMBED_DIM, MLP_DIM))
        w2   = nrm(next(keys), (MLP_DIM, EMBED_DIM))
        bqkv = nrm(next(keys), (3 * EMBED_DIM,))
        bo   = nrm(next(keys), (EMBED_DIM,))
        mb1  = nrm(next(keys), (MLP_DIM,))
        mb2  = nrm(next(keys), (EMBED_DIM,))

        lv = jnp.zeros((8, 256), jnp.float32)
        lv = lv.at[0, :EMBED_DIM].set(jnp.ones((EMBED_DIM,), jnp.float32))   # ln1 gamma
        # row 1: ln1 beta (zeros)
        lv = lv.at[2, :3 * EMBED_DIM].set(bqkv)
        lv = lv.at[3, :EMBED_DIM].set(bo)
        lv = lv.at[4, :EMBED_DIM].set(jnp.ones((EMBED_DIM,), jnp.float32))   # ln2 gamma
        # row 5: ln2 beta (zeros)
        lv = lv.at[6, :MLP_DIM].set(mb1)
        lv = lv.at[7, :EMBED_DIM].set(mb2)

        wqkv_l.append(wqkv); wo_l.append(wo); w1_l.append(w1); w2_l.append(w2)
        lvec_l.append(lv)

    return {
        "proj_w": proj_w_pad.astype(MM_DTYPE),
        "pos": pos,
        "misc": misc,
        "wqkv": jnp.stack(wqkv_l).astype(MM_DTYPE),
        "wo":   jnp.stack(wo_l).astype(MM_DTYPE),
        "w1":   jnp.stack(w1_l).astype(MM_DTYPE),
        "w2":   jnp.stack(w2_l).astype(MM_DTYPE),
        "lvec": jnp.stack(lvec_l),
        "head_w": head_w_pad.astype(MM_DTYPE),
    }


if __name__ == "__main__":
    B = 2
    key = jax.random.PRNGKey(0)
    k_x, k_p = jax.random.split(key)
    x_img = jax.random.normal(k_x, (B, IN_CHANS, IMG_SIZE, IMG_SIZE), jnp.float32)
    params = init_params(k_p)

    out = vit_forward(x_img, params)
    out = jax.block_until_ready(out)
    assert out.shape == (B, NUM_CLASSES), out.shape
    assert bool(jnp.all(jnp.isfinite(out)))
    print("KERNEL_OK")
</pallas_src>

<mosaic_0001>
module attributes {stable_mosaic.version = 11 : i64} {
  func.func @vit_kernel(%arg0: i32, %arg1: memref<2x16x64xf32, #tpu.memory_space<vmem>>, %arg2: memref<64x64xbf16, #tpu.memory_space<vmem>>, %arg3: memref<17x64xf32, #tpu.memory_space<vmem>>, %arg4: memref<8x128xf32, #tpu.memory_space<vmem>>, %arg5: memref<3x64x192xbf16, #tpu.memory_space<vmem>>, %arg6: memref<3x64x64xbf16, #tpu.memory_space<vmem>>, %arg7: memref<3x64x256xbf16, #tpu.memory_space<vmem>>, %arg8: memref<3x256x64xbf16, #tpu.memory_space<vmem>>, %arg9: memref<3x8x256xf32, #tpu.memory_space<vmem>>, %arg10: memref<64x128xbf16, #tpu.memory_space<vmem>>, %arg11: memref<48x128xf32, #tpu.memory_space<vmem>>, %arg12: memref<2x24x64xf32, #tpu.memory_space<vmem>>) attributes {dimension_semantics = [#tpu.dimension_semantics<parallel>], iteration_bounds = array<i64: 1>, scalar_prefetch = 0 : i64, scratch_operands = 1 : i64, tpu.core_type = #tpu.core_type<tc>, window_params = [{transform_indices = @transform_0, window_bounds = array<i64: 2, 16, 64>}, {pipeline_mode = #tpu.pipeline_mode<synchronous>, transform_indices = @transform_1, window_bounds = array<i64: 64, 64>}, {pipeline_mode = #tpu.pipeline_mode<synchronous>, transform_indices = @transform_2, window_bounds = array<i64: 17, 64>}, {pipeline_mode = #tpu.pipeline_mode<synchronous>, transform_indices = @transform_3, window_bounds = array<i64: 8, 128>}, {pipeline_mode = #tpu.pipeline_mode<synchronous>, transform_indices = @transform_4, window_bounds = array<i64: 3, 64, 192>}, {pipeline_mode = #tpu.pipeline_mode<synchronous>, transform_indices = @transform_5, window_bounds = array<i64: 3, 64, 64>}, {pipeline_mode = #tpu.pipeline_mode<synchronous>, transform_indices = @transform_6, window_bounds = array<i64: 3, 64, 256>}, {pipeline_mode = #tpu.pipeline_mode<synchronous>, transform_indices = @transform_7, window_bounds = array<i64: 3, 256, 64>}, {pipeline_mode = #tpu.pipeline_mode<synchronous>, transform_indices = @transform_8, window_bounds = array<i64: 3, 8, 256>}, {pipeline_mode = #tpu.pipeline_mode<synchronous>, transform_indices = @transform_9, window_bounds = array<i64: 64, 128>}, {transform_indices = @transform_10, window_bounds = array<i64: 48, 128>}]} {
    %c0 = arith.constant 0 : index
    %c0_0 = arith.constant 0 : index
    %0 = vector.load %arg4[%c0, %c0_0] : memref<8x128xf32, #tpu.memory_space<vmem>>, vector<1x64xf32>
    %c1 = arith.constant 1 : index
    %c0_1 = arith.constant 0 : index
    %1 = vector.load %arg4[%c1, %c0_1] : memref<8x128xf32, #tpu.memory_space<vmem>>, vector<1x64xf32>
    %c2 = arith.constant 2 : index
    %c0_2 = arith.constant 0 : index
    %2 = vector.load %arg4[%c2, %c0_2] : memref<8x128xf32, #tpu.memory_space<vmem>>, vector<1x64xf32>
    %c3 = arith.constant 3 : index
    %c0_3 = arith.constant 0 : index
    %3 = vector.load %arg4[%c3, %c0_3] : memref<8x128xf32, #tpu.memory_space<vmem>>, vector<1x64xf32>
    %c4 = arith.constant 4 : index
    %c0_4 = arith.constant 0 : index
    %4 = vector.load %arg4[%c4, %c0_4] : memref<8x128xf32, #tpu.memory_space<vmem>>, vector<1x128xf32>
    %c0_5 = arith.constant 0 : index
    %c0_6 = arith.constant 0 : index
    %c0_7 = arith.constant 0 : index
    %5 = vector.load %arg1[%c0_5, %c0_6, %c0_7] : memref<2x16x64xf32, #tpu.memory_space<vmem>>, vector<2x16x64xf32>
    %6 = vector.shape_cast %5 : vector<2x16x64xf32> to vector<32x64xf32>
    %7 = arith.truncf %6 : vector<32x64xf32> to vector<32x64xbf16>
    %c0_8 = arith.constant 0 : index
    %c0_9 = arith.constant 0 : index
    %8 = vector.load %arg2[%c0_8, %c0_9] : memref<64x64xbf16, #tpu.memory_space<vmem>>, vector<64x64xbf16>
    %cst = arith.constant dense<0.000000e+00> : vector<32x64xf32>
    %9 = tpu.matmul %7, %8, %cst {dimension_numbers = #tpu.dot_dimension_numbers<[1], [0], [0], [1], [0, 0, 1, 1], [], []>} : vector<32x64xbf16>, vector<64x64xbf16>, vector<32x64xf32> -> vector<32x64xf32>
    %10 = vector.broadcast %0 : vector<1x64xf32> to vector<32x64xf32>
    %11 = arith.addf %9, %10 : vector<32x64xf32>
    %12 = vector.shape_cast %11 : vector<32x64xf32> to vector<2x16x64xf32>
    %c0_10 = arith.constant 0 : index
    %c0_11 = arith.constant 0 : index
    %13 = vector.load %arg3[%c0_10, %c0_11] : memref<17x64xf32, #tpu.memory_space<vmem>>, vector<1x64xf32>
    %14 = arith.addf %1, %13 : vector<1x64xf32>
    %15 = vector.shape_cast %14 : vector<1x64xf32> to vector<1x1x64xf32>
    %16 = vector.shape_cast %15 : vector<1x1x64xf32> to vector<1x1x64xf32>
    %17 = vector.broadcast %16 : vector<1x1x64xf32> to vector<2x1x64xf32>
    %c0_12 = arith.constant 0 : index
    %c0_13 = arith.constant 0 : index
    %c0_14 = arith.constant 0 : index
    %18 = vector.load %arg12[%c0_12, %c0_13, %c0_14] : memref<2x24x64xf32, #tpu.memory_space<vmem>>, vector<2x1x64xf32>
    tpu.vector_store %arg12[%c0_12, %c0_13, %c0_14], %17 {strides = array<i32>} : memref<2x24x64xf32, #tpu.memory_space<vmem>>, vector<2x1x64xf32>,
    %c1_15 = arith.constant 1 : index
    %c0_16 = arith.constant 0 : index
    %19 = vector.load %arg3[%c1_15, %c0_16] : memref<17x64xf32, #tpu.memory_space<vmem>>, vector<16x64xf32>
    %20 = vector.shape_cast %19 : vector<16x64xf32> to vector<1x16x64xf32>
    %21 = vector.broadcast %20 : vector<1x16x64xf32> to vector<2x16x64xf32>
    %22 = arith.addf %12, %21 : vector<2x16x64xf32>
    %c0_17 = arith.constant 0 : index
    %c1_18 = arith.constant 1 : index
    %c0_19 = arith.constant 0 : index
    %23 = vector.load %arg12[%c0_17, %c1_18, %c0_19] : memref<2x24x64xf32, #tpu.memory_space<vmem>>, vector<2x16x64xf32>
    tpu.vector_store %arg12[%c0_17, %c1_18, %c0_19], %22 {strides = array<i32>} : memref<2x24x64xf32, #tpu.memory_space<vmem>>, vector<2x16x64xf32>,
    %cst_20 = arith.constant 0.000000e+00 : f32
    %24 = vector.broadcast %cst_20 : f32 to vector<2x7x64xf32>
    %c0_21 = arith.constant 0 : index
    %c17 = arith.constant 17 : index
    %c0_22 = arith.constant 0 : index
    %25 = vector.load %arg12[%c0_21, %c17, %c0_22] : memref<2x24x64xf32, #tpu.memory_space<vmem>>, vector<2x7x64xf32>
    tpu.vector_store %arg12[%c0_21, %c17, %c0_22], %24 {strides = array<i32>} : memref<2x24x64xf32, #tpu.memory_space<vmem>>, vector<2x7x64xf32>,
    %c0_23 = arith.constant 0 : index
    %c0_24 = arith.constant 0 : index
    %c0_25 = arith.constant 0 : index
    %26 = vector.load %arg12[%c0_23, %c0_24, %c0_25] : memref<2x24x64xf32, #tpu.memory_space<vmem>>, vector<2x24x64xf32>
    %27 = vector.shape_cast %26 : vector<2x24x64xf32> to vector<48x64xf32>
    %28 = tpu.iota {dimensions = array<i32: 2>} : vector<1x1x24xi32>
    %c17_i32 = arith.constant 17 : i32
    %29 = vector.broadcast %c17_i32 : i32 to vector<1x1x24xi32>
    %30 = arith.cmpi slt, %28, %29 : vector<1x1x24xi32>
    %cst_26 = arith.constant 0.000000e+00 : f32
    %cst_27 = arith.constant -1.000000e+30 : f32
    %31 = vector.broadcast %cst_26 : f32 to vector<1x1x24xf32>
    %32 = vector.broadcast %cst_27 : f32 to vector<1x1x24xf32>
    %33 = arith.select %30, %31, %32 : vector<1x1x24xi1>, vector<1x1x24xf32>
    %c0_28 = arith.constant 0 : index
    %c0_29 = arith.constant 0 : index
    %c0_30 = arith.constant 0 : index
    %34 = vector.load %arg9[%c0_28, %c0_29, %c0_30] : memref<3x8x256xf32, #tpu.memory_space<vmem>>, vector<1x8x256xf32>
    %35 = vector.shape_cast %34 : vector<1x8x256xf32> to vector<8x256xf32>
    %36 = vector.extract_strided_slice %35 {offsets = [0, 0], sizes = [1, 64], strides = [1, 1]} : vector<8x256xf32> to vector<1x64xf32>
    %37 = vector.extract_strided_slice %35 {offsets = [1, 0], sizes = [1, 64], strides = [1, 1]} : vector<8x256xf32> to vector<1x64xf32>
    %38 = vector.extract_strided_slice %35 {offsets = [2, 0], sizes = [1, 192], strides = [1, 1]} : vector<8x256xf32> to vector<1x192xf32>
    %39 = vector.extract_strided_slice %35 {offsets = [3, 0], sizes = [1, 64], strides = [1, 1]} : vector<8x256xf32> to vector<1x64xf32>
    %40 = vector.extract_strided_slice %35 {offsets = [4, 0], sizes = [1, 64], strides = [1, 1]} : vector<8x256xf32> to vector<1x64xf32>
    %41 = vector.extract_strided_slice %35 {offsets = [5, 0], sizes = [1, 64], strides = [1, 1]} : vector<8x256xf32> to vector<1x64xf32>
    %42 = vector.extract_strided_slice %35 {offsets = [6, 0], sizes = [1, 256], strides = [1, 1]} : vector<8x256xf32> to vector<1x256xf32>
    %43 = vector.extract_strided_slice %35 {offsets = [7, 0], sizes = [1, 64], strides = [1, 1]} : vector<8x256xf32> to vector<1x64xf32>
    %cst_31 = arith.constant dense<0.000000e+00> : vector<48xf32>
    %44 = vector.multi_reduction <add>, %27, %cst_31 [1] : vector<48x64xf32> to vector<48xf32>
    %45 = vector.shape_cast %44 : vector<48xf32> to vector<48x1xf32>
    %cst_32 = arith.constant 6.400000e+01 : f32
    %46 = vector.broadcast %cst_32 : f32 to vector<48x1xf32>
    %47 = arith.divf %45, %46 : vector<48x1xf32>
    %48 = vector.broadcast %47 : vector<48x1xf32> to vector<48x64xf32>
    %49 = arith.subf %27, %48 : vector<48x64xf32>
    %50 = arith.mulf %49, %49 : vector<48x64xf32>
    %cst_33 = arith.constant dense<0.000000e+00> : vector<48xf32>
    %51 = vector.multi_reduction <add>, %50, %cst_33 [1] : vector<48x64xf32> to vector<48xf32>
    %52 = vector.shape_cast %51 : vector<48xf32> to vector<48x1xf32>
    %cst_34 = arith.constant 6.400000e+01 : f32
    %53 = vector.broadcast %cst_34 : f32 to vector<48x1xf32>
    %54 = arith.divf %52, %53 : vector<48x1xf32>
    %55 = vector.broadcast %47 : vector<48x1xf32> to vector<48x64xf32>
    %56 = arith.subf %27, %55 : vector<48x64xf32>
    %cst_35 = arith.constant 9.99999974E-6 : f32
    %57 = vector.broadcast %cst_35 : f32 to vector<48x1xf32>
    %58 = arith.addf %54, %57 : vector<48x1xf32>
    %59 = math.rsqrt %58 : vector<48x1xf32>
    %60 = vector.broadcast %59 : vector<48x1xf32> to vector<48x64xf32>
    %61 = arith.mulf %56, %60 : vector<48x64xf32>
    %62 = vector.broadcast %36 : vector<1x64xf32> to vector<48x64xf32>
    %63 = arith.mulf %61, %62 : vector<48x64xf32>
    %64 = vector.broadcast %37 : vector<1x64xf32> to vector<48x64xf32>
    %65 = arith.addf %63, %64 : vector<48x64xf32>
    %66 = arith.truncf %65 : vector<48x64xf32> to vector<48x64xbf16>
    %c0_36 = arith.constant 0 : index
    %c0_37 = arith.constant 0 : index
    %c0_38 = arith.constant 0 : index
    %67 = vector.load %arg5[%c0_36, %c0_37, %c0_38] : memref<3x64x192xbf16, #tpu.memory_space<vmem>>, vector<1x64x192xbf16>
    %68 = vector.shape_cast %67 : vector<1x64x192xbf16> to vector<64x192xbf16>
    %cst_39 = arith.constant dense<0.000000e+00> : vector<48x192xf32>
    %69 = tpu.matmul %66, %68, %cst_39 {dimension_numbers = #tpu.dot_dimension_numbers<[1], [0], [0], [1], [0, 0, 1, 1], [], []>} : vector<48x64xbf16>, vector<64x192xbf16>, vector<48x192xf32> -> vector<48x192xf32>
    %70 = vector.broadcast %38 : vector<1x192xf32> to vector<48x192xf32>
    %71 = arith.addf %69, %70 : vector<48x192xf32>
    %72 = vector.extract_strided_slice %71 {offsets = [0, 0], sizes = [48, 64], strides = [1, 1]} : vector<48x192xf32> to vector<48x64xf32>
    %73 = vector.shape_cast %72 : vector<48x64xf32> to vector<2x24x64xf32>
    %74 = arith.truncf %73 : vector<2x24x64xf32> to vector<2x24x64xbf16>
    %75 = vector.extract_strided_slice %71 {offsets = [0, 64], sizes = [48, 64], strides = [1, 1]} : vector<48x192xf32> to vector<48x64xf32>
    %76 = vector.shape_cast %75 : vector<48x64xf32> to vector<2x24x64xf32>
    %77 = arith.truncf %76 : vector<2x24x64xf32> to vector<2x24x64xbf16>
    %78 = vector.extract_strided_slice %71 {offsets = [0, 128], sizes = [48, 64], strides = [1, 1]} : vector<48x192xf32> to vector<48x64xf32>
    %79 = vector.shape_cast %78 : vector<48x64xf32> to vector<2x24x64xf32>
    %80 = arith.truncf %79 : vector<2x24x64xf32> to vector<2x24x64xbf16>
    %81 = vector.extract_strided_slice %74 {offsets = [0, 0, 0], sizes = [2, 24, 16], strides = [1, 1, 1]} : vector<2x24x64xbf16> to vector<2x24x16xbf16>
    %82 = vector.extract_strided_slice %77 {offsets = [0, 0, 0], sizes = [2, 24, 16], strides = [1, 1, 1]} : vector<2x24x64xbf16> to vector<2x24x16xbf16>
    %83 = vector.extract_strided_slice %80 {offsets = [0, 0, 0], sizes = [2, 24, 16], strides = [1, 1, 1]} : vector<2x24x64xbf16> to vector<2x24x16xbf16>
    "tpu.trace_start"() <{level = 10 : i32, message = "bqd,bkd->bqk"}> : () -> ()
    %cst_40 = arith.constant dense<0.000000e+00> : vector<2x24x24xf32>
    %84 = tpu.matmul %81, %82, %cst_40 {dimension_numbers = #tpu.dot_dimension_numbers<[2], [2], [1], [1], [0, 0, 0, 1, 1, 1], [0], [0]>} : vector<2x24x16xbf16>, vector<2x24x16xbf16>, vector<2x24x24xf32> -> vector<2x24x24xf32>
    "tpu.trace_stop"() : () -> ()
    %cst_41 = arith.constant 2.500000e-01 : f32
    %85 = vector.broadcast %cst_41 : f32 to vector<2x24x24xf32>
    %86 = arith.mulf %84, %85 : vector<2x24x24xf32>
    %87 = vector.broadcast %33 : vector<1x1x24xf32> to vector<2x24x24xf32>
    %88 = arith.addf %86, %87 : vector<2x24x24xf32>
    %cst_42 = arith.constant dense<0xFF800000> : vector<2x24xf32>
    %89 = vector.multi_reduction <maximumf>, %88, %cst_42 [2] : vector<2x24x24xf32> to vector<2x24xf32>
    %90 = vector.shape_cast %89 : vector<2x24xf32> to vector<2x24x1xf32>
    %91 = vector.broadcast %90 : vector<2x24x1xf32> to vector<2x24x24xf32>
    %92 = arith.subf %88, %91 : vector<2x24x24xf32>
    %93 = math.exp %92 : vector<2x24x24xf32>
    %cst_43 = arith.constant dense<0.000000e+00> : vector<2x24xf32>
    %94 = vector.multi_reduction <add>, %93, %cst_43 [2] : vector<2x24x24xf32> to vector<2x24xf32>
    %95 = vector.shape_cast %94 : vector<2x24xf32> to vector<2x24x1xf32>
    %96 = vector.broadcast %95 : vector<2x24x1xf32> to vector<2x24x24xf32>
    %97 = arith.divf %93, %96 : vector<2x24x24xf32>
    %98 = arith.truncf %97 : vector<2x24x24xf32> to vector<2x24x24xbf16>
    "tpu.trace_start"() <{level = 10 : i32, message = "bqk,bkd->bqd"}> : () -> ()
    %cst_44 = arith.constant dense<0.000000e+00> : vector<2x24x16xf32>
    %99 = tpu.matmul %98, %83, %cst_44 {dimension_numbers = #tpu.dot_dimension_numbers<[2], [1], [1], [2], [0, 0, 0, 1, 1, 2], [0], [0]>} : vector<2x24x24xbf16>, vector<2x24x16xbf16>, vector<2x24x16xf32> -> vector<2x24x16xf32>
    "tpu.trace_stop"() : () -> ()
    %100 = vector.shape_cast %99 : vector<2x24x16xf32> to vector<48x16xf32>
    %101 = vector.extract_strided_slice %74 {offsets = [0, 0, 16], sizes = [2, 24, 16], strides = [1, 1, 1]} : vector<2x24x64xbf16> to vector<2x24x16xbf16>
    %102 = vector.extract_strided_slice %77 {offsets = [0, 0, 16], sizes = [2, 24, 16], strides = [1, 1, 1]} : vector<2x24x64xbf16> to vector<2x24x16xbf16>
    %103 = vector.extract_strided_slice %80 {offsets = [0, 0, 16], sizes = [2, 24, 16], strides = [1, 1, 1]} : vector<2x24x64xbf16> to vector<2x24x16xbf16>
    "tpu.trace_start"() <{level = 10 : i32, message = "bqd,bkd->bqk"}> : () -> ()
    %cst_45 = arith.constant dense<0.000000e+00> : vector<2x24x24xf32>
    %104 = tpu.matmul %101, %102, %cst_45 {dimension_numbers = #tpu.dot_dimension_numbers<[2], [2], [1], [1], [0, 0, 0, 1, 1, 1], [0], [0]>} : vector<2x24x16xbf16>, vector<2x24x16xbf16>, vector<2x24x24xf32> -> vector<2x24x24xf32>
    "tpu.trace_stop"() : () -> ()
    %cst_46 = arith.constant 2.500000e-01 : f32
    %105 = vector.broadcast %cst_46 : f32 to vector<2x24x24xf32>
    %106 = arith.mulf %104, %105 : vector<2x24x24xf32>
    %107 = vector.broadcast %33 : vector<1x1x24xf32> to vector<2x24x24xf32>
    %108 = arith.addf %106, %107 : vector<2x24x24xf32>
    %cst_47 = arith.constant dense<0xFF800000> : vector<2x24xf32>
    %109 = vector.multi_reduction <maximumf>, %108, %cst_47 [2] : vector<2x24x24xf32> to vector<2x24xf32>
    %110 = vector.shape_cast %109 : vector<2x24xf32> to vector<2x24x1xf32>
    %111 = vector.broadcast %110 : vector<2x24x1xf32> to vector<2x24x24xf32>
    %112 = arith.subf %108, %111 : vector<2x24x24xf32>
    %113 = math.exp %112 : vector<2x24x24xf32>
    %cst_48 = arith.constant dense<0.000000e+00> : vector<2x24xf32>
    %114 = vector.multi_reduction <add>, %113, %cst_48 [2] : vector<2x24x24xf32> to vector<2x24xf32>
    %115 = vector.shape_cast %114 : vector<2x24xf32> to vector<2x24x1xf32>
    %116 = vector.broadcast %115 : vector<2x24x1xf32> to vector<2x24x24xf32>
    %117 = arith.divf %113, %116 : vector<2x24x24xf32>
    %118 = arith.truncf %117 : vector<2x24x24xf32> to vector<2x24x24xbf16>
    "tpu.trace_start"() <{level = 10 : i32, message = "bqk,bkd->bqd"}> : () -> ()
    %cst_49 = arith.constant dense<0.000000e+00> : vector<2x24x16xf32>
    %119 = tpu.matmul %118, %103, %cst_49 {dimension_numbers = #tpu.dot_dimension_numbers<[2], [1], [1], [2], [0, 0, 0, 1, 1, 2], [0], [0]>} : vector<2x24x24xbf16>, vector<2x24x16xbf16>, vector<2x24x16xf32> -> vector<2x24x16xf32>
    "tpu.trace_stop"() : () -> ()
    %120 = vector.shape_cast %119 : vector<2x24x16xf32> to vector<48x16xf32>
    %121 = vector.extract_strided_slice %74 {offsets = [0, 0, 32], sizes = [2, 24, 16], strides = [1, 1, 1]} : vector<2x24x64xbf16> to vector<2x24x16xbf16>
    %122 = vector.extract_strided_slice %77 {offsets = [0, 0, 32], sizes = [2, 24, 16], strides = [1, 1, 1]} : vector<2x24x64xbf16> to vector<2x24x16xbf16>
    %123 = vector.extract_strided_slice %80 {offsets = [0, 0, 32], sizes = [2, 24, 16], strides = [1, 1, 1]} : vector<2x24x64xbf16> to vector<2x24x16xbf16>
    "tpu.trace_start"() <{level = 10 : i32, message = "bqd,bkd->bqk"}> : () -> ()
    %cst_50 = arith.constant dense<0.000000e+00> : vector<2x24x24xf32>
    %124 = tpu.matmul %121, %122, %cst_50 {dimension_numbers = #tpu.dot_dimension_numbers<[2], [2], [1], [1], [0, 0, 0, 1, 1, 1], [0], [0]>} : vector<2x24x16xbf16>, vector<2x24x16xbf16>, vector<2x24x24xf32> -> vector<2x24x24xf32>
    "tpu.trace_stop"() : () -> ()
    %cst_51 = arith.constant 2.500000e-01 : f32
    %125 = vector.broadcast %cst_51 : f32 to vector<2x24x24xf32>
    %126 = arith.mulf %124, %125 : vector<2x24x24xf32>
    %127 = vector.broadcast %33 : vector<1x1x24xf32> to vector<2x24x24xf32>
    %128 = arith.addf %126, %127 : vector<2x24x24xf32>
    %cst_52 = arith.constant dense<0xFF800000> : vector<2x24xf32>
    %129 = vector.multi_reduction <maximumf>, %128, %cst_52 [2] : vector<2x24x24xf32> to vector<2x24xf32>
    %130 = vector.shape_cast %129 : vector<2x24xf32> to vector<2x24x1xf32>
    %131 = vector.broadcast %130 : vector<2x24x1xf32> to vector<2x24x24xf32>
    %132 = arith.subf %128, %131 : vector<2x24x24xf32>
    %133 = math.exp %132 : vector<2x24x24xf32>
    %cst_53 = arith.constant dense<0.000000e+00> : vector<2x24xf32>
    %134 = vector.multi_reduction <add>, %133, %cst_53 [2] : vector<2x24x24xf32> to vector<2x24xf32>
    %135 = vector.shape_cast %134 : vector<2x24xf32> to vector<2x24x1xf32>
    %136 = vector.broadcast %135 : vector<2x24x1xf32> to vector<2x24x24xf32>
    %137 = arith.divf %133, %136 : vector<2x24x24xf32>
    %138 = arith.truncf %137 : vector<2x24x24xf32> to vector<2x24x24xbf16>
    "tpu.trace_start"() <{level = 10 : i32, message = "bqk,bkd->bqd"}> : () -> ()
    %cst_54 = arith.constant dense<0.000000e+00> : vector<2x24x16xf32>
    %139 = tpu.matmul %138, %123, %cst_54 {dimension_numbers = #tpu.dot_dimension_numbers<[2], [1], [1], [2], [0, 0, 0, 1, 1, 2], [0], [0]>} : vector<2x24x24xbf16>, vector<2x24x16xbf16>, vector<2x24x16xf32> -> vector<2x24x16xf32>
    "tpu.trace_stop"() : () -> ()
    %140 = vector.shape_cast %139 : vector<2x24x16xf32> to vector<48x16xf32>
    %141 = vector.extract_strided_slice %74 {offsets = [0, 0, 48], sizes = [2, 24, 16], strides = [1, 1, 1]} : vector<2x24x64xbf16> to vector<2x24x16xbf16>
    %142 = vector.extract_strided_slice %77 {offsets = [0, 0, 48], sizes = [2, 24, 16], strides = [1, 1, 1]} : vector<2x24x64xbf16> to vector<2x24x16xbf16>
    %143 = vector.extract_strided_slice %80 {offsets = [0, 0, 48], sizes = [2, 24, 16], strides = [1, 1, 1]} : vector<2x24x64xbf16> to vector<2x24x16xbf16>
    "tpu.trace_start"() <{level = 10 : i32, message = "bqd,bkd->bqk"}> : () -> ()
    %cst_55 = arith.constant dense<0.000000e+00> : vector<2x24x24xf32>
    %144 = tpu.matmul %141, %142, %cst_55 {dimension_numbers = #tpu.dot_dimension_numbers<[2], [2], [1], [1], [0, 0, 0, 1, 1, 1], [0], [0]>} : vector<2x24x16xbf16>, vector<2x24x16xbf16>, vector<2x24x24xf32> -> vector<2x24x24xf32>
    "tpu.trace_stop"() : () -> ()
    %cst_56 = arith.constant 2.500000e-01 : f32
    %145 = vector.broadcast %cst_56 : f32 to vector<2x24x24xf32>
    %146 = arith.mulf %144, %145 : vector<2x24x24xf32>
    %147 = vector.broadcast %33 : vector<1x1x24xf32> to vector<2x24x24xf32>
    %148 = arith.addf %146, %147 : vector<2x24x24xf32>
    %cst_57 = arith.constant dense<0xFF800000> : vector<2x24xf32>
    %149 = vector.multi_reduction <maximumf>, %148, %cst_57 [2] : vector<2x24x24xf32> to vector<2x24xf32>
    %150 = vector.shape_cast %149 : vector<2x24xf32> to vector<2x24x1xf32>
    %151 = vector.broadcast %150 : vector<2x24x1xf32> to vector<2x24x24xf32>
    %152 = arith.subf %148, %151 : vector<2x24x24xf32>
    %153 = math.exp %152 : vector<2x24x24xf32>
    %cst_58 = arith.constant dense<0.000000e+00> : vector<2x24xf32>
    %154 = vector.multi_reduction <add>, %153, %cst_58 [2] : vector<2x24x24xf32> to vector<2x24xf32>
    %155 = vector.shape_cast %154 : vector<2x24xf32> to vector<2x24x1xf32>
    %156 = vector.broadcast %155 : vector<2x24x1xf32> to vector<2x24x24xf32>
    %157 = arith.divf %153, %156 : vector<2x24x24xf32>
    %158 = arith.truncf %157 : vector<2x24x24xf32> to vector<2x24x24xbf16>
    "tpu.trace_start"() <{level = 10 : i32, message = "bqk,bkd->bqd"}> : () -> ()
    %cst_59 = arith.constant dense<0.000000e+00> : vector<2x24x16xf32>
    %159 = tpu.matmul %158, %143, %cst_59 {dimension_numbers = #tpu.dot_dimension_numbers<[2], [1], [1], [2], [0, 0, 0, 1, 1, 2], [0], [0]>} : vector<2x24x24xbf16>, vector<2x24x16xbf16>, vector<2x24x16xf32> -> vector<2x24x16xf32>
    "tpu.trace_stop"() : () -> ()
    %160 = vector.shape_cast %159 : vector<2x24x16xf32> to vector<48x16xf32>
    %161 = tpu.concatenate %100, %120, %140, %160 in 1 : vector<48x16xf32>, vector<48x16xf32>, vector<48x16xf32>, vector<48x16xf32> -> vector<48x64xf32>
    %162 = arith.truncf %161 : vector<48x64xf32> to vector<48x64xbf16>
    %c0_60 = arith.constant 0 : index
    %c0_61 = arith.constant 0 : index
    %c0_62 = arith.constant 0 : index
    %163 = vector.load %arg6[%c0_60, %c0_61, %c0_62] : memref<3x64x64xbf16, #tpu.memory_space<vmem>>, vector<1x64x64xbf16>
    %164 = vector.shape_cast %163 : vector<1x64x64xbf16> to vector<64x64xbf16>
    %cst_63 = arith.constant dense<0.000000e+00> : vector<48x64xf32>
    %165 = tpu.matmul %162, %164, %cst_63 {dimension_numbers = #tpu.dot_dimension_numbers<[1], [0], [0], [1], [0, 0, 1, 1], [], []>} : vector<48x64xbf16>, vector<64x64xbf16>, vector<48x64xf32> -> vector<48x64xf32>
    %166 = vector.broadcast %39 : vector<1x64xf32> to vector<48x64xf32>
    %167 = arith.addf %165, %166 : vector<48x64xf32>
    %168 = arith.addf %27, %167 : vector<48x64xf32>
    %cst_64 = arith.constant dense<0.000000e+00> : vector<48xf32>
    %169 = vector.multi_reduction <add>, %168, %cst_64 [1] : vector<48x64xf32> to vector<48xf32>
    %170 = vector.shape_cast %169 : vector<48xf32> to vector<48x1xf32>
    %cst_65 = arith.constant 6.400000e+01 : f32
    %171 = vector.broadcast %cst_65 : f32 to vector<48x1xf32>
    %172 = arith.divf %170, %171 : vector<48x1xf32>
    %173 = vector.broadcast %172 : vector<48x1xf32> to vector<48x64xf32>
    %174 = arith.subf %168, %173 : vector<48x64xf32>
    %175 = arith.mulf %174, %174 : vector<48x64xf32>
    %cst_66 = arith.constant dense<0.000000e+00> : vector<48xf32>
    %176 = vector.multi_reduction <add>, %175, %cst_66 [1] : vector<48x64xf32> to vector<48xf32>
    %177 = vector.shape_cast %176 : vector<48xf32> to vector<48x1xf32>
    %cst_67 = arith.constant 6.400000e+01 : f32
    %178 = vector.broadcast %cst_67 : f32 to vector<48x1xf32>
    %179 = arith.divf %177, %178 : vector<48x1xf32>
    %180 = vector.broadcast %172 : vector<48x1xf32> to vector<48x64xf32>
    %181 = arith.subf %168, %180 : vector<48x64xf32>
    %cst_68 = arith.constant 9.99999974E-6 : f32
    %182 = vector.broadcast %cst_68 : f32 to vector<48x1xf32>
    %183 = arith.addf %179, %182 : vector<48x1xf32>
    %184 = math.rsqrt %183 : vector<48x1xf32>
    %185 = vector.broadcast %184 : vector<48x1xf32> to vector<48x64xf32>
    %186 = arith.mulf %181, %185 : vector<48x64xf32>
    %187 = vector.broadcast %40 : vector<1x64xf32> to vector<48x64xf32>
    %188 = arith.mulf %186, %187 : vector<48x64xf32>
    %189 = vector.broadcast %41 : vector<1x64xf32> to vector<48x64xf32>
    %190 = arith.addf %188, %189 : vector<48x64xf32>
    %191 = arith.truncf %190 : vector<48x64xf32> to vector<48x64xbf16>
    %c0_69 = arith.constant 0 : index
    %c0_70 = arith.constant 0 : index
    %c0_71 = arith.constant 0 : index
    %192 = vector.load %arg7[%c0_69, %c0_70, %c0_71] : memref<3x64x256xbf16, #tpu.memory_space<vmem>>, vector<1x64x256xbf16>
    %193 = vector.shape_cast %192 : vector<1x64x256xbf16> to vector<64x256xbf16>
    %cst_72 = arith.constant dense<0.000000e+00> : vector<48x256xf32>
    %194 = tpu.matmul %191, %193, %cst_72 {dimension_numbers = #tpu.dot_dimension_numbers<[1], [0], [0], [1], [0, 0, 1, 1], [], []>} : vector<48x64xbf16>, vector<64x256xbf16>, vector<48x256xf32> -> vector<48x256xf32>
    %195 = vector.broadcast %42 : vector<1x256xf32> to vector<48x256xf32>
    %196 = arith.addf %194, %195 : vector<48x256xf32>
    %cst_73 = arith.constant 5.000000e-01 : f32
    %197 = vector.broadcast %cst_73 : f32 to vector<48x256xf32>
    %198 = arith.mulf %197, %196 : vector<48x256xf32>
    %cst_74 = arith.constant 0.707106769 : f32
    %199 = vector.broadcast %cst_74 : f32 to vector<48x256xf32>
    %200 = arith.mulf %196, %199 : vector<48x256xf32>
    %201 = math.erf %200 : vector<48x256xf32>
    %cst_75 = arith.constant 1.000000e+00 : f32
    %202 = vector.broadcast %cst_75 : f32 to vector<48x256xf32>
    %203 = arith.addf %202, %201 : vector<48x256xf32>
    %204 = arith.mulf %198, %203 : vector<48x256xf32>
    %205 = arith.truncf %204 : vector<48x256xf32> to vector<48x256xbf16>
    %c0_76 = arith.constant 0 : index
    %c0_77 = arith.constant 0 : index
    %c0_78 = arith.constant 0 : index
    %206 = vector.load %arg8[%c0_76, %c0_77, %c0_78] : memref<3x256x64xbf16, #tpu.memory_space<vmem>>, vector<1x256x64xbf16>
    %207 = vector.shape_cast %206 : vector<1x256x64xbf16> to vector<256x64xbf16>
    %cst_79 = arith.constant dense<0.000000e+00> : vector<48x64xf32>
    %208 = tpu.matmul %205, %207, %cst_79 {dimension_numbers = #tpu.dot_dimension_numbers<[1], [0], [0], [1], [0, 0, 1, 1], [], []>} : vector<48x256xbf16>, vector<256x64xbf16>, vector<48x64xf32> -> vector<48x64xf32>
    %209 = vector.broadcast %43 : vector<1x64xf32> to vector<48x64xf32>
    %210 = arith.addf %208, %209 : vector<48x64xf32>
    %211 = arith.addf %168, %210 : vector<48x64xf32>
    %c1_80 = arith.constant 1 : index
    %c0_81 = arith.constant 0 : index
    %c0_82 = arith.constant 0 : index
    %212 = vector.load %arg9[%c1_80, %c0_81, %c0_82] : memref<3x8x256xf32, #tpu.memory_space<vmem>>, vector<1x8x256xf32>
    %213 = vector.shape_cast %212 : vector<1x8x256xf32> to vector<8x256xf32>
    %214 = vector.extract_strided_slice %213 {offsets = [0, 0], sizes = [1, 64], strides = [1, 1]} : vector<8x256xf32> to vector<1x64xf32>
    %215 = vector.extract_strided_slice %213 {offsets = [1, 0], sizes = [1, 64], strides = [1, 1]} : vector<8x256xf32> to vector<1x64xf32>
    %216 = vector.extract_strided_slice %213 {offsets = [2, 0], sizes = [1, 192], strides = [1, 1]} : vector<8x256xf32> to vector<1x192xf32>
    %217 = vector.extract_strided_slice %213 {offsets = [3, 0], sizes = [1, 64], strides = [1, 1]} : vector<8x256xf32> to vector<1x64xf32>
    %218 = vector.extract_strided_slice %213 {offsets = [4, 0], sizes = [1, 64], strides = [1, 1]} : vector<8x256xf32> to vector<1x64xf32>
    %219 = vector.extract_strided_slice %213 {offsets = [5, 0], sizes = [1, 64], strides = [1, 1]} : vector<8x256xf32> to vector<1x64xf32>
    %220 = vector.extract_strided_slice %213 {offsets = [6, 0], sizes = [1, 256], strides = [1, 1]} : vector<8x256xf32> to vector<1x256xf32>
    %221 = vector.extract_strided_slice %213 {offsets = [7, 0], sizes = [1, 64], strides = [1, 1]} : vector<8x256xf32> to vector<1x64xf32>
    %cst_83 = arith.constant dense<0.000000e+00> : vector<48xf32>
    %222 = vector.multi_reduction <add>, %211, %cst_83 [1] : vector<48x64xf32> to vector<48xf32>
    %223 = vector.shape_cast %222 : vector<48xf32> to vector<48x1xf32>
    %cst_84 = arith.constant 6.400000e+01 : f32
    %224 = vector.broadcast %cst_84 : f32 to vector<48x1xf32>
    %225 = arith.divf %223, %224 : vector<48x1xf32>
    %226 = vector.broadcast %225 : vector<48x1xf32> to vector<48x64xf32>
    %227 = arith.subf %211, %226 : vector<48x64xf32>
    %228 = arith.mulf %227, %227 : vector<48x64xf32>
    %cst_85 = arith.constant dense<0.000000e+00> : vector<48xf32>
    %229 = vector.multi_reduction <add>, %228, %cst_85 [1] : vector<48x64xf32> to vector<48xf32>
    %230 = vector.shape_cast %229 : vector<48xf32> to vector<48x1xf32>
    %cst_86 = arith.constant 6.400000e+01 : f32
    %231 = vector.broadcast %cst_86 : f32 to vector<48x1xf32>
    %232 = arith.divf %230, %231 : vector<48x1xf32>
    %233 = vector.broadcast %225 : vector<48x1xf32> to vector<48x64xf32>
    %234 = arith.subf %211, %233 : vector<48x64xf32>
    %cst_87 = arith.constant 9.99999974E-6 : f32
    %235 = vector.broadcast %cst_87 : f32 to vector<48x1xf32>
    %236 = arith.addf %232, %235 : vector<48x1xf32>
    %237 = math.rsqrt %236 : vector<48x1xf32>
    %238 = vector.broadcast %237 : vector<48x1xf32> to vector<48x64xf32>
    %239 = arith.mulf %234, %238 : vector<48x64xf32>
    %240 = vector.broadcast %214 : vector<1x64xf32> to vector<48x64xf32>
    %241 = arith.mulf %239, %240 : vector<48x64xf32>
    %242 = vector.broadcast %215 : vector<1x64xf32> to vector<48x64xf32>
    %243 = arith.addf %241, %242 : vector<48x64xf32>
    %244 = arith.truncf %243 : vector<48x64xf32> to vector<48x64xbf16>
    %c1_88 = arith.constant 1 : index
    %c0_89 = arith.constant 0 : index
    %c0_90 = arith.constant 0 : index
    %245 = vector.load %arg5[%c1_88, %c0_89, %c0_90] : memref<3x64x192xbf16, #tpu.memory_space<vmem>>, vector<1x64x192xbf16>
    %246 = vector.shape_cast %245 : vector<1x64x192xbf16> to vector<64x192xbf16>
    %cst_91 = arith.constant dense<0.000000e+00> : vector<48x192xf32>
    %247 = tpu.matmul %244, %246, %cst_91 {dimension_numbers = #tpu.dot_dimension_numbers<[1], [0], [0], [1], [0, 0, 1, 1], [], []>} : vector<48x64xbf16>, vector<64x192xbf16>, vector<48x192xf32> -> vector<48x192xf32>
    %248 = vector.broadcast %216 : vector<1x192xf32> to vector<48x192xf32>
    %249 = arith.addf %247, %248 : vector<48x192xf32>
    %250 = vector.extract_strided_slice %249 {offsets = [0, 0], sizes = [48, 64], strides = [1, 1]} : vector<48x192xf32> to vector<48x64xf32>
    %251 = vector.shape_cast %250 : vector<48x64xf32> to vector<2x24x64xf32>
    %252 = arith.truncf %251 : vector<2x24x64xf32> to vector<2x24x64xbf16>
    %253 = vector.extract_strided_slice %249 {offsets = [0, 64], sizes = [48, 64], strides = [1, 1]} : vector<48x192xf32> to vector<48x64xf32>
    %254 = vector.shape_cast %253 : vector<48x64xf32> to vector<2x24x64xf32>
    %255 = arith.truncf %254 : vector<2x24x64xf32> to vector<2x24x64xbf16>
    %256 = vector.extract_strided_slice %249 {offsets = [0, 128], sizes = [48, 64], strides = [1, 1]} : vector<48x192xf32> to vector<48x64xf32>
    %257 = vector.shape_cast %256 : vector<48x64xf32> to vector<2x24x64xf32>
    %258 = arith.truncf %257 : vector<2x24x64xf32> to vector<2x24x64xbf16>
    %259 = vector.extract_strided_slice %252 {offsets = [0, 0, 0], sizes = [2, 24, 16], strides = [1, 1, 1]} : vector<2x24x64xbf16> to vector<2x24x16xbf16>
    %260 = vector.extract_strided_slice %255 {offsets = [0, 0, 0], sizes = [2, 24, 16], strides = [1, 1, 1]} : vector<2x24x64xbf16> to vector<2x24x16xbf16>
    %261 = vector.extract_strided_slice %258 {offsets = [0, 0, 0], sizes = [2, 24, 16], strides = [1, 1, 1]} : vector<2x24x64xbf16> to vector<2x24x16xbf16>
    "tpu.trace_start"() <{level = 10 : i32, message = "bqd,bkd->bqk"}> : () -> ()
    %cst_92 = arith.constant dense<0.000000e+00> : vector<2x24x24xf32>
    %262 = tpu.matmul %259, %260, %cst_92 {dimension_numbers = #tpu.dot_dimension_numbers<[2], [2], [1], [1], [0, 0, 0, 1, 1, 1], [0], [0]>} : vector<2x24x16xbf16>, vector<2x24x16xbf16>, vector<2x24x24xf32> -> vector<2x24x24xf32>
    "tpu.trace_stop"() : () -> ()
    %cst_93 = arith.constant 2.500000e-01 : f32
    %263 = vector.broadcast %cst_93 : f32 to vector<2x24x24xf32>
    %264 = arith.mulf %262, %263 : vector<2x24x24xf32>
    %265 = vector.broadcast %33 : vector<1x1x24xf32> to vector<2x24x24xf32>
    %266 = arith.addf %264, %265 : vector<2x24x24xf32>
    %cst_94 = arith.constant dense<0xFF800000> : vector<2x24xf32>
    %267 = vector.multi_reduction <maximumf>, %266, %cst_94 [2] : vector<2x24x24xf32> to vector<2x24xf32>
    %268 = vector.shape_cast %267 : vector<2x24xf32> to vector<2x24x1xf32>
    %269 = vector.broadcast %268 : vector<2x24x1xf32> to vector<2x24x24xf32>
    %270 = arith.subf %266, %269 : vector<2x24x24xf32>
    %271 = math.exp %270 : vector<2x24x24xf32>
    %cst_95 = arith.constant dense<0.000000e+00> : vector<2x24xf32>
    %272 = vector.multi_reduction <add>, %271, %cst_95 [2] : vector<2x24x24xf32> to vector<2x24xf32>
    %273 = vector.shape_cast %272 : vector<2x24xf32> to vector<2x24x1xf32>
    %274 = vector.broadcast %273 : vector<2x24x1xf32> to vector<2x24x24xf32>
    %275 = arith.divf %271, %274 : vector<2x24x24xf32>
    %276 = arith.truncf %275 : vector<2x24x24xf32> to vector<2x24x24xbf16>
    "tpu.trace_start"() <{level = 10 : i32, message = "bqk,bkd->bqd"}> : () -> ()
    %cst_96 = arith.constant dense<0.000000e+00> : vector<2x24x16xf32>
    %277 = tpu.matmul %276, %261, %cst_96 {dimension_numbers = #tpu.dot_dimension_numbers<[2], [1], [1], [2], [0, 0, 0, 1, 1, 2], [0], [0]>} : vector<2x24x24xbf16>, vector<2x24x16xbf16>, vector<2x24x16xf32> -> vector<2x24x16xf32>
    "tpu.trace_stop"() : () -> ()
    %278 = vector.shape_cast %277 : vector<2x24x16xf32> to vector<48x16xf32>
    %279 = vector.extract_strided_slice %252 {offsets = [0, 0, 16], sizes = [2, 24, 16], strides = [1, 1, 1]} : vector<2x24x64xbf16> to vector<2x24x16xbf16>
    %280 = vector.extract_strided_slice %255 {offsets = [0, 0, 16], sizes = [2, 24, 16], strides = [1, 1, 1]} : vector<2x24x64xbf16> to vector<2x24x16xbf16>
    %281 = vector.extract_strided_slice %258 {offsets = [0, 0, 16], sizes = [2, 24, 16], strides = [1, 1, 1]} : vector<2x24x64xbf16> to vector<2x24x16xbf16>
    "tpu.trace_start"() <{level = 10 : i32, message = "bqd,bkd->bqk"}> : () -> ()
    %cst_97 = arith.constant dense<0.000000e+00> : vector<2x24x24xf32>
    %282 = tpu.matmul %279, %280, %cst_97 {dimension_numbers = #tpu.dot_dimension_numbers<[2], [2], [1], [1], [0, 0, 0, 1, 1, 1], [0], [0]>} : vector<2x24x16xbf16>, vector<2x24x16xbf16>, vector<2x24x24xf32> -> vector<2x24x24xf32>
    "tpu.trace_stop"() : () -> ()
    %cst_98 = arith.constant 2.500000e-01 : f32
    %283 = vector.broadcast %cst_98 : f32 to vector<2x24x24xf32>
    %284 = arith.mulf %282, %283 : vector<2x24x24xf32>
    %285 = vector.broadcast %33 : vector<1x1x24xf32> to vector<2x24x24xf32>
    %286 = arith.addf %284, %285 : vector<2x24x24xf32>
    %cst_99 = arith.constant dense<0xFF800000> : vector<2x24xf32>
    %287 = vector.multi_reduction <maximumf>, %286, %cst_99 [2] : vector<2x24x24xf32> to vector<2x24xf32>
    %288 = vector.shape_cast %287 : vector<2x24xf32> to vector<2x24x1xf32>
    %289 = vector.broadcast %288 : vector<2x24x1xf32> to vector<2x24x24xf32>
    %290 = arith.subf %286, %289 : vector<2x24x24xf32>
    %291 = math.exp %290 : vector<2x24x24xf32>
    %cst_100 = arith.constant dense<0.000000e+00> : vector<2x24xf32>
    %292 = vector.multi_reduction <add>, %291, %cst_100 [2] : vector<2x24x24xf32> to vector<2x24xf32>
    %293 = vector.shape_cast %292 : vector<2x24xf32> to vector<2x24x1xf32>
    %294 = vector.broadcast %293 : vector<2x24x1xf32> to vector<2x24x24xf32>
    %295 = arith.divf %291, %294 : vector<2x24x24xf32>
    %296 = arith.truncf %295 : vector<2x24x24xf32> to vector<2x24x24xbf16>
    "tpu.trace_start"() <{level = 10 : i32, message = "bqk,bkd->bqd"}> : () -> ()
    %cst_101 = arith.constant dense<0.000000e+00> : vector<2x24x16xf32>
    %297 = tpu.matmul %296, %281, %cst_101 {dimension_numbers = #tpu.dot_dimension_numbers<[2], [1], [1], [2], [0, 0, 0, 1, 1, 2], [0], [0]>} : vector<2x24x24xbf16>, vector<2x24x16xbf16>, vector<2x24x16xf32> -> vector<2x24x16xf32>
    "tpu.trace_stop"() : () -> ()
    %298 = vector.shape_cast %297 : vector<2x24x16xf32> to vector<48x16xf32>
    %299 = vector.extract_strided_slice %252 {offsets = [0, 0, 32], sizes = [2, 24, 16], strides = [1, 1, 1]} : vector<2x24x64xbf16> to vector<2x24x16xbf16>
    %300 = vector.extract_strided_slice %255 {offsets = [0, 0, 32], sizes = [2, 24, 16], strides = [1, 1, 1]} : vector<2x24x64xbf16> to vector<2x24x16xbf16>
    %301 = vector.extract_strided_slice %258 {offsets = [0, 0, 32], sizes = [2, 24, 16], strides = [1, 1, 1]} : vector<2x24x64xbf16> to vector<2x24x16xbf16>
    "tpu.trace_start"() <{level = 10 : i32, message = "bqd,bkd->bqk"}> : () -> ()
    %cst_102 = arith.constant dense<0.000000e+00> : vector<2x24x24xf32>
    %302 = tpu.matmul %299, %300, %cst_102 {dimension_numbers = #tpu.dot_dimension_numbers<[2], [2], [1], [1], [0, 0, 0, 1, 1, 1], [0], [0]>} : vector<2x24x16xbf16>, vector<2x24x16xbf16>, vector<2x24x24xf32> -> vector<2x24x24xf32>
    "tpu.trace_stop"() : () -> ()
    %cst_103 = arith.constant 2.500000e-01 : f32
    %303 = vector.broadcast %cst_103 : f32 to vector<2x24x24xf32>
    %304 = arith.mulf %302, %303 : vector<2x24x24xf32>
    %305 = vector.broadcast %33 : vector<1x1x24xf32> to vector<2x24x24xf32>
    %306 = arith.addf %304, %305 : vector<2x24x24xf32>
    %cst_104 = arith.constant dense<0xFF800000> : vector<2x24xf32>
    %307 = vector.multi_reduction <maximumf>, %306, %cst_104 [2] : vector<2x24x24xf32> to vector<2x24xf32>
    %308 = vector.shape_cast %307 : vector<2x24xf32> to vector<2x24x1xf32>
    %309 = vector.broadcast %308 : vector<2x24x1xf32> to vector<2x24x24xf32>
    %310 = arith.subf %306, %309 : vector<2x24x24xf32>
    %311 = math.exp %310 : vector<2x24x24xf32>
    %cst_105 = arith.constant dense<0.000000e+00> : vector<2x24xf32>
    %312 = vector.multi_reduction <add>, %311, %cst_105 [2] : vector<2x24x24xf32> to vector<2x24xf32>
    %313 = vector.shape_cast %312 : vector<2x24xf32> to vector<2x24x1xf32>
    %314 = vector.broadcast %313 : vector<2x24x1xf32> to vector<2x24x24xf32>
    %315 = arith.divf %311, %314 : vector<2x24x24xf32>
    %316 = arith.truncf %315 : vector<2x24x24xf32> to vector<2x24x24xbf16>
    "tpu.trace_start"() <{level = 10 : i32, message = "bqk,bkd->bqd"}> : () -> ()
    %cst_106 = arith.constant dense<0.000000e+00> : vector<2x24x16xf32>
    %317 = tpu.matmul %316, %301, %cst_106 {dimension_numbers = #tpu.dot_dimension_numbers<[2], [1], [1], [2], [0, 0, 0, 1, 1, 2], [0], [0]>} : vector<2x24x24xbf16>, vector<2x24x16xbf16>, vector<2x24x16xf32> -> vector<2x24x16xf32>
    "tpu.trace_stop"() : () -> ()
    %318 = vector.shape_cast %317 : vector<2x24x16xf32> to vector<48x16xf32>
    %319 = vector.extract_strided_slice %252 {offsets = [0, 0, 48], sizes = [2, 24, 16], strides = [1, 1, 1]} : vector<2x24x64xbf16> to vector<2x24x16xbf16>
    %320 = vector.extract_strided_slice %255 {offsets = [0, 0, 48], sizes = [2, 24, 16], strides = [1, 1, 1]} : vector<2x24x64xbf16> to vector<2x24x16xbf16>
    %321 = vector.extract_strided_slice %258 {offsets = [0, 0, 48], sizes = [2, 24, 16], strides = [1, 1, 1]} : vector<2x24x64xbf16> to vector<2x24x16xbf16>
    "tpu.trace_start"() <{level = 10 : i32, message = "bqd,bkd->bqk"}> : () -> ()
    %cst_107 = arith.constant dense<0.000000e+00> : vector<2x24x24xf32>
    %322 = tpu.matmul %319, %320, %cst_107 {dimension_numbers = #tpu.dot_dimension_numbers<[2], [2], [1], [1], [0, 0, 0, 1, 1, 1], [0], [0]>} : vector<2x24x16xbf16>, vector<2x24x16xbf16>, vector<2x24x24xf32> -> vector<2x24x24xf32>
    "tpu.trace_stop"() : () -> ()
    %cst_108 = arith.constant 2.500000e-01 : f32
    %323 = vector.broadcast %cst_108 : f32 to vector<2x24x24xf32>
    %324 = arith.mulf %322, %323 : vector<2x24x24xf32>
    %325 = vector.broadcast %33 : vector<1x1x24xf32> to vector<2x24x24xf32>
    %326 = arith.addf %324, %325 : vector<2x24x24xf32>
    %cst_109 = arith.constant dense<0xFF800000> : vector<2x24xf32>
    %327 = vector.multi_reduction <maximumf>, %326, %cst_109 [2] : vector<2x24x24xf32> to vector<2x24xf32>
    %328 = vector.shape_cast %327 : vector<2x24xf32> to vector<2x24x1xf32>
    %329 = vector.broadcast %328 : vector<2x24x1xf32> to vector<2x24x24xf32>
    %330 = arith.subf %326, %329 : vector<2x24x24xf32>
    %331 = math.exp %330 : vector<2x24x24xf32>
    %cst_110 = arith.constant dense<0.000000e+00> : vector<2x24xf32>
    %332 = vector.multi_reduction <add>, %331, %cst_110 [2] : vector<2x24x24xf32> to vector<2x24xf32>
    %333 = vector.shape_cast %332 : vector<2x24xf32> to vector<2x24x1xf32>
    %334 = vector.broadcast %333 : vector<2x24x1xf32> to vector<2x24x24xf32>
    %335 = arith.divf %331, %334 : vector<2x24x24xf32>
    %336 = arith.truncf %335 : vector<2x24x24xf32> to vector<2x24x24xbf16>
    "tpu.trace_start"() <{level = 10 : i32, message = "bqk,bkd->bqd"}> : () -> ()
    %cst_111 = arith.constant dense<0.000000e+00> : vector<2x24x16xf32>
    %337 = tpu.matmul %336, %321, %cst_111 {dimension_numbers = #tpu.dot_dimension_numbers<[2], [1], [1], [2], [0, 0, 0, 1, 1, 2], [0], [0]>} : vector<2x24x24xbf16>, vector<2x24x16xbf16>, vector<2x24x16xf32> -> vector<2x24x16xf32>
    "tpu.trace_stop"() : () -> ()
    %338 = vector.shape_cast %337 : vector<2x24x16xf32> to vector<48x16xf32>
    %339 = tpu.concatenate %278, %298, %318, %338 in 1 : vector<48x16xf32>, vector<48x16xf32>, vector<48x16xf32>, vector<48x16xf32> -> vector<48x64xf32>
    %340 = arith.truncf %339 : vector<48x64xf32> to vector<48x64xbf16>
    %c1_112 = arith.constant 1 : index
    %c0_113 = arith.constant 0 : index
    %c0_114 = arith.constant 0 : index
    %341 = vector.load %arg6[%c1_112, %c0_113, %c0_114] : memref<3x64x64xbf16, #tpu.memory_space<vmem>>, vector<1x64x64xbf16>
    %342 = vector.shape_cast %341 : vector<1x64x64xbf16> to vector<64x64xbf16>
    %cst_115 = arith.constant dense<0.000000e+00> : vector<48x64xf32>
    %343 = tpu.matmul %340, %342, %cst_115 {dimension_numbers = #tpu.dot_dimension_numbers<[1], [0], [0], [1], [0, 0, 1, 1], [], []>} : vector<48x64xbf16>, vector<64x64xbf16>, vector<48x64xf32> -> vector<48x64xf32>
    %344 = vector.broadcast %217 : vector<1x64xf32> to vector<48x64xf32>
    %345 = arith.addf %343, %344 : vector<48x64xf32>
    %346 = arith.addf %211, %345 : vector<48x64xf32>
    %cst_116 = arith.constant dense<0.000000e+00> : vector<48xf32>
    %347 = vector.multi_reduction <add>, %346, %cst_116 [1] : vector<48x64xf32> to vector<48xf32>
    %348 = vector.shape_cast %347 : vector<48xf32> to vector<48x1xf32>
    %cst_117 = arith.constant 6.400000e+01 : f32
    %349 = vector.broadcast %cst_117 : f32 to vector<48x1xf32>
    %350 = arith.divf %348, %349 : vector<48x1xf32>
    %351 = vector.broadcast %350 : vector<48x1xf32> to vector<48x64xf32>
    %352 = arith.subf %346, %351 : vector<48x64xf32>
    %353 = arith.mulf %352, %352 : vector<48x64xf32>
    %cst_118 = arith.constant dense<0.000000e+00> : vector<48xf32>
    %354 = vector.multi_reduction <add>, %353, %cst_118 [1] : vector<48x64xf32> to vector<48xf32>
    %355 = vector.shape_cast %354 : vector<48xf32> to vector<48x1xf32>
    %cst_119 = arith.constant 6.400000e+01 : f32
    %356 = vector.broadcast %cst_119 : f32 to vector<48x1xf32>
    %357 = arith.divf %355, %356 : vector<48x1xf32>
    %358 = vector.broadcast %350 : vector<48x1xf32> to vector<48x64xf32>
    %359 = arith.subf %346, %358 : vector<48x64xf32>
    %cst_120 = arith.constant 9.99999974E-6 : f32
    %360 = vector.broadcast %cst_120 : f32 to vector<48x1xf32>
    %361 = arith.addf %357, %360 : vector<48x1xf32>
    %362 = math.rsqrt %361 : vector<48x1xf32>
    %363 = vector.broadcast %362 : vector<48x1xf32> to vector<48x64xf32>
    %364 = arith.mulf %359, %363 : vector<48x64xf32>
    %365 = vector.broadcast %218 : vector<1x64xf32> to vector<48x64xf32>
    %366 = arith.mulf %364, %365 : vector<48x64xf32>
    %367 = vector.broadcast %219 : vector<1x64xf32> to vector<48x64xf32>
    %368 = arith.addf %366, %367 : vector<48x64xf32>
    %369 = arith.truncf %368 : vector<48x64xf32> to vector<48x64xbf16>
    %c1_121 = arith.constant 1 : index
    %c0_122 = arith.constant 0 : index
    %c0_123 = arith.constant 0 : index
    %370 = vector.load %arg7[%c1_121, %c0_122, %c0_123] : memref<3x64x256xbf16, #tpu.memory_space<vmem>>, vector<1x64x256xbf16>
    %371 = vector.shape_cast %370 : vector<1x64x256xbf16> to vector<64x256xbf16>
    %cst_124 = arith.constant dense<0.000000e+00> : vector<48x256xf32>
    %372 = tpu.matmul %369, %371, %cst_124 {dimension_numbers = #tpu.dot_dimension_numbers<[1], [0], [0], [1], [0, 0, 1, 1], [], []>} : vector<48x64xbf16>, vector<64x256xbf16>, vector<48x256xf32> -> vector<48x256xf32>
    %373 = vector.broadcast %220 : vector<1x256xf32> to vector<48x256xf32>
    %374 = arith.addf %372, %373 : vector<48x256xf32>
    %cst_125 = arith.constant 5.000000e-01 : f32
    %375 = vector.broadcast %cst_125 : f32 to vector<48x256xf32>
    %376 = arith.mulf %375, %374 : vector<48x256xf32>
    %cst_126 = arith.constant 0.707106769 : f32
    %377 = vector.broadcast %cst_126 : f32 to vector<48x256xf32>
    %378 = arith.mulf %374, %377 : vector<48x256xf32>
    %379 = math.erf %378 : vector<48x256xf32>
    %cst_127 = arith.constant 1.000000e+00 : f32
    %380 = vector.broadcast %cst_127 : f32 to vector<48x256xf32>
    %381 = arith.addf %380, %379 : vector<48x256xf32>
    %382 = arith.mulf %376, %381 : vector<48x256xf32>
    %383 = arith.truncf %382 : vector<48x256xf32> to vector<48x256xbf16>
    %c1_128 = arith.constant 1 : index
    %c0_129 = arith.constant 0 : index
    %c0_130 = arith.constant 0 : index
    %384 = vector.load %arg8[%c1_128, %c0_129, %c0_130] : memref<3x256x64xbf16, #tpu.memory_space<vmem>>, vector<1x256x64xbf16>
    %385 = vector.shape_cast %384 : vector<1x256x64xbf16> to vector<256x64xbf16>
    %cst_131 = arith.constant dense<0.000000e+00> : vector<48x64xf32>
    %386 = tpu.matmul %383, %385, %cst_131 {dimension_numbers = #tpu.dot_dimension_numbers<[1], [0], [0], [1], [0, 0, 1, 1], [], []>} : vector<48x256xbf16>, vector<256x64xbf16>, vector<48x64xf32> -> vector<48x64xf32>
    %387 = vector.broadcast %221 : vector<1x64xf32> to vector<48x64xf32>
    %388 = arith.addf %386, %387 : vector<48x64xf32>
    %389 = arith.addf %346, %388 : vector<48x64xf32>
    %c2_132 = arith.constant 2 : index
    %c0_133 = arith.constant 0 : index
    %c0_134 = arith.constant 0 : index
    %390 = vector.load %arg9[%c2_132, %c0_133, %c0_134] : memref<3x8x256xf32, #tpu.memory_space<vmem>>, vector<1x8x256xf32>
    %391 = vector.shape_cast %390 : vector<1x8x256xf32> to vector<8x256xf32>
    %392 = vector.extract_strided_slice %391 {offsets = [0, 0], sizes = [1, 64], strides = [1, 1]} : vector<8x256xf32> to vector<1x64xf32>
    %393 = vector.extract_strided_slice %391 {offsets = [1, 0], sizes = [1, 64], strides = [1, 1]} : vector<8x256xf32> to vector<1x64xf32>
    %394 = vector.extract_strided_slice %391 {offsets = [2, 0], sizes = [1, 192], strides = [1, 1]} : vector<8x256xf32> to vector<1x192xf32>
    %395 = vector.extract_strided_slice %391 {offsets = [3, 0], sizes = [1, 64], strides = [1, 1]} : vector<8x256xf32> to vector<1x64xf32>
    %396 = vector.extract_strided_slice %391 {offsets = [4, 0], sizes = [1, 64], strides = [1, 1]} : vector<8x256xf32> to vector<1x64xf32>
    %397 = vector.extract_strided_slice %391 {offsets = [5, 0], sizes = [1, 64], strides = [1, 1]} : vector<8x256xf32> to vector<1x64xf32>
    %398 = vector.extract_strided_slice %391 {offsets = [6, 0], sizes = [1, 256], strides = [1, 1]} : vector<8x256xf32> to vector<1x256xf32>
    %399 = vector.extract_strided_slice %391 {offsets = [7, 0], sizes = [1, 64], strides = [1, 1]} : vector<8x256xf32> to vector<1x64xf32>
    %cst_135 = arith.constant dense<0.000000e+00> : vector<48xf32>
    %400 = vector.multi_reduction <add>, %389, %cst_135 [1] : vector<48x64xf32> to vector<48xf32>
    %401 = vector.shape_cast %400 : vector<48xf32> to vector<48x1xf32>
    %cst_136 = arith.constant 6.400000e+01 : f32
    %402 = vector.broadcast %cst_136 : f32 to vector<48x1xf32>
    %403 = arith.divf %401, %402 : vector<48x1xf32>
    %404 = vector.broadcast %403 : vector<48x1xf32> to vector<48x64xf32>
    %405 = arith.subf %389, %404 : vector<48x64xf32>
    %406 = arith.mulf %405, %405 : vector<48x64xf32>
    %cst_137 = arith.constant dense<0.000000e+00> : vector<48xf32>
    %407 = vector.multi_reduction <add>, %406, %cst_137 [1] : vector<48x64xf32> to vector<48xf32>
    %408 = vector.shape_cast %407 : vector<48xf32> to vector<48x1xf32>
    %cst_138 = arith.constant 6.400000e+01 : f32
    %409 = vector.broadcast %cst_138 : f32 to vector<48x1xf32>
    %410 = arith.divf %408, %409 : vector<48x1xf32>
    %411 = vector.broadcast %403 : vector<48x1xf32> to vector<48x64xf32>
    %412 = arith.subf %389, %411 : vector<48x64xf32>
    %cst_139 = arith.constant 9.99999974E-6 : f32
    %413 = vector.broadcast %cst_139 : f32 to vector<48x1xf32>
    %414 = arith.addf %410, %413 : vector<48x1xf32>
    %415 = math.rsqrt %414 : vector<48x1xf32>
    %416 = vector.broadcast %415 : vector<48x1xf32> to vector<48x64xf32>
    %417 = arith.mulf %412, %416 : vector<48x64xf32>
    %418 = vector.broadcast %392 : vector<1x64xf32> to vector<48x64xf32>
    %419 = arith.mulf %417, %418 : vector<48x64xf32>
    %420 = vector.broadcast %393 : vector<1x64xf32> to vector<48x64xf32>
    %421 = arith.addf %419, %420 : vector<48x64xf32>
    %422 = arith.truncf %421 : vector<48x64xf32> to vector<48x64xbf16>
    %c2_140 = arith.constant 2 : index
    %c0_141 = arith.constant 0 : index
    %c0_142 = arith.constant 0 : index
    %423 = vector.load %arg5[%c2_140, %c0_141, %c0_142] : memref<3x64x192xbf16, #tpu.memory_space<vmem>>, vector<1x64x192xbf16>
    %424 = vector.shape_cast %423 : vector<1x64x192xbf16> to vector<64x192xbf16>
    %cst_143 = arith.constant dense<0.000000e+00> : vector<48x192xf32>
    %425 = tpu.matmul %422, %424, %cst_143 {dimension_numbers = #tpu.dot_dimension_numbers<[1], [0], [0], [1], [0, 0, 1, 1], [], []>} : vector<48x64xbf16>, vector<64x192xbf16>, vector<48x192xf32> -> vector<48x192xf32>
    %426 = vector.broadcast %394 : vector<1x192xf32> to vector<48x192xf32>
    %427 = arith.addf %425, %426 : vector<48x192xf32>
    %428 = vector.extract_strided_slice %427 {offsets = [0, 0], sizes = [48, 64], strides = [1, 1]} : vector<48x192xf32> to vector<48x64xf32>
    %429 = vector.shape_cast %428 : vector<48x64xf32> to vector<2x24x64xf32>
    %430 = arith.truncf %429 : vector<2x24x64xf32> to vector<2x24x64xbf16>
    %431 = vector.extract_strided_slice %427 {offsets = [0, 64], sizes = [48, 64], strides = [1, 1]} : vector<48x192xf32> to vector<48x64xf32>
    %432 = vector.shape_cast %431 : vector<48x64xf32> to vector<2x24x64xf32>
    %433 = arith.truncf %432 : vector<2x24x64xf32> to vector<2x24x64xbf16>
    %434 = vector.extract_strided_slice %427 {offsets = [0, 128], sizes = [48, 64], strides = [1, 1]} : vector<48x192xf32> to vector<48x64xf32>
    %435 = vector.shape_cast %434 : vector<48x64xf32> to vector<2x24x64xf32>
    %436 = arith.truncf %435 : vector<2x24x64xf32> to vector<2x24x64xbf16>
    %437 = vector.extract_strided_slice %430 {offsets = [0, 0, 0], sizes = [2, 24, 16], strides = [1, 1, 1]} : vector<2x24x64xbf16> to vector<2x24x16xbf16>
    %438 = vector.extract_strided_slice %433 {offsets = [0, 0, 0], sizes = [2, 24, 16], strides = [1, 1, 1]} : vector<2x24x64xbf16> to vector<2x24x16xbf16>
    %439 = vector.extract_strided_slice %436 {offsets = [0, 0, 0], sizes = [2, 24, 16], strides = [1, 1, 1]} : vector<2x24x64xbf16> to vector<2x24x16xbf16>
    "tpu.trace_start"() <{level = 10 : i32, message = "bqd,bkd->bqk"}> : () -> ()
    %cst_144 = arith.constant dense<0.000000e+00> : vector<2x24x24xf32>
    %440 = tpu.matmul %437, %438, %cst_144 {dimension_numbers = #tpu.dot_dimension_numbers<[2], [2], [1], [1], [0, 0, 0, 1, 1, 1], [0], [0]>} : vector<2x24x16xbf16>, vector<2x24x16xbf16>, vector<2x24x24xf32> -> vector<2x24x24xf32>
    "tpu.trace_stop"() : () -> ()
    %cst_145 = arith.constant 2.500000e-01 : f32
    %441 = vector.broadcast %cst_145 : f32 to vector<2x24x24xf32>
    %442 = arith.mulf %440, %441 : vector<2x24x24xf32>
    %443 = vector.broadcast %33 : vector<1x1x24xf32> to vector<2x24x24xf32>
    %444 = arith.addf %442, %443 : vector<2x24x24xf32>
    %cst_146 = arith.constant dense<0xFF800000> : vector<2x24xf32>
    %445 = vector.multi_reduction <maximumf>, %444, %cst_146 [2] : vector<2x24x24xf32> to vector<2x24xf32>
    %446 = vector.shape_cast %445 : vector<2x24xf32> to vector<2x24x1xf32>
    %447 = vector.broadcast %446 : vector<2x24x1xf32> to vector<2x24x24xf32>
    %448 = arith.subf %444, %447 : vector<2x24x24xf32>
    %449 = math.exp %448 : vector<2x24x24xf32>
    %cst_147 = arith.constant dense<0.000000e+00> : vector<2x24xf32>
    %450 = vector.multi_reduction <add>, %449, %cst_147 [2] : vector<2x24x24xf32> to vector<2x24xf32>
    %451 = vector.shape_cast %450 : vector<2x24xf32> to vector<2x24x1xf32>
    %452 = vector.broadcast %451 : vector<2x24x1xf32> to vector<2x24x24xf32>
    %453 = arith.divf %449, %452 : vector<2x24x24xf32>
    %454 = arith.truncf %453 : vector<2x24x24xf32> to vector<2x24x24xbf16>
    "tpu.trace_start"() <{level = 10 : i32, message = "bqk,bkd->bqd"}> : () -> ()
    %cst_148 = arith.constant dense<0.000000e+00> : vector<2x24x16xf32>
    %455 = tpu.matmul %454, %439, %cst_148 {dimension_numbers = #tpu.dot_dimension_numbers<[2], [1], [1], [2], [0, 0, 0, 1, 1, 2], [0], [0]>} : vector<2x24x24xbf16>, vector<2x24x16xbf16>, vector<2x24x16xf32> -> vector<2x24x16xf32>
    "tpu.trace_stop"() : () -> ()
    %456 = vector.shape_cast %455 : vector<2x24x16xf32> to vector<48x16xf32>
    %457 = vector.extract_strided_slice %430 {offsets = [0, 0, 16], sizes = [2, 24, 16], strides = [1, 1, 1]} : vector<2x24x64xbf16> to vector<2x24x16xbf16>
    %458 = vector.extract_strided_slice %433 {offsets = [0, 0, 16], sizes = [2, 24, 16], strides = [1, 1, 1]} : vector<2x24x64xbf16> to vector<2x24x16xbf16>
    %459 = vector.extract_strided_slice %436 {offsets = [0, 0, 16], sizes = [2, 24, 16], strides = [1, 1, 1]} : vector<2x24x64xbf16> to vector<2x24x16xbf16>
    "tpu.trace_start"() <{level = 10 : i32, message = "bqd,bkd->bqk"}> : () -> ()
    %cst_149 = arith.constant dense<0.000000e+00> : vector<2x24x24xf32>
    %460 = tpu.matmul %457, %458, %cst_149 {dimension_numbers = #tpu.dot_dimension_numbers<[2], [2], [1], [1], [0, 0, 0, 1, 1, 1], [0], [0]>} : vector<2x24x16xbf16>, vector<2x24x16xbf16>, vector<2x24x24xf32> -> vector<2x24x24xf32>
    "tpu.trace_stop"() : () -> ()
    %cst_150 = arith.constant 2.500000e-01 : f32
    %461 = vector.broadcast %cst_150 : f32 to vector<2x24x24xf32>
    %462 = arith.mulf %460, %461 : vector<2x24x24xf32>
    %463 = vector.broadcast %33 : vector<1x1x24xf32> to vector<2x24x24xf32>
    %464 = arith.addf %462, %463 : vector<2x24x24xf32>
    %cst_151 = arith.constant dense<0xFF800000> : vector<2x24xf32>
    %465 = vector.multi_reduction <maximumf>, %464, %cst_151 [2] : vector<2x24x24xf32> to vector<2x24xf32>
    %466 = vector.shape_cast %465 : vector<2x24xf32> to vector<2x24x1xf32>
    %467 = vector.broadcast %466 : vector<2x24x1xf32> to vector<2x24x24xf32>
    %468 = arith.subf %464, %467 : vector<2x24x24xf32>
    %469 = math.exp %468 : vector<2x24x24xf32>
    %cst_152 = arith.constant dense<0.000000e+00> : vector<2x24xf32>
    %470 = vector.multi_reduction <add>, %469, %cst_152 [2] : vector<2x24x24xf32> to vector<2x24xf32>
    %471 = vector.shape_cast %470 : vector<2x24xf32> to vector<2x24x1xf32>
    %472 = vector.broadcast %471 : vector<2x24x1xf32> to vector<2x24x24xf32>
    %473 = arith.divf %469, %472 : vector<2x24x24xf32>
    %474 = arith.truncf %473 : vector<2x24x24xf32> to vector<2x24x24xbf16>
    "tpu.trace_start"() <{level = 10 : i32, message = "bqk,bkd->bqd"}> : () -> ()
    %cst_153 = arith.constant dense<0.000000e+00> : vector<2x24x16xf32>
    %475 = tpu.matmul %474, %459, %cst_153 {dimension_numbers = #tpu.dot_dimension_numbers<[2], [1], [1], [2], [0, 0, 0, 1, 1, 2], [0], [0]>} : vector<2x24x24xbf16>, vector<2x24x16xbf16>, vector<2x24x16xf32> -> vector<2x24x16xf32>
    "tpu.trace_stop"() : () -> ()
    %476 = vector.shape_cast %475 : vector<2x24x16xf32> to vector<48x16xf32>
    %477 = vector.extract_strided_slice %430 {offsets = [0, 0, 32], sizes = [2, 24, 16], strides = [1, 1, 1]} : vector<2x24x64xbf16> to vector<2x24x16xbf16>
    %478 = vector.extract_strided_slice %433 {offsets = [0, 0, 32], sizes = [2, 24, 16], strides = [1, 1, 1]} : vector<2x24x64xbf16> to vector<2x24x16xbf16>
    %479 = vector.extract_strided_slice %436 {offsets = [0, 0, 32], sizes = [2, 24, 16], strides = [1, 1, 1]} : vector<2x24x64xbf16> to vector<2x24x16xbf16>
    "tpu.trace_start"() <{level = 10 : i32, message = "bqd,bkd->bqk"}> : () -> ()
    %cst_154 = arith.constant dense<0.000000e+00> : vector<2x24x24xf32>
    %480 = tpu.matmul %477, %478, %cst_154 {dimension_numbers = #tpu.dot_dimension_numbers<[2], [2], [1], [1], [0, 0, 0, 1, 1, 1], [0], [0]>} : vector<2x24x16xbf16>, vector<2x24x16xbf16>, vector<2x24x24xf32> -> vector<2x24x24xf32>
    "tpu.trace_stop"() : () -> ()
    %cst_155 = arith.constant 2.500000e-01 : f32
    %481 = vector.broadcast %cst_155 : f32 to vector<2x24x24xf32>
    %482 = arith.mulf %480, %481 : vector<2x24x24xf32>
    %483 = vector.broadcast %33 : vector<1x1x24xf32> to vector<2x24x24xf32>
    %484 = arith.addf %482, %483 : vector<2x24x24xf32>
    %cst_156 = arith.constant dense<0xFF800000> : vector<2x24xf32>
    %485 = vector.multi_reduction <maximumf>, %484, %cst_156 [2] : vector<2x24x24xf32> to vector<2x24xf32>
    %486 = vector.shape_cast %485 : vector<2x24xf32> to vector<2x24x1xf32>
    %487 = vector.broadcast %486 : vector<2x24x1xf32> to vector<2x24x24xf32>
    %488 = arith.subf %484, %487 : vector<2x24x24xf32>
    %489 = math.exp %488 : vector<2x24x24xf32>
    %cst_157 = arith.constant dense<0.000000e+00> : vector<2x24xf32>
    %490 = vector.multi_reduction <add>, %489, %cst_157 [2] : vector<2x24x24xf32> to vector<2x24xf32>
    %491 = vector.shape_cast %490 : vector<2x24xf32> to vector<2x24x1xf32>
    %492 = vector.broadcast %491 : vector<2x24x1xf32> to vector<2x24x24xf32>
    %493 = arith.divf %489, %492 : vector<2x24x24xf32>
    %494 = arith.truncf %493 : vector<2x24x24xf32> to vector<2x24x24xbf16>
    "tpu.trace_start"() <{level = 10 : i32, message = "bqk,bkd->bqd"}> : () -> ()
    %cst_158 = arith.constant dense<0.000000e+00> : vector<2x24x16xf32>
    %495 = tpu.matmul %494, %479, %cst_158 {dimension_numbers = #tpu.dot_dimension_numbers<[2], [1], [1], [2], [0, 0, 0, 1, 1, 2], [0], [0]>} : vector<2x24x24xbf16>, vector<2x24x16xbf16>, vector<2x24x16xf32> -> vector<2x24x16xf32>
    "tpu.trace_stop"() : () -> ()
    %496 = vector.shape_cast %495 : vector<2x24x16xf32> to vector<48x16xf32>
    %497 = vector.extract_strided_slice %430 {offsets = [0, 0, 48], sizes = [2, 24, 16], strides = [1, 1, 1]} : vector<2x24x64xbf16> to vector<2x24x16xbf16>
    %498 = vector.extract_strided_slice %433 {offsets = [0, 0, 48], sizes = [2, 24, 16], strides = [1, 1, 1]} : vector<2x24x64xbf16> to vector<2x24x16xbf16>
    %499 = vector.extract_strided_slice %436 {offsets = [0, 0, 48], sizes = [2, 24, 16], strides = [1, 1, 1]} : vector<2x24x64xbf16> to vector<2x24x16xbf16>
    "tpu.trace_start"() <{level = 10 : i32, message = "bqd,bkd->bqk"}> : () -> ()
    %cst_159 = arith.constant dense<0.000000e+00> : vector<2x24x24xf32>
    %500 = tpu.matmul %497, %498, %cst_159 {dimension_numbers = #tpu.dot_dimension_numbers<[2], [2], [1], [1], [0, 0, 0, 1, 1, 1], [0], [0]>} : vector<2x24x16xbf16>, vector<2x24x16xbf16>, vector<2x24x24xf32> -> vector<2x24x24xf32>
    "tpu.trace_stop"() : () -> ()
    %cst_160 = arith.constant 2.500000e-01 : f32
    %501 = vector.broadcast %cst_160 : f32 to vector<2x24x24xf32>
    %502 = arith.mulf %500, %501 : vector<2x24x24xf32>
    %503 = vector.broadcast %33 : vector<1x1x24xf32> to vector<2x24x24xf32>
    %504 = arith.addf %502, %503 : vector<2x24x24xf32>
    %cst_161 = arith.constant dense<0xFF800000> : vector<2x24xf32>
    %505 = vector.multi_reduction <maximumf>, %504, %cst_161 [2] : vector<2x24x24xf32> to vector<2x24xf32>
    %506 = vector.shape_cast %505 : vector<2x24xf32> to vector<2x24x1xf32>
    %507 = vector.broadcast %506 : vector<2x24x1xf32> to vector<2x24x24xf32>
    %508 = arith.subf %504, %507 : vector<2x24x24xf32>
    %509 = math.exp %508 : vector<2x24x24xf32>
    %cst_162 = arith.constant dense<0.000000e+00> : vector<2x24xf32>
    %510 = vector.multi_reduction <add>, %509, %cst_162 [2] : vector<2x24x24xf32> to vector<2x24xf32>
    %511 = vector.shape_cast %510 : vector<2x24xf32> to vector<2x24x1xf32>
    %512 = vector.broadcast %511 : vector<2x24x1xf32> to vector<2x24x24xf32>
    %513 = arith.divf %509, %512 : vector<2x24x24xf32>
    %514 = arith.truncf %513 : vector<2x24x24xf32> to vector<2x24x24xbf16>
    "tpu.trace_start"() <{level = 10 : i32, message = "bqk,bkd->bqd"}> : () -> ()
    %cst_163 = arith.constant dense<0.000000e+00> : vector<2x24x16xf32>
    %515 = tpu.matmul %514, %499, %cst_163 {dimension_numbers = #tpu.dot_dimension_numbers<[2], [1], [1], [2], [0, 0, 0, 1, 1, 2], [0], [0]>} : vector<2x24x24xbf16>, vector<2x24x16xbf16>, vector<2x24x16xf32> -> vector<2x24x16xf32>
    "tpu.trace_stop"() : () -> ()
    %516 = vector.shape_cast %515 : vector<2x24x16xf32> to vector<48x16xf32>
    %517 = tpu.concatenate %456, %476, %496, %516 in 1 : vector<48x16xf32>, vector<48x16xf32>, vector<48x16xf32>, vector<48x16xf32> -> vector<48x64xf32>
    %518 = arith.truncf %517 : vector<48x64xf32> to vector<48x64xbf16>
    %c2_164 = arith.constant 2 : index
    %c0_165 = arith.constant 0 : index
    %c0_166 = arith.constant 0 : index
    %519 = vector.load %arg6[%c2_164, %c0_165, %c0_166] : memref<3x64x64xbf16, #tpu.memory_space<vmem>>, vector<1x64x64xbf16>
    %520 = vector.shape_cast %519 : vector<1x64x64xbf16> to vector<64x64xbf16>
    %cst_167 = arith.constant dense<0.000000e+00> : vector<48x64xf32>
    %521 = tpu.matmul %518, %520, %cst_167 {dimension_numbers = #tpu.dot_dimension_numbers<[1], [0], [0], [1], [0, 0, 1, 1], [], []>} : vector<48x64xbf16>, vector<64x64xbf16>, vector<48x64xf32> -> vector<48x64xf32>
    %522 = vector.broadcast %395 : vector<1x64xf32> to vector<48x64xf32>
    %523 = arith.addf %521, %522 : vector<48x64xf32>
    %524 = arith.addf %389, %523 : vector<48x64xf32>
    %cst_168 = arith.constant dense<0.000000e+00> : vector<48xf32>
    %525 = vector.multi_reduction <add>, %524, %cst_168 [1] : vector<48x64xf32> to vector<48xf32>
    %526 = vector.shape_cast %525 : vector<48xf32> to vector<48x1xf32>
    %cst_169 = arith.constant 6.400000e+01 : f32
    %527 = vector.broadcast %cst_169 : f32 to vector<48x1xf32>
    %528 = arith.divf %526, %527 : vector<48x1xf32>
    %529 = vector.broadcast %528 : vector<48x1xf32> to vector<48x64xf32>
    %530 = arith.subf %524, %529 : vector<48x64xf32>
    %531 = arith.mulf %530, %530 : vector<48x64xf32>
    %cst_170 = arith.constant dense<0.000000e+00> : vector<48xf32>
    %532 = vector.multi_reduction <add>, %531, %cst_170 [1] : vector<48x64xf32> to vector<48xf32>
    %533 = vector.shape_cast %532 : vector<48xf32> to vector<48x1xf32>
    %cst_171 = arith.constant 6.400000e+01 : f32
    %534 = vector.broadcast %cst_171 : f32 to vector<48x1xf32>
    %535 = arith.divf %533, %534 : vector<48x1xf32>
    %536 = vector.broadcast %528 : vector<48x1xf32> to vector<48x64xf32>
    %537 = arith.subf %524, %536 : vector<48x64xf32>
    %cst_172 = arith.constant 9.99999974E-6 : f32
    %538 = vector.broadcast %cst_172 : f32 to vector<48x1xf32>
    %539 = arith.addf %535, %538 : vector<48x1xf32>
    %540 = math.rsqrt %539 : vector<48x1xf32>
    %541 = vector.broadcast %540 : vector<48x1xf32> to vector<48x64xf32>
    %542 = arith.mulf %537, %541 : vector<48x64xf32>
    %543 = vector.broadcast %396 : vector<1x64xf32> to vector<48x64xf32>
    %544 = arith.mulf %542, %543 : vector<48x64xf32>
    %545 = vector.broadcast %397 : vector<1x64xf32> to vector<48x64xf32>
    %546 = arith.addf %544, %545 : vector<48x64xf32>
    %547 = arith.truncf %546 : vector<48x64xf32> to vector<48x64xbf16>
    %c2_173 = arith.constant 2 : index
    %c0_174 = arith.constant 0 : index
    %c0_175 = arith.constant 0 : index
    %548 = vector.load %arg7[%c2_173, %c0_174, %c0_175] : memref<3x64x256xbf16, #tpu.memory_space<vmem>>, vector<1x64x256xbf16>
    %549 = vector.shape_cast %548 : vector<1x64x256xbf16> to vector<64x256xbf16>
    %cst_176 = arith.constant dense<0.000000e+00> : vector<48x256xf32>
    %550 = tpu.matmul %547, %549, %cst_176 {dimension_numbers = #tpu.dot_dimension_numbers<[1], [0], [0], [1], [0, 0, 1, 1], [], []>} : vector<48x64xbf16>, vector<64x256xbf16>, vector<48x256xf32> -> vector<48x256xf32>
    %551 = vector.broadcast %398 : vector<1x256xf32> to vector<48x256xf32>
    %552 = arith.addf %550, %551 : vector<48x256xf32>
    %cst_177 = arith.constant 5.000000e-01 : f32
    %553 = vector.broadcast %cst_177 : f32 to vector<48x256xf32>
    %554 = arith.mulf %553, %552 : vector<48x256xf32>
    %cst_178 = arith.constant 0.707106769 : f32
    %555 = vector.broadcast %cst_178 : f32 to vector<48x256xf32>
    %556 = arith.mulf %552, %555 : vector<48x256xf32>
    %557 = math.erf %556 : vector<48x256xf32>
    %cst_179 = arith.constant 1.000000e+00 : f32
    %558 = vector.broadcast %cst_179 : f32 to vector<48x256xf32>
    %559 = arith.addf %558, %557 : vector<48x256xf32>
    %560 = arith.mulf %554, %559 : vector<48x256xf32>
    %561 = arith.truncf %560 : vector<48x256xf32> to vector<48x256xbf16>
    %c2_180 = arith.constant 2 : index
    %c0_181 = arith.constant 0 : index
    %c0_182 = arith.constant 0 : index
    %562 = vector.load %arg8[%c2_180, %c0_181, %c0_182] : memref<3x256x64xbf16, #tpu.memory_space<vmem>>, vector<1x256x64xbf16>
    %563 = vector.shape_cast %562 : vector<1x256x64xbf16> to vector<256x64xbf16>
    %cst_183 = arith.constant dense<0.000000e+00> : vector<48x64xf32>
    %564 = tpu.matmul %561, %563, %cst_183 {dimension_numbers = #tpu.dot_dimension_numbers<[1], [0], [0], [1], [0, 0, 1, 1], [], []>} : vector<48x256xbf16>, vector<256x64xbf16>, vector<48x64xf32> -> vector<48x64xf32>
    %565 = vector.broadcast %399 : vector<1x64xf32> to vector<48x64xf32>
    %566 = arith.addf %564, %565 : vector<48x64xf32>
    %567 = arith.addf %524, %566 : vector<48x64xf32>
    %cst_184 = arith.constant dense<0.000000e+00> : vector<48xf32>
    %568 = vector.multi_reduction <add>, %567, %cst_184 [1] : vector<48x64xf32> to vector<48xf32>
    %569 = vector.shape_cast %568 : vector<48xf32> to vector<48x1xf32>
    %cst_185 = arith.constant 6.400000e+01 : f32
    %570 = vector.broadcast %cst_185 : f32 to vector<48x1xf32>
    %571 = arith.divf %569, %570 : vector<48x1xf32>
    %572 = vector.broadcast %571 : vector<48x1xf32> to vector<48x64xf32>
    %573 = arith.subf %567, %572 : vector<48x64xf32>
    %574 = arith.mulf %573, %573 : vector<48x64xf32>
    %cst_186 = arith.constant dense<0.000000e+00> : vector<48xf32>
    %575 = vector.multi_reduction <add>, %574, %cst_186 [1] : vector<48x64xf32> to vector<48xf32>
    %576 = vector.shape_cast %575 : vector<48xf32> to vector<48x1xf32>
    %cst_187 = arith.constant 6.400000e+01 : f32
    %577 = vector.broadcast %cst_187 : f32 to vector<48x1xf32>
    %578 = arith.divf %576, %577 : vector<48x1xf32>
    %579 = vector.broadcast %571 : vector<48x1xf32> to vector<48x64xf32>
    %580 = arith.subf %567, %579 : vector<48x64xf32>
    %cst_188 = arith.constant 9.99999974E-6 : f32
    %581 = vector.broadcast %cst_188 : f32 to vector<48x1xf32>
    %582 = arith.addf %578, %581 : vector<48x1xf32>
    %583 = math.rsqrt %582 : vector<48x1xf32>
    %584 = vector.broadcast %583 : vector<48x1xf32> to vector<48x64xf32>
    %585 = arith.mulf %580, %584 : vector<48x64xf32>
    %586 = vector.broadcast %2 : vector<1x64xf32> to vector<48x64xf32>
    %587 = arith.mulf %585, %586 : vector<48x64xf32>
    %588 = vector.broadcast %3 : vector<1x64xf32> to vector<48x64xf32>
    %589 = arith.addf %587, %588 : vector<48x64xf32>
    %590 = arith.truncf %589 : vector<48x64xf32> to vector<48x64xbf16>
    %c0_189 = arith.constant 0 : index
    %c0_190 = arith.constant 0 : index
    %591 = vector.load %arg10[%c0_189, %c0_190] : memref<64x128xbf16, #tpu.memory_space<vmem>>, vector<64x128xbf16>
    %cst_191 = arith.constant dense<0.000000e+00> : vector<48x128xf32>
    %592 = tpu.matmul %590, %591, %cst_191 {dimension_numbers = #tpu.dot_dimension_numbers<[1], [0], [0], [1], [0, 0, 1, 1], [], []>} : vector<48x64xbf16>, vector<64x128xbf16>, vector<48x128xf32> -> vector<48x128xf32>
    %593 = vector.broadcast %4 : vector<1x128xf32> to vector<48x128xf32>
    %594 = arith.addf %592, %593 : vector<48x128xf32>
    %c0_192 = arith.constant 0 : index
    %c0_193 = arith.constant 0 : index
    %595 = vector.load %arg11[%c0_192, %c0_193] : memref<48x128xf32, #tpu.memory_space<vmem>>, vector<48x128xf32>
    tpu.vector_store %arg11[%c0_192, %c0_193], %594 {strides = array<i32>} : memref<48x128xf32, #tpu.memory_space<vmem>>, vector<48x128xf32>,
    return
  }
  func.func @transform_0(%arg0: i32) -> (i32, i32, i32) {
    %c0_i32 = arith.constant 0 : i32
    %c0_i32_0 = arith.constant 0 : i32
    %c0_i32_1 = arith.constant 0 : i32
    return %arg0, %c0_i32, %c0_i32_0 : i32, i32, i32
  }
  func.func @transform_1(%arg0: i32) -> (i32, i32) {
    %c0_i32 = arith.constant 0 : i32
    %c0_i32_0 = arith.constant 0 : i32
    %c0_i32_1 = arith.constant 0 : i32
    return %c0_i32, %c0_i32_0 : i32, i32
  }
  func.func @transform_2(%arg0: i32) -> (i32, i32) {
    %c0_i32 = arith.constant 0 : i32
    %c0_i32_0 = arith.constant 0 : i32
    %c0_i32_1 = arith.constant 0 : i32
    return %c0_i32, %c0_i32_0 : i32, i32
  }
  func.func @transform_3(%arg0: i32) -> (i32, i32) {
    %c0_i32 = arith.constant 0 : i32
    %c0_i32_0 = arith.constant 0 : i32
    %c0_i32_1 = arith.constant 0 : i32
    return %c0_i32, %c0_i32_0 : i32, i32
  }
  func.func @transform_4(%arg0: i32) -> (i32, i32, i32) {
    %c0_i32 = arith.constant 0 : i32
    %c0_i32_0 = arith.constant 0 : i32
    %c0_i32_1 = arith.constant 0 : i32
    %c0_i32_2 = arith.constant 0 : i32
    return %c0_i32, %c0_i32_0, %c0_i32_1 : i32, i32, i32
  }
  func.func @transform_5(%arg0: i32) -> (i32, i32, i32) {
    %c0_i32 = arith.constant 0 : i32
    %c0_i32_0 = arith.constant 0 : i32
    %c0_i32_1 = arith.constant 0 : i32
    %c0_i32_2 = arith.constant 0 : i32
    return %c0_i32, %c0_i32_0, %c0_i32_1 : i32, i32, i32
  }
  func.func @transform_6(%arg0: i32) -> (i32, i32, i32) {
    %c0_i32 = arith.constant 0 : i32
    %c0_i32_0 = arith.constant 0 : i32
    %c0_i32_1 = arith.constant 0 : i32
    %c0_i32_2 = arith.constant 0 : i32
    return %c0_i32, %c0_i32_0, %c0_i32_1 : i32, i32, i32
  }
  func.func @transform_7(%arg0: i32) -> (i32, i32, i32) {
    %c0_i32 = arith.constant 0 : i32
    %c0_i32_0 = arith.constant 0 : i32
    %c0_i32_1 = arith.constant 0 : i32
    %c0_i32_2 = arith.constant 0 : i32
    return %c0_i32, %c0_i32_0, %c0_i32_1 : i32, i32, i32
  }
  func.func @transform_8(%arg0: i32) -> (i32, i32, i32) {
    %c0_i32 = arith.constant 0 : i32
    %c0_i32_0 = arith.constant 0 : i32
    %c0_i32_1 = arith.constant 0 : i32
    %c0_i32_2 = arith.constant 0 : i32
    return %c0_i32, %c0_i32_0, %c0_i32_1 : i32, i32, i32
  }
  func.func @transform_9(%arg0: i32) -> (i32, i32) {
    %c0_i32 = arith.constant 0 : i32
    %c0_i32_0 = arith.constant 0 : i32
    %c0_i32_1 = arith.constant 0 : i32
    return %c0_i32, %c0_i32_0 : i32, i32
  }
  func.func @transform_10(%arg0: i32) -> (i32, i32) {
    %c0_i32 = arith.constant 0 : i32
    %c0_i32_0 = arith.constant 0 : i32
    return %arg0, %c0_i32 : i32, i32
  }
}

</mosaic_0001>

<llo_original>
// kernel: tpu_custom_call.1
$region0: #{tpu_custom_call.1}
  #allocation0 [shape = 'u32[]', space=smem, size = 0x4, offset = 0x4, fixed_abs, tag = 'smem constant byte address 0x4 - core index']
  #allocation1 [shape = 'u32[144,128]{1,0:T(1,128)}', space=vmem, size = 0x12000, scoped, tag = 'internal scratch']
  #allocation2 [shape = 'f32[2,24,64]{2,1,0:T(8,128)}', space=vmem, size = 0x6000, scoped, tag = 'scratch operand']
  %s0 = inlined_call_operand.vmem [shape: f32[2,16,64], index: 0, kind: input, shape index: {}]
  %s1 = inlined_call_operand.hbm [shape: bf16[64,64], index: 1, kind: input, shape index: {}]
  %s2 = inlined_call_operand.hbm [shape: f32[17,64], index: 2, kind: input, shape index: {}]
  %s3 = inlined_call_operand.hbm [shape: f32[8,128], index: 3, kind: input, shape index: {}]
  %s4 = inlined_call_operand.vmem [shape: bf16[3,64,192], index: 4, kind: input, shape index: {}]
  %s5 = inlined_call_operand.vmem [shape: bf16[3,64,64], index: 5, kind: input, shape index: {}]
  %s6 = inlined_call_operand.vmem [shape: bf16[3,64,256], index: 6, kind: input, shape index: {}]
  %s7 = inlined_call_operand.vmem [shape: bf16[3,256,64], index: 7, kind: input, shape index: {}]
  %s8 = inlined_call_operand.vmem [shape: f32[3,8,256], index: 8, kind: input, shape index: {}]
  %s9 = inlined_call_operand.vmem [shape: bf16[64,128], index: 9, kind: input, shape index: {}]
  %s10 = inlined_call_operand.hbm [shape: f32[48,128], index: 10, kind: output, shape index: {}]
  %s11 = sld [smem:[#allocation0]]
  $region62: #{tpu_custom_call.1} parent=0
    _
  %s13 = ssub.s32 1, %s11
  %s14 = scalar_select 0, %s13, %s11
  $region1: #{tpu_custom_call.1} parent=0
    #allocation3 [shape = 'u8[16384]{0}', space=vmem, size = 0x4000, scoped, tag = 'input window, operand 1, single buffered']
    #allocation4 [shape = 's32[1]{0}', space=sflag, size = 0x4, scoped, tag = 'scoped memory for tpu_custom_call.1']
    #allocation5 [shape = 's32[1]{0}', space=sflag, size = 0x4, scoped, tag = 'scoped memory for tpu_custom_call.1']
    #allocation6 [shape = 'u8[12288]{0}', space=vmem, size = 0x3000, scoped, tag = 'input window, operand 2, single buffered']
    #allocation7 [shape = 's32[1]{0}', space=sflag, size = 0x4, scoped, tag = 'scoped memory for tpu_custom_call.1']
    #allocation8 [shape = 'u8[4096]{0}', space=vmem, size = 0x1000, scoped, tag = 'input window, operand 3, single buffered']
    #allocation9 [shape = 'u8[24576]{0}', space=vmem, size = 0x6000, scoped, tag = 'output window, operand 0, single buffered']
    %15 = vsyncpa [#allocation4], 0
    %16 = vsyncpa [#allocation7], 0
    %17 = vsyncpa [#allocation5], 0
    // Predicated region
    $region2: #{tpu_custom_call.1} parent=1 // pred_check
      _
    $region3: #{tpu_custom_call.1} parent=1 // pred_check_branch
      %19 = sbr.rel (0) target = $region5
    $region4: #{tpu_custom_call.1} parent=1 // pred_region
      _
    $region5: #{tpu_custom_call.1} parent=1 // pred_fallthru
      _
    // Predicated region
    $region6: #{tpu_custom_call.1} parent=1 // pred_check
      _
    $region7: #{tpu_custom_call.1} parent=1 // pred_check_branch
      %21 = sbr.rel (0) target = $region9
    $region8: #{tpu_custom_call.1} parent=1 // pred_region
      %s23 = ssub.s32 512, 512
      %24 = vsyncadd [#allocation4], %s23
      %s25 = sshll.u32 [#allocation3], 4
      %s26 = int_to_ptr.vmem [resolvable:$true] %s25
      %31 = dma.hbm_to_vmem [thread:$0]  %s1, 512, %s26, [#allocation4], 64, 64, 4
    $region9: #{tpu_custom_call.1} parent=1 // pred_fallthru
      _
    // Predicated region
    $region10: #{tpu_custom_call.1} parent=1 // pred_check
      _
    $region11: #{tpu_custom_call.1} parent=1 // pred_check_branch
      %33 = sbr.rel (0) target = $region13
    $region12: #{tpu_custom_call.1} parent=1 // pred_region
      %s35 = ssub.s32 384, 384
      %36 = vsyncadd [#allocation7], %s35
      %s37 = sshll.u32 [#allocation6], 4
      %s38 = int_to_ptr.vmem [resolvable:$true] %s37
      %43 = dma.hbm_to_vmem [thread:$0]  %s2, 384, %s38, [#allocation7], 128, 128, 8
    $region13: #{tpu_custom_call.1} parent=1 // pred_fallthru
      _
    // Predicated region
    $region14: #{tpu_custom_call.1} parent=1 // pred_check
      _
    $region15: #{tpu_custom_call.1} parent=1 // pred_check_branch
      %45 = sbr.rel (0) target = $region17
    $region16: #{tpu_custom_call.1} parent=1 // pred_region
      %s47 = ssub.s32 128, 128
      %48 = vsyncadd [#allocation7], %s47
      %s50 = sshll.u32 [#allocation8], 4
      %s51 = int_to_ptr.vmem [resolvable:$true] %s50
      %53 = dma.hbm_to_vmem [thread:$0]  %s3, 128, %s51, [#allocation7]
    $region17: #{tpu_custom_call.1} parent=1 // pred_fallthru
      _
    // Predicated region
    $region18: #{tpu_custom_call.1} parent=1 // pred_check
      _
    $region19: #{tpu_custom_call.1} parent=1 // pred_check_branch
      %55 = sbr.rel (0) target = $region21
    $region20: #{tpu_custom_call.1} parent=1 // pred_region
      _
    $region21: #{tpu_custom_call.1} parent=1 // pred_fallthru
      _
    // Predicated region
    $region22: #{tpu_custom_call.1} parent=1 // pred_check
      _
    $region23: #{tpu_custom_call.1} parent=1 // pred_check_branch
      %57 = sbr.rel (0) target = $region25
    $region24: #{tpu_custom_call.1} parent=1 // pred_region
      _
    $region25: #{tpu_custom_call.1} parent=1 // pred_fallthru
      _
    // Predicated region
    $region26: #{tpu_custom_call.1} parent=1 // pred_check
      _
    $region27: #{tpu_custom_call.1} parent=1 // pred_check_branch
      %59 = sbr.rel (0) target = $region29
    $region28: #{tpu_custom_call.1} parent=1 // pred_region
      _
    $region29: #{tpu_custom_call.1} parent=1 // pred_fallthru
      _
    // Predicated region
    $region30: #{tpu_custom_call.1} parent=1 // pred_check
      _
    $region31: #{tpu_custom_call.1} parent=1 // pred_check_branch
      %61 = sbr.rel (0) target = $region33
    $region32: #{tpu_custom_call.1} parent=1 // pred_region
      _
    $region33: #{tpu_custom_call.1} parent=1 // pred_fallthru
      _
    // Predicated region
    $region34: #{tpu_custom_call.1} parent=1 // pred_check
      _
    $region35: #{tpu_custom_call.1} parent=1 // pred_check_branch
      %63 = sbr.rel (0) target = $region37
    $region36: #{tpu_custom_call.1} parent=1 // pred_region
      _
    $region37: #{tpu_custom_call.1} parent=1 // pred_fallthru
      _
    // Predicated region
    $region38: #{tpu_custom_call.1} parent=1 // pred_check
      _
    $region39: #{tpu_custom_call.1} parent=1 // pred_check_branch
      %65 = sbr.rel (0) target = $region41
    $region40: #{tpu_custom_call.1} parent=1 // pred_region
      _
    $region41: #{tpu_custom_call.1} parent=1 // pred_fallthru
      _
    // Predicated region
    $region42: #{tpu_custom_call.1} parent=1 // pred_check
      _
    $region43: #{tpu_custom_call.1} parent=1 // pred_check_branch
      %67 = sbr.rel (0) target = $region45
    $region44: #{tpu_custom_call.1} parent=1 // pred_region
      %68 = dma.done [#allocation4], 512
    $region45: #{tpu_custom_call.1} parent=1 // pred_fallthru
      _
    // Predicated region
    $region46: #{tpu_custom_call.1} parent=1 // pred_check
      _
    $region47: #{tpu_custom_call.1} parent=1 // pred_check_branch
      %70 = sbr.rel (0) target = $region49
    $region48: #{tpu_custom_call.1} parent=1 // pred_region
      %71 = dma.done [#allocation7], 384
    $region49: #{tpu_custom_call.1} parent=1 // pred_fallthru
      _
    // Predicated region
    $region50: #{tpu_custom_call.1} parent=1 // pred_check
      _
    $region51: #{tpu_custom_call.1} parent=1 // pred_check_branch
      %73 = sbr.rel (0) target = $region53
    $region52: #{tpu_custom_call.1} parent=1 // pred_region
      %74 = dma.done [#allocation7], 128
    $region53: #{tpu_custom_call.1} parent=1 // pred_fallthru
      _
    %v76 = vld [vmem:[#allocation8] sm:$0x1]
    %v77 = vld [vmem:[#allocation8 + $0x1] sm:$0x1]
    %v78 = vld [vmem:[#allocation8 + $0x2] sm:$0x1]
    %v79 = vld [vmem:[#allocation8 + $0x3] sm:$0x1]
    %v80 = vld [vmem:[#allocation8 + $0x4] sm:$0x1]
    %v81 = vld [vmem:[%s0] sm:$0xff]
    %v82 = vld [vmem:[%s0 + $0x8] sm:$0xff]
    %v83 = vld [vmem:[%s0 + $0x10] sm:$0xff]
    %v84 = vld [vmem:[%s0 + $0x18] sm:$0xff]
    %v85 = vpack.c.bf16 %v82, %v81
    %v86 = vpack.c.bf16 %v84, %v83
    %v87 = vld [vmem:[#allocation3] sm:$0xf]
    %v88 = vld [vmem:[#allocation3 + $0x4] sm:$0xf]
    %v89 = vld [vmem:[#allocation3 + $0x8] sm:$0xf]
    %v90 = vld [vmem:[#allocation3 + $0xc] sm:$0xf]
    %v91 = vld [vmem:[#allocation3 + $0x10] sm:$0xf]
    %v92 = vld [vmem:[#allocation3 + $0x14] sm:$0xf]
    %v93 = vld [vmem:[#allocation3 + $0x18] sm:$0xf]
    %v94 = vld [vmem:[#allocation3 + $0x1c] sm:$0xf]
    %v95 = vlaneseq
    %v96 = vshrl.u32 %v95, 7
    %v97 = vsub.s32 0, %v96
    %v98 = vrot.slane %v76, %v97
    %v107 = vunpack.c.l.b16 %v87
    %v108 = vunpack.c.l.b16 %v88
    %v109 = vunpack.c.l.b16 %v89
    %v110 = vunpack.c.l.b16 %v90
    %v111 = vunpack.c.l.b16 %v91
    %v112 = vunpack.c.l.b16 %v92
    %v113 = vunpack.c.l.b16 %v93
    %v114 = vunpack.c.l.b16 %v94
    %v115 = vpack.c.b16 %v108, %v107
    %v116 = vpack.c.b16 %v110, %v109
    %v117 = vpack.c.b16 %v112, %v111
    %v118 = vpack.c.b16 %v114, %v113
    %vm123 = vcmask 523264
    %v125 = vsel %vm123, %v85, 0
    %v128 = vsel %vm123, %v86, 0
    %130 = vmatprep.subr.bf16.mxu0 0
    %131 = vmatpush1.bf16.msra.mxu0 %v115
    %132 = vmatprep.subr.bf16.mxu0 0
    %133 = vmatpush1.bf16.msra.mxu0 %v116
    %134 = vmatprep.subr.bf16.mxu0 0
    %135 = vmatpush1.bf16.msra.mxu0 %v117
    %136 = vmatprep.subr.bf16.mxu0 0
    %137 = vmatpush1.bf16.msra.mxu0 %v118
    %138 = vmatprep.subr.bf16.mxu0 0
    %139 = vmatpush1.bf16.msra.mxu0 0
    %140 = vmatprep.subr.bf16.mxu0 0
    %141 = vmatpush1.bf16.msra.mxu0 0
    %142 = vmatprep.subr.bf16.mxu0 0
    %143 = vmatpush1.bf16.msra.mxu0 0
    %144 = vmatprep.subr.bf16.mxu0 0
    %145 = vmatpush1.bf16.msra.mxu0 0
    %146 = vmatprep.subr.bf16.mxu0 0
    %147 = vmatpush1.bf16.msra.mxu0 0
    %148 = vmatprep.subr.bf16.mxu0 0
    %149 = vmatpush1.bf16.msra.mxu0 0
    %150 = vmatprep.subr.bf16.mxu0 0
    %151 = vmatpush1.bf16.msra.mxu0 0
    %152 = vmatprep.subr.bf16.mxu0 0
    %153 = vmatpush1.bf16.msra.mxu0 0
    %154 = vmatprep.subr.bf16.mxu0 0
    %155 = vmatpush1.bf16.msra.mxu0 0
    %156 = vmatprep.subr.bf16.mxu0 0
    %157 = vmatpush1.bf16.msra.mxu0 0
    %158 = vmatprep.subr.bf16.mxu0 0
    %159 = vmatpush1.bf16.msra.mxu0 0
    %160 = vmatprep.subr.bf16.mxu0 0
    %161 = vmatpush1.bf16.msra.mxu0 0
    %162 = vmatprep.mubr.bf16.mxu0 0
    %163 = vmatmul.mubr.bf16.gmra.mrb[0].mxu0 %v125
    %v164 = vpop.f32.mrb[0].mxu0
    %v165 = vadd.f32 %v98, %v164
    %v166 = vpop.f32.mrb[0].mxu0
    %v167 = vpop.f32.mrb[0].mxu0
    %v168 = vadd.f32 %v98, %v167
    %v169 = vpop.f32.mrb[0].mxu0
    %170 = vmatprep.mubr.bf16.mxu0 0
    %171 = vmatmul.mubr.bf16.gmra.mrb[0].mxu0 %v128
    %v172 = vpop.f32.mrb[0].mxu0
    %v173 = vadd.f32 %v98, %v172
    %v174 = vpop.f32.mrb[0].mxu0
    %v175 = vpop.f32.mrb[0].mxu0
    %v176 = vadd.f32 %v98, %v175
    %v177 = vpop.f32.mrb[0].mxu0
    %178 = vdwg.mxu0
    %v179 = vld [vmem:[#allocation6] sm:$0x1]
    %v180 = vadd.f32 %v77, %v179
    %vm181 = vcmask 516096
    %182 = vst.msk [vmem:[#allocation2] sm:$0x1] %vm181, %v180
    %183 = vst.msk [vmem:[#allocation2 + $0x18] sm:$0x1] %vm181, %v180
    %v184 = vld [vmem:[#allocation6 + $0x1] sm:$0xff]
    %v185 = vld [vmem:[#allocation6 + $0x9] sm:$0xff]
    %v186 = vadd.f32 %v165, %v184
    %v187 = vadd.f32 %v168, %v185
    %v188 = vadd.f32 %v173, %v184
    %v189 = vadd.f32 %v176, %v185
    %190 = vst.msk [vmem:[#allocation2 + $0x1] sm:$0xff] %vm123, %v186
    %191 = vst.msk [vmem:[#allocation2 + $0x9] sm:$0xff] %vm123, %v187
    %192 = vst.msk [vmem:[#allocation2 + $0x19] sm:$0xff] %vm123, %v188
    %193 = vst.msk [vmem:[#allocation2 + $0x21] sm:$0xff] %vm123, %v189
    %vm194 = vcmask 522240
    %195 = vst.msk [vmem:[#allocation2 + $0x11] sm:$0x7f] %vm194, 0.0
    %196 = vst.msk [vmem:[#allocation2 + $0x29] sm:$0x7f] %vm194, 0.0
    %v197 = vld [vmem:[#allocation2] sm:$0xff]
    %v198 = vld [vmem:[#allocation2 + $0x8] sm:$0xff]
    %v199 = vld [vmem:[#allocation2 + $0x10] sm:$0xff]
    %v200 = vld [vmem:[#allocation2 + $0x18] sm:$0xff]
    %v201 = vld [vmem:[#allocation2 + $0x20] sm:$0xff]
    %v202 = vld [vmem:[#allocation2 + $0x28] sm:$0xff]
    %v203 = vlaneseq
    %v204 = vand.u32 %v203, 127
    %vm205 = vcmp.lt.s32.totalorder %v204, 17
    %v206 = vsel %vm205, 0.0, -1e+30
    %v207 = vld [vmem:[%s8] sm:$0xff]
    %v208 = vld [vmem:[%s8 + $0x8] sm:$0xff]
    %v209 = vsel %vm123, %v197, 0.0
    %210 = vadd.xlane.f32.xlu0 %v209
    %v211 = vpop.xlane.xlu0 %210
    %v212 = vsel %vm123, %v198, 0.0
    %213 = vadd.xlane.f32.xlu0 %v212
    %v214 = vpop.xlane.xlu0 %213
    %v215 = vsel %vm123, %v199, 0.0
    %216 = vadd.xlane.f32.xlu0 %v215
    %v217 = vpop.xlane.xlu0 %216
    %v218 = vsel %vm123, %v200, 0.0
    %219 = vadd.xlane.f32.xlu0 %v218
    %v220 = vpop.xlane.xlu0 %219
    %v221 = vsel %vm123, %v201, 0.0
    %222 = vadd.xlane.f32.xlu0 %v221
    %v223 = vpop.xlane.xlu0 %222
    %v224 = vsel %vm123, %v202, 0.0
    %225 = vadd.xlane.f32.xlu0 %v224
    %v226 = vpop.xlane.xlu0 %225
    %v227 = vrcp.pop 64.0
    %v228 = vmul.f32 %v211, %v227
    %v229 = vmul.f32 %v214, %v227
    %v230 = vmul.f32 %v217, %v227
    %v231 = vmul.f32 %v220, %v227
    %v232 = vmul.f32 %v223, %v227
    %v233 = vmul.f32 %v226, %v227
    %v234 = vsub.f32 %v197, %v228
    %v235 = vsub.f32 %v198, %v229
    %v236 = vsub.f32 %v199, %v230
    %v237 = vsub.f32 %v200, %v231
    %v238 = vsub.f32 %v201, %v232
    %v239 = vsub.f32 %v202, %v233
    %v240 = vmul.f32 %v234, %v234
    %v241 = vmul.f32 %v235, %v235
    %v242 = vmul.f32 %v236, %v236
    %v243 = vmul.f32 %v237, %v237
    %v244 = vmul.f32 %v238, %v238
    %v245 = vmul.f32 %v239, %v239
    %v246 = vsel %vm123, %v240, 0.0
    %247 = vadd.xlane.f32.xlu0 %v246
    %v248 = vpop.xlane.xlu0 %247
    %v249 = vsel %vm123, %v241, 0.0
    %250 = vadd.xlane.f32.xlu0 %v249
    %v251 = vpop.xlane.xlu0 %250
    %v252 = vsel %vm123, %v242, 0.0
    %253 = vadd.xlane.f32.xlu0 %v252
    %v254 = vpop.xlane.xlu0 %253
    %v255 = vsel %vm123, %v243, 0.0
    %256 = vadd.xlane.f32.xlu0 %v255
    %v257 = vpop.xlane.xlu0 %256
    %v258 = vsel %vm123, %v244, 0.0
    %259 = vadd.xlane.f32.xlu0 %v258
    %v260 = vpop.xlane.xlu0 %259
    %v261 = vsel %vm123, %v245, 0.0
    %262 = vadd.xlane.f32.xlu0 %v261
    %v263 = vpop.xlane.xlu0 %262
    %v264 = vmul.f32 %v248, %v227
    %v265 = vmul.f32 %v251, %v227
    %v266 = vmul.f32 %v254, %v227
    %v267 = vmul.f32 %v257, %v227
    %v268 = vmul.f32 %v260, %v227
    %v269 = vmul.f32 %v263, %v227
    %v270 = vadd.f32 %v264, 1e-05
    %v271 = vadd.f32 %v265, 1e-05
    %v272 = vadd.f32 %v266, 1e-05
    %v273 = vadd.f32 %v267, 1e-05
    %v274 = vadd.f32 %v268, 1e-05
    %v275 = vadd.f32 %v269, 1e-05
    %v276 = vrsqrt.pop %v270
    %v277 = vrsqrt.pop %v271
    %v278 = vrsqrt.pop %v272
    %v279 = vrsqrt.pop %v273
    %v280 = vrsqrt.pop %v274
    %v281 = vrsqrt.pop %v275
    %v282 = vmul.f32 %v234, %v276
    %v283 = vmul.f32 %v235, %v277
    %v284 = vmul.f32 %v236, %v278
    %v285 = vmul.f32 %v237, %v279
    %v286 = vmul.f32 %v238, %v280
    %v287 = vmul.f32 %v239, %v281
    %v288 = vlaneseq
    %v289 = vshrl.u32 %v288, 7
    %v290 = vsub.s32 0, %v289
    %v291 = vrot.slane %v207, %v290
    %v292 = vmul.f32 %v282, %v291
    %v293 = vmul.f32 %v283, %v291
    %v294 = vmul.f32 %v284, %v291
    %v295 = vmul.f32 %v285, %v291
    %v296 = vmul.f32 %v286, %v291
    %v297 = vmul.f32 %v287, %v291
    %v298 = vlaneseq
    %v299 = vshrl.u32 %v298, 7
    %v300 = vsub.s32 1, %v299
    %v301 = vrot.slane %v207, %v300
    %v302 = vadd.f32 %v292, %v301
    %v303 = vadd.f32 %v293, %v301
    %v304 = vadd.f32 %v294, %v301
    %v305 = vadd.f32 %v295, %v301
    %v306 = vadd.f32 %v296, %v301
    %v307 = vadd.f32 %v297, %v301
    %v308 = vpack.c.bf16 %v303, %v302
    %v309 = vpack.c.bf16 %v305, %v304
    %v310 = vpack.c.bf16 %v307, %v306
    %v311 = vld [vmem:[%s4] sm:$0xff]
    %v312 = vld [vmem:[%s4 + $0x8] sm:$0xff]
    %v313 = vld [vmem:[%s4 + $0x10] sm:$0xff]
    %v314 = vld [vmem:[%s4 + $0x18] sm:$0xff]
    %v315 = vld [vmem:[%s4 + $0x20] sm:$0xff]
    %v316 = vld [vmem:[%s4 + $0x28] sm:$0xff]
    %v317 = vld [vmem:[%s4 + $0x30] sm:$0xff]
    %v318 = vld [vmem:[%s4 + $0x38] sm:$0xff]
    %v319 = vlaneseq
    %v320 = vshrl.u32 %v319, 7
    %v321 = vsub.s32 2, %v320
    %v322 = vrot.slane %v207, %v321
    %v323 = vlaneseq
    %v324 = vshrl.u32 %v323, 7
    %v325 = vsub.s32 2, %v324
    %v326 = vrot.slane %v208, %v325
    %v335 = vunpack.c.l.b16 %v311
    %v336 = vunpack.c.h.b16 %v311
    %v337 = vunpack.c.l.b16 %v312
    %v338 = vunpack.c.h.b16 %v312
    %v339 = vunpack.c.l.b16 %v313
    %v340 = vunpack.c.h.b16 %v313
    %v341 = vunpack.c.l.b16 %v314
    %v342 = vunpack.c.h.b16 %v314
    %v343 = vunpack.c.l.b16 %v315
    %v344 = vunpack.c.h.b16 %v315
    %v345 = vunpack.c.l.b16 %v316
    %v346 = vunpack.c.h.b16 %v316
    %v347 = vunpack.c.l.b16 %v317
    %v348 = vunpack.c.h.b16 %v317
    %v349 = vunpack.c.l.b16 %v318
    %v350 = vunpack.c.h.b16 %v318
    %v351 = vpack.c.b16 %v337, %v335
    %v352 = vpack.c.b16 %v338, %v336
    %v353 = vpack.c.b16 %v341, %v339
    %v354 = vpack.c.b16 %v342, %v340
    %v355 = vpack.c.b16 %v345, %v343
    %v356 = vpack.c.b16 %v346, %v344
    %v357 = vpack.c.b16 %v349, %v347
    %v358 = vpack.c.b16 %v350, %v348
    %v368 = vsel %vm123, %v308, 0
    %v371 = vsel %vm123, %v309, 0
    %v374 = vsel %vm123, %v310, 0
    %376 = vmatprep.subr.bf16.mxu0 %v352
    %377 = vmatpush1.bf16.msra.mxu0 %v351
    %378 = vmatprep.subr.bf16.mxu0 %v354
    %379 = vmatpush1.bf16.msra.mxu0 %v353
    %380 = vmatprep.subr.bf16.mxu0 %v356
    %381 = vmatpush1.bf16.msra.mxu0 %v355
    %382 = vmatprep.subr.bf16.mxu0 %v358
    %383 = vmatpush1.bf16.msra.mxu0 %v357
    %384 = vmatprep.subr.bf16.mxu0 0
    %385 = vmatpush1.bf16.msra.mxu0 0
    %386 = vmatprep.subr.bf16.mxu0 0
    %387 = vmatpush1.bf16.msra.mxu0 0
    %388 = vmatprep.subr.bf16.mxu0 0
    %389 = vmatpush1.bf16.msra.mxu0 0
    %390 = vmatprep.subr.bf16.mxu0 0
    %391 = vmatpush1.bf16.msra.mxu0 0
    %392 = vmatprep.subr.bf16.mxu0 0
    %393 = vmatpush1.bf16.msra.mxu0 0
    %394 = vmatprep.subr.bf16.mxu0 0
    %395 = vmatpush1.bf16.msra.mxu0 0
    %396 = vmatprep.subr.bf16.mxu0 0
    %397 = vmatpush1.bf16.msra.mxu0 0
    %398 = vmatprep.subr.bf16.mxu0 0
    %399 = vmatpush1.bf16.msra.mxu0 0
    %400 = vmatprep.subr.bf16.mxu0 0
    %401 = vmatpush1.bf16.msra.mxu0 0
    %402 = vmatprep.subr.bf16.mxu0 0
    %403 = vmatpush1.bf16.msra.mxu0 0
    %404 = vmatprep.subr.bf16.mxu0 0
    %405 = vmatpush1.bf16.msra.mxu0 0
    %406 = vmatprep.subr.bf16.mxu0 0
    %407 = vmatpush1.bf16.msra.mxu0 0
    %408 = vmatprep.mubr.bf16.mxu0 0
    %409 = vmatmul.mubr.bf16.gmra.mrb[0].mxu0 %v368
    %v410 = vpop.f32.mrb[0].mxu0
    %v411 = vadd.f32 %v322, %v410
    %v412 = vpop.f32.mrb[0].mxu0
    %v413 = vadd.f32 %v326, %v412
    %v414 = vpop.f32.mrb[0].mxu0
    %v415 = vadd.f32 %v322, %v414
    %v416 = vpop.f32.mrb[0].mxu0
    %v417 = vadd.f32 %v326, %v416
    %418 = vmatprep.mubr.bf16.mxu0 0
    %419 = vmatmul.mubr.bf16.gmra.mrb[0].mxu0 %v371
    %v420 = vpop.f32.mrb[0].mxu0
    %v421 = vadd.f32 %v322, %v420
    %v422 = vpop.f32.mrb[0].mxu0
    %v423 = vadd.f32 %v326, %v422
    %v424 = vpop.f32.mrb[0].mxu0
    %v425 = vadd.f32 %v322, %v424
    %v426 = vpop.f32.mrb[0].mxu0
    %v427 = vadd.f32 %v326, %v426
    %428 = vmatprep.mubr.bf16.mxu0 0
    %429 = vmatmul.mubr.bf16.gmra.mrb[0].mxu0 %v374
    %v430 = vpop.f32.mrb[0].mxu0
    %v431 = vadd.f32 %v322, %v430
    %v432 = vpop.f32.mrb[0].mxu0
    %v433 = vadd.f32 %v326, %v432
    %v434 = vpop.f32.mrb[0].mxu0
    %v435 = vadd.f32 %v322, %v434
    %v436 = vpop.f32.mrb[0].mxu0
    %v437 = vadd.f32 %v326, %v436
    %438 = vdwg.mxu0
    %v439 = vpack.c.bf16 %v415, %v411
    %v440 = vpack.c.bf16 %v421, %v421
    %v441 = vpack.c.bf16 %v431, %v425
    %v442 = vpack.c.bf16 %v435, %v435
    %v443 = vpack.c.bf16 %v417, %v413
    %v444 = vpack.c.bf16 %v423, %v423
    %v445 = vpack.c.bf16 %v433, %v427
    %v446 = vpack.c.bf16 %v437, %v437
    %449 = vrot.lane.b32.xlu0 %v439, 64
    %v450 = vpop.permute.xlu0 %449
    %451 = vrot.lane.b32.xlu0 %v440, 64
    %v452 = vpop.permute.xlu0 %451
    %vm453 = vcmask 130048
    %v455 = vsel %vm453, %v439, 0
    %v458 = vsel %vm453, %v440, 0
    %v461 = vsel %vm453, %v450, 0
    %v464 = vsel %vm453, %v452, 0
    %466 = vmatprep.subr.bf16.mxu0 0
    %467 = vmatpush1.bf16.xpose.msra.mxu0 %v461
    %468 = vmatprep.subr.bf16.mxu0 0
    %469 = vmatpush1.bf16.xpose.msra.mxu0 %v464
    %470 = vmatprep.subr.bf16.mxu0 0
    %471 = vmatpush1.bf16.xpose.msra.mxu0 0
    %472 = vmatprep.subr.bf16.mxu0 0
    %473 = vmatpush1.bf16.xpose.msra.mxu0 0
    %474 = vmatprep.subr.bf16.mxu0 0
    %475 = vmatpush1.bf16.xpose.msra.mxu0 0
    %476 = vmatprep.subr.bf16.mxu0 0
    %477 = vmatpush1.bf16.xpose.msra.mxu0 0
    %478 = vmatprep.subr.bf16.mxu0 0
    %479 = vmatpush1.bf16.xpose.msra.mxu0 0
    %480 = vmatprep.subr.bf16.mxu0 0
    %481 = vmatpush1.bf16.xpose.msra.mxu0 0
    %482 = vmatprep.subr.bf16.mxu0 0
    %483 = vmatpush1.bf16.xpose.msra.mxu0 0
    %484 = vmatprep.subr.bf16.mxu0 0
    %485 = vmatpush1.bf16.xpose.msra.mxu0 0
    %486 = vmatprep.subr.bf16.mxu0 0
    %487 = vmatpush1.bf16.xpose.msra.mxu0 0
    %488 = vmatprep.subr.bf16.mxu0 0
    %489 = vmatpush1.bf16.xpose.msra.mxu0 0
    %490 = vmatprep.subr.bf16.mxu0 0
    %491 = vmatpush1.bf16.xpose.msra.mxu0 0
    %492 = vmatprep.subr.bf16.mxu0 0
    %493 = vmatpush1.bf16.xpose.msra.mxu0 0
    %494 = vmatprep.subr.bf16.mxu0 0
    %495 = vmatpush1.bf16.xpose.msra.mxu0 0
    %496 = vmatprep.subr.bf16.mxu0 0
    %497 = vmatpush1.bf16.xpose.msra.mxu0 0
    %498 = vmatprep.mubr.bf16.mxu0 0
    %499 = vmatmul.mubr.bf16.gmra.mrb[0].mxu0 %v455
    %v500 = vpop.f32.mrb[0].mxu0
    %v501 = vadd.f32 0.0, %v500
    %v502 = vpop.f32.mrb[0].mxu0
    %v503 = vpop.f32.mrb[0].mxu0
    %v504 = vadd.f32 0.0, %v503
    %v505 = vpop.f32.mrb[0].mxu0
    %506 = vmatprep.mubr.bf16.mxu0 0
    %507 = vmatmul.mubr.bf16.gmra.mrb[0].mxu0 %v458
    %v508 = vpop.f32.mrb[0].mxu0
    %v509 = vadd.f32 0.0, %v508
    %v510 = vpop.f32.mrb[0].mxu0
    %v511 = vpop.f32.mrb[0].mxu0
    %v512 = vpop.f32.mrb[0].mxu0
    %513 = vdwg.mxu0
    %516 = vrot.lane.b32.xlu0 %v441, 64
    %v517 = vpop.permute.xlu0 %516
    %518 = vrot.lane.b32.xlu0 %v442, 64
    %v519 = vpop.permute.xlu0 %518
    %v521 = vsel %vm453, %v441, 0
    %v524 = vsel %vm453, %v442, 0
    %v527 = vsel %vm453, %v517, 0
    %v530 = vsel %vm453, %v519, 0
    %532 = vmatprep.subr.bf16.mxu0 0
    %533 = vmatpush1.bf16.xpose.msra.mxu0 %v527
    %534 = vmatprep.subr.bf16.mxu0 0
    %535 = vmatpush1.bf16.xpose.msra.mxu0 %v530
    %536 = vmatprep.subr.bf16.mxu0 0
    %537 = vmatpush1.bf16.xpose.msra.mxu0 0
    %538 = vmatprep.subr.bf16.mxu0 0
    %539 = vmatpush1.bf16.xpose.msra.mxu0 0
    %540 = vmatprep.subr.bf16.mxu0 0
    %541 = vmatpush1.bf16.xpose.msra.mxu0 0
    %542 = vmatprep.subr.bf16.mxu0 0
    %543 = vmatpush1.bf16.xpose.msra.mxu0 0
    %544 = vmatprep.subr.bf16.mxu0 0
    %545 = vmatpush1.bf16.xpose.msra.mxu0 0
    %546 = vmatprep.subr.bf16.mxu0 0
    %547 = vmatpush1.bf16.xpose.msra.mxu0 0
    %548 = vmatprep.subr.bf16.mxu0 0
    %549 = vmatpush1.bf16.xpose.msra.mxu0 0
    %550 = vmatprep.subr.bf16.mxu0 0
    %551 = vmatpush1.bf16.xpose.msra.mxu0 0
    %552 = vmatprep.subr.bf16.mxu0 0
    %553 = vmatpush1.bf16.xpose.msra.mxu0 0
    %554 = vmatprep.subr.bf16.mxu0 0
    %555 = vmatpush1.bf16.xpose.msra.mxu0 0
    %556 = vmatprep.subr.bf16.mxu0 0
    %557 = vmatpush1.bf16.xpose.msra.mxu0 0
    %558 = vmatprep.subr.bf16.mxu0 0
    %559 = vmatpush1.bf16.xpose.msra.mxu0 0
    %560 = vmatprep.subr.bf16.mxu0 0
    %561 = vmatpush1.bf16.xpose.msra.mxu0 0
    %562 = vmatprep.subr.bf16.mxu0 0
    %563 = vmatpush1.bf16.xpose.msra.mxu0 0
    %564 = vmatprep.mubr.bf16.mxu0 0
    %565 = vmatmul.mubr.bf16.gmra.mrb[0].mxu0 %v521
    %v566 = vpop.f32.mrb[0].mxu0
    %v567 = vadd.f32 0.0, %v566
    %v568 = vpop.f32.mrb[0].mxu0
    %v569 = vpop.f32.mrb[0].mxu0
    %v570 = vadd.f32 0.0, %v569
    %v571 = vpop.f32.mrb[0].mxu0
    %572 = vmatprep.mubr.bf16.mxu0 0
    %573 = vmatmul.mubr.bf16.gmra.mrb[0].mxu0 %v524
    %v574 = vpop.f32.mrb[0].mxu0
    %v575 = vadd.f32 0.0, %v574
    %v576 = vpop.f32.mrb[0].mxu0
    %v577 = vpop.f32.mrb[0].mxu0
    %v578 = vpop.f32.mrb[0].mxu0
    %579 = vdwg.mxu0
    %v580 = vmul.f32 %v501, 0.25
    %v581 = vmul.f32 %v504, 0.25
    %v582 = vmul.f32 %v509, 0.25
    %v583 = vmul.f32 %v567, 0.25
    %v584 = vmul.f32 %v570, 0.25
    %v585 = vmul.f32 %v575, 0.25
    %v586 = vadd.f32 %v580, %v206
    %v587 = vadd.f32 %v581, %v206
    %v588 = vadd.f32 %v582, %v206
    %v589 = vadd.f32 %v583, %v206
    %v590 = vadd.f32 %v584, %v206
    %v591 = vadd.f32 %v585, %v206
    %vm592 = vcmask 195584
    %v593 = vsel %vm592, %v586, -inf
    %594 = vmax.xlane.f32.xlu0 %v593
    %v595 = vpop.xlane.xlu0 %594
    %v596 = vsel %vm592, %v587, -inf
    %597 = vmax.xlane.f32.xlu0 %v596
    %v598 = vpop.xlane.xlu0 %597
    %v599 = vsel %vm592, %v588, -inf
    %600 = vmax.xlane.f32.xlu0 %v599
    %v601 = vpop.xlane.xlu0 %600
    %v602 = vsel %vm592, %v589, -inf
    %603 = vmax.xlane.f32.xlu0 %v602
    %v604 = vpop.xlane.xlu0 %603
    %v605 = vsel %vm592, %v590, -inf
    %606 = vmax.xlane.f32.xlu0 %v605
    %v607 = vpop.xlane.xlu0 %606
    %v608 = vsel %vm592, %v591, -inf
    %609 = vmax.xlane.f32.xlu0 %v608
    %v610 = vpop.xlane.xlu0 %609
    %v611 = vsub.f32 %v586, %v595
    %v612 = vsub.f32 %v587, %v598
    %v613 = vsub.f32 %v588, %v601
    %v614 = vsub.f32 %v589, %v604
    %v615 = vsub.f32 %v590, %v607
    %v616 = vsub.f32 %v591, %v610
    %v617 = vmul.f32 %v611, 1.442695
    %v618 = vpow.pop %v617
    %v619 = vmul.f32 %v612, 1.442695
    %v620 = vpow.pop %v619
    %v621 = vmul.f32 %v613, 1.442695
    %v622 = vpow.pop %v621
    %v623 = vmul.f32 %v614, 1.442695
    %v624 = vpow.pop %v623
    %v625 = vmul.f32 %v615, 1.442695
    %v626 = vpow.pop %v625
    %v627 = vmul.f32 %v616, 1.442695
    %v628 = vpow.pop %v627
    %v629 = vsel %vm592, %v618, 0.0
    %630 = vadd.xlane.f32.xlu0 %v629
    %v631 = vpop.xlane.xlu0 %630
    %v632 = vsel %vm592, %v620, 0.0
    %633 = vadd.xlane.f32.xlu0 %v632
    %v634 = vpop.xlane.xlu0 %633
    %v635 = vsel %vm592, %v622, 0.0
    %636 = vadd.xlane.f32.xlu0 %v635
    %v637 = vpop.xlane.xlu0 %636
    %v638 = vsel %vm592, %v624, 0.0
    %639 = vadd.xlane.f32.xlu0 %v638
    %v640 = vpop.xlane.xlu0 %639
    %v641 = vsel %vm592, %v626, 0.0
    %642 = vadd.xlane.f32.xlu0 %v641
    %v643 = vpop.xlane.xlu0 %642
    %v644 = vsel %vm592, %v628, 0.0
    %645 = vadd.xlane.f32.xlu0 %v644
    %v646 = vpop.xlane.xlu0 %645
    %v647 = vrcp.pop %v631
    %v648 = vmul.f32 %v618, %v647
    %v649 = vrcp.pop %v634
    %v650 = vmul.f32 %v620, %v649
    %v651 = vrcp.pop %v637
    %v652 = vmul.f32 %v622, %v651
    %v653 = vrcp.pop %v640
    %v654 = vmul.f32 %v624, %v653
    %v655 = vrcp.pop %v643
    %v656 = vmul.f32 %v626, %v655
    %v657 = vrcp.pop %v646
    %v658 = vmul.f32 %v628, %v657
    %v659 = vpack.c.bf16 %v650, %v648
    %v660 = vpack.c.bf16 %v652, %v652
    %v661 = vpack.c.bf16 %v656, %v654
    %v662 = vpack.c.bf16 %v658, %v658
    %v664 = vsel %vm592, %v659, 0
    %v667 = vsel %vm592, %v660, 0
    %vm669 = vcmask 1043456
    %v671 = vsel %vm669, %v444, 0
    %673 = vmatprep.subr.bf16.mxu0 0
    %674 = vmatpush1.bf16.msra.mxu0 %v443
    %675 = vmatprep.subr.bf16.mxu0 0
    %676 = vmatpush1.bf16.msra.mxu0 %v671
    %677 = vmatprep.subr.bf16.mxu0 0
    %678 = vmatpush1.bf16.msra.mxu0 0
    %679 = vmatprep.subr.bf16.mxu0 0
    %680 = vmatpush1.bf16.msra.mxu0 0
    %681 = vmatprep.subr.bf16.mxu0 0
    %682 = vmatpush1.bf16.msra.mxu0 0
    %683 = vmatprep.subr.bf16.mxu0 0
    %684 = vmatpush1.bf16.msra.mxu0 0
    %685 = vmatprep.subr.bf16.mxu0 0
    %686 = vmatpush1.bf16.msra.mxu0 0
    %687 = vmatprep.subr.bf16.mxu0 0
    %688 = vmatpush1.bf16.msra.mxu0 0
    %689 = vmatprep.subr.bf16.mxu0 0
    %690 = vmatpush1.bf16.msra.mxu0 0
    %691 = vmatprep.subr.bf16.mxu0 0
    %692 = vmatpush1.bf16.msra.mxu0 0
    %693 = vmatprep.subr.bf16.mxu0 0
    %694 = vmatpush1.bf16.msra.mxu0 0
    %695 = vmatprep.subr.bf16.mxu0 0
    %696 = vmatpush1.bf16.msra.mxu0 0
    %697 = vmatprep.subr.bf16.mxu0 0
    %698 = vmatpush1.bf16.msra.mxu0 0
    %699 = vmatprep.subr.bf16.mxu0 0
    %700 = vmatpush1.bf16.msra.mxu0 0
    %701 = vmatprep.subr.bf16.mxu0 0
    %702 = vmatpush1.bf16.msra.mxu0 0
    %703 = vmatprep.subr.bf16.mxu0 0
    %704 = vmatpush1.bf16.msra.mxu0 0
    %705 = vmatprep.mubr.bf16.mxu0 0
    %706 = vmatmul.mubr.bf16.gmra.mrb[0].mxu0 %v664
    %v707 = vpop.f32.mrb[0].mxu0
    %v708 = vadd.f32 0.0, %v707
    %v709 = vpop.f32.mrb[0].mxu0
    %v710 = vpop.f32.mrb[0].mxu0
    %v711 = vadd.f32 0.0, %v710
    %v712 = vpop.f32.mrb[0].mxu0
    %713 = vmatprep.mubr.bf16.mxu0 0
    %714 = vmatmul.mubr.bf16.gmra.mrb[0].mxu0 %v667
    %v715 = vpop.f32.mrb[0].mxu0
    %v716 = vadd.f32 0.0, %v715
    %v717 = vpop.f32.mrb[0].mxu0
    %v718 = vpop.f32.mrb[0].mxu0
    %v719 = vpop.f32.mrb[0].mxu0
    %720 = vdwg.mxu0
    %v722 = vsel %vm592, %v661, 0
    %v725 = vsel %vm592, %v662, 0
    %v728 = vsel %vm669, %v446, 0
    %730 = vmatprep.subr.bf16.mxu0 0
    %731 = vmatpush1.bf16.msra.mxu0 %v445
    %732 = vmatprep.subr.bf16.mxu0 0
    %733 = vmatpush1.bf16.msra.mxu0 %v728
    %734 = vmatprep.subr.bf16.mxu0 0
    %735 = vmatpush1.bf16.msra.mxu0 0
    %736 = vmatprep.subr.bf16.mxu0 0
    %737 = vmatpush1.bf16.msra.mxu0 0
    %738 = vmatprep.subr.bf16.mxu0 0
    %739 = vmatpush1.bf16.msra.mxu0 0
    %740 = vmatprep.subr.bf16.mxu0 0
    %741 = vmatpush1.bf16.msra.mxu0 0
    %742 = vmatprep.subr.bf16.mxu0 0
    %743 = vmatpush1.bf16.msra.mxu0 0
    %744 = vmatprep.subr.bf16.mxu0 0
    %745 = vmatpush1.bf16.msra.mxu0 0
    %746 = vmatprep.subr.bf16.mxu0 0
    %747 = vmatpush1.bf16.msra.mxu0 0
    %748 = vmatprep.subr.bf16.mxu0 0
    %749 = vmatpush1.bf16.msra.mxu0 0
    %750 = vmatprep.subr.bf16.mxu0 0
    %751 = vmatpush1.bf16.msra.mxu0 0
    %752 = vmatprep.subr.bf16.mxu0 0
    %753 = vmatpush1.bf16.msra.mxu0 0
    %754 = vmatprep.subr.bf16.mxu0 0
    %755 = vmatpush1.bf16.msra.mxu0 0
    %756 = vmatprep.subr.bf16.mxu0 0
    %757 = vmatpush1.bf16.msra.mxu0 0
    %758 = vmatprep.subr.bf16.mxu0 0
    %759 = vmatpush1.bf16.msra.mxu0 0
    %760 = vmatprep.subr.bf16.mxu0 0
    %761 = vmatpush1.bf16.msra.mxu0 0
    %762 = vmatprep.mubr.bf16.mxu0 0
    %763 = vmatmul.mubr.bf16.gmra.mrb[0].mxu0 %v722
    %v764 = vpop.f32.mrb[0].mxu0
    %v765 = vadd.f32 0.0, %v764
    %v766 = vpop.f32.mrb[0].mxu0
    %v767 = vpop.f32.mrb[0].mxu0
    %v768 = vadd.f32 0.0, %v767
    %v769 = vpop.f32.mrb[0].mxu0
    %770 = vmatprep.mubr.bf16.mxu0 0
    %771 = vmatmul.mubr.bf16.gmra.mrb[0].mxu0 %v725
    %v772 = vpop.f32.mrb[0].mxu0
    %v773 = vadd.f32 0.0, %v772
    %v774 = vpop.f32.mrb[0].mxu0
    %v775 = vpop.f32.mrb[0].mxu0
    %v776 = vpop.f32.mrb[0].mxu0
    %777 = vdwg.mxu0
    %778 = vrot.lane.b32.xlu0 %v439, 112
    %v779 = vpop.permute.xlu0 %778
    %780 = vrot.lane.b32.xlu0 %v440, 112
    %v781 = vpop.permute.xlu0 %780
    %782 = vrot.lane.b32.xlu0 %v439, 48
    %v783 = vpop.permute.xlu0 %782
    %784 = vrot.lane.b32.xlu0 %v440, 48
    %v785 = vpop.permute.xlu0 %784
    %v787 = vsel %vm453, %v779, 0
    %v790 = vsel %vm453, %v781, 0
    %v793 = vsel %vm453, %v783, 0
    %v796 = vsel %vm453, %v785, 0
    %798 = vmatprep.subr.bf16.mxu0 0
    %799 = vmatpush1.bf16.xpose.msra.mxu0 %v793
    %800 = vmatprep.subr.bf16.mxu0 0
    %801 = vmatpush1.bf16.xpose.msra.mxu0 %v796
    %802 = vmatprep.subr.bf16.mxu0 0
    %803 = vmatpush1.bf16.xpose.msra.mxu0 0
    %804 = vmatprep.subr.bf16.mxu0 0
    %805 = vmatpush1.bf16.xpose.msra.mxu0 0
    %806 = vmatprep.subr.bf16.mxu0 0
    %807 = vmatpush1.bf16.xpose.msra.mxu0 0
    %808 = vmatprep.subr.bf16.mxu0 0
    %809 = vmatpush1.bf16.xpose.msra.mxu0 0
    %810 = vmatprep.subr.bf16.mxu0 0
    %811 = vmatpush1.bf16.xpose.msra.mxu0 0
    %812 = vmatprep.subr.bf16.mxu0 0
    %813 = vmatpush1.bf16.xpose.msra.mxu0 0
    %814 = vmatprep.subr.bf16.mxu0 0
    %815 = vmatpush1.bf16.xpose.msra.mxu0 0
    %816 = vmatprep.subr.bf16.mxu0 0
    %817 = vmatpush1.bf16.xpose.msra.mxu0 0
    %818 = vmatprep.subr.bf16.mxu0 0
    %819 = vmatpush1.bf16.xpose.msra.mxu0 0
    %820 = vmatprep.subr.bf16.mxu0 0
    %821 = vmatpush1.bf16.xpose.msra.mxu0 0
    %822 = vmatprep.subr.bf16.mxu0 0
    %823 = vmatpush1.bf16.xpose.msra.mxu0 0
    %824 = vmatprep.subr.bf16.mxu0 0
    %825 = vmatpush1.bf16.xpose.msra.mxu0 0
    %826 = vmatprep.subr.bf16.mxu0 0
    %827 = vmatpush1.bf16.xpose.msra.mxu0 0
    %828 = vmatprep.subr.bf16.mxu0 0
    %829 = vmatpush1.bf16.xpose.msra.mxu0 0
    %830 = vmatprep.mubr.bf16.mxu0 0
    %831 = vmatmul.mubr.bf16.gmra.mrb[0].mxu0 %v787
    %v832 = vpop.f32.mrb[0].mxu0
    %v833 = vadd.f32 0.0, %v832
    %v834 = vpop.f32.mrb[0].mxu0
    %v835 = vpop.f32.mrb[0].mxu0
    %v836 = vadd.f32 0.0, %v835
    %v837 = vpop.f32.mrb[0].mxu0
    %838 = vmatprep.mubr.bf16.mxu0 0
    %839 = vmatmul.mubr.bf16.gmra.mrb[0].mxu0 %v790
    %v840 = vpop.f32.mrb[0].mxu0
    %v841 = vadd.f32 0.0, %v840
    %v842 = vpop.f32.mrb[0].mxu0
    %v843 = vpop.f32.mrb[0].mxu0
    %v844 = vpop.f32.mrb[0].mxu0
    %845 = vdwg.mxu0
    %846 = vrot.lane.b32.xlu0 %v441, 112
    %v847 = vpop.permute.xlu0 %846
    %848 = vrot.lane.b32.xlu0 %v442, 112
    %v849 = vpop.permute.xlu0 %848
    %850 = vrot.lane.b32.xlu0 %v441, 48
    %v851 = vpop.permute.xlu0 %850
    %852 = vrot.lane.b32.xlu0 %v442, 48
    %v853 = vpop.permute.xlu0 %852
    %v855 = vsel %vm453, %v847, 0
    %v858 = vsel %vm453, %v849, 0
    %v861 = vsel %vm453, %v851, 0
    %v864 = vsel %vm453, %v853, 0
    %866 = vmatprep.subr.bf16.mxu0 0
    %867 = vmatpush1.bf16.xpose.msra.mxu0 %v861
    %868 = vmatprep.subr.bf16.mxu0 0
    %869 = vmatpush1.bf16.xpose.msra.mxu0 %v864
    %870 = vmatprep.subr.bf16.mxu0 0
    %871 = vmatpush1.bf16.xpose.msra.mxu0 0
    %872 = vmatprep.subr.bf16.mxu0 0
    %873 = vmatpush1.bf16.xpose.msra.mxu0 0
    %874 = vmatprep.subr.bf16.mxu0 0
    %875 = vmatpush1.bf16.xpose.msra.mxu0 0
    %876 = vmatprep.subr.bf16.mxu0 0
    %877 = vmatpush1.bf16.xpose.msra.mxu0 0
    %878 = vmatprep.subr.bf16.mxu0 0
    %879 = vmatpush1.bf16.xpose.msra.mxu0 0
    %880 = vmatprep.subr.bf16.mxu0 0
    %881 = vmatpush1.bf16.xpose.msra.mxu0 0
    %882 = vmatprep.subr.bf16.mxu0 0
    %883 = vmatpush1.bf16.xpose.msra.mxu0 0
    %884 = vmatprep.subr.bf16.mxu0 0
    %885 = vmatpush1.bf16.xpose.msra.mxu0 0
    %886 = vmatprep.subr.bf16.mxu0 0
    %887 = vmatpush1.bf16.xpose.msra.mxu0 0
    %888 = vmatprep.subr.bf16.mxu0 0
    %889 = vmatpush1.bf16.xpose.msra.mxu0 0
    %890 = vmatprep.subr.bf16.mxu0 0
    %891 = vmatpush1.bf16.xpose.msra.mxu0 0
    %892 = vmatprep.subr.bf16.mxu0 0
    %893 = vmatpush1.bf16.xpose.msra.mxu0 0
    %894 = vmatprep.subr.bf16.mxu0 0
    %895 = vmatpush1.bf16.xpose.msra.mxu0 0
    %896 = vmatprep.subr.bf16.mxu0 0
    %897 = vmatpush1.bf16.xpose.msra.mxu0 0
    %898 = vmatprep.mubr.bf16.mxu0 0
    %899 = vmatmul.mubr.bf16.gmra.mrb[0].mxu0 %v855
    %v900 = vpop.f32.mrb[0].mxu0
    %v901 = vadd.f32 0.0, %v900
    %v902 = vpop.f32.mrb[0].mxu0
    %v903 = vpop.f32.mrb[0].mxu0
    %v904 = vadd.f32 0.0, %v903
    %v905 = vpop.f32.mrb[0].mxu0
    %906 = vmatprep.mubr.bf16.mxu0 0
    %907 = vmatmul.mubr.bf16.gmra.mrb[0].mxu0 %v858
    %v908 = vpop.f32.mrb[0].mxu0
    %v909 = vadd.f32 0.0, %v908
    %v910 = vpop.f32.mrb[0].mxu0
    %v911 = vpop.f32.mrb[0].mxu0
    %v912 = vpop.f32.mrb[0].mxu0
    %913 = vdwg.mxu0
    %v914 = vmul.f32 %v833, 0.25
    %v915 = vmul.f32 %v836, 0.25
    %v916 = vmul.f32 %v841, 0.25
    %v917 = vmul.f32 %v901, 0.25
    %v918 = vmul.f32 %v904, 0.25
    %v919 = vmul.f32 %v909, 0.25
    %v920 = vadd.f32 %v914, %v206
    %v921 = vadd.f32 %v915, %v206
    %v922 = vadd.f32 %v916, %v206
    %v923 = vadd.f32 %v917, %v206
    %v924 = vadd.f32 %v918, %v206
    %v925 = vadd.f32 %v919, %v206
    %v926 = vsel %vm592, %v920, -inf
    %927 = vmax.xlane.f32.xlu0 %v926
    %v928 = vpop.xlane.xlu0 %927
    %v929 = vsel %vm592, %v921, -inf
    %930 = vmax.xlane.f32.xlu0 %v929
    %v931 = vpop.xlane.xlu0 %930
    %v932 = vsel %vm592, %v922, -inf
    %933 = vmax.xlane.f32.xlu0 %v932
    %v934 = vpop.xlane.xlu0 %933
    %v935 = vsel %vm592, %v923, -inf
    %936 = vmax.xlane.f32.xlu0 %v935
    %v937 = vpop.xlane.xlu0 %936
    %v938 = vsel %vm592, %v924, -inf
    %939 = vmax.xlane.f32.xlu0 %v938
    %v940 = vpop.xlane.xlu0 %939
    %v941 = vsel %vm592, %v925, -inf
    %942 = vmax.xlane.f32.xlu0 %v941
    %v943 = vpop.xlane.xlu0 %942
    %v944 = vsub.f32 %v920, %v928
    %v945 = vsub.f32 %v921, %v931
    %v946 = vsub.f32 %v922, %v934
    %v947 = vsub.f32 %v923, %v937
    %v948 = vsub.f32 %v924, %v940
    %v949 = vsub.f32 %v925, %v943
    %v950 = vmul.f32 %v944, 1.442695
    %v951 = vpow.pop %v950
    %v952 = vmul.f32 %v945, 1.442695
    %v953 = vpow.pop %v952
    %v954 = vmul.f32 %v946, 1.442695
    %v955 = vpow.pop %v954
    %v956 = vmul.f32 %v947, 1.442695
    %v957 = vpow.pop %v956
    %v958 = vmul.f32 %v948, 1.442695
    %v959 = vpow.pop %v958
    %v960 = vmul.f32 %v949, 1.442695
    %v961 = vpow.pop %v960
    %v962 = vsel %vm592, %v951, 0.0
    %963 = vadd.xlane.f32.xlu0 %v962
    %v964 = vpop.xlane.xlu0 %963
    %v965 = vsel %vm592, %v953, 0.0
    %966 = vadd.xlane.f32.xlu0 %v965
    %v967 = vpop.xlane.xlu0 %966
    %v968 = vsel %vm592, %v955, 0.0
    %969 = vadd.xlane.f32.xlu0 %v968
    %v970 = vpop.xlane.xlu0 %969
    %v971 = vsel %vm592, %v957, 0.0
    %972 = vadd.xlane.f32.xlu0 %v971
    %v973 = vpop.xlane.xlu0 %972
    %v974 = vsel %vm592, %v959, 0.0
    %975 = vadd.xlane.f32.xlu0 %v974
    %v976 = vpop.xlane.xlu0 %975
    %v977 = vsel %vm592, %v961, 0.0
    %978 = vadd.xlane.f32.xlu0 %v977
    %v979 = vpop.xlane.xlu0 %978
    %v980 = vrcp.pop %v964
    %v981 = vmul.f32 %v951, %v980
    %v982 = vrcp.pop %v967
    %v983 = vmul.f32 %v953, %v982
    %v984 = vrcp.pop %v970
    %v985 = vmul.f32 %v955, %v984
    %v986 = vrcp.pop %v973
    %v987 = vmul.f32 %v957, %v986
    %v988 = vrcp.pop %v976
    %v989 = vmul.f32 %v959, %v988
    %v990 = vrcp.pop %v979
    %v991 = vmul.f32 %v961, %v990
    %v992 = vpack.c.bf16 %v983, %v981
    %v993 = vpack.c.bf16 %v985, %v985
    %v994 = vpack.c.bf16 %v989, %v987
    %v995 = vpack.c.bf16 %v991, %v991
    %998 = vrot.lane.b32.xlu0 %v443, 112
    %v999 = vpop.permute.xlu0 %998
    %1000 = vrot.lane.b32.xlu0 %v444, 112
    %v1001 = vpop.permute.xlu0 %1000
    %v1004 = vsel %vm592, %v992, 0
    %v1007 = vsel %vm592, %v993, 0
    %v1010 = vsel %vm669, %v1001, 0
    %1012 = vmatprep.subr.bf16.mxu0 0
    %1013 = vmatpush1.bf16.msra.mxu0 %v999
    %1014 = vmatprep.subr.bf16.mxu0 0
    %1015 = vmatpush1.bf16.msra.mxu0 %v1010
    %1016 = vmatprep.subr.bf16.mxu0 0
    %1017 = vmatpush1.bf16.msra.mxu0 0
    %1018 = vmatprep.subr.bf16.mxu0 0
    %1019 = vmatpush1.bf16.msra.mxu0 0
    %1020 = vmatprep.subr.bf16.mxu0 0
    %1021 = vmatpush1.bf16.msra.mxu0 0
    %1022 = vmatprep.subr.bf16.mxu0 0
    %1023 = vmatpush1.bf16.msra.mxu0 0
    %1024 = vmatprep.subr.bf16.mxu0 0
    %1025 = vmatpush1.bf16.msra.mxu0 0
    %1026 = vmatprep.subr.bf16.mxu0 0
    %1027 = vmatpush1.bf16.msra.mxu0 0
    %1028 = vmatprep.subr.bf16.mxu0 0
    %1029 = vmatpush1.bf16.msra.mxu0 0
    %1030 = vmatprep.subr.bf16.mxu0 0
    %1031 = vmatpush1.bf16.msra.mxu0 0
    %1032 = vmatprep.subr.bf16.mxu0 0
    %1033 = vmatpush1.bf16.msra.mxu0 0
    %1034 = vmatprep.subr.bf16.mxu0 0
    %1035 = vmatpush1.bf16.msra.mxu0 0
    %1036 = vmatprep.subr.bf16.mxu0 0
    %1037 = vmatpush1.bf16.msra.mxu0 0
    %1038 = vmatprep.subr.bf16.mxu0 0
    %1039 = vmatpush1.bf16.msra.mxu0 0
    %1040 = vmatprep.subr.bf16.mxu0 0
    %1041 = vmatpush1.bf16.msra.mxu0 0
    %1042 = vmatprep.subr.bf16.mxu0 0
    %1043 = vmatpush1.bf16.msra.mxu0 0
    %1044 = vmatprep.mubr.bf16.mxu0 0
    %1045 = vmatmul.mubr.bf16.gmra.mrb[0].mxu0 %v1004
    %v1046 = vpop.f32.mrb[0].mxu0
    %v1047 = vadd.f32 0.0, %v1046
    %v1048 = vpop.f32.mrb[0].mxu0
    %v1049 = vpop.f32.mrb[0].mxu0
    %v1050 = vadd.f32 0.0, %v1049
    %v1051 = vpop.f32.mrb[0].mxu0
    %1052 = vmatprep.mubr.bf16.mxu0 0
    %1053 = vmatmul.mubr.bf16.gmra.mrb[0].mxu0 %v1007
    %v1054 = vpop.f32.mrb[0].mxu0
    %v1055 = vadd.f32 0.0, %v1054
    %v1056 = vpop.f32.mrb[0].mxu0
    %v1057 = vpop.f32.mrb[0].mxu0
    %v1058 = vpop.f32.mrb[0].mxu0
    %1059 = vdwg.mxu0
    %1062 = vrot.lane.b32.xlu0 %v445, 112
    %v1063 = vpop.permute.xlu0 %1062
    %1064 = vrot.lane.b32.xlu0 %v446, 112
    %v1065 = vpop.permute.xlu0 %1064
    %v1068 = vsel %vm592, %v994, 0
    %v1071 = vsel %vm592, %v995, 0
    %v1074 = vsel %vm669, %v1065, 0
    %1076 = vmatprep.subr.bf16.mxu0 0
    %1077 = vmatpush1.bf16.msra.mxu0 %v1063
    %1078 = vmatprep.subr.bf16.mxu0 0
    %1079 = vmatpush1.bf16.msra.mxu0 %v1074
    %1080 = vmatprep.subr.bf16.mxu0 0
    %1081 = vmatpush1.bf16.msra.mxu0 0
    %1082 = vmatprep.subr.bf16.mxu0 0
    %1083 = vmatpush1.bf16.msra.mxu0 0
    %1084 = vmatprep.subr.bf16.mxu0 0
    %1085 = vmatpush1.bf16.msra.mxu0 0
    %1086 = vmatprep.subr.bf16.mxu0 0
    %1087 = vmatpush1.bf16.msra.mxu0 0
    %1088 = vmatprep.subr.bf16.mxu0 0
    %1089 = vmatpush1.bf16.msra.mxu0 0
    %1090 = vmatprep.subr.bf16.mxu0 0
    %1091 = vmatpush1.bf16.msra.mxu0 0
    %1092 = vmatprep.subr.bf16.mxu0 0
    %1093 = vmatpush1.bf16.msra.mxu0 0
    %1094 = vmatprep.subr.bf16.mxu0 0
    %1095 = vmatpush1.bf16.msra.mxu0 0
    %1096 = vmatprep.subr.bf16.mxu0 0
    %1097 = vmatpush1.bf16.msra.mxu0 0
    %1098 = vmatprep.subr.bf16.mxu0 0
    %1099 = vmatpush1.bf16.msra.mxu0 0
    %1100 = vmatprep.subr.bf16.mxu0 0
    %1101 = vmatpush1.bf16.msra.mxu0 0
    %1102 = vmatprep.subr.bf16.mxu0 0
    %1103 = vmatpush1.bf16.msra.mxu0 0
    %1104 = vmatprep.subr.bf16.mxu0 0
    %1105 = vmatpush1.bf16.msra.mxu0 0
    %1106 = vmatprep.subr.bf16.mxu0 0
    %1107 = vmatpush1.bf16.msra.mxu0 0
    %1108 = vmatprep.mubr.bf16.mxu0 0
    %1109 = vmatmul.mubr.bf16.gmra.mrb[0].mxu0 %v1068
    %v1110 = vpop.f32.mrb[0].mxu0
    %v1111 = vadd.f32 0.0, %v1110
    %v1112 = vpop.f32.mrb[0].mxu0
    %v1113 = vpop.f32.mrb[0].mxu0
    %v1114 = vadd.f32 0.0, %v1113
    %v1115 = vpop.f32.mrb[0].mxu0
    %1116 = vmatprep.mubr.bf16.mxu0 0
    %1117 = vmatmul.mubr.bf16.gmra.mrb[0].mxu0 %v1071
    %v1118 = vpop.f32.mrb[0].mxu0
    %v1119 = vadd.f32 0.0, %v1118
    %v1120 = vpop.f32.mrb[0].mxu0
    %v1121 = vpop.f32.mrb[0].mxu0
    %v1122 = vpop.f32.mrb[0].mxu0
    %1123 = vdwg.mxu0
    %1124 = vrot.lane.b32.xlu0 %v439, 96
    %v1125 = vpop.permute.xlu0 %1124
    %1126 = vrot.lane.b32.xlu0 %v440, 96
    %v1127 = vpop.permute.xlu0 %1126
    %1128 = vrot.lane.b32.xlu0 %v439, 32
    %v1129 = vpop.permute.xlu0 %1128
    %1130 = vrot.lane.b32.xlu0 %v440, 32
    %v1131 = vpop.permute.xlu0 %1130
    %v1133 = vsel %vm453, %v1125, 0
    %v1136 = vsel %vm453, %v1127, 0
    %v1139 = vsel %vm453, %v1129, 0
    %v1142 = vsel %vm453, %v1131, 0
    %1144 = vmatprep.subr.bf16.mxu0 0
    %1145 = vmatpush1.bf16.xpose.msra.mxu0 %v1139
    %1146 = vmatprep.subr.bf16.mxu0 0
    %1147 = vmatpush1.bf16.xpose.msra.mxu0 %v1142
    %1148 = vmatprep.subr.bf16.mxu0 0
    %1149 = vmatpush1.bf16.xpose.msra.mxu0 0
    %1150 = vmatprep.subr.bf16.mxu0 0
    %1151 = vmatpush1.bf16.xpose.msra.mxu0 0
    %1152 = vmatprep.subr.bf16.mxu0 0
    %1153 = vmatpush1.bf16.xpose.msra.mxu0 0
    %1154 = vmatprep.subr.bf16.mxu0 0
    %1155 = vmatpush1.bf16.xpose.msra.mxu0 0
    %1156 = vmatprep.subr.bf16.mxu0 0
    %1157 = vmatpush1.bf16.xpose.msra.mxu0 0
    %1158 = vmatprep.subr.bf16.mxu0 0
    %1159 = vmatpush1.bf16.xpose.msra.mxu0 0
    %1160 = vmatprep.subr.bf16.mxu0 0
    %1161 = vmatpush1.bf16.xpose.msra.mxu0 0
    %1162 = vmatprep.subr.bf16.mxu0 0
    %1163 = vmatpush1.bf16.xpose.msra.mxu0 0
    %1164 = vmatprep.subr.bf16.mxu0 0
    %1165 = vmatpush1.bf16.xpose.msra.mxu0 0
    %1166 = vmatprep.subr.bf16.mxu0 0
    %1167 = vmatpush1.bf16.xpose.msra.mxu0 0
    %1168 = vmatprep.subr.bf16.mxu0 0
    %1169 = vmatpush1.bf16.xpose.msra.mxu0 0
    %1170 = vmatprep.subr.bf16.mxu0 0
    %1171 = vmatpush1.bf16.xpose.msra.mxu0 0
    %1172 = vmatprep.subr.bf16.mxu0 0
    %1173 = vmatpush1.bf16.xpose.msra.mxu0 0
    %1174 = vmatprep.subr.bf16.mxu0 0
    %1175 = vmatpush1.bf16.xpose.msra.mxu0 0
    %1176 = vmatprep.mubr.bf16.mxu0 0
    %1177 = vmatmul.mubr.bf16.gmra.mrb[0].mxu0 %v1133
    %v1178 = vpop.f32.mrb[0].mxu0
    %v1179 = vadd.f32 0.0, %v1178
    %v1180 = vpop.f32.mrb[0].mxu0
    %v1181 = vpop.f32.mrb[0].mxu0
    %v1182 = vadd.f32 0.0, %v1181
    %v1183 = vpop.f32.mrb[0].mxu0
    %1184 = vmatprep.mubr.bf16.mxu0 0
    %1185 = vmatmul.mubr.bf16.gmra.mrb[0].mxu0 %v1136
    %v1186 = vpop.f32.mrb[0].mxu0
    %v1187 = vadd.f32 0.0, %v1186
    %v1188 = vpop.f32.mrb[0].mxu0
    %v1189 = vpop.f32.mrb[0].mxu0
    %v1190 = vpop.f32.mrb[0].mxu0
    %1191 = vdwg.mxu0
    %1192 = vrot.lane.b32.xlu0 %v441, 96
    %v1193 = vpop.permute.xlu0 %1192
    %1194 = vrot.lane.b32.xlu0 %v442, 96
    %v1195 = vpop.permute.xlu0 %1194
    %1196 = vrot.lane.b32.xlu0 %v441, 32
    %v1197 = vpop.permute.xlu0 %1196
    %1198 = vrot.lane.b32.xlu0 %v442, 32
    %v1199 = vpop.permute.xlu0 %1198
    %v1201 = vsel %vm453, %v1193, 0
    %v1204 = vsel %vm453, %v1195, 0
    %v1207 = vsel %vm453, %v1197, 0
    %v1210 = vsel %vm453, %v1199, 0
    %1212 = vmatprep.subr.bf16.mxu0 0
    %1213 = vmatpush1.bf16.xpose.msra.mxu0 %v1207
    %1214 = vmatprep.subr.bf16.mxu0 0
    %1215 = vmatpush1.bf16.xpose.msra.mxu0 %v1210
    %1216 = vmatprep.subr.bf16.mxu0 0
    %1217 = vmatpush1.bf16.xpose.msra.mxu0 0
    %1218 = vmatprep.subr.bf16.mxu0 0
    %1219 = vmatpush1.bf16.xpose.msra.mxu0 0
    %1220 = vmatprep.subr.bf16.mxu0 0
    %1221 = vmatpush1.bf16.xpose.msra.mxu0 0
    %1222 = vmatprep.subr.bf16.mxu0 0
    %1223 = vmatpush1.bf16.xpose.msra.mxu0 0
    %1224 = vmatprep.subr.bf16.mxu0 0
    %1225 = vmatpush1.bf16.xpose.msra.mxu0 0
    %1226 = vmatprep.subr.bf16.mxu0 0
    %1227 = vmatpush1.bf16.xpose.msra.mxu0 0
    %1228 = vmatprep.subr.bf16.mxu0 0
    %1229 = vmatpush1.bf16.xpose.msra.mxu0 0
    %1230 = vmatprep.subr.bf16.mxu0 0
    %1231 = vmatpush1.bf16.xpose.msra.mxu0 0
    %1232 = vmatprep.subr.bf16.mxu0 0
    %1233 = vmatpush1.bf16.xpose.msra.mxu0 0
    %1234 = vmatprep.subr.bf16.mxu0 0
    %1235 = vmatpush1.bf16.xpose.msra.mxu0 0
    %1236 = vmatprep.subr.bf16.mxu0 0
    %1237 = vmatpush1.bf16.xpose.msra.mxu0 0
    %1238 = vmatprep.subr.bf16.mxu0 0
    %1239 = vmatpush1.bf16.xpose.msra.mxu0 0
    %1240 = vmatprep.subr.bf16.mxu0 0
    %1241 = vmatpush1.bf16.xpose.msra.mxu0 0
    %1242 = vmatprep.subr.bf16.mxu0 0
    %1243 = vmatpush1.bf16.xpose.msra.mxu0 0
    %1244 = vmatprep.mubr.bf16.mxu0 0
    %1245 = vmatmul.mubr.bf16.gmra.mrb[0].mxu0 %v1201
    %v1246 = vpop.f32.mrb[0].mxu0
    %v1247 = vadd.f32 0.0, %v1246
    %v1248 = vpop.f32.mrb[0].mxu0
    %v1249 = vpop.f32.mrb[0].mxu0
    %v1250 = vadd.f32 0.0, %v1249
    %v1251 = vpop.f32.mrb[0].mxu0
    %1252 = vmatprep.mubr.bf16.mxu0 0
    %1253 = vmatmul.mubr.bf16.gmra.mrb[0].mxu0 %v1204
    %v1254 = vpop.f32.mrb[0].mxu0
    %v1255 = vadd.f32 0.0, %v1254
    %v1256 = vpop.f32.mrb[0].mxu0
    %v1257 = vpop.f32.mrb[0].mxu0
    %v1258 = vpop.f32.mrb[0].mxu0
    %1259 = vdwg.mxu0
    %v1260 = vmul.f32 %v1179, 0.25
    %v1261 = vmul.f32 %v1182, 0.25
    %v1262 = vmul.f32 %v1187, 0.25
    %v1263 = vmul.f32 %v1247, 0.25
    %v1264 = vmul.f32 %v1250, 0.25
    %v1265 = vmul.f32 %v1255, 0.25
    %v1266 = vadd.f32 %v1260, %v206
    %v1267 = vadd.f32 %v1261, %v206
    %v1268 = vadd.f32 %v1262, %v206
    %v1269 = vadd.f32 %v1263, %v206
    %v1270 = vadd.f32 %v1264, %v206
    %v1271 = vadd.f32 %v1265, %v206
    %v1272 = vsel %vm592, %v1266, -inf
    %1273 = vmax.xlane.f32.xlu0 %v1272
    %v1274 = vpop.xlane.xlu0 %1273
    %v1275 = vsel %vm592, %v1267, -inf
    %1276 = vmax.xlane.f32.xlu0 %v1275
    %v1277 = vpop.xlane.xlu0 %1276
    %v1278 = vsel %vm592, %v1268, -inf
    %1279 = vmax.xlane.f32.xlu0 %v1278
    %v1280 = vpop.xlane.xlu0 %1279
    %v1281 = vsel %vm592, %v1269, -inf
    %1282 = vmax.xlane.f32.xlu0 %v1281
    %v1283 = vpop.xlane.xlu0 %1282
    %v1284 = vsel %vm592, %v1270, -inf
    %1285 = vmax.xlane.f32.xlu0 %v1284
    %v1286 = vpop.xlane.xlu0 %1285
    %v1287 = vsel %vm592, %v1271, -inf
    %1288 = vmax.xlane.f32.xlu0 %v1287
    %v1289 = vpop.xlane.xlu0 %1288
    %v1290 = vsub.f32 %v1266, %v1274
    %v1291 = vsub.f32 %v1267, %v1277
    %v1292 = vsub.f32 %v1268, %v1280
    %v1293 = vsub.f32 %v1269, %v1283
    %v1294 = vsub.f32 %v1270, %v1286
    %v1295 = vsub.f32 %v1271, %v1289
    %v1296 = vmul.f32 %v1290, 1.442695
    %v1297 = vpow.pop %v1296
    %v1298 = vmul.f32 %v1291, 1.442695
    %v1299 = vpow.pop %v1298
    %v1300 = vmul.f32 %v1292, 1.442695
    %v1301 = vpow.pop %v1300
    %v1302 = vmul.f32 %v1293, 1.442695
    %v1303 = vpow.pop %v1302
    %v1304 = vmul.f32 %v1294, 1.442695
    %v1305 = vpow.pop %v1304
    %v1306 = vmul.f32 %v1295, 1.442695
    %v1307 = vpow.pop %v1306
    %v1308 = vsel %vm592, %v1297, 0.0
    %1309 = vadd.xlane.f32.xlu0 %v1308
    %v1310 = vpop.xlane.xlu0 %1309
    %v1311 = vsel %vm592, %v1299, 0.0
    %1312 = vadd.xlane.f32.xlu0 %v1311
    %v1313 = vpop.xlane.xlu0 %1312
    %v1314 = vsel %vm592, %v1301, 0.0
    %1315 = vadd.xlane.f32.xlu0 %v1314
    %v1316 = vpop.xlane.xlu0 %1315
    %v1317 = vsel %vm592, %v1303, 0.0
    %1318 = vadd.xlane.f32.xlu0 %v1317
    %v1319 = vpop.xlane.xlu0 %1318
    %v1320 = vsel %vm592, %v1305, 0.0
    %1321 = vadd.xlane.f32.xlu0 %v1320
    %v1322 = vpop.xlane.xlu0 %1321
    %v1323 = vsel %vm592, %v1307, 0.0
    %1324 = vadd.xlane.f32.xlu0 %v1323
    %v1325 = vpop.xlane.xlu0 %1324
    %v1326 = vrcp.pop %v1310
    %v1327 = vmul.f32 %v1297, %v1326
    %v1328 = vrcp.pop %v1313
    %v1329 = vmul.f32 %v1299, %v1328
    %v1330 = vrcp.pop %v1316
    %v1331 = vmul.f32 %v1301, %v1330
    %v1332 = vrcp.pop %v1319
    %v1333 = vmul.f32 %v1303, %v1332
    %v1334 = vrcp.pop %v1322
    %v1335 = vmul.f32 %v1305, %v1334
    %v1336 = vrcp.pop %v1325
    %v1337 = vmul.f32 %v1307, %v1336
    %v1338 = vpack.c.bf16 %v1329, %v1327
    %v1339 = vpack.c.bf16 %v1331, %v1331
    %v1340 = vpack.c.bf16 %v1335, %v1333
    %v1341 = vpack.c.bf16 %v1337, %v1337
    %1342 = vrot.lane.b32.xlu0 %v443, 96
    %v1343 = vpop.permute.xlu0 %1342
    %1344 = vrot.lane.b32.xlu0 %v444, 96
    %v1345 = vpop.permute.xlu0 %1344
    %v1348 = vsel %vm592, %v1338, 0
    %v1351 = vsel %vm592, %v1339, 0
    %v1354 = vsel %vm669, %v1345, 0
    %1356 = vmatprep.subr.bf16.mxu0 0
    %1357 = vmatpush1.bf16.msra.mxu0 %v1343
    %1358 = vmatprep.subr.bf16.mxu0 0
    %1359 = vmatpush1.bf16.msra.mxu0 %v1354
    %1360 = vmatprep.subr.bf16.mxu0 0
    %1361 = vmatpush1.bf16.msra.mxu0 0
    %1362 = vmatprep.subr.bf16.mxu0 0
    %1363 = vmatpush1.bf16.msra.mxu0 0
    %1364 = vmatprep.subr.bf16.mxu0 0
    %1365 = vmatpush1.bf16.msra.mxu0 0
    %1366 = vmatprep.subr.bf16.mxu0 0
    %1367 = vmatpush1.bf16.msra.mxu0 0
    %1368 = vmatprep.subr.bf16.mxu0 0
    %1369 = vmatpush1.bf16.msra.mxu0 0
    %1370 = vmatprep.subr.bf16.mxu0 0
    %1371 = vmatpush1.bf16.msra.mxu0 0
    %1372 = vmatprep.subr.bf16.mxu0 0
    %1373 = vmatpush1.bf16.msra.mxu0 0
    %1374 = vmatprep.subr.bf16.mxu0 0
    %1375 = vmatpush1.bf16.msra.mxu0 0
    %1376 = vmatprep.subr.bf16.mxu0 0
    %1377 = vmatpush1.bf16.msra.mxu0 0
    %1378 = vmatprep.subr.bf16.mxu0 0
    %1379 = vmatpush1.bf16.msra.mxu0 0
    %1380 = vmatprep.subr.bf16.mxu0 0
    %1381 = vmatpush1.bf16.msra.mxu0 0
    %1382 = vmatprep.subr.bf16.mxu0 0
    %1383 = vmatpush1.bf16.msra.mxu0 0
    %1384 = vmatprep.subr.bf16.mxu0 0
    %1385 = vmatpush1.bf16.msra.mxu0 0
    %1386 = vmatprep.subr.bf16.mxu0 0
    %1387 = vmatpush1.bf16.msra.mxu0 0
    %1388 = vmatprep.mubr.bf16.mxu0 0
    %1389 = vmatmul.mubr.bf16.gmra.mrb[0].mxu0 %v1348
    %v1390 = vpop.f32.mrb[0].mxu0
    %v1391 = vadd.f32 0.0, %v1390
    %v1392 = vpop.f32.mrb[0].mxu0
    %v1393 = vpop.f32.mrb[0].mxu0
    %v1394 = vadd.f32 0.0, %v1393
    %v1395 = vpop.f32.mrb[0].mxu0
    %1396 = vmatprep.mubr.bf16.mxu0 0
    %1397 = vmatmul.mubr.bf16.gmra.mrb[0].mxu0 %v1351
    %v1398 = vpop.f32.mrb[0].mxu0
    %v1399 = vadd.f32 0.0, %v1398
    %v1400 = vpop.f32.mrb[0].mxu0
    %v1401 = vpop.f32.mrb[0].mxu0
    %v1402 = vpop.f32.mrb[0].mxu0
    %1403 = vdwg.mxu0
    %1404 = vrot.lane.b32.xlu0 %v445, 96
    %v1405 = vpop.permute.xlu0 %1404
    %1406 = vrot.lane.b32.xlu0 %v446, 96
    %v1407 = vpop.permute.xlu0 %1406
    %v1410 = vsel %vm592, %v1340, 0
    %v1413 = vsel %vm592, %v1341, 0
    %v1416 = vsel %vm669, %v1407, 0
    %1418 = vmatprep.subr.bf16.mxu0 0
    %1419 = vmatpush1.bf16.msra.mxu0 %v1405
    %1420 = vmatprep.subr.bf16.mxu0 0
    %1421 = vmatpush1.bf16.msra.mxu0 %v1416
    %1422 = vmatprep.subr.bf16.mxu0 0
    %1423 = vmatpush1.bf16.msra.mxu0 0
    %1424 = vmatprep.subr.bf16.mxu0 0
    %1425 = vmatpush1.bf16.msra.mxu0 0
    %1426 = vmatprep.subr.bf16.mxu0 0
    %1427 = vmatpush1.bf16.msra.mxu0 0
    %1428 = vmatprep.subr.bf16.mxu0 0
    %1429 = vmatpush1.bf16.msra.mxu0 0
    %1430 = vmatprep.subr.bf16.mxu0 0
    %1431 = vmatpush1.bf16.msra.mxu0 0
    %1432 = vmatprep.subr.bf16.mxu0 0
    %1433 = vmatpush1.bf16.msra.mxu0 0
    %1434 = vmatprep.subr.bf16.mxu0 0
    %1435 = vmatpush1.bf16.msra.mxu0 0
    %1436 = vmatprep.subr.bf16.mxu0 0
    %1437 = vmatpush1.bf16.msra.mxu0 0
    %1438 = vmatprep.subr.bf16.mxu0 0
    %1439 = vmatpush1.bf16.msra.mxu0 0
    %1440 = vmatprep.subr.bf16.mxu0 0
    %1441 = vmatpush1.bf16.msra.mxu0 0
    %1442 = vmatprep.subr.bf16.mxu0 0
    %1443 = vmatpush1.bf16.msra.mxu0 0
    %1444 = vmatprep.subr.bf16.mxu0 0
    %1445 = vmatpush1.bf16.msra.mxu0 0
    %1446 = vmatprep.subr.bf16.mxu0 0
    %1447 = vmatpush1.bf16.msra.mxu0 0
    %1448 = vmatprep.subr.bf16.mxu0 0
    %1449 = vmatpush1.bf16.msra.mxu0 0
    %1450 = vmatprep.mubr.bf16.mxu0 0
    %1451 = vmatmul.mubr.bf16.gmra.mrb[0].mxu0 %v1410
    %v1452 = vpop.f32.mrb[0].mxu0
    %v1453 = vadd.f32 0.0, %v1452
    %v1454 = vpop.f32.mrb[0].mxu0
    %v1455 = vpop.f32.mrb[0].mxu0
    %v1456 = vadd.f32 0.0, %v1455
    %v1457 = vpop.f32.mrb[0].mxu0
    %1458 = vmatprep.mubr.bf16.mxu0 0
    %1459 = vmatmul.mubr.bf16.gmra.mrb[0].mxu0 %v1413
    %v1460 = vpop.f32.mrb[0].mxu0
    %v1461 = vadd.f32 0.0, %v1460
    %v1462 = vpop.f32.mrb[0].mxu0
    %v1463 = vpop.f32.mrb[0].mxu0
    %v1464 = vpop.f32.mrb[0].mxu0
    %1465 = vdwg.mxu0
    %1466 = vrot.lane.b32.xlu0 %v439, 80
    %v1467 = vpop.permute.xlu0 %1466
    %1468 = vrot.lane.b32.xlu0 %v440, 80
    %v1469 = vpop.permute.xlu0 %1468
    %1470 = vrot.lane.b32.xlu0 %v439, 16
    %v1471 = vpop.permute.xlu0 %1470
    %1472 = vrot.lane.b32.xlu0 %v440, 16
    %v1473 = vpop.permute.xlu0 %1472
    %v1475 = vsel %vm453, %v1467, 0
    %v1478 = vsel %vm453, %v1469, 0
    %v1481 = vsel %vm453, %v1471, 0
    %v1484 = vsel %vm453, %v1473, 0
    %1486 = vmatprep.subr.bf16.mxu0 0
    %1487 = vmatpush1.bf16.xpose.msra.mxu0 %v1481
    %1488 = vmatprep.subr.bf16.mxu0 0
    %1489 = vmatpush1.bf16.xpose.msra.mxu0 %v1484
    %1490 = vmatprep.subr.bf16.mxu0 0
    %1491 = vmatpush1.bf16.xpose.msra.mxu0 0
    %1492 = vmatprep.subr.bf16.mxu0 0
    %1493 = vmatpush1.bf16.xpose.msra.mxu0 0
    %1494 = vmatprep.subr.bf16.mxu0 0
    %1495 = vmatpush1.bf16.xpose.msra.mxu0 0
    %1496 = vmatprep.subr.bf16.mxu0 0
    %1497 = vmatpush1.bf16.xpose.msra.mxu0 0
    %1498 = vmatprep.subr.bf16.mxu0 0
    %1499 = vmatpush1.bf16.xpose.msra.mxu0 0
    %1500 = vmatprep.subr.bf16.mxu0 0
    %1501 = vmatpush1.bf16.xpose.msra.mxu0 0
    %1502 = vmatprep.subr.bf16.mxu0 0
    %1503 = vmatpush1.bf16.xpose.msra.mxu0 0
    %1504 = vmatprep.subr.bf16.mxu0 0
    %1505 = vmatpush1.bf16.xpose.msra.mxu0 0
    %1506 = vmatprep.subr.bf16.mxu0 0
    %1507 = vmatpush1.bf16.xpose.msra.mxu0 0
    %1508 = vmatprep.subr.bf16.mxu0 0
    %1509 = vmatpush1.bf16.xpose.msra.mxu0 0
    %1510 = vmatprep.subr.bf16.mxu0 0
    %1511 = vmatpush1.bf16.xpose.msra.mxu0 0
    %1512 = vmatprep.subr.bf16.mxu0 0
    %1513 = vmatpush1.bf16.xpose.msra.mxu0 0
    %1514 = vmatprep.subr.bf16.mxu0 0
    %1515 = vmatpush1.bf16.xpose.msra.mxu0 0
    %1516 = vmatprep.subr.bf16.mxu0 0
    %1517 = vmatpush1.bf16.xpose.msra.mxu0 0
    %1518 = vmatprep.mubr.bf16.mxu0 0
    %1519 = vmatmul.mubr.bf16.gmra.mrb[0].mxu0 %v1475
    %v1520 = vpop.f32.mrb[0].mxu0
    %v1521 = vadd.f32 0.0, %v1520
    %v1522 = vpop.f32.mrb[0].mxu0
    %v1523 = vpop.f32.mrb[0].mxu0
    %v1524 = vadd.f32 0.0, %v1523
    %v1525 = vpop.f32.mrb[0].mxu0
    %1526 = vmatprep.mubr.bf16.mxu0 0
    %1527 = vmatmul.mubr.bf16.gmra.mrb[0].mxu0 %v1478
    %v1528 = vpop.f32.mrb[0].mxu0
    %v1529 = vadd.f32 0.0, %v1528
    %v1530 = vpop.f32.mrb[0].mxu0
    %v1531 = vpop.f32.mrb[0].mxu0
    %v1532 = vpop.f32.mrb[0].mxu0
    %1533 = vdwg.mxu0
    %1534 = vrot.lane.b32.xlu0 %v441, 80
    %v1535 = vpop.permute.xlu0 %1534
    %1536 = vrot.lane.b32.xlu0 %v442, 80
    %v1537 = vpop.permute.xlu0 %1536
    %1538 = vrot.lane.b32.xlu0 %v441, 16
    %v1539 = vpop.permute.xlu0 %1538
    %1540 = vrot.lane.b32.xlu0 %v442, 16
    %v1541 = vpop.permute.xlu0 %1540
    %v1543 = vsel %vm453, %v1535, 0
    %v1546 = vsel %vm453, %v1537, 0
    %v1549 = vsel %vm453, %v1539, 0
    %v1552 = vsel %vm453, %v1541, 0
    %1554 = vmatprep.subr.bf16.mxu0 0
    %1555 = vmatpush1.bf16.xpose.msra.mxu0 %v1549
    %1556 = vmatprep.subr.bf16.mxu0 0
    %1557 = vmatpush1.bf16.xpose.msra.mxu0 %v1552
    %1558 = vmatprep.subr.bf16.mxu0 0
    %1559 = vmatpush1.bf16.xpose.msra.mxu0 0
    %1560 = vmatprep.subr.bf16.mxu0 0
    %1561 = vmatpush1.bf16.xpose.msra.mxu0 0
    %1562 = vmatprep.subr.bf16.mxu0 0
    %1563 = vmatpush1.bf16.xpose.msra.mxu0 0
    %1564 = vmatprep.subr.bf16.mxu0 0
    %1565 = vmatpush1.bf16.xpose.msra.mxu0 0
    %1566 = vmatprep.subr.bf16.mxu0 0
    %1567 = vmatpush1.bf16.xpose.msra.mxu0 0
    %1568 = vmatprep.subr.bf16.mxu0 0
    %1569 = vmatpush1.bf16.xpose.msra.mxu0 0
    %1570 = vmatprep.subr.bf16.mxu0 0
    %1571 = vmatpush1.bf16.xpose.msra.mxu0 0
    %1572 = vmatprep.subr.bf16.mxu0 0
    %1573 = vmatpush1.bf16.xpose.msra.mxu0 0
    %1574 = vmatprep.subr.bf16.mxu0 0
    %1575 = vmatpush1.bf16.xpose.msra.mxu0 0
    %1576 = vmatprep.subr.bf16.mxu0 0
    %1577 = vmatpush1.bf16.xpose.msra.mxu0 0
    %1578 = vmatprep.subr.bf16.mxu0 0
    %1579 = vmatpush1.bf16.xpose.msra.mxu0 0
    %1580 = vmatprep.subr.bf16.mxu0 0
    %1581 = vmatpush1.bf16.xpose.msra.mxu0 0
    %1582 = vmatprep.subr.bf16.mxu0 0
    %1583 = vmatpush1.bf16.xpose.msra.mxu0 0
    %1584 = vmatprep.subr.bf16.mxu0 0
    %1585 = vmatpush1.bf16.xpose.msra.mxu0 0
    %1586 = vmatprep.mubr.bf16.mxu0 0
    %1587 = vmatmul.mubr.bf16.gmra.mrb[0].mxu0 %v1543
    %v1588 = vpop.f32.mrb[0].mxu0
    %v1589 = vadd.f32 0.0, %v1588
    %v1590 = vpop.f32.mrb[0].mxu0
    %v1591 = vpop.f32.mrb[0].mxu0
    %v1592 = vadd.f32 0.0, %v1591
    %v1593 = vpop.f32.mrb[0].mxu0
    %1594 = vmatprep.mubr.bf16.mxu0 0
    %1595 = vmatmul.mubr.bf16.gmra.mrb[0].mxu0 %v1546
    %v1596 = vpop.f32.mrb[0].mxu0
    %v1597 = vadd.f32 0.0, %v1596
    %v1598 = vpop.f32.mrb[0].mxu0
    %v1599 = vpop.f32.mrb[0].mxu0
    %v1600 = vpop.f32.mrb[0].mxu0
    %1601 = vdwg.mxu0
    %v1602 = vmul.f32 %v1521, 0.25
    %v1603 = vmul.f32 %v1524, 0.25
    %v1604 = vmul.f32 %v1529, 0.25
    %v1605 = vmul.f32 %v1589, 0.25
    %v1606 = vmul.f32 %v1592, 0.25
    %v1607 = vmul.f32 %v1597, 0.25
    %v1608 = vadd.f32 %v1602, %v206
    %v1609 = vadd.f32 %v1603, %v206
    %v1610 = vadd.f32 %v1604, %v206
    %v1611 = vadd.f32 %v1605, %v206
    %v1612 = vadd.f32 %v1606, %v206
    %v1613 = vadd.f32 %v1607, %v206
    %v1614 = vsel %vm592, %v1608, -inf
    %1615 = vmax.xlane.f32.xlu0 %v1614
    %v1616 = vpop.xlane.xlu0 %1615
    %v1617 = vsel %vm592, %v1609, -inf
    %1618 = vmax.xlane.f32.xlu0 %v1617
    %v1619 = vpop.xlane.xlu0 %1618
    %v1620 = vsel %vm592, %v1610, -inf
    %1621 = vmax.xlane.f32.xlu0 %v1620
    %v1622 = vpop.xlane.xlu0 %1621
    %v1623 = vsel %vm592, %v1611, -inf
    %1624 = vmax.xlane.f32.xlu0 %v1623
    %v1625 = vpop.xlane.xlu0 %1624
    %v1626 = vsel %vm592, %v1612, -inf
    %1627 = vmax.xlane.f32.xlu0 %v1626
    %v1628 = vpop.xlane.xlu0 %1627
    %v1629 = vsel %vm592, %v1613, -inf
    %1630 = vmax.xlane.f32.xlu0 %v1629
    %v1631 = vpop.xlane.xlu0 %1630
    %v1632 = vsub.f32 %v1608, %v1616
    %v1633 = vsub.f32 %v1609, %v1619
    %v1634 = vsub.f32 %v1610, %v1622
    %v1635 = vsub.f32 %v1611, %v1625
    %v1636 = vsub.f32 %v1612, %v1628
    %v1637 = vsub.f32 %v1613, %v1631
    %v1638 = vmul.f32 %v1632, 1.442695
    %v1639 = vpow.pop %v1638
    %v1640 = vmul.f32 %v1633, 1.442695
    %v1641 = vpow.pop %v1640
    %v1642 = vmul.f32 %v1634, 1.442695
    %v1643 = vpow.pop %v1642
    %v1644 = vmul.f32 %v1635, 1.442695
    %v1645 = vpow.pop %v1644
    %v1646 = vmul.f32 %v1636, 1.442695
    %v1647 = vpow.pop %v1646
    %v1648 = vmul.f32 %v1637, 1.442695
    %v1649 = vpow.pop %v1648
    %v1650 = vsel %vm592, %v1639, 0.0
    %1651 = vadd.xlane.f32.xlu0 %v1650
    %v1652 = vpop.xlane.xlu0 %1651
    %v1653 = vsel %vm592, %v1641, 0.0
    %1654 = vadd.xlane.f32.xlu0 %v1653
    %v1655 = vpop.xlane.xlu0 %1654
    %v1656 = vsel %vm592, %v1643, 0.0
    %1657 = vadd.xlane.f32.xlu0 %v1656
    %v1658 = vpop.xlane.xlu0 %1657
    %v1659 = vsel %vm592, %v1645, 0.0
    %1660 = vadd.xlane.f32.xlu0 %v1659
    %v1661 = vpop.xlane.xlu0 %1660
    %v1662 = vsel %vm592, %v1647, 0.0
    %1663 = vadd.xlane.f32.xlu0 %v1662
    %v1664 = vpop.xlane.xlu0 %1663
    %v1665 = vsel %vm592, %v1649, 0.0
    %1666 = vadd.xlane.f32.xlu0 %v1665
    %v1667 = vpop.xlane.xlu0 %1666
    %v1668 = vrcp.pop %v1652
    %v1669 = vmul.f32 %v1639, %v1668
    %v1670 = vrcp.pop %v1655
    %v1671 = vmul.f32 %v1641, %v1670
    %v1672 = vrcp.pop %v1658
    %v1673 = vmul.f32 %v1643, %v1672
    %v1674 = vrcp.pop %v1661
    %v1675 = vmul.f32 %v1645, %v1674
    %v1676 = vrcp.pop %v1664
    %v1677 = vmul.f32 %v1647, %v1676
    %v1678 = vrcp.pop %v1667
    %v1679 = vmul.f32 %v1649, %v1678
    %v1680 = vpack.c.bf16 %v1671, %v1669
    %v1681 = vpack.c.bf16 %v1673, %v1673
    %v1682 = vpack.c.bf16 %v1677, %v1675
    %v1683 = vpack.c.bf16 %v1679, %v1679
    %1684 = vrot.lane.b32.xlu0 %v443, 80
    %v1685 = vpop.permute.xlu0 %1684
    %1686 = vrot.lane.b32.xlu0 %v444, 80
    %v1687 = vpop.permute.xlu0 %1686
    %v1690 = vsel %vm592, %v1680, 0
    %v1693 = vsel %vm592, %v1681, 0
    %v1696 = vsel %vm669, %v1687, 0
    %1698 = vmatprep.subr.bf16.mxu0 0
    %1699 = vmatpush1.bf16.msra.mxu0 %v1685
    %1700 = vmatprep.subr.bf16.mxu0 0
    %1701 = vmatpush1.bf16.msra.mxu0 %v1696
    %1702 = vmatprep.subr.bf16.mxu0 0
    %1703 = vmatpush1.bf16.msra.mxu0 0
    %1704 = vmatprep.subr.bf16.mxu0 0
    %1705 = vmatpush1.bf16.msra.mxu0 0
    %1706 = vmatprep.subr.bf16.mxu0 0
    %1707 = vmatpush1.bf16.msra.mxu0 0
    %1708 = vmatprep.subr.bf16.mxu0 0
    %1709 = vmatpush1.bf16.msra.mxu0 0
    %1710 = vmatprep.subr.bf16.mxu0 0
    %1711 = vmatpush1.bf16.msra.mxu0 0
    %1712 = vmatprep.subr.bf16.mxu0 0
    %1713 = vmatpush1.bf16.msra.mxu0 0
    %1714 = vmatprep.subr.bf16.mxu0 0
    %1715 = vmatpush1.bf16.msra.mxu0 0
    %1716 = vmatprep.subr.bf16.mxu0 0
    %1717 = vmatpush1.bf16.msra.mxu0 0
    %1718 = vmatprep.subr.bf16.mxu0 0
    %1719 = vmatpush1.bf16.msra.mxu0 0
    %1720 = vmatprep.subr.bf16.mxu0 0
    %1721 = vmatpush1.bf16.msra.mxu0 0
    %1722 = vmatprep.subr.bf16.mxu0 0
    %1723 = vmatpush1.bf16.msra.mxu0 0
    %1724 = vmatprep.subr.bf16.mxu0 0
    %1725 = vmatpush1.bf16.msra.mxu0 0
    %1726 = vmatprep.subr.bf16.mxu0 0
    %1727 = vmatpush1.bf16.msra.mxu0 0
    %1728 = vmatprep.subr.bf16.mxu0 0
    %1729 = vmatpush1.bf16.msra.mxu0 0
    %1730 = vmatprep.mubr.bf16.mxu0 0
    %1731 = vmatmul.mubr.bf16.gmra.mrb[0].mxu0 %v1690
    %v1732 = vpop.f32.mrb[0].mxu0
    %v1733 = vadd.f32 0.0, %v1732
    %v1734 = vpop.f32.mrb[0].mxu0
    %v1735 = vpop.f32.mrb[0].mxu0
    %v1736 = vadd.f32 0.0, %v1735
    %v1737 = vpop.f32.mrb[0].mxu0
    %1738 = vmatprep.mubr.bf16.mxu0 0
    %1739 = vmatmul.mubr.bf16.gmra.mrb[0].mxu0 %v1693
    %v1740 = vpop.f32.mrb[0].mxu0
    %v1741 = vadd.f32 0.0, %v1740
    %v1742 = vpop.f32.mrb[0].mxu0
    %v1743 = vpop.f32.mrb[0].mxu0
    %v1744 = vpop.f32.mrb[0].mxu0
    %1745 = vdwg.mxu0
    %1746 = vrot.lane.b32.xlu0 %v445, 80
    %v1747 = vpop.permute.xlu0 %1746
    %1748 = vrot.lane.b32.xlu0 %v446, 80
    %v1749 = vpop.permute.xlu0 %1748
    %v1752 = vsel %vm592, %v1682, 0
    %v1755 = vsel %vm592, %v1683, 0
    %v1758 = vsel %vm669, %v1749, 0
    %1760 = vmatprep.subr.bf16.mxu0 0
    %1761 = vmatpush1.bf16.msra.mxu0 %v1747
    %1762 = vmatprep.subr.bf16.mxu0 0
    %1763 = vmatpush1.bf16.msra.mxu0 %v1758
    %1764 = vmatprep.subr.bf16.mxu0 0
    %1765 = vmatpush1.bf16.msra.mxu0 0
    %1766 = vmatprep.subr.bf16.mxu0 0
    %1767 = vmatpush1.bf16.msra.mxu0 0
    %1768 = vmatprep.subr.bf16.mxu0 0
    %1769 = vmatpush1.bf16.msra.mxu0 0
    %1770 = vmatprep.subr.bf16.mxu0 0
    %1771 = vmatpush1.bf16.msra.mxu0 0
    %1772 = vmatprep.subr.bf16.mxu0 0
    %1773 = vmatpush1.bf16.msra.mxu0 0
    %1774 = vmatprep.subr.bf16.mxu0 0
    %1775 = vmatpush1.bf16.msra.mxu0 0
    %1776 = vmatprep.subr.bf16.mxu0 0
    %1777 = vmatpush1.bf16.msra.mxu0 0
    %1778 = vmatprep.subr.bf16.mxu0 0
    %1779 = vmatpush1.bf16.msra.mxu0 0
    %1780 = vmatprep.subr.bf16.mxu0 0
    %1781 = vmatpush1.bf16.msra.mxu0 0
    %1782 = vmatprep.subr.bf16.mxu0 0
    %1783 = vmatpush1.bf16.msra.mxu0 0
    %1784 = vmatprep.subr.bf16.mxu0 0
    %1785 = vmatpush1.bf16.msra.mxu0 0
    %1786 = vmatprep.subr.bf16.mxu0 0
    %1787 = vmatpush1.bf16.msra.mxu0 0
    %1788 = vmatprep.subr.bf16.mxu0 0
    %1789 = vmatpush1.bf16.msra.mxu0 0
    %1790 = vmatprep.subr.bf16.mxu0 0
    %1791 = vmatpush1.bf16.msra.mxu0 0
    %1792 = vmatprep.mubr.bf16.mxu0 0
    %1793 = vmatmul.mubr.bf16.gmra.mrb[0].mxu0 %v1752
    %v1794 = vpop.f32.mrb[0].mxu0
    %v1795 = vadd.f32 0.0, %v1794
    %v1796 = vpop.f32.mrb[0].mxu0
    %v1797 = vpop.f32.mrb[0].mxu0
    %v1798 = vadd.f32 0.0, %v1797
    %v1799 = vpop.f32.mrb[0].mxu0
    %1800 = vmatprep.mubr.bf16.mxu0 0
    %1801 = vmatmul.mubr.bf16.gmra.mrb[0].mxu0 %v1755
    %v1802 = vpop.f32.mrb[0].mxu0
    %v1803 = vadd.f32 0.0, %v1802
    %v1804 = vpop.f32.mrb[0].mxu0
    %v1805 = vpop.f32.mrb[0].mxu0
    %v1806 = vpop.f32.mrb[0].mxu0
    %1807 = vdwg.mxu0
    %1814 = vrot.lane.b32.xlu0 %v1047, 16
    %v1815 = vpop.permute.xlu0 %1814
    %1816 = vrot.lane.b32.xlu0 %v1050, 16
    %v1817 = vpop.permute.xlu0 %1816
    %1818 = vrot.lane.b32.xlu0 %v1055, 16
    %v1819 = vpop.permute.xlu0 %1818
    %1820 = vrot.lane.b32.xlu0 %v1111, 16
    %v1821 = vpop.permute.xlu0 %1820
    %1822 = vrot.lane.b32.xlu0 %v1114, 16
    %v1823 = vpop.permute.xlu0 %1822
    %1824 = vrot.lane.b32.xlu0 %v1119, 16
    %v1825 = vpop.permute.xlu0 %1824
    %1838 = vrot.lane.b32.xlu0 %v1391, 32
    %v1839 = vpop.permute.xlu0 %1838
    %1840 = vrot.lane.b32.xlu0 %v1394, 32
    %v1841 = vpop.permute.xlu0 %1840
    %1842 = vrot.lane.b32.xlu0 %v1399, 32
    %v1843 = vpop.permute.xlu0 %1842
    %1844 = vrot.lane.b32.xlu0 %v1453, 32
    %v1845 = vpop.permute.xlu0 %1844
    %1846 = vrot.lane.b32.xlu0 %v1456, 32
    %v1847 = vpop.permute.xlu0 %1846
    %1848 = vrot.lane.b32.xlu0 %v1461, 32
    %v1849 = vpop.permute.xlu0 %1848
    %1862 = vrot.lane.b32.xlu0 %v1733, 48
    %v1863 = vpop.permute.xlu0 %1862
    %1864 = vrot.lane.b32.xlu0 %v1736, 48
    %v1865 = vpop.permute.xlu0 %1864
    %1866 = vrot.lane.b32.xlu0 %v1741, 48
    %v1867 = vpop.permute.xlu0 %1866
    %1868 = vrot.lane.b32.xlu0 %v1795, 48
    %v1869 = vpop.permute.xlu0 %1868
    %1870 = vrot.lane.b32.xlu0 %v1798, 48
    %v1871 = vpop.permute.xlu0 %1870
    %1872 = vrot.lane.b32.xlu0 %v1803, 48
    %v1873 = vpop.permute.xlu0 %1872
    %v1880 = vsel %vm453, %v708, %v1815
    %v1881 = vsel %vm453, %v711, %v1817
    %v1882 = vsel %vm453, %v716, %v1819
    %v1883 = vsel %vm453, %v765, %v1821
    %v1884 = vsel %vm453, %v768, %v1823
    %v1885 = vsel %vm453, %v773, %v1825
    %vm1886 = vcmask 261120
    %v1887 = vsel %vm1886, %v1880, %v1839
    %v1888 = vsel %vm1886, %v1881, %v1841
    %v1889 = vsel %vm1886, %v1882, %v1843
    %v1890 = vsel %vm1886, %v1883, %v1845
    %v1891 = vsel %vm1886, %v1884, %v1847
    %v1892 = vsel %vm1886, %v1885, %v1849
    %vm1893 = vcmask 392192
    %v1894 = vsel %vm1893, %v1887, %v1863
    %v1895 = vsel %vm1893, %v1888, %v1865
    %v1896 = vsel %vm1893, %v1889, %v1867
    %v1897 = vsel %vm1893, %v1890, %v1869
    %v1898 = vsel %vm1893, %v1891, %v1871
    %v1899 = vsel %vm1893, %v1892, %v1873
    %v1900 = vpack.c.bf16 %v1895, %v1894
    %v1901 = vpack.c.bf16 %v1897, %v1896
    %v1902 = vpack.c.bf16 %v1899, %v1898
    %v1903 = vld [vmem:[%s5] sm:$0xf]
    %v1904 = vld [vmem:[%s5 + $0x4] sm:$0xf]
    %v1905 = vld [vmem:[%s5 + $0x8] sm:$0xf]
    %v1906 = vld [vmem:[%s5 + $0xc] sm:$0xf]
    %v1907 = vld [vmem:[%s5 + $0x10] sm:$0xf]
    %v1908 = vld [vmem:[%s5 + $0x14] sm:$0xf]
    %v1909 = vld [vmem:[%s5 + $0x18] sm:$0xf]
    %v1910 = vld [vmem:[%s5 + $0x1c] sm:$0xf]
    %v1911 = vlaneseq
    %v1912 = vshrl.u32 %v1911, 7
    %v1913 = vsub.s32 3, %v1912
    %v1914 = vrot.slane %v207, %v1913
    %v1923 = vunpack.c.l.b16 %v1903
    %v1924 = vunpack.c.l.b16 %v1904
    %v1925 = vunpack.c.l.b16 %v1905
    %v1926 = vunpack.c.l.b16 %v1906
    %v1927 = vunpack.c.l.b16 %v1907
    %v1928 = vunpack.c.l.b16 %v1908
    %v1929 = vunpack.c.l.b16 %v1909
    %v1930 = vunpack.c.l.b16 %v1910
    %v1931 = vpack.c.b16 %v1924, %v1923
    %v1932 = vpack.c.b16 %v1926, %v1925
    %v1933 = vpack.c.b16 %v1928, %v1927
    %v1934 = vpack.c.b16 %v1930, %v1929
    %v1940 = vsel %vm123, %v1900, 0
    %v1943 = vsel %vm123, %v1901, 0
    %v1946 = vsel %vm123, %v1902, 0
    %1948 = vmatprep.subr.bf16.mxu0 0
    %1949 = vmatpush1.bf16.msra.mxu0 %v1931
    %1950 = vmatprep.subr.bf16.mxu0 0
    %1951 = vmatpush1.bf16.msra.mxu0 %v1932
    %1952 = vmatprep.subr.bf16.mxu0 0
    %1953 = vmatpush1.bf16.msra.mxu0 %v1933
    %1954 = vmatprep.subr.bf16.mxu0 0
    %1955 = vmatpush1.bf16.msra.mxu0 %v1934
    %1956 = vmatprep.subr.bf16.mxu0 0
    %1957 = vmatpush1.bf16.msra.mxu0 0
    %1958 = vmatprep.subr.bf16.mxu0 0
    %1959 = vmatpush1.bf16.msra.mxu0 0
    %1960 = vmatprep.subr.bf16.mxu0 0
    %1961 = vmatpush1.bf16.msra.mxu0 0
    %1962 = vmatprep.subr.bf16.mxu0 0
    %1963 = vmatpush1.bf16.msra.mxu0 0
    %1964 = vmatprep.subr.bf16.mxu0 0
    %1965 = vmatpush1.bf16.msra.mxu0 0
    %1966 = vmatprep.subr.bf16.mxu0 0
    %1967 = vmatpush1.bf16.msra.mxu0 0
    %1968 = vmatprep.subr.bf16.mxu0 0
    %1969 = vmatpush1.bf16.msra.mxu0 0
    %1970 = vmatprep.subr.bf16.mxu0 0
    %1971 = vmatpush1.bf16.msra.mxu0 0
    %1972 = vmatprep.subr.bf16.mxu0 0
    %1973 = vmatpush1.bf16.msra.mxu0 0
    %1974 = vmatprep.subr.bf16.mxu0 0
    %1975 = vmatpush1.bf16.msra.mxu0 0
    %1976 = vmatprep.subr.bf16.mxu0 0
    %1977 = vmatpush1.bf16.msra.mxu0 0
    %1978 = vmatprep.subr.bf16.mxu0 0
    %1979 = vmatpush1.bf16.msra.mxu0 0
    %1980 = vmatprep.mubr.bf16.mxu0 0
    %1981 = vmatmul.mubr.bf16.gmra.mrb[0].mxu0 %v1940
    %v1982 = vpop.f32.mrb[0].mxu0
    %v1983 = vadd.f32 %v1914, %v1982
    %v1984 = vpop.f32.mrb[0].mxu0
    %v1985 = vpop.f32.mrb[0].mxu0
    %v1986 = vadd.f32 %v1914, %v1985
    %v1987 = vpop.f32.mrb[0].mxu0
    %1988 = vmatprep.mubr.bf16.mxu0 0
    %1989 = vmatmul.mubr.bf16.gmra.mrb[0].mxu0 %v1943
    %v1990 = vpop.f32.mrb[0].mxu0
    %v1991 = vadd.f32 %v1914, %v1990
    %v1992 = vpop.f32.mrb[0].mxu0
    %v1993 = vpop.f32.mrb[0].mxu0
    %v1994 = vadd.f32 %v1914, %v1993
    %v1995 = vpop.f32.mrb[0].mxu0
    %1996 = vmatprep.mubr.bf16.mxu0 0
    %1997 = vmatmul.mubr.bf16.gmra.mrb[0].mxu0 %v1946
    %v1998 = vpop.f32.mrb[0].mxu0
    %v1999 = vadd.f32 %v1914, %v1998
    %v2000 = vpop.f32.mrb[0].mxu0
    %v2001 = vpop.f32.mrb[0].mxu0
    %v2002 = vadd.f32 %v1914, %v2001
    %v2003 = vpop.f32.mrb[0].mxu0
    %2004 = vdwg.mxu0
    %v2005 = vadd.f32 %v197, %v1983
    %v2006 = vadd.f32 %v198, %v1986
    %v2007 = vadd.f32 %v199, %v1991
    %v2008 = vadd.f32 %v200, %v1994
    %v2009 = vadd.f32 %v201, %v1999
    %v2010 = vadd.f32 %v202, %v2002
    %v2011 = vsel %vm123, %v2005, 0.0
    %2012 = vadd.xlane.f32.xlu0 %v2011
    %v2013 = vpop.xlane.xlu0 %2012
    %v2014 = vsel %vm123, %v2006, 0.0
    %2015 = vadd.xlane.f32.xlu0 %v2014
    %v2016 = vpop.xlane.xlu0 %2015
    %v2017 = vsel %vm123, %v2007, 0.0
    %2018 = vadd.xlane.f32.xlu0 %v2017
    %v2019 = vpop.xlane.xlu0 %2018
    %v2020 = vsel %vm123, %v2008, 0.0
    %2021 = vadd.xlane.f32.xlu0 %v2020
    %v2022 = vpop.xlane.xlu0 %2021
    %v2023 = vsel %vm123, %v2009, 0.0
    %2024 = vadd.xlane.f32.xlu0 %v2023
    %v2025 = vpop.xlane.xlu0 %2024
    %v2026 = vsel %vm123, %v2010, 0.0
    %2027 = vadd.xlane.f32.xlu0 %v2026
    %v2028 = vpop.xlane.xlu0 %2027
    %v2029 = vmul.f32 %v2013, %v227
    %v2030 = vmul.f32 %v2016, %v227
    %v2031 = vmul.f32 %v2019, %v227
    %v2032 = vmul.f32 %v2022, %v227
    %v2033 = vmul.f32 %v2025, %v227
    %v2034 = vmul.f32 %v2028, %v227
    %v2035 = vsub.f32 %v2005, %v2029
    %v2036 = vsub.f32 %v2006, %v2030
    %v2037 = vsub.f32 %v2007, %v2031
    %v2038 = vsub.f32 %v2008, %v2032
    %v2039 = vsub.f32 %v2009, %v2033
    %v2040 = vsub.f32 %v2010, %v2034
    %v2041 = vmul.f32 %v2035, %v2035
    %v2042 = vmul.f32 %v2036, %v2036
    %v2043 = vmul.f32 %v2037, %v2037
    %v2044 = vmul.f32 %v2038, %v2038
    %v2045 = vmul.f32 %v2039, %v2039
    %v2046 = vmul.f32 %v2040, %v2040
    %v2047 = vsel %vm123, %v2041, 0.0
    %2048 = vadd.xlane.f32.xlu0 %v2047
    %v2049 = vpop.xlane.xlu0 %2048
    %v2050 = vsel %vm123, %v2042, 0.0
    %2051 = vadd.xlane.f32.xlu0 %v2050
    %v2052 = vpop.xlane.xlu0 %2051
    %v2053 = vsel %vm123, %v2043, 0.0
    %2054 = vadd.xlane.f32.xlu0 %v2053
    %v2055 = vpop.xlane.xlu0 %2054
    %v2056 = vsel %vm123, %v2044, 0.0
    %2057 = vadd.xlane.f32.xlu0 %v2056
    %v2058 = vpop.xlane.xlu0 %2057
    %v2059 = vsel %vm123, %v2045, 0.0
    %2060 = vadd.xlane.f32.xlu0 %v2059
    %v2061 = vpop.xlane.xlu0 %2060
    %v2062 = vsel %vm123, %v2046, 0.0
    %2063 = vadd.xlane.f32.xlu0 %v2062
    %v2064 = vpop.xlane.xlu0 %2063
    %v2065 = vmul.f32 %v2049, %v227
    %v2066 = vmul.f32 %v2052, %v227
    %v2067 = vmul.f32 %v2055, %v227
    %v2068 = vmul.f32 %v2058, %v227
    %v2069 = vmul.f32 %v2061, %v227
    %v2070 = vmul.f32 %v2064, %v227
    %v2071 = vadd.f32 %v2065, 1e-05
    %v2072 = vadd.f32 %v2066, 1e-05
    %v2073 = vadd.f32 %v2067, 1e-05
    %v2074 = vadd.f32 %v2068, 1e-05
    %v2075 = vadd.f32 %v2069, 1e-05
    %v2076 = vadd.f32 %v2070, 1e-05
    %v2077 = vrsqrt.pop %v2071
    %v2078 = vrsqrt.pop %v2072
    %v2079 = vrsqrt.pop %v2073
    %v2080 = vrsqrt.pop %v2074
    %v2081 = vrsqrt.pop %v2075
    %v2082 = vrsqrt.pop %v2076
    %v2083 = vmul.f32 %v2035, %v2077
    %v2084 = vmul.f32 %v2036, %v2078
    %v2085 = vmul.f32 %v2037, %v2079
    %v2086 = vmul.f32 %v2038, %v2080
    %v2087 = vmul.f32 %v2039, %v2081
    %v2088 = vmul.f32 %v2040, %v2082
    %v2089 = vlaneseq
    %v2090 = vshrl.u32 %v2089, 7
    %v2091 = vsub.s32 4, %v2090
    %v2092 = vrot.slane %v207, %v2091
    %v2093 = vmul.f32 %v2083, %v2092
    %v2094 = vmul.f32 %v2084, %v2092
    %v2095 = vmul.f32 %v2085, %v2092
    %v2096 = vmul.f32 %v2086, %v2092
    %v2097 = vmul.f32 %v2087, %v2092
    %v2098 = vmul.f32 %v2088, %v2092
    %v2099 = vlaneseq
    %v2100 = vshrl.u32 %v2099, 7
    %v2101 = vsub.s32 5, %v2100
    %v2102 = vrot.slane %v207, %v2101
    %v2103 = vadd.f32 %v2093, %v2102
    %v2104 = vadd.f32 %v2094, %v2102
    %v2105 = vadd.f32 %v2095, %v2102
    %v2106 = vadd.f32 %v2096, %v2102
    %v2107 = vadd.f32 %v2097, %v2102
    %v2108 = vadd.f32 %v2098, %v2102
    %v2109 = vpack.c.bf16 %v2104, %v2103
    %v2110 = vpack.c.bf16 %v2106, %v2105
    %v2111 = vpack.c.bf16 %v2108, %v2107
    %v2112 = vld [vmem:[%s6] sm:$0xff]
    %v2113 = vld [vmem:[%s6 + $0x8] sm:$0xff]
    %v2114 = vld [vmem:[%s6 + $0x10] sm:$0xff]
    %v2115 = vld [vmem:[%s6 + $0x18] sm:$0xff]
    %v2116 = vld [vmem:[%s6 + $0x20] sm:$0xff]
    %v2117 = vld [vmem:[%s6 + $0x28] sm:$0xff]
    %v2118 = vld [vmem:[%s6 + $0x30] sm:$0xff]
    %v2119 = vld [vmem:[%s6 + $0x38] sm:$0xff]
    %v2120 = vlaneseq
    %v2121 = vshrl.u32 %v2120, 7
    %v2122 = vsub.s32 6, %v2121
    %v2123 = vrot.slane %v207, %v2122
    %v2124 = vlaneseq
    %v2125 = vshrl.u32 %v2124, 7
    %v2126 = vsub.s32 6, %v2125
    %v2127 = vrot.slane %v208, %v2126
    %v2136 = vunpack.c.l.b16 %v2112
    %v2137 = vunpack.c.h.b16 %v2112
    %v2138 = vunpack.c.l.b16 %v2113
    %v2139 = vunpack.c.h.b16 %v2113
    %v2140 = vunpack.c.l.b16 %v2114
    %v2141 = vunpack.c.h.b16 %v2114
    %v2142 = vunpack.c.l.b16 %v2115
    %v2143 = vunpack.c.h.b16 %v2115
    %v2144 = vunpack.c.l.b16 %v2116
    %v2145 = vunpack.c.h.b16 %v2116
    %v2146 = vunpack.c.l.b16 %v2117
    %v2147 = vunpack.c.h.b16 %v2117
    %v2148 = vunpack.c.l.b16 %v2118
    %v2149 = vunpack.c.h.b16 %v2118
    %v2150 = vunpack.c.l.b16 %v2119
    %v2151 = vunpack.c.h.b16 %v2119
    %v2152 = vpack.c.b16 %v2138, %v2136
    %v2153 = vpack.c.b16 %v2139, %v2137
    %v2154 = vpack.c.b16 %v2142, %v2140
    %v2155 = vpack.c.b16 %v2143, %v2141
    %v2156 = vpack.c.b16 %v2146, %v2144
    %v2157 = vpack.c.b16 %v2147, %v2145
    %v2158 = vpack.c.b16 %v2150, %v2148
    %v2159 = vpack.c.b16 %v2151, %v2149
    %v2169 = vsel %vm123, %v2109, 0
    %v2172 = vsel %vm123, %v2110, 0
    %v2175 = vsel %vm123, %v2111, 0
    %2177 = vmatprep.subr.bf16.mxu0 %v2153
    %2178 = vmatpush1.bf16.msra.mxu0 %v2152
    %2179 = vmatprep.subr.bf16.mxu0 %v2155
    %2180 = vmatpush1.bf16.msra.mxu0 %v2154
    %2181 = vmatprep.subr.bf16.mxu0 %v2157
    %2182 = vmatpush1.bf16.msra.mxu0 %v2156
    %2183 = vmatprep.subr.bf16.mxu0 %v2159
    %2184 = vmatpush1.bf16.msra.mxu0 %v2158
    %2185 = vmatprep.subr.bf16.mxu0 0
    %2186 = vmatpush1.bf16.msra.mxu0 0
    %2187 = vmatprep.subr.bf16.mxu0 0
    %2188 = vmatpush1.bf16.msra.mxu0 0
    %2189 = vmatprep.subr.bf16.mxu0 0
    %2190 = vmatpush1.bf16.msra.mxu0 0
    %2191 = vmatprep.subr.bf16.mxu0 0
    %2192 = vmatpush1.bf16.msra.mxu0 0
    %2193 = vmatprep.subr.bf16.mxu0 0
    %2194 = vmatpush1.bf16.msra.mxu0 0
    %2195 = vmatprep.subr.bf16.mxu0 0
    %2196 = vmatpush1.bf16.msra.mxu0 0
    %2197 = vmatprep.subr.bf16.mxu0 0
    %2198 = vmatpush1.bf16.msra.mxu0 0
    %2199 = vmatprep.subr.bf16.mxu0 0
    %2200 = vmatpush1.bf16.msra.mxu0 0
    %2201 = vmatprep.subr.bf16.mxu0 0
    %2202 = vmatpush1.bf16.msra.mxu0 0
    %2203 = vmatprep.subr.bf16.mxu0 0
    %2204 = vmatpush1.bf16.msra.mxu0 0
    %2205 = vmatprep.subr.bf16.mxu0 0
    %2206 = vmatpush1.bf16.msra.mxu0 0
    %2207 = vmatprep.subr.bf16.mxu0 0
    %2208 = vmatpush1.bf16.msra.mxu0 0
    %2209 = vmatprep.mubr.bf16.mxu0 0
    %2210 = vmatmul.mubr.bf16.gmra.mrb[0].mxu0 %v2169
    %v2211 = vpop.f32.mrb[0].mxu0
    %v2212 = vadd.f32 %v2123, %v2211
    %v2213 = vpop.f32.mrb[0].mxu0
    %v2214 = vadd.f32 %v2127, %v2213
    %v2215 = vpop.f32.mrb[0].mxu0
    %v2216 = vadd.f32 %v2123, %v2215
    %v2217 = vpop.f32.mrb[0].mxu0
    %v2218 = vadd.f32 %v2127, %v2217
    %2219 = vmatprep.mubr.bf16.mxu0 0
    %2220 = vmatmul.mubr.bf16.gmra.mrb[0].mxu0 %v2172
    %v2221 = vpop.f32.mrb[0].mxu0
    %v2222 = vadd.f32 %v2123, %v2221
    %v2223 = vpop.f32.mrb[0].mxu0
    %v2224 = vadd.f32 %v2127, %v2223
    %v2225 = vpop.f32.mrb[0].mxu0
    %v2226 = vadd.f32 %v2123, %v2225
    %v2227 = vpop.f32.mrb[0].mxu0
    %v2228 = vadd.f32 %v2127, %v2227
    %2229 = vmatprep.mubr.bf16.mxu0 0
    %2230 = vmatmul.mubr.bf16.gmra.mrb[0].mxu0 %v2175
    %v2231 = vpop.f32.mrb[0].mxu0
    %v2232 = vadd.f32 %v2123, %v2231
    %v2233 = vpop.f32.mrb[0].mxu0
    %v2234 = vadd.f32 %v2127, %v2233
    %v2235 = vpop.f32.mrb[0].mxu0
    %v2236 = vadd.f32 %v2123, %v2235
    %v2237 = vpop.f32.mrb[0].mxu0
    %v2238 = vadd.f32 %v2127, %v2237
    %2239 = vdwg.mxu0
    %v2240 = vmul.f32 %v2212, 0.5
    %v2241 = vmul.f32 %v2214, 0.5
    %v2242 = vmul.f32 %v2216, 0.5
    %v2243 = vmul.f32 %v2218, 0.5
    %v2244 = vmul.f32 %v2222, 0.5
    %v2245 = vmul.f32 %v2224, 0.5
    %v2246 = vmul.f32 %v2226, 0.5
    %v2247 = vmul.f32 %v2228, 0.5
    %v2248 = vmul.f32 %v2232, 0.5
    %v2249 = vmul.f32 %v2234, 0.5
    %v2250 = vmul.f32 %v2236, 0.5
    %v2251 = vmul.f32 %v2238, 0.5
    %v2252 = vmul.f32 %v2212, 0.70710677
    %v2253 = vmul.f32 %v2214, 0.70710677
    %v2254 = vmul.f32 %v2216, 0.70710677
    %v2255 = vmul.f32 %v2218, 0.70710677
    %v2256 = vmul.f32 %v2222, 0.70710677
    %v2257 = vmul.f32 %v2224, 0.70710677
    %v2258 = vmul.f32 %v2226, 0.70710677
    %v2259 = vmul.f32 %v2228, 0.70710677
    %v2260 = vmul.f32 %v2232, 0.70710677
    %v2261 = vmul.f32 %v2234, 0.70710677
    %v2262 = vmul.f32 %v2236, 0.70710677
    %v2263 = vmul.f32 %v2238, 0.70710677
    %v2264 = verf.f32.pop %v2252
    %v2265 = verf.f32.pop %v2253
    %v2266 = verf.f32.pop %v2254
    %v2267 = verf.f32.pop %v2255
    %v2268 = verf.f32.pop %v2256
    %v2269 = verf.f32.pop %v2257
    %v2270 = verf.f32.pop %v2258
    %v2271 = verf.f32.pop %v2259
    %v2272 = verf.f32.pop %v2260
    %v2273 = verf.f32.pop %v2261
    %v2274 = verf.f32.pop %v2262
    %v2275 = verf.f32.pop %v2263
    %v2276 = vadd.f32 %v2264, 1.0
    %v2277 = vadd.f32 %v2265, 1.0
    %v2278 = vadd.f32 %v2266, 1.0
    %v2279 = vadd.f32 %v2267, 1.0
    %v2280 = vadd.f32 %v2268, 1.0
    %v2281 = vadd.f32 %v2269, 1.0
    %v2282 = vadd.f32 %v2270, 1.0
    %v2283 = vadd.f32 %v2271, 1.0
    %v2284 = vadd.f32 %v2272, 1.0
    %v2285 = vadd.f32 %v2273, 1.0
    %v2286 = vadd.f32 %v2274, 1.0
    %v2287 = vadd.f32 %v2275, 1.0
    %v2288 = vmul.f32 %v2240, %v2276
    %v2289 = vmul.f32 %v2241, %v2277
    %v2290 = vmul.f32 %v2242, %v2278
    %v2291 = vmul.f32 %v2243, %v2279
    %v2292 = vmul.f32 %v2244, %v2280
    %v2293 = vmul.f32 %v2245, %v2281
    %v2294 = vmul.f32 %v2246, %v2282
    %v2295 = vmul.f32 %v2247, %v2283
    %v2296 = vmul.f32 %v2248, %v2284
    %v2297 = vmul.f32 %v2249, %v2285
    %v2298 = vmul.f32 %v2250, %v2286
    %v2299 = vmul.f32 %v2251, %v2287
    %v2300 = vpack.c.bf16 %v2290, %v2288
    %v2301 = vpack.c.bf16 %v2291, %v2289
    %v2302 = vpack.c.bf16 %v2294, %v2292
    %v2303 = vpack.c.bf16 %v2295, %v2293
    %v2304 = vpack.c.bf16 %v2298, %v2296
    %v2305 = vpack.c.bf16 %v2299, %v2297
    %v2306 = vld [vmem:[%s7] sm:$0xf]
    %v2307 = vld [vmem:[%s7 + $0x4] sm:$0xf]
    %v2308 = vld [vmem:[%s7 + $0x8] sm:$0xf]
    %v2309 = vld [vmem:[%s7 + $0xc] sm:$0xf]
    %v2310 = vld [vmem:[%s7 + $0x10] sm:$0xf]
    %v2311 = vld [vmem:[%s7 + $0x14] sm:$0xf]
    %v2312 = vld [vmem:[%s7 + $0x18] sm:$0xf]
    %v2313 = vld [vmem:[%s7 + $0x1c] sm:$0xf]
    %v2314 = vld [vmem:[%s7 + $0x20] sm:$0xf]
    %v2315 = vld [vmem:[%s7 + $0x24] sm:$0xf]
    %v2316 = vld [vmem:[%s7 + $0x28] sm:$0xf]
    %v2317 = vld [vmem:[%s7 + $0x2c] sm:$0xf]
    %v2318 = vld [vmem:[%s7 + $0x30] sm:$0xf]
    %v2319 = vld [vmem:[%s7 + $0x34] sm:$0xf]
    %v2320 = vld [vmem:[%s7 + $0x38] sm:$0xf]
    %v2321 = vld [vmem:[%s7 + $0x3c] sm:$0xf]
    %v2322 = vld [vmem:[%s7 + $0x40] sm:$0xf]
    %v2323 = vld [vmem:[%s7 + $0x44] sm:$0xf]
    %v2324 = vld [vmem:[%s7 + $0x48] sm:$0xf]
    %v2325 = vld [vmem:[%s7 + $0x4c] sm:$0xf]
    %v2326 = vld [vmem:[%s7 + $0x50] sm:$0xf]
    %v2327 = vld [vmem:[%s7 + $0x54] sm:$0xf]
    %v2328 = vld [vmem:[%s7 + $0x58] sm:$0xf]
    %v2329 = vld [vmem:[%s7 + $0x5c] sm:$0xf]
    %v2330 = vld [vmem:[%s7 + $0x60] sm:$0xf]
    %v2331 = vld [vmem:[%s7 + $0x64] sm:$0xf]
    %v2332 = vld [vmem:[%s7 + $0x68] sm:$0xf]
    %v2333 = vld [vmem:[%s7 + $0x6c] sm:$0xf]
    %v2334 = vld [vmem:[%s7 + $0x70] sm:$0xf]
    %v2335 = vld [vmem:[%s7 + $0x74] sm:$0xf]
    %v2336 = vld [vmem:[%s7 + $0x78] sm:$0xf]
    %v2337 = vld [vmem:[%s7 + $0x7c] sm:$0xf]
    %v2338 = vlaneseq
    %v2339 = vshrl.u32 %v2338, 7
    %v2340 = vsub.s32 7, %v2339
    %v2341 = vrot.slane %v207, %v2340
    %v2374 = vunpack.c.l.b16 %v2306
    %v2375 = vunpack.c.l.b16 %v2307
    %v2376 = vunpack.c.l.b16 %v2308
    %v2377 = vunpack.c.l.b16 %v2309
    %v2378 = vunpack.c.l.b16 %v2310
    %v2379 = vunpack.c.l.b16 %v2311
    %v2380 = vunpack.c.l.b16 %v2312
    %v2381 = vunpack.c.l.b16 %v2313
    %v2382 = vunpack.c.l.b16 %v2314
    %v2383 = vunpack.c.l.b16 %v2315
    %v2384 = vunpack.c.l.b16 %v2316
    %v2385 = vunpack.c.l.b16 %v2317
    %v2386 = vunpack.c.l.b16 %v2318
    %v2387 = vunpack.c.l.b16 %v2319
    %v2388 = vunpack.c.l.b16 %v2320
    %v2389 = vunpack.c.l.b16 %v2321
    %v2390 = vunpack.c.l.b16 %v2322
    %v2391 = vunpack.c.l.b16 %v2323
    %v2392 = vunpack.c.l.b16 %v2324
    %v2393 = vunpack.c.l.b16 %v2325
    %v2394 = vunpack.c.l.b16 %v2326
    %v2395 = vunpack.c.l.b16 %v2327
    %v2396 = vunpack.c.l.b16 %v2328
    %v2397 = vunpack.c.l.b16 %v2329
    %v2398 = vunpack.c.l.b16 %v2330
    %v2399 = vunpack.c.l.b16 %v2331
    %v2400 = vunpack.c.l.b16 %v2332
    %v2401 = vunpack.c.l.b16 %v2333
    %v2402 = vunpack.c.l.b16 %v2334
    %v2403 = vunpack.c.l.b16 %v2335
    %v2404 = vunpack.c.l.b16 %v2336
    %v2405 = vunpack.c.l.b16 %v2337
    %v2406 = vpack.c.b16 %v2375, %v2374
    %v2407 = vpack.c.b16 %v2377, %v2376
    %v2408 = vpack.c.b16 %v2379, %v2378
    %v2409 = vpack.c.b16 %v2381, %v2380
    %v2410 = vpack.c.b16 %v2383, %v2382
    %v2411 = vpack.c.b16 %v2385, %v2384
    %v2412 = vpack.c.b16 %v2387, %v2386
    %v2413 = vpack.c.b16 %v2389, %v2388
    %v2414 = vpack.c.b16 %v2391, %v2390
    %v2415 = vpack.c.b16 %v2393, %v2392
    %v2416 = vpack.c.b16 %v2395, %v2394
    %v2417 = vpack.c.b16 %v2397, %v2396
    %v2418 = vpack.c.b16 %v2399, %v2398
    %v2419 = vpack.c.b16 %v2401, %v2400
    %v2420 = vpack.c.b16 %v2403, %v2402
    %v2421 = vpack.c.b16 %v2405, %v2404
    %2438 = vmatprep.subr.bf16.mxu0 0
    %2439 = vmatpush1.bf16.msra.mxu0 %v2406
    %2440 = vmatprep.subr.bf16.mxu0 0
    %2441 = vmatpush1.bf16.msra.mxu0 %v2407
    %2442 = vmatprep.subr.bf16.mxu0 0
    %2443 = vmatpush1.bf16.msra.mxu0 %v2408
    %2444 = vmatprep.subr.bf16.mxu0 0
    %2445 = vmatpush1.bf16.msra.mxu0 %v2409
    %2446 = vmatprep.subr.bf16.mxu0 0
    %2447 = vmatpush1.bf16.msra.mxu0 %v2410
    %2448 = vmatprep.subr.bf16.mxu0 0
    %2449 = vmatpush1.bf16.msra.mxu0 %v2411
    %2450 = vmatprep.subr.bf16.mxu0 0
    %2451 = vmatpush1.bf16.msra.mxu0 %v2412
    %2452 = vmatprep.subr.bf16.mxu0 0
    %2453 = vmatpush1.bf16.msra.mxu0 %v2413
    %2454 = vmatprep.subr.bf16.mxu0 0
    %2455 = vmatpush1.bf16.msra.mxu0 %v2414
    %2456 = vmatprep.subr.bf16.mxu0 0
    %2457 = vmatpush1.bf16.msra.mxu0 %v2415
    %2458 = vmatprep.subr.bf16.mxu0 0
    %2459 = vmatpush1.bf16.msra.mxu0 %v2416
    %2460 = vmatprep.subr.bf16.mxu0 0
    %2461 = vmatpush1.bf16.msra.mxu0 %v2417
    %2462 = vmatprep.subr.bf16.mxu0 0
    %2463 = vmatpush1.bf16.msra.mxu0 %v2418
    %2464 = vmatprep.subr.bf16.mxu0 0
    %2465 = vmatpush1.bf16.msra.mxu0 %v2419
    %2466 = vmatprep.subr.bf16.mxu0 0
    %2467 = vmatpush1.bf16.msra.mxu0 %v2420
    %2468 = vmatprep.subr.bf16.mxu0 0
    %2469 = vmatpush1.bf16.msra.mxu0 %v2421
    %2470 = vmatprep.mubr.bf16.mxu0 %v2301
    %2471 = vmatmul.mubr.bf16.gmra.mrb[0].mxu0 %v2300
    %v2472 = vpop.f32.mrb[0].mxu0
    %v2473 = vadd.f32 %v2341, %v2472
    %v2474 = vpop.f32.mrb[0].mxu0
    %v2475 = vpop.f32.mrb[0].mxu0
    %v2476 = vadd.f32 %v2341, %v2475
    %v2477 = vpop.f32.mrb[0].mxu0
    %2478 = vmatprep.mubr.bf16.mxu0 %v2303
    %2479 = vmatmul.mubr.bf16.gmra.mrb[0].mxu0 %v2302
    %v2480 = vpop.f32.mrb[0].mxu0
    %v2481 = vadd.f32 %v2341, %v2480
    %v2482 = vpop.f32.mrb[0].mxu0
    %v2483 = vpop.f32.mrb[0].mxu0
    %v2484 = vadd.f32 %v2341, %v2483
    %v2485 = vpop.f32.mrb[0].mxu0
    %2486 = vmatprep.mubr.bf16.mxu0 %v2305
    %2487 = vmatmul.mubr.bf16.gmra.mrb[0].mxu0 %v2304
    %v2488 = vpop.f32.mrb[0].mxu0
    %v2489 = vadd.f32 %v2341, %v2488
    %v2490 = vpop.f32.mrb[0].mxu0
    %v2491 = vpop.f32.mrb[0].mxu0
    %v2492 = vadd.f32 %v2341, %v2491
    %v2493 = vpop.f32.mrb[0].mxu0
    %2494 = vdwg.mxu0
    %v2495 = vadd.f32 %v2005, %v2473
    %v2496 = vadd.f32 %v2006, %v2476
    %v2497 = vadd.f32 %v2007, %v2481
    %v2498 = vadd.f32 %v2008, %v2484
    %v2499 = vadd.f32 %v2009, %v2489
    %v2500 = vadd.f32 %v2010, %v2492
    %s2501 = scalar_lea.vmem %s8, 16
    %v2502 = vld [vmem:[%s2501] sm:$0xff]
    %v2503 = vld [vmem:[%s2501 + $0x8] sm:$0xff]
    %v2504 = vsel %vm123, %v2495, 0.0
    %2505 = vadd.xlane.f32.xlu0 %v2504
    %v2506 = vpop.xlane.xlu0 %2505
    %v2507 = vsel %vm123, %v2496, 0.0
    %2508 = vadd.xlane.f32.xlu0 %v2507
    %v2509 = vpop.xlane.xlu0 %2508
    %v2510 = vsel %vm123, %v2497, 0.0
    %2511 = vadd.xlane.f32.xlu0 %v2510
    %v2512 = vpop.xlane.xlu0 %2511
    %v2513 = vsel %vm123, %v2498, 0.0
    %2514 = vadd.xlane.f32.xlu0 %v2513
    %v2515 = vpop.xlane.xlu0 %2514
    %v2516 = vsel %vm123, %v2499, 0.0
    %2517 = vadd.xlane.f32.xlu0 %v2516
    %v2518 = vpop.xlane.xlu0 %2517
    %v2519 = vsel %vm123, %v2500, 0.0
    %2520 = vadd.xlane.f32.xlu0 %v2519
    %v2521 = vpop.xlane.xlu0 %2520
    %v2522 = vmul.f32 %v2506, %v227
    %v2523 = vmul.f32 %v2509, %v227
    %v2524 = vmul.f32 %v2512, %v227
    %v2525 = vmul.f32 %v2515, %v227
    %v2526 = vmul.f32 %v2518, %v227
    %v2527 = vmul.f32 %v2521, %v227
    %v2528 = vsub.f32 %v2495, %v2522
    %v2529 = vsub.f32 %v2496, %v2523
    %v2530 = vsub.f32 %v2497, %v2524
    %v2531 = vsub.f32 %v2498, %v2525
    %v2532 = vsub.f32 %v2499, %v2526
    %v2533 = vsub.f32 %v2500, %v2527
    %v2534 = vmul.f32 %v2528, %v2528
    %v2535 = vmul.f32 %v2529, %v2529
    %v2536 = vmul.f32 %v2530, %v2530
    %v2537 = vmul.f32 %v2531, %v2531
    %v2538 = vmul.f32 %v2532, %v2532
    %v2539 = vmul.f32 %v2533, %v2533
    %v2540 = vsel %vm123, %v2534, 0.0
    %2541 = vadd.xlane.f32.xlu0 %v2540
    %v2542 = vpop.xlane.xlu0 %2541
    %v2543 = vsel %vm123, %v2535, 0.0
    %2544 = vadd.xlane.f32.xlu0 %v2543
    %v2545 = vpop.xlane.xlu0 %2544
    %v2546 = vsel %vm123, %v2536, 0.0
    %2547 = vadd.xlane.f32.xlu0 %v2546
    %v2548 = vpop.xlane.xlu0 %2547
    %v2549 = vsel %vm123, %v2537, 0.0
    %2550 = vadd.xlane.f32.xlu0 %v2549
    %v2551 = vpop.xlane.xlu0 %2550
    %v2552 = vsel %vm123, %v2538, 0.0
    %2553 = vadd.xlane.f32.xlu0 %v2552
    %v2554 = vpop.xlane.xlu0 %2553
    %v2555 = vsel %vm123, %v2539, 0.0
    %2556 = vadd.xlane.f32.xlu0 %v2555
    %v2557 = vpop.xlane.xlu0 %2556
    %v2558 = vmul.f32 %v2542, %v227
    %v2559 = vmul.f32 %v2545, %v227
    %v2560 = vmul.f32 %v2548, %v227
    %v2561 = vmul.f32 %v2551, %v227
    %v2562 = vmul.f32 %v2554, %v227
    %v2563 = vmul.f32 %v2557, %v227
    %v2564 = vadd.f32 %v2558, 1e-05
    %v2565 = vadd.f32 %v2559, 1e-05
    %v2566 = vadd.f32 %v2560, 1e-05
    %v2567 = vadd.f32 %v2561, 1e-05
    %v2568 = vadd.f32 %v2562, 1e-05
    %v2569 = vadd.f32 %v2563, 1e-05
    %v2570 = vrsqrt.pop %v2564
    %v2571 = vrsqrt.pop %v2565
    %v2572 = vrsqrt.pop %v2566
    %v2573 = vrsqrt.pop %v2567
    %v2574 = vrsqrt.pop %v2568
    %v2575 = vrsqrt.pop %v2569
    %v2576 = vmul.f32 %v2528, %v2570
    %v2577 = vmul.f32 %v2529, %v2571
    %v2578 = vmul.f32 %v2530, %v2572
    %v2579 = vmul.f32 %v2531, %v2573
    %v2580 = vmul.f32 %v2532, %v2574
    %v2581 = vmul.f32 %v2533, %v2575
    %v2582 = vlaneseq
    %v2583 = vshrl.u32 %v2582, 7
    %v2584 = vsub.s32 0, %v2583
    %v2585 = vrot.slane %v2502, %v2584
    %v2586 = vmul.f32 %v2576, %v2585
    %v2587 = vmul.f32 %v2577, %v2585
    %v2588 = vmul.f32 %v2578, %v2585
    %v2589 = vmul.f32 %v2579, %v2585
    %v2590 = vmul.f32 %v2580, %v2585
    %v2591 = vmul.f32 %v2581, %v2585
    %v2592 = vlaneseq
    %v2593 = vshrl.u32 %v2592, 7
    %v2594 = vsub.s32 1, %v2593
    %v2595 = vrot.slane %v2502, %v2594
    %v2596 = vadd.f32 %v2586, %v2595
    %v2597 = vadd.f32 %v2587, %v2595
    %v2598 = vadd.f32 %v2588, %v2595
    %v2599 = vadd.f32 %v2589, %v2595
    %v2600 = vadd.f32 %v2590, %v2595
    %v2601 = vadd.f32 %v2591, %v2595
    %v2602 = vpack.c.bf16 %v2597, %v2596
    %v2603 = vpack.c.bf16 %v2599, %v2598
    %v2604 = vpack.c.bf16 %v2601, %v2600
    %s2605 = scalar_lea.vmem %s4, 64
    %v2606 = vld [vmem:[%s2605] sm:$0xff]
    %v2607 = vld [vmem:[%s2605 + $0x8] sm:$0xff]
    %v2608 = vld [vmem:[%s2605 + $0x10] sm:$0xff]
    %v2609 = vld [vmem:[%s2605 + $0x18] sm:$0xff]
    %v2610 = vld [vmem:[%s2605 + $0x20] sm:$0xff]
    %v2611 = vld [vmem:[%s2605 + $0x28] sm:$0xff]
    %v2612 = vld [vmem:[%s2605 + $0x30] sm:$0xff]
    %v2613 = vld [vmem:[%s2605 + $0x38] sm:$0xff]
    %v2614 = vlaneseq
    %v2615 = vshrl.u32 %v2614, 7
    %v2616 = vsub.s32 2, %v2615
    %v2617 = vrot.slane %v2502, %v2616
    %v2618 = vlaneseq
    %v2619 = vshrl.u32 %v2618, 7
    %v2620 = vsub.s32 2, %v2619
    %v2621 = vrot.slane %v2503, %v2620
    %v2630 = vunpack.c.l.b16 %v2606
    %v2631 = vunpack.c.h.b16 %v2606
    %v2632 = vunpack.c.l.b16 %v2607
    %v2633 = vunpack.c.h.b16 %v2607
    %v2634 = vunpack.c.l.b16 %v2608
    %v2635 = vunpack.c.h.b16 %v2608
    %v2636 = vunpack.c.l.b16 %v2609
    %v2637 = vunpack.c.h.b16 %v2609
    %v2638 = vunpack.c.l.b16 %v2610
    %v2639 = vunpack.c.h.b16 %v2610
    %v2640 = vunpack.c.l.b16 %v2611
    %v2641 = vunpack.c.h.b16 %v2611
    %v2642 = vunpack.c.l.b16 %v2612
    %v2643 = vunpack.c.h.b16 %v2612
    %v2644 = vunpack.c.l.b16 %v2613
    %v2645 = vunpack.c.h.b16 %v2613
    %v2646 = vpack.c.b16 %v2632, %v2630
    %v2647 = vpack.c.b16 %v2633, %v2631
    %v2648 = vpack.c.b16 %v2636, %v2634
    %v2649 = vpack.c.b16 %v2637, %v2635
    %v2650 = vpack.c.b16 %v2640, %v2638
    %v2651 = vpack.c.b16 %v2641, %v2639
    %v2652 = vpack.c.b16 %v2644, %v2642
    %v2653 = vpack.c.b16 %v2645, %v2643
    %v2663 = vsel %vm123, %v2602, 0
    %v2666 = vsel %vm123, %v2603, 0
    %v2669 = vsel %vm123, %v2604, 0
    %2671 = vmatprep.subr.bf16.mxu0 %v2647
    %2672 = vmatpush1.bf16.msra.mxu0 %v2646
    %2673 = vmatprep.subr.bf16.mxu0 %v2649
    %2674 = vmatpush1.bf16.msra.mxu0 %v2648
    %2675 = vmatprep.subr.bf16.mxu0 %v2651
    %2676 = vmatpush1.bf16.msra.mxu0 %v2650
    %2677 = vmatprep.subr.bf16.mxu0 %v2653
    %2678 = vmatpush1.bf16.msra.mxu0 %v2652
    %2679 = vmatprep.subr.bf16.mxu0 0
    %2680 = vmatpush1.bf16.msra.mxu0 0
    %2681 = vmatprep.subr.bf16.mxu0 0
    %2682 = vmatpush1.bf16.msra.mxu0 0
    %2683 = vmatprep.subr.bf16.mxu0 0
    %2684 = vmatpush1.bf16.msra.mxu0 0
    %2685 = vmatprep.subr.bf16.mxu0 0
    %2686 = vmatpush1.bf16.msra.mxu0 0
    %2687 = vmatprep.subr.bf16.mxu0 0
    %2688 = vmatpush1.bf16.msra.mxu0 0
    %2689 = vmatprep.subr.bf16.mxu0 0
    %2690 = vmatpush1.bf16.msra.mxu0 0
    %2691 = vmatprep.subr.bf16.mxu0 0
    %2692 = vmatpush1.bf16.msra.mxu0 0
    %2693 = vmatprep.subr.bf16.mxu0 0
    %2694 = vmatpush1.bf16.msra.mxu0 0
    %2695 = vmatprep.subr.bf16.mxu0 0
    %2696 = vmatpush1.bf16.msra.mxu0 0
    %2697 = vmatprep.subr.bf16.mxu0 0
    %2698 = vmatpush1.bf16.msra.mxu0 0
    %2699 = vmatprep.subr.bf16.mxu0 0
    %2700 = vmatpush1.bf16.msra.mxu0 0
    %2701 = vmatprep.subr.bf16.mxu0 0
    %2702 = vmatpush1.bf16.msra.mxu0 0
    %2703 = vmatprep.mubr.bf16.mxu0 0
    %2704 = vmatmul.mubr.bf16.gmra.mrb[0].mxu0 %v2663
    %v2705 = vpop.f32.mrb[0].mxu0
    %v2706 = vadd.f32 %v2617, %v2705
    %v2707 = vpop.f32.mrb[0].mxu0
    %v2708 = vadd.f32 %v2621, %v2707
    %v2709 = vpop.f32.mrb[0].mxu0
    %v2710 = vadd.f32 %v2617, %v2709
    %v2711 = vpop.f32.mrb[0].mxu0
    %v2712 = vadd.f32 %v2621, %v2711
    %2713 = vmatprep.mubr.bf16.mxu0 0
    %2714 = vmatmul.mubr.bf16.gmra.mrb[0].mxu0 %v2666
    %v2715 = vpop.f32.mrb[0].mxu0
    %v2716 = vadd.f32 %v2617, %v2715
    %v2717 = vpop.f32.mrb[0].mxu0
    %v2718 = vadd.f32 %v2621, %v2717
    %v2719 = vpop.f32.mrb[0].mxu0
    %v2720 = vadd.f32 %v2617, %v2719
    %v2721 = vpop.f32.mrb[0].mxu0
    %v2722 = vadd.f32 %v2621, %v2721
    %2723 = vmatprep.mubr.bf16.mxu0 0
    %2724 = vmatmul.mubr.bf16.gmra.mrb[0].mxu0 %v2669
    %v2725 = vpop.f32.mrb[0].mxu0
    %v2726 = vadd.f32 %v2617, %v2725
    %v2727 = vpop.f32.mrb[0].mxu0
    %v2728 = vadd.f32 %v2621, %v2727
    %v2729 = vpop.f32.mrb[0].mxu0
    %v2730 = vadd.f32 %v2617, %v2729
    %v2731 = vpop.f32.mrb[0].mxu0
    %v2732 = vadd.f32 %v2621, %v2731
    %2733 = vdwg.mxu0
    %v2734 = vpack.c.bf16 %v2710, %v2706
    %v2735 = vpack.c.bf16 %v2716, %v2716
    %v2736 = vpack.c.bf16 %v2726, %v2720
    %v2737 = vpack.c.bf16 %v2730, %v2730
    %v2738 = vpack.c.bf16 %v2712, %v2708
    %v2739 = vpack.c.bf16 %v2718, %v2718
    %v2740 = vpack.c.bf16 %v2728, %v2722
    %v2741 = vpack.c.bf16 %v2732, %v2732
    %2744 = vrot.lane.b32.xlu0 %v2734, 64
    %v2745 = vpop.permute.xlu0 %2744
    %2746 = vrot.lane.b32.xlu0 %v2735, 64
    %v2747 = vpop.permute.xlu0 %2746
    %v2749 = vsel %vm453, %v2734, 0
    %v2752 = vsel %vm453, %v2735, 0
    %v2755 = vsel %vm453, %v2745, 0
    %v2758 = vsel %vm453, %v2747, 0
    %2760 = vmatprep.subr.bf16.mxu0 0
    %2761 = vmatpush1.bf16.xpose.msra.mxu0 %v2755
    %2762 = vmatprep.subr.bf16.mxu0 0
    %2763 = vmatpush1.bf16.xpose.msra.mxu0 %v2758
    %2764 = vmatprep.subr.bf16.mxu0 0
    %2765 = vmatpush1.bf16.xpose.msra.mxu0 0
    %2766 = vmatprep.subr.bf16.mxu0 0
    %2767 = vmatpush1.bf16.xpose.msra.mxu0 0
    %2768 = vmatprep.subr.bf16.mxu0 0
    %2769 = vmatpush1.bf16.xpose.msra.mxu0 0
    %2770 = vmatprep.subr.bf16.mxu0 0
    %2771 = vmatpush1.bf16.xpose.msra.mxu0 0
    %2772 = vmatprep.subr.bf16.mxu0 0
    %2773 = vmatpush1.bf16.xpose.msra.mxu0 0
    %2774 = vmatprep.subr.bf16.mxu0 0
    %2775 = vmatpush1.bf16.xpose.msra.mxu0 0
    %2776 = vmatprep.subr.bf16.mxu0 0
    %2777 = vmatpush1.bf16.xpose.msra.mxu0 0
    %2778 = vmatprep.subr.bf16.mxu0 0
    %2779 = vmatpush1.bf16.xpose.msra.mxu0 0
    %2780 = vmatprep.subr.bf16.mxu0 0
    %2781 = vmatpush1.bf16.xpose.msra.mxu0 0
    %2782 = vmatprep.subr.bf16.mxu0 0
    %2783 = vmatpush1.bf16.xpose.msra.mxu0 0
    %2784 = vmatprep.subr.bf16.mxu0 0
    %2785 = vmatpush1.bf16.xpose.msra.mxu0 0
    %2786 = vmatprep.subr.bf16.mxu0 0
    %2787 = vmatpush1.bf16.xpose.msra.mxu0 0
    %2788 = vmatprep.subr.bf16.mxu0 0
    %2789 = vmatpush1.bf16.xpose.msra.mxu0 0
    %2790 = vmatprep.subr.bf16.mxu0 0
    %2791 = vmatpush1.bf16.xpose.msra.mxu0 0
    %2792 = vmatprep.mubr.bf16.mxu0 0
    %2793 = vmatmul.mubr.bf16.gmra.mrb[0].mxu0 %v2749
    %v2794 = vpop.f32.mrb[0].mxu0
    %v2795 = vadd.f32 0.0, %v2794
    %v2796 = vpop.f32.mrb[0].mxu0
    %v2797 = vpop.f32.mrb[0].mxu0
    %v2798 = vadd.f32 0.0, %v2797
    %v2799 = vpop.f32.mrb[0].mxu0
    %2800 = vmatprep.mubr.bf16.mxu0 0
    %2801 = vmatmul.mubr.bf16.gmra.mrb[0].mxu0 %v2752
    %v2802 = vpop.f32.mrb[0].mxu0
    %v2803 = vadd.f32 0.0, %v2802
    %v2804 = vpop.f32.mrb[0].mxu0
    %v2805 = vpop.f32.mrb[0].mxu0
    %v2806 = vpop.f32.mrb[0].mxu0
    %2807 = vdwg.mxu0
    %2810 = vrot.lane.b32.xlu0 %v2736, 64
    %v2811 = vpop.permute.xlu0 %2810
    %2812 = vrot.lane.b32.xlu0 %v2737, 64
    %v2813 = vpop.permute.xlu0 %2812
    %v2815 = vsel %vm453, %v2736, 0
    %v2818 = vsel %vm453, %v2737, 0
    %v2821 = vsel %vm453, %v2811, 0
    %v2824 = vsel %vm453, %v2813, 0
    %2826 = vmatprep.subr.bf16.mxu0 0
    %2827 = vmatpush1.bf16.xpose.msra.mxu0 %v2821
    %2828 = vmatprep.subr.bf16.mxu0 0
    %2829 = vmatpush1.bf16.xpose.msra.mxu0 %v2824
    %2830 = vmatprep.subr.bf16.mxu0 0
    %2831 = vmatpush1.bf16.xpose.msra.mxu0 0
    %2832 = vmatprep.subr.bf16.mxu0 0
    %2833 = vmatpush1.bf16.xpose.msra.mxu0 0
    %2834 = vmatprep.subr.bf16.mxu0 0
    %2835 = vmatpush1.bf16.xpose.msra.mxu0 0
    %2836 = vmatprep.subr.bf16.mxu0 0
    %2837 = vmatpush1.bf16.xpose.msra.mxu0 0
    %2838 = vmatprep.subr.bf16.mxu0 0
    %2839 = vmatpush1.bf16.xpose.msra.mxu0 0
    %2840 = vmatprep.subr.bf16.mxu0 0
    %2841 = vmatpush1.bf16.xpose.msra.mxu0 0
    %2842 = vmatprep.subr.bf16.mxu0 0
    %2843 = vmatpush1.bf16.xpose.msra.mxu0 0
    %2844 = vmatprep.subr.bf16.mxu0 0
    %2845 = vmatpush1.bf16.xpose.msra.mxu0 0
    %2846 = vmatprep.subr.bf16.mxu0 0
    %2847 = vmatpush1.bf16.xpose.msra.mxu0 0
    %2848 = vmatprep.subr.bf16.mxu0 0
    %2849 = vmatpush1.bf16.xpose.msra.mxu0 0
    %2850 = vmatprep.subr.bf16.mxu0 0
    %2851 = vmatpush1.bf16.xpose.msra.mxu0 0
    %2852 = vmatprep.subr.bf16.mxu0 0
    %2853 = vmatpush1.bf16.xpose.msra.mxu0 0
    %2854 = vmatprep.subr.bf16.mxu0 0
    %2855 = vmatpush1.bf16.xpose.msra.mxu0 0
    %2856 = vmatprep.subr.bf16.mxu0 0
    %2857 = vmatpush1.bf16.xpose.msra.mxu0 0
    %2858 = vmatprep.mubr.bf16.mxu0 0
    %2859 = vmatmul.mubr.bf16.gmra.mrb[0].mxu0 %v2815
    %v2860 = vpop.f32.mrb[0].mxu0
    %v2861 = vadd.f32 0.0, %v2860
    %v2862 = vpop.f32.mrb[0].mxu0
    %v2863 = vpop.f32.mrb[0].mxu0
    %v2864 = vadd.f32 0.0, %v2863
    %v2865 = vpop.f32.mrb[0].mxu0
    %2866 = vmatprep.mubr.bf16.mxu0 0
    %2867 = vmatmul.mubr.bf16.gmra.mrb[0].mxu0 %v2818
    %v2868 = vpop.f32.mrb[0].mxu0
    %v2869 = vadd.f32 0.0, %v2868
    %v2870 = vpop.f32.mrb[0].mxu0
    %v2871 = vpop.f32.mrb[0].mxu0
    %v2872 = vpop.f32.mrb[0].mxu0
    %2873 = vdwg.mxu0
    %v2874 = vmul.f32 %v2795, 0.25
    %v2875 = vmul.f32 %v2798, 0.25
    %v2876 = vmul.f32 %v2803, 0.25
    %v2877 = vmul.f32 %v2861, 0.25
    %v2878 = vmul.f32 %v2864, 0.25
    %v2879 = vmul.f32 %v2869, 0.25
    %v2880 = vadd.f32 %v2874, %v206
    %v2881 = vadd.f32 %v2875, %v206
    %v2882 = vadd.f32 %v2876, %v206
    %v2883 = vadd.f32 %v2877, %v206
    %v2884 = vadd.f32 %v2878, %v206
    %v2885 = vadd.f32 %v2879, %v206
    %v2886 = vsel %vm592, %v2880, -inf
    %2887 = vmax.xlane.f32.xlu0 %v2886
    %v2888 = vpop.xlane.xlu0 %2887
    %v2889 = vsel %vm592, %v2881, -inf
    %2890 = vmax.xlane.f32.xlu0 %v2889
    %v2891 = vpop.xlane.xlu0 %2890
    %v2892 = vsel %vm592, %v2882, -inf
    %2893 = vmax.xlane.f32.xlu0 %v2892
    %v2894 = vpop.xlane.xlu0 %2893
    %v2895 = vsel %vm592, %v2883, -inf
    %2896 = vmax.xlane.f32.xlu0 %v2895
    %v2897 = vpop.xlane.xlu0 %2896
    %v2898 = vsel %vm592, %v2884, -inf
    %2899 = vmax.xlane.f32.xlu0 %v2898
    %v2900 = vpop.xlane.xlu0 %2899
    %v2901 = vsel %vm592, %v2885, -inf
    %2902 = vmax.xlane.f32.xlu0 %v2901
    %v2903 = vpop.xlane.xlu0 %2902
    %v2904 = vsub.f32 %v2880, %v2888
    %v2905 = vsub.f32 %v2881, %v2891
    %v2906 = vsub.f32 %v2882, %v2894
    %v2907 = vsub.f32 %v2883, %v2897
    %v2908 = vsub.f32 %v2884, %v2900
    %v2909 = vsub.f32 %v2885, %v2903
    %v2910 = vmul.f32 %v2904, 1.442695
    %v2911 = vpow.pop %v2910
    %v2912 = vmul.f32 %v2905, 1.442695
    %v2913 = vpow.pop %v2912
    %v2914 = vmul.f32 %v2906, 1.442695
    %v2915 = vpow.pop %v2914
    %v2916 = vmul.f32 %v2907, 1.442695
    %v2917 = vpow.pop %v2916
    %v2918 = vmul.f32 %v2908, 1.442695
    %v2919 = vpow.pop %v2918
    %v2920 = vmul.f32 %v2909, 1.442695
    %v2921 = vpow.pop %v2920
    %v2922 = vsel %vm592, %v2911, 0.0
    %2923 = vadd.xlane.f32.xlu0 %v2922
    %v2924 = vpop.xlane.xlu0 %2923
    %v2925 = vsel %vm592, %v2913, 0.0
    %2926 = vadd.xlane.f32.xlu0 %v2925
    %v2927 = vpop.xlane.xlu0 %2926
    %v2928 = vsel %vm592, %v2915, 0.0
    %2929 = vadd.xlane.f32.xlu0 %v2928
    %v2930 = vpop.xlane.xlu0 %2929
    %v2931 = vsel %vm592, %v2917, 0.0
    %2932 = vadd.xlane.f32.xlu0 %v2931
    %v2933 = vpop.xlane.xlu0 %2932
    %v2934 = vsel %vm592, %v2919, 0.0
    %2935 = vadd.xlane.f32.xlu0 %v2934
    %v2936 = vpop.xlane.xlu0 %2935
    %v2937 = vsel %vm592, %v2921, 0.0
    %2938 = vadd.xlane.f32.xlu0 %v2937
    %v2939 = vpop.xlane.xlu0 %2938
    %v2940 = vrcp.pop %v2924
    %v2941 = vmul.f32 %v2911, %v2940
    %v2942 = vrcp.pop %v2927
    %v2943 = vmul.f32 %v2913, %v2942
    %v2944 = vrcp.pop %v2930
    %v2945 = vmul.f32 %v2915, %v2944
    %v2946 = vrcp.pop %v2933
    %v2947 = vmul.f32 %v2917, %v2946
    %v2948 = vrcp.pop %v2936
    %v2949 = vmul.f32 %v2919, %v2948
    %v2950 = vrcp.pop %v2939
    %v2951 = vmul.f32 %v2921, %v2950
    %v2952 = vpack.c.bf16 %v2943, %v2941
    %v2953 = vpack.c.bf16 %v2945, %v2945
    %v2954 = vpack.c.bf16 %v2949, %v2947
    %v2955 = vpack.c.bf16 %v2951, %v2951
    %v2957 = vsel %vm592, %v2952, 0
    %v2960 = vsel %vm592, %v2953, 0
    %v2963 = vsel %vm669, %v2739, 0
    %2965 = vmatprep.subr.bf16.mxu0 0
    %2966 = vmatpush1.bf16.msra.mxu0 %v2738
    %2967 = vmatprep.subr.bf16.mxu0 0
    %2968 = vmatpush1.bf16.msra.mxu0 %v2963
    %2969 = vmatprep.subr.bf16.mxu0 0
    %2970 = vmatpush1.bf16.msra.mxu0 0
    %2971 = vmatprep.subr.bf16.mxu0 0
    %2972 = vmatpush1.bf16.msra.mxu0 0
    %2973 = vmatprep.subr.bf16.mxu0 0
    %2974 = vmatpush1.bf16.msra.mxu0 0
    %2975 = vmatprep.subr.bf16.mxu0 0
    %2976 = vmatpush1.bf16.msra.mxu0 0
    %2977 = vmatprep.subr.bf16.mxu0 0
    %2978 = vmatpush1.bf16.msra.mxu0 0
    %2979 = vmatprep.subr.bf16.mxu0 0
    %2980 = vmatpush1.bf16.msra.mxu0 0
    %2981 = vmatprep.subr.bf16.mxu0 0
    %2982 = vmatpush1.bf16.msra.mxu0 0
    %2983 = vmatprep.subr.bf16.mxu0 0
    %2984 = vmatpush1.bf16.msra.mxu0 0
    %2985 = vmatprep.subr.bf16.mxu0 0
    %2986 = vmatpush1.bf16.msra.mxu0 0
    %2987 = vmatprep.subr.bf16.mxu0 0
    %2988 = vmatpush1.bf16.msra.mxu0 0
    %2989 = vmatprep.subr.bf16.mxu0 0
    %2990 = vmatpush1.bf16.msra.mxu0 0
    %2991 = vmatprep.subr.bf16.mxu0 0
    %2992 = vmatpush1.bf16.msra.mxu0 0
    %2993 = vmatprep.subr.bf16.mxu0 0
    %2994 = vmatpush1.bf16.msra.mxu0 0
    %2995 = vmatprep.subr.bf16.mxu0 0
    %2996 = vmatpush1.bf16.msra.mxu0 0
    %2997 = vmatprep.mubr.bf16.mxu0 0
    %2998 = vmatmul.mubr.bf16.gmra.mrb[0].mxu0 %v2957
    %v2999 = vpop.f32.mrb[0].mxu0
    %v3000 = vadd.f32 0.0, %v2999
    %v3001 = vpop.f32.mrb[0].mxu0
    %v3002 = vpop.f32.mrb[0].mxu0
    %v3003 = vadd.f32 0.0, %v3002
    %v3004 = vpop.f32.mrb[0].mxu0
    %3005 = vmatprep.mubr.bf16.mxu0 0
    %3006 = vmatmul.mubr.bf16.gmra.mrb[0].mxu0 %v2960
    %v3007 = vpop.f32.mrb[0].mxu0
    %v3008 = vadd.f32 0.0, %v3007
    %v3009 = vpop.f32.mrb[0].mxu0
    %v3010 = vpop.f32.mrb[0].mxu0
    %v3011 = vpop.f32.mrb[0].mxu0
    %3012 = vdwg.mxu0
    %v3014 = vsel %vm592, %v2954, 0
    %v3017 = vsel %vm592, %v2955, 0
    %v3020 = vsel %vm669, %v2741, 0
    %3022 = vmatprep.subr.bf16.mxu0 0
    %3023 = vmatpush1.bf16.msra.mxu0 %v2740
    %3024 = vmatprep.subr.bf16.mxu0 0
    %3025 = vmatpush1.bf16.msra.mxu0 %v3020
    %3026 = vmatprep.subr.bf16.mxu0 0
    %3027 = vmatpush1.bf16.msra.mxu0 0
    %3028 = vmatprep.subr.bf16.mxu0 0
    %3029 = vmatpush1.bf16.msra.mxu0 0
    %3030 = vmatprep.subr.bf16.mxu0 0
    %3031 = vmatpush1.bf16.msra.mxu0 0
    %3032 = vmatprep.subr.bf16.mxu0 0
    %3033 = vmatpush1.bf16.msra.mxu0 0
    %3034 = vmatprep.subr.bf16.mxu0 0
    %3035 = vmatpush1.bf16.msra.mxu0 0
    %3036 = vmatprep.subr.bf16.mxu0 0
    %3037 = vmatpush1.bf16.msra.mxu0 0
    %3038 = vmatprep.subr.bf16.mxu0 0
    %3039 = vmatpush1.bf16.msra.mxu0 0
    %3040 = vmatprep.subr.bf16.mxu0 0
    %3041 = vmatpush1.bf16.msra.mxu0 0
    %3042 = vmatprep.subr.bf16.mxu0 0
    %3043 = vmatpush1.bf16.msra.mxu0 0
    %3044 = vmatprep.subr.bf16.mxu0 0
    %3045 = vmatpush1.bf16.msra.mxu0 0
    %3046 = vmatprep.subr.bf16.mxu0 0
    %3047 = vmatpush1.bf16.msra.mxu0 0
    %3048 = vmatprep.subr.bf16.mxu0 0
    %3049 = vmatpush1.bf16.msra.mxu0 0
    %3050 = vmatprep.subr.bf16.mxu0 0
    %3051 = vmatpush1.bf16.msra.mxu0 0
    %3052 = vmatprep.subr.bf16.mxu0 0
    %3053 = vmatpush1.bf16.msra.mxu0 0
    %3054 = vmatprep.mubr.bf16.mxu0 0
    %3055 = vmatmul.mubr.bf16.gmra.mrb[0].mxu0 %v3014
    %v3056 = vpop.f32.mrb[0].mxu0
    %v3057 = vadd.f32 0.0, %v3056
    %v3058 = vpop.f32.mrb[0].mxu0
    %v3059 = vpop.f32.mrb[0].mxu0
    %v3060 = vadd.f32 0.0, %v3059
    %v3061 = vpop.f32.mrb[0].mxu0
    %3062 = vmatprep.mubr.bf16.mxu0 0
    %3063 = vmatmul.mubr.bf16.gmra.mrb[0].mxu0 %v3017
    %v3064 = vpop.f32.mrb[0].mxu0
    %v3065 = vadd.f32 0.0, %v3064
    %v3066 = vpop.f32.mrb[0].mxu0
    %v3067 = vpop.f32.mrb[0].mxu0
    %v3068 = vpop.f32.mrb[0].mxu0
    %3069 = vdwg.mxu0
    %3070 = vrot.lane.b32.xlu0 %v2734, 112
    %v3071 = vpop.permute.xlu0 %3070
    %3072 = vrot.lane.b32.xlu0 %v2735, 112
    %v3073 = vpop.permute.xlu0 %3072
    %3074 = vrot.lane.b32.xlu0 %v2734, 48
    %v3075 = vpop.permute.xlu0 %3074
    %3076 = vrot.lane.b32.xlu0 %v2735, 48
    %v3077 = vpop.permute.xlu0 %3076
    %v3079 = vsel %vm453, %v3071, 0
    %v3082 = vsel %vm453, %v3073, 0
    %v3085 = vsel %vm453, %v3075, 0
    %v3088 = vsel %vm453, %v3077, 0
    %3090 = vmatprep.subr.bf16.mxu0 0
    %3091 = vmatpush1.bf16.xpose.msra.mxu0 %v3085
    %3092 = vmatprep.subr.bf16.mxu0 0
    %3093 = vmatpush1.bf16.xpose.msra.mxu0 %v3088
    %3094 = vmatprep.subr.bf16.mxu0 0
    %3095 = vmatpush1.bf16.xpose.msra.mxu0 0
    %3096 = vmatprep.subr.bf16.mxu0 0
    %3097 = vmatpush1.bf16.xpose.msra.mxu0 0
    %3098 = vmatprep.subr.bf16.mxu0 0
    %3099 = vmatpush1.bf16.xpose.msra.mxu0 0
    %3100 = vmatprep.subr.bf16.mxu0 0
    %3101 = vmatpush1.bf16.xpose.msra.mxu0 0
    %3102 = vmatprep.subr.bf16.mxu0 0
    %3103 = vmatpush1.bf16.xpose.msra.mxu0 0
    %3104 = vmatprep.subr.bf16.mxu0 0
    %3105 = vmatpush1.bf16.xpose.msra.mxu0 0
    %3106 = vmatprep.subr.bf16.mxu0 0
    %3107 = vmatpush1.bf16.xpose.msra.mxu0 0
    %3108 = vmatprep.subr.bf16.mxu0 0
    %3109 = vmatpush1.bf16.xpose.msra.mxu0 0
    %3110 = vmatprep.subr.bf16.mxu0 0
    %3111 = vmatpush1.bf16.xpose.msra.mxu0 0
    %3112 = vmatprep.subr.bf16.mxu0 0
    %3113 = vmatpush1.bf16.xpose.msra.mxu0 0
    %3114 = vmatprep.subr.bf16.mxu0 0
    %3115 = vmatpush1.bf16.xpose.msra.mxu0 0
    %3116 = vmatprep.subr.bf16.mxu0 0
    %3117 = vmatpush1.bf16.xpose.msra.mxu0 0
    %3118 = vmatprep.subr.bf16.mxu0 0
    %3119 = vmatpush1.bf16.xpose.msra.mxu0 0
    %3120 = vmatprep.subr.bf16.mxu0 0
    %3121 = vmatpush1.bf16.xpose.msra.mxu0 0
    %3122 = vmatprep.mubr.bf16.mxu0 0
    %3123 = vmatmul.mubr.bf16.gmra.mrb[0].mxu0 %v3079
    %v3124 = vpop.f32.mrb[0].mxu0
    %v3125 = vadd.f32 0.0, %v3124
    %v3126 = vpop.f32.mrb[0].mxu0
    %v3127 = vpop.f32.mrb[0].mxu0
    %v3128 = vadd.f32 0.0, %v3127
    %v3129 = vpop.f32.mrb[0].mxu0
    %3130 = vmatprep.mubr.bf16.mxu0 0
    %3131 = vmatmul.mubr.bf16.gmra.mrb[0].mxu0 %v3082
    %v3132 = vpop.f32.mrb[0].mxu0
    %v3133 = vadd.f32 0.0, %v3132
    %v3134 = vpop.f32.mrb[0].mxu0
    %v3135 = vpop.f32.mrb[0].mxu0
    %v3136 = vpop.f32.mrb[0].mxu0
    %3137 = vdwg.mxu0
    %3138 = vrot.lane.b32.xlu0 %v2736, 112
    %v3139 = vpop.permute.xlu0 %3138
    %3140 = vrot.lane.b32.xlu0 %v2737, 112
    %v3141 = vpop.permute.xlu0 %3140
    %3142 = vrot.lane.b32.xlu0 %v2736, 48
    %v3143 = vpop.permute.xlu0 %3142
    %3144 = vrot.lane.b32.xlu0 %v2737, 48
    %v3145 = vpop.permute.xlu0 %3144
    %v3147 = vsel %vm453, %v3139, 0
    %v3150 = vsel %vm453, %v3141, 0
    %v3153 = vsel %vm453, %v3143, 0
    %v3156 = vsel %vm453, %v3145, 0
    %3158 = vmatprep.subr.bf16.mxu0 0
    %3159 = vmatpush1.bf16.xpose.msra.mxu0 %v3153
    %3160 = vmatprep.subr.bf16.mxu0 0
    %3161 = vmatpush1.bf16.xpose.msra.mxu0 %v3156
    %3162 = vmatprep.subr.bf16.mxu0 0
    %3163 = vmatpush1.bf16.xpose.msra.mxu0 0
    %3164 = vmatprep.subr.bf16.mxu0 0
    %3165 = vmatpush1.bf16.xpose.msra.mxu0 0
    %3166 = vmatprep.subr.bf16.mxu0 0
    %3167 = vmatpush1.bf16.xpose.msra.mxu0 0
    %3168 = vmatprep.subr.bf16.mxu0 0
    %3169 = vmatpush1.bf16.xpose.msra.mxu0 0
    %3170 = vmatprep.subr.bf16.mxu0 0
    %3171 = vmatpush1.bf16.xpose.msra.mxu0 0
    %3172 = vmatprep.subr.bf16.mxu0 0
    %3173 = vmatpush1.bf16.xpose.msra.mxu0 0
    %3174 = vmatprep.subr.bf16.mxu0 0
    %3175 = vmatpush1.bf16.xpose.msra.mxu0 0
    %3176 = vmatprep.subr.bf16.mxu0 0
    %3177 = vmatpush1.bf16.xpose.msra.mxu0 0
    %3178 = vmatprep.subr.bf16.mxu0 0
    %3179 = vmatpush1.bf16.xpose.msra.mxu0 0
    %3180 = vmatprep.subr.bf16.mxu0 0
    %3181 = vmatpush1.bf16.xpose.msra.mxu0 0
    %3182 = vmatprep.subr.bf16.mxu0 0
    %3183 = vmatpush1.bf16.xpose.msra.mxu0 0
    %3184 = vmatprep.subr.bf16.mxu0 0
    %3185 = vmatpush1.bf16.xpose.msra.mxu0 0
    %3186 = vmatprep.subr.bf16.mxu0 0
    %3187 = vmatpush1.bf16.xpose.msra.mxu0 0
    %3188 = vmatprep.subr.bf16.mxu0 0
    %3189 = vmatpush1.bf16.xpose.msra.mxu0 0
    %3190 = vmatprep.mubr.bf16.mxu0 0
    %3191 = vmatmul.mubr.bf16.gmra.mrb[0].mxu0 %v3147
    %v3192 = vpop.f32.mrb[0].mxu0
    %v3193 = vadd.f32 0.0, %v3192
    %v3194 = vpop.f32.mrb[0].mxu0
    %v3195 = vpop.f32.mrb[0].mxu0
    %v3196 = vadd.f32 0.0, %v3195
    %v3197 = vpop.f32.mrb[0].mxu0
    %3198 = vmatprep.mubr.bf16.mxu0 0
    %3199 = vmatmul.mubr.bf16.gmra.mrb[0].mxu0 %v3150
    %v3200 = vpop.f32.mrb[0].mxu0
    %v3201 = vadd.f32 0.0, %v3200
    %v3202 = vpop.f32.mrb[0].mxu0
    %v3203 = vpop.f32.mrb[0].mxu0
    %v3204 = vpop.f32.mrb[0].mxu0
    %3205 = vdwg.mxu0
    %v3206 = vmul.f32 %v3125, 0.25
    %v3207 = vmul.f32 %v3128, 0.25
    %v3208 = vmul.f32 %v3133, 0.25
    %v3209 = vmul.f32 %v3193, 0.25
    %v3210 = vmul.f32 %v3196, 0.25
    %v3211 = vmul.f32 %v3201, 0.25
    %v3212 = vadd.f32 %v3206, %v206
    %v3213 = vadd.f32 %v3207, %v206
    %v3214 = vadd.f32 %v3208, %v206
    %v3215 = vadd.f32 %v3209, %v206
    %v3216 = vadd.f32 %v3210, %v206
    %v3217 = vadd.f32 %v3211, %v206
    %v3218 = vsel %vm592, %v3212, -inf
    %3219 = vmax.xlane.f32.xlu0 %v3218
    %v3220 = vpop.xlane.xlu0 %3219
    %v3221 = vsel %vm592, %v3213, -inf
    %3222 = vmax.xlane.f32.xlu0 %v3221
    %v3223 = vpop.xlane.xlu0 %3222
    %v3224 = vsel %vm592, %v3214, -inf
    %3225 = vmax.xlane.f32.xlu0 %v3224
    %v3226 = vpop.xlane.xlu0 %3225
    %v3227 = vsel %vm592, %v3215, -inf
    %3228 = vmax.xlane.f32.xlu0 %v3227
    %v3229 = vpop.xlane.xlu0 %3228
    %v3230 = vsel %vm592, %v3216, -inf
    %3231 = vmax.xlane.f32.xlu0 %v3230
    %v3232 = vpop.xlane.xlu0 %3231
    %v3233 = vsel %vm592, %v3217, -inf
    %3234 = vmax.xlane.f32.xlu0 %v3233
    %v3235 = vpop.xlane.xlu0 %3234
    %v3236 = vsub.f32 %v3212, %v3220
    %v3237 = vsub.f32 %v3213, %v3223
    %v3238 = vsub.f32 %v3214, %v3226
    %v3239 = vsub.f32 %v3215, %v3229
    %v3240 = vsub.f32 %v3216, %v3232
    %v3241 = vsub.f32 %v3217, %v3235
    %v3242 = vmul.f32 %v3236, 1.442695
    %v3243 = vpow.pop %v3242
    %v3244 = vmul.f32 %v3237, 1.442695
    %v3245 = vpow.pop %v3244
    %v3246 = vmul.f32 %v3238, 1.442695
    %v3247 = vpow.pop %v3246
    %v3248 = vmul.f32 %v3239, 1.442695
    %v3249 = vpow.pop %v3248
    %v3250 = vmul.f32 %v3240, 1.442695
    %v3251 = vpow.pop %v3250
    %v3252 = vmul.f32 %v3241, 1.442695
    %v3253 = vpow.pop %v3252
    %v3254 = vsel %vm592, %v3243, 0.0
    %3255 = vadd.xlane.f32.xlu0 %v3254
    %v3256 = vpop.xlane.xlu0 %3255
    %v3257 = vsel %vm592, %v3245, 0.0
    %3258 = vadd.xlane.f32.xlu0 %v3257
    %v3259 = vpop.xlane.xlu0 %3258
    %v3260 = vsel %vm592, %v3247, 0.0
    %3261 = vadd.xlane.f32.xlu0 %v3260
    %v3262 = vpop.xlane.xlu0 %3261
    %v3263 = vsel %vm592, %v3249, 0.0
    %3264 = vadd.xlane.f32.xlu0 %v3263
    %v3265 = vpop.xlane.xlu0 %3264
    %v3266 = vsel %vm592, %v3251, 0.0
    %3267 = vadd.xlane.f32.xlu0 %v3266
    %v3268 = vpop.xlane.xlu0 %3267
    %v3269 = vsel %vm592, %v3253, 0.0
    %3270 = vadd.xlane.f32.xlu0 %v3269
    %v3271 = vpop.xlane.xlu0 %3270
    %v3272 = vrcp.pop %v3256
    %v3273 = vmul.f32 %v3243, %v3272
    %v3274 = vrcp.pop %v3259
    %v3275 = vmul.f32 %v3245, %v3274
    %v3276 = vrcp.pop %v3262
    %v3277 = vmul.f32 %v3247, %v3276
    %v3278 = vrcp.pop %v3265
    %v3279 = vmul.f32 %v3249, %v3278
    %v3280 = vrcp.pop %v3268
    %v3281 = vmul.f32 %v3251, %v3280
    %v3282 = vrcp.pop %v3271
    %v3283 = vmul.f32 %v3253, %v3282
    %v3284 = vpack.c.bf16 %v3275, %v3273
    %v3285 = vpack.c.bf16 %v3277, %v3277
    %v3286 = vpack.c.bf16 %v3281, %v3279
    %v3287 = vpack.c.bf16 %v3283, %v3283
    %3290 = vrot.lane.b32.xlu0 %v2738, 112
    %v3291 = vpop.permute.xlu0 %3290
    %3292 = vrot.lane.b32.xlu0 %v2739, 112
    %v3293 = vpop.permute.xlu0 %3292
    %v3296 = vsel %vm592, %v3284, 0
    %v3299 = vsel %vm592, %v3285, 0
    %v3302 = vsel %vm669, %v3293, 0
    %3304 = vmatprep.subr.bf16.mxu0 0
    %3305 = vmatpush1.bf16.msra.mxu0 %v3291
    %3306 = vmatprep.subr.bf16.mxu0 0
    %3307 = vmatpush1.bf16.msra.mxu0 %v3302
    %3308 = vmatprep.subr.bf16.mxu0 0
    %3309 = vmatpush1.bf16.msra.mxu0 0
    %3310 = vmatprep.subr.bf16.mxu0 0
    %3311 = vmatpush1.bf16.msra.mxu0 0
    %3312 = vmatprep.subr.bf16.mxu0 0
    %3313 = vmatpush1.bf16.msra.mxu0 0
    %3314 = vmatprep.subr.bf16.mxu0 0
    %3315 = vmatpush1.bf16.msra.mxu0 0
    %3316 = vmatprep.subr.bf16.mxu0 0
    %3317 = vmatpush1.bf16.msra.mxu0 0
    %3318 = vmatprep.subr.bf16.mxu0 0
    %3319 = vmatpush1.bf16.msra.mxu0 0
    %3320 = vmatprep.subr.bf16.mxu0 0
    %3321 = vmatpush1.bf16.msra.mxu0 0
    %3322 = vmatprep.subr.bf16.mxu0 0
    %3323 = vmatpush1.bf16.msra.mxu0 0
    %3324 = vmatprep.subr.bf16.mxu0 0
    %3325 = vmatpush1.bf16.msra.mxu0 0
    %3326 = vmatprep.subr.bf16.mxu0 0
    %3327 = vmatpush1.bf16.msra.mxu0 0
    %3328 = vmatprep.subr.bf16.mxu0 0
    %3329 = vmatpush1.bf16.msra.mxu0 0
    %3330 = vmatprep.subr.bf16.mxu0 0
    %3331 = vmatpush1.bf16.msra.mxu0 0
    %3332 = vmatprep.subr.bf16.mxu0 0
    %3333 = vmatpush1.bf16.msra.mxu0 0
    %3334 = vmatprep.subr.bf16.mxu0 0
    %3335 = vmatpush1.bf16.msra.mxu0 0
    %3336 = vmatprep.mubr.bf16.mxu0 0
    %3337 = vmatmul.mubr.bf16.gmra.mrb[0].mxu0 %v3296
    %v3338 = vpop.f32.mrb[0].mxu0
    %v3339 = vadd.f32 0.0, %v3338
    %v3340 = vpop.f32.mrb[0].mxu0
    %v3341 = vpop.f32.mrb[0].mxu0
    %v3342 = vadd.f32 0.0, %v3341
    %v3343 = vpop.f32.mrb[0].mxu0
    %3344 = vmatprep.mubr.bf16.mxu0 0
    %3345 = vmatmul.mubr.bf16.gmra.mrb[0].mxu0 %v3299
    %v3346 = vpop.f32.mrb[0].mxu0
    %v3347 = vadd.f32 0.0, %v3346
    %v3348 = vpop.f32.mrb[0].mxu0
    %v3349 = vpop.f32.mrb[0].mxu0
    %v3350 = vpop.f32.mrb[0].mxu0
    %3351 = vdwg.mxu0
    %3354 = vrot.lane.b32.xlu0 %v2740, 112
    %v3355 = vpop.permute.xlu0 %3354
    %3356 = vrot.lane.b32.xlu0 %v2741, 112
    %v3357 = vpop.permute.xlu0 %3356
    %v3360 = vsel %vm592, %v3286, 0
    %v3363 = vsel %vm592, %v3287, 0
    %v3366 = vsel %vm669, %v3357, 0
    %3368 = vmatprep.subr.bf16.mxu0 0
    %3369 = vmatpush1.bf16.msra.mxu0 %v3355
    %3370 = vmatprep.subr.bf16.mxu0 0
    %3371 = vmatpush1.bf16.msra.mxu0 %v3366
    %3372 = vmatprep.subr.bf16.mxu0 0
    %3373 = vmatpush1.bf16.msra.mxu0 0
    %3374 = vmatprep.subr.bf16.mxu0 0
    %3375 = vmatpush1.bf16.msra.mxu0 0
    %3376 = vmatprep.subr.bf16.mxu0 0
    %3377 = vmatpush1.bf16.msra.mxu0 0
    %3378 = vmatprep.subr.bf16.mxu0 0
    %3379 = vmatpush1.bf16.msra.mxu0 0
    %3380 = vmatprep.subr.bf16.mxu0 0
    %3381 = vmatpush1.bf16.msra.mxu0 0
    %3382 = vmatprep.subr.bf16.mxu0 0
    %3383 = vmatpush1.bf16.msra.mxu0 0
    %3384 = vmatprep.subr.bf16.mxu0 0
    %3385 = vmatpush1.bf16.msra.mxu0 0
    %3386 = vmatprep.subr.bf16.mxu0 0
    %3387 = vmatpush1.bf16.msra.mxu0 0
    %3388 = vmatprep.subr.bf16.mxu0 0
    %3389 = vmatpush1.bf16.msra.mxu0 0
    %3390 = vmatprep.subr.bf16.mxu0 0
    %3391 = vmatpush1.bf16.msra.mxu0 0
    %3392 = vmatprep.subr.bf16.mxu0 0
    %3393 = vmatpush1.bf16.msra.mxu0 0
    %3394 = vmatprep.subr.bf16.mxu0 0
    %3395 = vmatpush1.bf16.msra.mxu0 0
    %3396 = vmatprep.subr.bf16.mxu0 0
    %3397 = vmatpush1.bf16.msra.mxu0 0
    %3398 = vmatprep.subr.bf16.mxu0 0
    %3399 = vmatpush1.bf16.msra.mxu0 0
    %3400 = vmatprep.mubr.bf16.mxu0 0
    %3401 = vmatmul.mubr.bf16.gmra.mrb[0].mxu0 %v3360
    %v3402 = vpop.f32.mrb[0].mxu0
    %v3403 = vadd.f32 0.0, %v3402
    %v3404 = vpop.f32.mrb[0].mxu0
    %v3405 = vpop.f32.mrb[0].mxu0
    %v3406 = vadd.f32 0.0, %v3405
    %v3407 = vpop.f32.mrb[0].mxu0
    %3408 = vmatprep.mubr.bf16.mxu0 0
    %3409 = vmatmul.mubr.bf16.gmra.mrb[0].mxu0 %v3363
    %v3410 = vpop.f32.mrb[0].mxu0
    %v3411 = vadd.f32 0.0, %v3410
    %v3412 = vpop.f32.mrb[0].mxu0
    %v3413 = vpop.f32.mrb[0].mxu0
    %v3414 = vpop.f32.mrb[0].mxu0
    %3415 = vdwg.mxu0
    %3416 = vrot.lane.b32.xlu0 %v2734, 96
    %v3417 = vpop.permute.xlu0 %3416
    %3418 = vrot.lane.b32.xlu0 %v2735, 96
    %v3419 = vpop.permute.xlu0 %3418
    %3420 = vrot.lane.b32.xlu0 %v2734, 32
    %v3421 = vpop.permute.xlu0 %3420
    %3422 = vrot.lane.b32.xlu0 %v2735, 32
    %v3423 = vpop.permute.xlu0 %3422
    %v3425 = vsel %vm453, %v3417, 0
    %v3428 = vsel %vm453, %v3419, 0
    %v3431 = vsel %vm453, %v3421, 0
    %v3434 = vsel %vm453, %v3423, 0
    %3436 = vmatprep.subr.bf16.mxu0 0
    %3437 = vmatpush1.bf16.xpose.msra.mxu0 %v3431
    %3438 = vmatprep.subr.bf16.mxu0 0
    %3439 = vmatpush1.bf16.xpose.msra.mxu0 %v3434
    %3440 = vmatprep.subr.bf16.mxu0 0
    %3441 = vmatpush1.bf16.xpose.msra.mxu0 0
    %3442 = vmatprep.subr.bf16.mxu0 0
    %3443 = vmatpush1.bf16.xpose.msra.mxu0 0
    %3444 = vmatprep.subr.bf16.mxu0 0
    %3445 = vmatpush1.bf16.xpose.msra.mxu0 0
    %3446 = vmatprep.subr.bf16.mxu0 0
    %3447 = vmatpush1.bf16.xpose.msra.mxu0 0
    %3448 = vmatprep.subr.bf16.mxu0 0
    %3449 = vmatpush1.bf16.xpose.msra.mxu0 0
    %3450 = vmatprep.subr.bf16.mxu0 0
    %3451 = vmatpush1.bf16.xpose.msra.mxu0 0
    %3452 = vmatprep.subr.bf16.mxu0 0
    %3453 = vmatpush1.bf16.xpose.msra.mxu0 0
    %3454 = vmatprep.subr.bf16.mxu0 0
    %3455 = vmatpush1.bf16.xpose.msra.mxu0 0
    %3456 = vmatprep.subr.bf16.mxu0 0
    %3457 = vmatpush1.bf16.xpose.msra.mxu0 0
    %3458 = vmatprep.subr.bf16.mxu0 0
    %3459 = vmatpush1.bf16.xpose.msra.mxu0 0
    %3460 = vmatprep.subr.bf16.mxu0 0
    %3461 = vmatpush1.bf16.xpose.msra.mxu0 0
    %3462 = vmatprep.subr.bf16.mxu0 0
    %3463 = vmatpush1.bf16.xpose.msra.mxu0 0
    %3464 = vmatprep.subr.bf16.mxu0 0
    %3465 = vmatpush1.bf16.xpose.msra.mxu0 0
    %3466 = vmatprep.subr.bf16.mxu0 0
    %3467 = vmatpush1.bf16.xpose.msra.mxu0 0
    %3468 = vmatprep.mubr.bf16.mxu0 0
    %3469 = vmatmul.mubr.bf16.gmra.mrb[0].mxu0 %v3425
    %v3470 = vpop.f32.mrb[0].mxu0
    %v3471 = vadd.f32 0.0, %v3470
    %v3472 = vpop.f32.mrb[0].mxu0
    %v3473 = vpop.f32.mrb[0].mxu0
    %v3474 = vadd.f32 0.0, %v3473
    %v3475 = vpop.f32.mrb[0].mxu0
    %3476 = vmatprep.mubr.bf16.mxu0 0
    %3477 = vmatmul.mubr.bf16.gmra.mrb[0].mxu0 %v3428
    %v3478 = vpop.f32.mrb[0].mxu0
    %v3479 = vadd.f32 0.0, %v3478
    %v3480 = vpop.f32.mrb[0].mxu0
    %v3481 = vpop.f32.mrb[0].mxu0
    %v3482 = vpop.f32.mrb[0].mxu0
    %3483 = vdwg.mxu0
    %3484 = vrot.lane.b32.xlu0 %v2736, 96
    %v3485 = vpop.permute.xlu0 %3484
    %3486 = vrot.lane.b32.xlu0 %v2737, 96
    %v3487 = vpop.permute.xlu0 %3486
    %3488 = vrot.lane.b32.xlu0 %v2736, 32
    %v3489 = vpop.permute.xlu0 %3488
    %3490 = vrot.lane.b32.xlu0 %v2737, 32
    %v3491 = vpop.permute.xlu0 %3490
    %v3493 = vsel %vm453, %v3485, 0
    %v3496 = vsel %vm453, %v3487, 0
    %v3499 = vsel %vm453, %v3489, 0
    %v3502 = vsel %vm453, %v3491, 0
    %3504 = vmatprep.subr.bf16.mxu0 0
    %3505 = vmatpush1.bf16.xpose.msra.mxu0 %v3499
    %3506 = vmatprep.subr.bf16.mxu0 0
    %3507 = vmatpush1.bf16.xpose.msra.mxu0 %v3502
    %3508 = vmatprep.subr.bf16.mxu0 0
    %3509 = vmatpush1.bf16.xpose.msra.mxu0 0
    %3510 = vmatprep.subr.bf16.mxu0 0
    %3511 = vmatpush1.bf16.xpose.msra.mxu0 0
    %3512 = vmatprep.subr.bf16.mxu0 0
    %3513 = vmatpush1.bf16.xpose.msra.mxu0 0
    %3514 = vmatprep.subr.bf16.mxu0 0
    %3515 = vmatpush1.bf16.xpose.msra.mxu0 0
    %3516 = vmatprep.subr.bf16.mxu0 0
    %3517 = vmatpush1.bf16.xpose.msra.mxu0 0
    %3518 = vmatprep.subr.bf16.mxu0 0
    %3519 = vmatpush1.bf16.xpose.msra.mxu0 0
    %3520 = vmatprep.subr.bf16.mxu0 0
    %3521 = vmatpush1.bf16.xpose.msra.mxu0 0
    %3522 = vmatprep.subr.bf16.mxu0 0
    %3523 = vmatpush1.bf16.xpose.msra.mxu0 0
    %3524 = vmatprep.subr.bf16.mxu0 0
    %3525 = vmatpush1.bf16.xpose.msra.mxu0 0
    %3526 = vmatprep.subr.bf16.mxu0 0
    %3527 = vmatpush1.bf16.xpose.msra.mxu0 0
    %3528 = vmatprep.subr.bf16.mxu0 0
    %3529 = vmatpush1.bf16.xpose.msra.mxu0 0
    %3530 = vmatprep.subr.bf16.mxu0 0
    %3531 = vmatpush1.bf16.xpose.msra.mxu0 0
    %3532 = vmatprep.subr.bf16.mxu0 0
    %3533 = vmatpush1.bf16.xpose.msra.mxu0 0
    %3534 = vmatprep.subr.bf16.mxu0 0
    %3535 = vmatpush1.bf16.xpose.msra.mxu0 0
    %3536 = vmatprep.mubr.bf16.mxu0 0
    %3537 = vmatmul.mubr.bf16.gmra.mrb[0].mxu0 %v3493
    %v3538 = vpop.f32.mrb[0].mxu0
    %v3539 = vadd.f32 0.0, %v3538
    %v3540 = vpop.f32.mrb[0].mxu0
    %v3541 = vpop.f32.mrb[0].mxu0
    %v3542 = vadd.f32 0.0, %v3541
    %v3543 = vpop.f32.mrb[0].mxu0
    %3544 = vmatprep.mubr.bf16.mxu0 0
    %3545 = vmatmul.mubr.bf16.gmra.mrb[0].mxu0 %v3496
    %v3546 = vpop.f32.mrb[0].mxu0
    %v3547 = vadd.f32 0.0, %v3546
    %v3548 = vpop.f32.mrb[0].mxu0
    %v3549 = vpop.f32.mrb[0].mxu0
    %v3550 = vpop.f32.mrb[0].mxu0
    %3551 = vdwg.mxu0
    %v3552 = vmul.f32 %v3471, 0.25
    %v3553 = vmul.f32 %v3474, 0.25
    %v3554 = vmul.f32 %v3479, 0.25
    %v3555 = vmul.f32 %v3539, 0.25
    %v3556 = vmul.f32 %v3542, 0.25
    %v3557 = vmul.f32 %v3547, 0.25
    %v3558 = vadd.f32 %v3552, %v206
    %v3559 = vadd.f32 %v3553, %v206
    %v3560 = vadd.f32 %v3554, %v206
    %v3561 = vadd.f32 %v3555, %v206
    %v3562 = vadd.f32 %v3556, %v206
    %v3563 = vadd.f32 %v3557, %v206
    %v3564 = vsel %vm592, %v3558, -inf
    %3565 = vmax.xlane.f32.xlu0 %v3564
    %v3566 = vpop.xlane.xlu0 %3565
    %v3567 = vsel %vm592, %v3559, -inf
    %3568 = vmax.xlane.f32.xlu0 %v3567
    %v3569 = vpop.xlane.xlu0 %3568
    %v3570 = vsel %vm592, %v3560, -inf
    %3571 = vmax.xlane.f32.xlu0 %v3570
    %v3572 = vpop.xlane.xlu0 %3571
    %v3573 = vsel %vm592, %v3561, -inf
    %3574 = vmax.xlane.f32.xlu0 %v3573
    %v3575 = vpop.xlane.xlu0 %3574
    %v3576 = vsel %vm592, %v3562, -inf
    %3577 = vmax.xlane.f32.xlu0 %v3576
    %v3578 = vpop.xlane.xlu0 %3577
    %v3579 = vsel %vm592, %v3563, -inf
    %3580 = vmax.xlane.f32.xlu0 %v3579
    %v3581 = vpop.xlane.xlu0 %3580
    %v3582 = vsub.f32 %v3558, %v3566
    %v3583 = vsub.f32 %v3559, %v3569
    %v3584 = vsub.f32 %v3560, %v3572
    %v3585 = vsub.f32 %v3561, %v3575
    %v3586 = vsub.f32 %v3562, %v3578
    %v3587 = vsub.f32 %v3563, %v3581
    %v3588 = vmul.f32 %v3582, 1.442695
    %v3589 = vpow.pop %v3588
    %v3590 = vmul.f32 %v3583, 1.442695
    %v3591 = vpow.pop %v3590
    %v3592 = vmul.f32 %v3584, 1.442695
    %v3593 = vpow.pop %v3592
    %v3594 = vmul.f32 %v3585, 1.442695
    %v3595 = vpow.pop %v3594
    %v3596 = vmul.f32 %v3586, 1.442695
    %v3597 = vpow.pop %v3596
    %v3598 = vmul.f32 %v3587, 1.442695
    %v3599 = vpow.pop %v3598
    %v3600 = vsel %vm592, %v3589, 0.0
    %3601 = vadd.xlane.f32.xlu0 %v3600
    %v3602 = vpop.xlane.xlu0 %3601
    %v3603 = vsel %vm592, %v3591, 0.0
    %3604 = vadd.xlane.f32.xlu0 %v3603
    %v3605 = vpop.xlane.xlu0 %3604
    %v3606 = vsel %vm592, %v3593, 0.0
    %3607 = vadd.xlane.f32.xlu0 %v3606
    %v3608 = vpop.xlane.xlu0 %3607
    %v3609 = vsel %vm592, %v3595, 0.0
    %3610 = vadd.xlane.f32.xlu0 %v3609
    %v3611 = vpop.xlane.xlu0 %3610
    %v3612 = vsel %vm592, %v3597, 0.0
    %3613 = vadd.xlane.f32.xlu0 %v3612
    %v3614 = vpop.xlane.xlu0 %3613
    %v3615 = vsel %vm592, %v3599, 0.0
    %3616 = vadd.xlane.f32.xlu0 %v3615
    %v3617 = vpop.xlane.xlu0 %3616
    %v3618 = vrcp.pop %v3602
    %v3619 = vmul.f32 %v3589, %v3618
    %v3620 = vrcp.pop %v3605
    %v3621 = vmul.f32 %v3591, %v3620
    %v3622 = vrcp.pop %v3608
    %v3623 = vmul.f32 %v3593, %v3622
    %v3624 = vrcp.pop %v3611
    %v3625 = vmul.f32 %v3595, %v3624
    %v3626 = vrcp.pop %v3614
    %v3627 = vmul.f32 %v3597, %v3626
    %v3628 = vrcp.pop %v3617
    %v3629 = vmul.f32 %v3599, %v3628
    %v3630 = vpack.c.bf16 %v3621, %v3619
    %v3631 = vpack.c.bf16 %v3623, %v3623
    %v3632 = vpack.c.bf16 %v3627, %v3625
    %v3633 = vpack.c.bf16 %v3629, %v3629
    %3634 = vrot.lane.b32.xlu0 %v2738, 96
    %v3635 = vpop.permute.xlu0 %3634
    %3636 = vrot.lane.b32.xlu0 %v2739, 96
    %v3637 = vpop.permute.xlu0 %3636
    %v3640 = vsel %vm592, %v3630, 0
    %v3643 = vsel %vm592, %v3631, 0
    %v3646 = vsel %vm669, %v3637, 0
    %3648 = vmatprep.subr.bf16.mxu0 0
    %3649 = vmatpush1.bf16.msra.mxu0 %v3635
    %3650 = vmatprep.subr.bf16.mxu0 0
    %3651 = vmatpush1.bf16.msra.mxu0 %v3646
    %3652 = vmatprep.subr.bf16.mxu0 0
    %3653 = vmatpush1.bf16.msra.mxu0 0
    %3654 = vmatprep.subr.bf16.mxu0 0
    %3655 = vmatpush1.bf16.msra.mxu0 0
    %3656 = vmatprep.subr.bf16.mxu0 0
    %3657 = vmatpush1.bf16.msra.mxu0 0
    %3658 = vmatprep.subr.bf16.mxu0 0
    %3659 = vmatpush1.bf16.msra.mxu0 0
    %3660 = vmatprep.subr.bf16.mxu0 0
    %3661 = vmatpush1.bf16.msra.mxu0 0
    %3662 = vmatprep.subr.bf16.mxu0 0
    %3663 = vmatpush1.bf16.msra.mxu0 0
    %3664 = vmatprep.subr.bf16.mxu0 0
    %3665 = vmatpush1.bf16.msra.mxu0 0
    %3666 = vmatprep.subr.bf16.mxu0 0
    %3667 = vmatpush1.bf16.msra.mxu0 0
    %3668 = vmatprep.subr.bf16.mxu0 0
    %3669 = vmatpush1.bf16.msra.mxu0 0
    %3670 = vmatprep.subr.bf16.mxu0 0
    %3671 = vmatpush1.bf16.msra.mxu0 0
    %3672 = vmatprep.subr.bf16.mxu0 0
    %3673 = vmatpush1.bf16.msra.mxu0 0
    %3674 = vmatprep.subr.bf16.mxu0 0
    %3675 = vmatpush1.bf16.msra.mxu0 0
    %3676 = vmatprep.subr.bf16.mxu0 0
    %3677 = vmatpush1.bf16.msra.mxu0 0
    %3678 = vmatprep.subr.bf16.mxu0 0
    %3679 = vmatpush1.bf16.msra.mxu0 0
    %3680 = vmatprep.mubr.bf16.mxu0 0
    %3681 = vmatmul.mubr.bf16.gmra.mrb[0].mxu0 %v3640
    %v3682 = vpop.f32.mrb[0].mxu0
    %v3683 = vadd.f32 0.0, %v3682
    %v3684 = vpop.f32.mrb[0].mxu0
    %v3685 = vpop.f32.mrb[0].mxu0
    %v3686 = vadd.f32 0.0, %v3685
    %v3687 = vpop.f32.mrb[0].mxu0
    %3688 = vmatprep.mubr.bf16.mxu0 0
    %3689 = vmatmul.mubr.bf16.gmra.mrb[0].mxu0 %v3643
    %v3690 = vpop.f32.mrb[0].mxu0
    %v3691 = vadd.f32 0.0, %v3690
    %v3692 = vpop.f32.mrb[0].mxu0
    %v3693 = vpop.f32.mrb[0].mxu0
    %v3694 = vpop.f32.mrb[0].mxu0
    %3695 = vdwg.mxu0
    %3696 = vrot.lane.b32.xlu0 %v2740, 96
    %v3697 = vpop.permute.xlu0 %3696
    %3698 = vrot.lane.b32.xlu0 %v2741, 96
    %v3699 = vpop.permute.xlu0 %3698
    %v3702 = vsel %vm592, %v3632, 0
    %v3705 = vsel %vm592, %v3633, 0
    %v3708 = vsel %vm669, %v3699, 0
    %3710 = vmatprep.subr.bf16.mxu0 0
    %3711 = vmatpush1.bf16.msra.mxu0 %v3697
    %3712 = vmatprep.subr.bf16.mxu0 0
    %3713 = vmatpush1.bf16.msra.mxu0 %v3708
    %3714 = vmatprep.subr.bf16.mxu0 0
    %3715 = vmatpush1.bf16.msra.mxu0 0
    %3716 = vmatprep.subr.bf16.mxu0 0
    %3717 = vmatpush1.bf16.msra.mxu0 0
    %3718 = vmatprep.subr.bf16.mxu0 0
    %3719 = vmatpush1.bf16.msra.mxu0 0
    %3720 = vmatprep.subr.bf16.mxu0 0
    %3721 = vmatpush1.bf16.msra.mxu0 0
    %3722 = vmatprep.subr.bf16.mxu0 0
    %3723 = vmatpush1.bf16.msra.mxu0 0
    %3724 = vmatprep.subr.bf16.mxu0 0
    %3725 = vmatpush1.bf16.msra.mxu0 0
    %3726 = vmatprep.subr.bf16.mxu0 0
    %3727 = vmatpush1.bf16.msra.mxu0 0
    %3728 = vmatprep.subr.bf16.mxu0 0
    %3729 = vmatpush1.bf16.msra.mxu0 0
    %3730 = vmatprep.subr.bf16.mxu0 0
    %3731 = vmatpush1.bf16.msra.mxu0 0
    %3732 = vmatprep.subr.bf16.mxu0 0
    %3733 = vmatpush1.bf16.msra.mxu0 0
    %3734 = vmatprep.subr.bf16.mxu0 0
    %3735 = vmatpush1.bf16.msra.mxu0 0
    %3736 = vmatprep.subr.bf16.mxu0 0
    %3737 = vmatpush1.bf16.msra.mxu0 0
    %3738 = vmatprep.subr.bf16.mxu0 0
    %3739 = vmatpush1.bf16.msra.mxu0 0
    %3740 = vmatprep.subr.bf16.mxu0 0
    %3741 = vmatpush1.bf16.msra.mxu0 0
    %3742 = vmatprep.mubr.bf16.mxu0 0
    %3743 = vmatmul.mubr.bf16.gmra.mrb[0].mxu0 %v3702
    %v3744 = vpop.f32.mrb[0].mxu0
    %v3745 = vadd.f32 0.0, %v3744
    %v3746 = vpop.f32.mrb[0].mxu0
    %v3747 = vpop.f32.mrb[0].mxu0
    %v3748 = vadd.f32 0.0, %v3747
    %v3749 = vpop.f32.mrb[0].mxu0
    %3750 = vmatprep.mubr.bf16.mxu0 0
    %3751 = vmatmul.mubr.bf16.gmra.mrb[0].mxu0 %v3705
    %v3752 = vpop.f32.mrb[0].mxu0
    %v3753 = vadd.f32 0.0, %v3752
    %v3754 = vpop.f32.mrb[0].mxu0
    %v3755 = vpop.f32.mrb[0].mxu0
    %v3756 = vpop.f32.mrb[0].mxu0
    %3757 = vdwg.mxu0
    %3758 = vrot.lane.b32.xlu0 %v2734, 80
    %v3759 = vpop.permute.xlu0 %3758
    %3760 = vrot.lane.b32.xlu0 %v2735, 80
    %v3761 = vpop.permute.xlu0 %3760
    %3762 = vrot.lane.b32.xlu0 %v2734, 16
    %v3763 = vpop.permute.xlu0 %3762
    %3764 = vrot.lane.b32.xlu0 %v2735, 16
    %v3765 = vpop.permute.xlu0 %3764
    %v3767 = vsel %vm453, %v3759, 0
    %v3770 = vsel %vm453, %v3761, 0
    %v3773 = vsel %vm453, %v3763, 0
    %v3776 = vsel %vm453, %v3765, 0
    %3778 = vmatprep.subr.bf16.mxu0 0
    %3779 = vmatpush1.bf16.xpose.msra.mxu0 %v3773
    %3780 = vmatprep.subr.bf16.mxu0 0
    %3781 = vmatpush1.bf16.xpose.msra.mxu0 %v3776
    %3782 = vmatprep.subr.bf16.mxu0 0
    %3783 = vmatpush1.bf16.xpose.msra.mxu0 0
    %3784 = vmatprep.subr.bf16.mxu0 0
    %3785 = vmatpush1.bf16.xpose.msra.mxu0 0
    %3786 = vmatprep.subr.bf16.mxu0 0
    %3787 = vmatpush1.bf16.xpose.msra.mxu0 0
    %3788 = vmatprep.subr.bf16.mxu0 0
    %3789 = vmatpush1.bf16.xpose.msra.mxu0 0
    %3790 = vmatprep.subr.bf16.mxu0 0
    %3791 = vmatpush1.bf16.xpose.msra.mxu0 0
    %3792 = vmatprep.subr.bf16.mxu0 0
    %3793 = vmatpush1.bf16.xpose.msra.mxu0 0
    %3794 = vmatprep.subr.bf16.mxu0 0
    %3795 = vmatpush1.bf16.xpose.msra.mxu0 0
    %3796 = vmatprep.subr.bf16.mxu0 0
    %3797 = vmatpush1.bf16.xpose.msra.mxu0 0
    %3798 = vmatprep.subr.bf16.mxu0 0
    %3799 = vmatpush1.bf16.xpose.msra.mxu0 0
    %3800 = vmatprep.subr.bf16.mxu0 0
    %3801 = vmatpush1.bf16.xpose.msra.mxu0 0
    %3802 = vmatprep.subr.bf16.mxu0 0
    %3803 = vmatpush1.bf16.xpose.msra.mxu0 0
    %3804 = vmatprep.subr.bf16.mxu0 0
    %3805 = vmatpush1.bf16.xpose.msra.mxu0 0
    %3806 = vmatprep.subr.bf16.mxu0 0
    %3807 = vmatpush1.bf16.xpose.msra.mxu0 0
    %3808 = vmatprep.subr.bf16.mxu0 0
    %3809 = vmatpush1.bf16.xpose.msra.mxu0 0
    %3810 = vmatprep.mubr.bf16.mxu0 0
    %3811 = vmatmul.mubr.bf16.gmra.mrb[0].mxu0 %v3767
    %v3812 = vpop.f32.mrb[0].mxu0
    %v3813 = vadd.f32 0.0, %v3812
    %v3814 = vpop.f32.mrb[0].mxu0
    %v3815 = vpop.f32.mrb[0].mxu0
    %v3816 = vadd.f32 0.0, %v3815
    %v3817 = vpop.f32.mrb[0].mxu0
    %3818 = vmatprep.mubr.bf16.mxu0 0
    %3819 = vmatmul.mubr.bf16.gmra.mrb[0].mxu0 %v3770
    %v3820 = vpop.f32.mrb[0].mxu0
    %v3821 = vadd.f32 0.0, %v3820
    %v3822 = vpop.f32.mrb[0].mxu0
    %v3823 = vpop.f32.mrb[0].mxu0
    %v3824 = vpop.f32.mrb[0].mxu0
    %3825 = vdwg.mxu0
    %3826 = vrot.lane.b32.xlu0 %v2736, 80
    %v3827 = vpop.permute.xlu0 %3826
    %3828 = vrot.lane.b32.xlu0 %v2737, 80
    %v3829 = vpop.permute.xlu0 %3828
    %3830 = vrot.lane.b32.xlu0 %v2736, 16
    %v3831 = vpop.permute.xlu0 %3830
    %3832 = vrot.lane.b32.xlu0 %v2737, 16
    %v3833 = vpop.permute.xlu0 %3832
    %v3835 = vsel %vm453, %v3827, 0
    %v3838 = vsel %vm453, %v3829, 0
    %v3841 = vsel %vm453, %v3831, 0
    %v3844 = vsel %vm453, %v3833, 0
    %3846 = vmatprep.subr.bf16.mxu0 0
    %3847 = vmatpush1.bf16.xpose.msra.mxu0 %v3841
    %3848 = vmatprep.subr.bf16.mxu0 0
    %3849 = vmatpush1.bf16.xpose.msra.mxu0 %v3844
    %3850 = vmatprep.subr.bf16.mxu0 0
    %3851 = vmatpush1.bf16.xpose.msra.mxu0 0
    %3852 = vmatprep.subr.bf16.mxu0 0
    %3853 = vmatpush1.bf16.xpose.msra.mxu0 0
    %3854 = vmatprep.subr.bf16.mxu0 0
    %3855 = vmatpush1.bf16.xpose.msra.mxu0 0
    %3856 = vmatprep.subr.bf16.mxu0 0
    %3857 = vmatpush1.bf16.xpose.msra.mxu0 0
    %3858 = vmatprep.subr.bf16.mxu0 0
    %3859 = vmatpush1.bf16.xpose.msra.mxu0 0
    %3860 = vmatprep.subr.bf16.mxu0 0
    %3861 = vmatpush1.bf16.xpose.msra.mxu0 0
    %3862 = vmatprep.subr.bf16.mxu0 0
    %3863 = vmatpush1.bf16.xpose.msra.mxu0 0
    %3864 = vmatprep.subr.bf16.mxu0 0
    %3865 = vmatpush1.bf16.xpose.msra.mxu0 0
    %3866 = vmatprep.subr.bf16.mxu0 0
    %3867 = vmatpush1.bf16.xpose.msra.mxu0 0
    %3868 = vmatprep.subr.bf16.mxu0 0
    %3869 = vmatpush1.bf16.xpose.msra.mxu0 0
    %3870 = vmatprep.subr.bf16.mxu0 0
    %3871 = vmatpush1.bf16.xpose.msra.mxu0 0
    %3872 = vmatprep.subr.bf16.mxu0 0
    %3873 = vmatpush1.bf16.xpose.msra.mxu0 0
    %3874 = vmatprep.subr.bf16.mxu0 0
    %3875 = vmatpush1.bf16.xpose.msra.mxu0 0
    %3876 = vmatprep.subr.bf16.mxu0 0
    %3877 = vmatpush1.bf16.xpose.msra.mxu0 0
    %3878 = vmatprep.mubr.bf16.mxu0 0
    %3879 = vmatmul.mubr.bf16.gmra.mrb[0].mxu0 %v3835
    %v3880 = vpop.f32.mrb[0].mxu0
    %v3881 = vadd.f32 0.0, %v3880
    %v3882 = vpop.f32.mrb[0].mxu0
    %v3883 = vpop.f32.mrb[0].mxu0
    %v3884 = vadd.f32 0.0, %v3883
    %v3885 = vpop.f32.mrb[0].mxu0
    %3886 = vmatprep.mubr.bf16.mxu0 0
    %3887 = vmatmul.mubr.bf16.gmra.mrb[0].mxu0 %v3838
    %v3888 = vpop.f32.mrb[0].mxu0
    %v3889 = vadd.f32 0.0, %v3888
    %v3890 = vpop.f32.mrb[0].mxu0
    %v3891 = vpop.f32.mrb[0].mxu0
    %v3892 = vpop.f32.mrb[0].mxu0
    %3893 = vdwg.mxu0
    %v3894 = vmul.f32 %v3813, 0.25
    %v3895 = vmul.f32 %v3816, 0.25
    %v3896 = vmul.f32 %v3821, 0.25
    %v3897 = vmul.f32 %v3881, 0.25
    %v3898 = vmul.f32 %v3884, 0.25
    %v3899 = vmul.f32 %v3889, 0.25
    %v3900 = vadd.f32 %v3894, %v206
    %v3901 = vadd.f32 %v3895, %v206
    %v3902 = vadd.f32 %v3896, %v206
    %v3903 = vadd.f32 %v3897, %v206
    %v3904 = vadd.f32 %v3898, %v206
    %v3905 = vadd.f32 %v3899, %v206
    %v3906 = vsel %vm592, %v3900, -inf
    %3907 = vmax.xlane.f32.xlu0 %v3906
    %v3908 = vpop.xlane.xlu0 %3907
    %v3909 = vsel %vm592, %v3901, -inf
    %3910 = vmax.xlane.f32.xlu0 %v3909
    %v3911 = vpop.xlane.xlu0 %3910
    %v3912 = vsel %vm592, %v3902, -inf
    %3913 = vmax.xlane.f32.xlu0 %v3912
    %v3914 = vpop.xlane.xlu0 %3913
    %v3915 = vsel %vm592, %v3903, -inf
    %3916 = vmax.xlane.f32.xlu0 %v3915
    %v3917 = vpop.xlane.xlu0 %3916
    %v3918 = vsel %vm592, %v3904, -inf
    %3919 = vmax.xlane.f32.xlu0 %v3918
    %v3920 = vpop.xlane.xlu0 %3919
    %v3921 = vsel %vm592, %v3905, -inf
    %3922 = vmax.xlane.f32.xlu0 %v3921
    %v3923 = vpop.xlane.xlu0 %3922
    %v3924 = vsub.f32 %v3900, %v3908
    %v3925 = vsub.f32 %v3901, %v3911
    %v3926 = vsub.f32 %v3902, %v3914
    %v3927 = vsub.f32 %v3903, %v3917
    %v3928 = vsub.f32 %v3904, %v3920
    %v3929 = vsub.f32 %v3905, %v3923
    %v3930 = vmul.f32 %v3924, 1.442695
    %v3931 = vpow.pop %v3930
    %v3932 = vmul.f32 %v3925, 1.442695
    %v3933 = vpow.pop %v3932
    %v3934 = vmul.f32 %v3926, 1.442695
    %v3935 = vpow.pop %v3934
    %v3936 = vmul.f32 %v3927, 1.442695
    %v3937 = vpow.pop %v3936
    %v3938 = vmul.f32 %v3928, 1.442695
    %v3939 = vpow.pop %v3938
    %v3940 = vmul.f32 %v3929, 1.442695
    %v3941 = vpow.pop %v3940
    %v3942 = vsel %vm592, %v3931, 0.0
    %3943 = vadd.xlane.f32.xlu0 %v3942
    %v3944 = vpop.xlane.xlu0 %3943
    %v3945 = vsel %vm592, %v3933, 0.0
    %3946 = vadd.xlane.f32.xlu0 %v3945
    %v3947 = vpop.xlane.xlu0 %3946
    %v3948 = vsel %vm592, %v3935, 0.0
    %3949 = vadd.xlane.f32.xlu0 %v3948
    %v3950 = vpop.xlane.xlu0 %3949
    %v3951 = vsel %vm592, %v3937, 0.0
    %3952 = vadd.xlane.f32.xlu0 %v3951
    %v3953 = vpop.xlane.xlu0 %3952
    %v3954 = vsel %vm592, %v3939, 0.0
    %3955 = vadd.xlane.f32.xlu0 %v3954
    %v3956 = vpop.xlane.xlu0 %3955
    %v3957 = vsel %vm592, %v3941, 0.0
    %3958 = vadd.xlane.f32.xlu0 %v3957
    %v3959 = vpop.xlane.xlu0 %3958
    %v3960 = vrcp.pop %v3944
    %v3961 = vmul.f32 %v3931, %v3960
    %v3962 = vrcp.pop %v3947
    %v3963 = vmul.f32 %v3933, %v3962
    %v3964 = vrcp.pop %v3950
    %v3965 = vmul.f32 %v3935, %v3964
    %v3966 = vrcp.pop %v3953
    %v3967 = vmul.f32 %v3937, %v3966
    %v3968 = vrcp.pop %v3956
    %v3969 = vmul.f32 %v3939, %v3968
    %v3970 = vrcp.pop %v3959
    %v3971 = vmul.f32 %v3941, %v3970
    %v3972 = vpack.c.bf16 %v3963, %v3961
    %v3973 = vpack.c.bf16 %v3965, %v3965
    %v3974 = vpack.c.bf16 %v3969, %v3967
    %v3975 = vpack.c.bf16 %v3971, %v3971
    %3976 = vrot.lane.b32.xlu0 %v2738, 80
    %v3977 = vpop.permute.xlu0 %3976
    %3978 = vrot.lane.b32.xlu0 %v2739, 80
    %v3979 = vpop.permute.xlu0 %3978
    %v3982 = vsel %vm592, %v3972, 0
    %v3985 = vsel %vm592, %v3973, 0
    %v3988 = vsel %vm669, %v3979, 0
    %3990 = vmatprep.subr.bf16.mxu0 0
    %3991 = vmatpush1.bf16.msra.mxu0 %v3977
    %3992 = vmatprep.subr.bf16.mxu0 0
    %3993 = vmatpush1.bf16.msra.mxu0 %v3988
    %3994 = vmatprep.subr.bf16.mxu0 0
    %3995 = vmatpush1.bf16.msra.mxu0 0
    %3996 = vmatprep.subr.bf16.mxu0 0
    %3997 = vmatpush1.bf16.msra.mxu0 0
    %3998 = vmatprep.subr.bf16.mxu0 0
    %3999 = vmatpush1.bf16.msra.mxu0 0
    %4000 = vmatprep.subr.bf16.mxu0 0
    %4001 = vmatpush1.bf16.msra.mxu0 0
    %4002 = vmatprep.subr.bf16.mxu0 0
    %4003 = vmatpush1.bf16.msra.mxu0 0
    %4004 = vmatprep.subr.bf16.mxu0 0
    %4005 = vmatpush1.bf16.msra.mxu0 0
    %4006 = vmatprep.subr.bf16.mxu0 0
    %4007 = vmatpush1.bf16.msra.mxu0 0
    %4008 = vmatprep.subr.bf16.mxu0 0
    %4009 = vmatpush1.bf16.msra.mxu0 0
    %4010 = vmatprep.subr.bf16.mxu0 0
    %4011 = vmatpush1.bf16.msra.mxu0 0
    %4012 = vmatprep.subr.bf16.mxu0 0
    %4013 = vmatpush1.bf16.msra.mxu0 0
    %4014 = vmatprep.subr.bf16.mxu0 0
    %4015 = vmatpush1.bf16.msra.mxu0 0
    %4016 = vmatprep.subr.bf16.mxu0 0
    %4017 = vmatpush1.bf16.msra.mxu0 0
    %4018 = vmatprep.subr.bf16.mxu0 0
    %4019 = vmatpush1.bf16.msra.mxu0 0
    %4020 = vmatprep.subr.bf16.mxu0 0
    %4021 = vmatpush1.bf16.msra.mxu0 0
    %4022 = vmatprep.mubr.bf16.mxu0 0
    %4023 = vmatmul.mubr.bf16.gmra.mrb[0].mxu0 %v3982
    %v4024 = vpop.f32.mrb[0].mxu0
    %v4025 = vadd.f32 0.0, %v4024
    %v4026 = vpop.f32.mrb[0].mxu0
    %v4027 = vpop.f32.mrb[0].mxu0
    %v4028 = vadd.f32 0.0, %v4027
    %v4029 = vpop.f32.mrb[0].mxu0
    %4030 = vmatprep.mubr.bf16.mxu0 0
    %4031 = vmatmul.mubr.bf16.gmra.mrb[0].mxu0 %v3985
    %v4032 = vpop.f32.mrb[0].mxu0
    %v4033 = vadd.f32 0.0, %v4032
    %v4034 = vpop.f32.mrb[0].mxu0
    %v4035 = vpop.f32.mrb[0].mxu0
    %v4036 = vpop.f32.mrb[0].mxu0
    %4037 = vdwg.mxu0
    %4038 = vrot.lane.b32.xlu0 %v2740, 80
    %v4039 = vpop.permute.xlu0 %4038
    %4040 = vrot.lane.b32.xlu0 %v2741, 80
    %v4041 = vpop.permute.xlu0 %4040
    %v4044 = vsel %vm592, %v3974, 0
    %v4047 = vsel %vm592, %v3975, 0
    %v4050 = vsel %vm669, %v4041, 0
    %4052 = vmatprep.subr.bf16.mxu0 0
    %4053 = vmatpush1.bf16.msra.mxu0 %v4039
    %4054 = vmatprep.subr.bf16.mxu0 0
    %4055 = vmatpush1.bf16.msra.mxu0 %v4050
    %4056 = vmatprep.subr.bf16.mxu0 0
    %4057 = vmatpush1.bf16.msra.mxu0 0
    %4058 = vmatprep.subr.bf16.mxu0 0
    %4059 = vmatpush1.bf16.msra.mxu0 0
    %4060 = vmatprep.subr.bf16.mxu0 0
    %4061 = vmatpush1.bf16.msra.mxu0 0
    %4062 = vmatprep.subr.bf16.mxu0 0
    %4063 = vmatpush1.bf16.msra.mxu0 0
    %4064 = vmatprep.subr.bf16.mxu0 0
    %4065 = vmatpush1.bf16.msra.mxu0 0
    %4066 = vmatprep.subr.bf16.mxu0 0
    %4067 = vmatpush1.bf16.msra.mxu0 0
    %4068 = vmatprep.subr.bf16.mxu0 0
    %4069 = vmatpush1.bf16.msra.mxu0 0
    %4070 = vmatprep.subr.bf16.mxu0 0
    %4071 = vmatpush1.bf16.msra.mxu0 0
    %4072 = vmatprep.subr.bf16.mxu0 0
    %4073 = vmatpush1.bf16.msra.mxu0 0
    %4074 = vmatprep.subr.bf16.mxu0 0
    %4075 = vmatpush1.bf16.msra.mxu0 0
    %4076 = vmatprep.subr.bf16.mxu0 0
    %4077 = vmatpush1.bf16.msra.mxu0 0
    %4078 = vmatprep.subr.bf16.mxu0 0
    %4079 = vmatpush1.bf16.msra.mxu0 0
    %4080 = vmatprep.subr.bf16.mxu0 0
    %4081 = vmatpush1.bf16.msra.mxu0 0
    %4082 = vmatprep.subr.bf16.mxu0 0
    %4083 = vmatpush1.bf16.msra.mxu0 0
    %4084 = vmatprep.mubr.bf16.mxu0 0
    %4085 = vmatmul.mubr.bf16.gmra.mrb[0].mxu0 %v4044
    %v4086 = vpop.f32.mrb[0].mxu0
    %v4087 = vadd.f32 0.0, %v4086
    %v4088 = vpop.f32.mrb[0].mxu0
    %v4089 = vpop.f32.mrb[0].mxu0
    %v4090 = vadd.f32 0.0, %v4089
    %v4091 = vpop.f32.mrb[0].mxu0
    %4092 = vmatprep.mubr.bf16.mxu0 0
    %4093 = vmatmul.mubr.bf16.gmra.mrb[0].mxu0 %v4047
    %v4094 = vpop.f32.mrb[0].mxu0
    %v4095 = vadd.f32 0.0, %v4094
    %v4096 = vpop.f32.mrb[0].mxu0
    %v4097 = vpop.f32.mrb[0].mxu0
    %v4098 = vpop.f32.mrb[0].mxu0
    %4099 = vdwg.mxu0
    %4106 = vrot.lane.b32.xlu0 %v3339, 16
    %v4107 = vpop.permute.xlu0 %4106
    %4108 = vrot.lane.b32.xlu0 %v3342, 16
    %v4109 = vpop.permute.xlu0 %4108
    %4110 = vrot.lane.b32.xlu0 %v3347, 16
    %v4111 = vpop.permute.xlu0 %4110
    %4112 = vrot.lane.b32.xlu0 %v3403, 16
    %v4113 = vpop.permute.xlu0 %4112
    %4114 = vrot.lane.b32.xlu0 %v3406, 16
    %v4115 = vpop.permute.xlu0 %4114
    %4116 = vrot.lane.b32.xlu0 %v3411, 16
    %v4117 = vpop.permute.xlu0 %4116
    %4130 = vrot.lane.b32.xlu0 %v3683, 32
    %v4131 = vpop.permute.xlu0 %4130
    %4132 = vrot.lane.b32.xlu0 %v3686, 32
    %v4133 = vpop.permute.xlu0 %4132
    %4134 = vrot.lane.b32.xlu0 %v3691, 32
    %v4135 = vpop.permute.xlu0 %4134
    %4136 = vrot.lane.b32.xlu0 %v3745, 32
    %v4137 = vpop.permute.xlu0 %4136
    %4138 = vrot.lane.b32.xlu0 %v3748, 32
    %v4139 = vpop.permute.xlu0 %4138
    %4140 = vrot.lane.b32.xlu0 %v3753, 32
    %v4141 = vpop.permute.xlu0 %4140
    %4154 = vrot.lane.b32.xlu0 %v4025, 48
    %v4155 = vpop.permute.xlu0 %4154
    %4156 = vrot.lane.b32.xlu0 %v4028, 48
    %v4157 = vpop.permute.xlu0 %4156
    %4158 = vrot.lane.b32.xlu0 %v4033, 48
    %v4159 = vpop.permute.xlu0 %4158
    %4160 = vrot.lane.b32.xlu0 %v4087, 48
    %v4161 = vpop.permute.xlu0 %4160
    %4162 = vrot.lane.b32.xlu0 %v4090, 48
    %v4163 = vpop.permute.xlu0 %4162
    %4164 = vrot.lane.b32.xlu0 %v4095, 48
    %v4165 = vpop.permute.xlu0 %4164
    %v4172 = vsel %vm453, %v3000, %v4107
    %v4173 = vsel %vm453, %v3003, %v4109
    %v4174 = vsel %vm453, %v3008, %v4111
    %v4175 = vsel %vm453, %v3057, %v4113
    %v4176 = vsel %vm453, %v3060, %v4115
    %v4177 = vsel %vm453, %v3065, %v4117
    %v4178 = vsel %vm1886, %v4172, %v4131
    %v4179 = vsel %vm1886, %v4173, %v4133
    %v4180 = vsel %vm1886, %v4174, %v4135
    %v4181 = vsel %vm1886, %v4175, %v4137
    %v4182 = vsel %vm1886, %v4176, %v4139
    %v4183 = vsel %vm1886, %v4177, %v4141
    %v4184 = vsel %vm1893, %v4178, %v4155
    %v4185 = vsel %vm1893, %v4179, %v4157
    %v4186 = vsel %vm1893, %v4180, %v4159
    %v4187 = vsel %vm1893, %v4181, %v4161
    %v4188 = vsel %vm1893, %v4182, %v4163
    %v4189 = vsel %vm1893, %v4183, %v4165
    %v4190 = vpack.c.bf16 %v4185, %v4184
    %v4191 = vpack.c.bf16 %v4187, %v4186
    %v4192 = vpack.c.bf16 %v4189, %v4188
    %s4193 = scalar_lea.vmem %s5, 32
    %v4194 = vld [vmem:[%s4193] sm:$0xf]
    %v4195 = vld [vmem:[%s4193 + $0x4] sm:$0xf]
    %v4196 = vld [vmem:[%s4193 + $0x8] sm:$0xf]
    %v4197 = vld [vmem:[%s4193 + $0xc] sm:$0xf]
    %v4198 = vld [vmem:[%s4193 + $0x10] sm:$0xf]
    %v4199 = vld [vmem:[%s4193 + $0x14] sm:$0xf]
    %v4200 = vld [vmem:[%s4193 + $0x18] sm:$0xf]
    %v4201 = vld [vmem:[%s4193 + $0x1c] sm:$0xf]
    %v4202 = vlaneseq
    %v4203 = vshrl.u32 %v4202, 7
    %v4204 = vsub.s32 3, %v4203
    %v4205 = vrot.slane %v2502, %v4204
    %v4214 = vunpack.c.l.b16 %v4194
    %v4215 = vunpack.c.l.b16 %v4195
    %v4216 = vunpack.c.l.b16 %v4196
    %v4217 = vunpack.c.l.b16 %v4197
    %v4218 = vunpack.c.l.b16 %v4198
    %v4219 = vunpack.c.l.b16 %v4199
    %v4220 = vunpack.c.l.b16 %v4200
    %v4221 = vunpack.c.l.b16 %v4201
    %v4222 = vpack.c.b16 %v4215, %v4214
    %v4223 = vpack.c.b16 %v4217, %v4216
    %v4224 = vpack.c.b16 %v4219, %v4218
    %v4225 = vpack.c.b16 %v4221, %v4220
    %v4231 = vsel %vm123, %v4190, 0
    %v4234 = vsel %vm123, %v4191, 0
    %v4237 = vsel %vm123, %v4192, 0
    %4239 = vmatprep.subr.bf16.mxu0 0
    %4240 = vmatpush1.bf16.msra.mxu0 %v4222
    %4241 = vmatprep.subr.bf16.mxu0 0
    %4242 = vmatpush1.bf16.msra.mxu0 %v4223
    %4243 = vmatprep.subr.bf16.mxu0 0
    %4244 = vmatpush1.bf16.msra.mxu0 %v4224
    %4245 = vmatprep.subr.bf16.mxu0 0
    %4246 = vmatpush1.bf16.msra.mxu0 %v4225
    %4247 = vmatprep.subr.bf16.mxu0 0
    %4248 = vmatpush1.bf16.msra.mxu0 0
    %4249 = vmatprep.subr.bf16.mxu0 0
    %4250 = vmatpush1.bf16.msra.mxu0 0
    %4251 = vmatprep.subr.bf16.mxu0 0
    %4252 = vmatpush1.bf16.msra.mxu0 0
    %4253 = vmatprep.subr.bf16.mxu0 0
    %4254 = vmatpush1.bf16.msra.mxu0 0
    %4255 = vmatprep.subr.bf16.mxu0 0
    %4256 = vmatpush1.bf16.msra.mxu0 0
    %4257 = vmatprep.subr.bf16.mxu0 0
    %4258 = vmatpush1.bf16.msra.mxu0 0
    %4259 = vmatprep.subr.bf16.mxu0 0
    %4260 = vmatpush1.bf16.msra.mxu0 0
    %4261 = vmatprep.subr.bf16.mxu0 0
    %4262 = vmatpush1.bf16.msra.mxu0 0
    %4263 = vmatprep.subr.bf16.mxu0 0
    %4264 = vmatpush1.bf16.msra.mxu0 0
    %4265 = vmatprep.subr.bf16.mxu0 0
    %4266 = vmatpush1.bf16.msra.mxu0 0
    %4267 = vmatprep.subr.bf16.mxu0 0
    %4268 = vmatpush1.bf16.msra.mxu0 0
    %4269 = vmatprep.subr.bf16.mxu0 0
    %4270 = vmatpush1.bf16.msra.mxu0 0
    %4271 = vmatprep.mubr.bf16.mxu0 0
    %4272 = vmatmul.mubr.bf16.gmra.mrb[0].mxu0 %v4231
    %v4273 = vpop.f32.mrb[0].mxu0
    %v4274 = vadd.f32 %v4205, %v4273
    %v4275 = vpop.f32.mrb[0].mxu0
    %v4276 = vpop.f32.mrb[0].mxu0
    %v4277 = vadd.f32 %v4205, %v4276
    %v4278 = vpop.f32.mrb[0].mxu0
    %4279 = vmatprep.mubr.bf16.mxu0 0
    %4280 = vmatmul.mubr.bf16.gmra.mrb[0].mxu0 %v4234
    %v4281 = vpop.f32.mrb[0].mxu0
    %v4282 = vadd.f32 %v4205, %v4281
    %v4283 = vpop.f32.mrb[0].mxu0
    %v4284 = vpop.f32.mrb[0].mxu0
    %v4285 = vadd.f32 %v4205, %v4284
    %v4286 = vpop.f32.mrb[0].mxu0
    %4287 = vmatprep.mubr.bf16.mxu0 0
    %4288 = vmatmul.mubr.bf16.gmra.mrb[0].mxu0 %v4237
    %v4289 = vpop.f32.mrb[0].mxu0
    %v4290 = vadd.f32 %v4205, %v4289
    %v4291 = vpop.f32.mrb[0].mxu0
    %v4292 = vpop.f32.mrb[0].mxu0
    %v4293 = vadd.f32 %v4205, %v4292
    %v4294 = vpop.f32.mrb[0].mxu0
    %4295 = vdwg.mxu0
    %v4296 = vadd.f32 %v2495, %v4274
    %v4297 = vadd.f32 %v2496, %v4277
    %v4298 = vadd.f32 %v2497, %v4282
    %v4299 = vadd.f32 %v2498, %v4285
    %v4300 = vadd.f32 %v2499, %v4290
    %v4301 = vadd.f32 %v2500, %v4293
    %v4302 = vsel %vm123, %v4296, 0.0
    %4303 = vadd.xlane.f32.xlu0 %v4302
    %v4304 = vpop.xlane.xlu0 %4303
    %v4305 = vsel %vm123, %v4297, 0.0
    %4306 = vadd.xlane.f32.xlu0 %v4305
    %v4307 = vpop.xlane.xlu0 %4306
    %v4308 = vsel %vm123, %v4298, 0.0
    %4309 = vadd.xlane.f32.xlu0 %v4308
    %v4310 = vpop.xlane.xlu0 %4309
    %v4311 = vsel %vm123, %v4299, 0.0
    %4312 = vadd.xlane.f32.xlu0 %v4311
    %v4313 = vpop.xlane.xlu0 %4312
    %v4314 = vsel %vm123, %v4300, 0.0
    %4315 = vadd.xlane.f32.xlu0 %v4314
    %v4316 = vpop.xlane.xlu0 %4315
    %v4317 = vsel %vm123, %v4301, 0.0
    %4318 = vadd.xlane.f32.xlu0 %v4317
    %v4319 = vpop.xlane.xlu0 %4318
    %v4320 = vmul.f32 %v4304, %v227
    %v4321 = vmul.f32 %v4307, %v227
    %v4322 = vmul.f32 %v4310, %v227
    %v4323 = vmul.f32 %v4313, %v227
    %v4324 = vmul.f32 %v4316, %v227
    %v4325 = vmul.f32 %v4319, %v227
    %v4326 = vsub.f32 %v4296, %v4320
    %v4327 = vsub.f32 %v4297, %v4321
    %v4328 = vsub.f32 %v4298, %v4322
    %v4329 = vsub.f32 %v4299, %v4323
    %v4330 = vsub.f32 %v4300, %v4324
    %v4331 = vsub.f32 %v4301, %v4325
    %v4332 = vmul.f32 %v4326, %v4326
    %v4333 = vmul.f32 %v4327, %v4327
    %v4334 = vmul.f32 %v4328, %v4328
    %v4335 = vmul.f32 %v4329, %v4329
    %v4336 = vmul.f32 %v4330, %v4330
    %v4337 = vmul.f32 %v4331, %v4331
    %v4338 = vsel %vm123, %v4332, 0.0
    %4339 = vadd.xlane.f32.xlu0 %v4338
    %v4340 = vpop.xlane.xlu0 %4339
    %v4341 = vsel %vm123, %v4333, 0.0
    %4342 = vadd.xlane.f32.xlu0 %v4341
    %v4343 = vpop.xlane.xlu0 %4342
    %v4344 = vsel %vm123, %v4334, 0.0
    %4345 = vadd.xlane.f32.xlu0 %v4344
    %v4346 = vpop.xlane.xlu0 %4345
    %v4347 = vsel %vm123, %v4335, 0.0
    %4348 = vadd.xlane.f32.xlu0 %v4347
    %v4349 = vpop.xlane.xlu0 %4348
    %v4350 = vsel %vm123, %v4336, 0.0
    %4351 = vadd.xlane.f32.xlu0 %v4350
    %v4352 = vpop.xlane.xlu0 %4351
    %v4353 = vsel %vm123, %v4337, 0.0
    %4354 = vadd.xlane.f32.xlu0 %v4353
    %v4355 = vpop.xlane.xlu0 %4354
    %v4356 = vmul.f32 %v4340, %v227
    %v4357 = vmul.f32 %v4343, %v227
    %v4358 = vmul.f32 %v4346, %v227
    %v4359 = vmul.f32 %v4349, %v227
    %v4360 = vmul.f32 %v4352, %v227
    %v4361 = vmul.f32 %v4355, %v227
    %v4362 = vadd.f32 %v4356, 1e-05
    %v4363 = vadd.f32 %v4357, 1e-05
    %v4364 = vadd.f32 %v4358, 1e-05
    %v4365 = vadd.f32 %v4359, 1e-05
    %v4366 = vadd.f32 %v4360, 1e-05
    %v4367 = vadd.f32 %v4361, 1e-05
    %v4368 = vrsqrt.pop %v4362
    %v4369 = vrsqrt.pop %v4363
    %v4370 = vrsqrt.pop %v4364
    %v4371 = vrsqrt.pop %v4365
    %v4372 = vrsqrt.pop %v4366
    %v4373 = vrsqrt.pop %v4367
    %v4374 = vmul.f32 %v4326, %v4368
    %v4375 = vmul.f32 %v4327, %v4369
    %v4376 = vmul.f32 %v4328, %v4370
    %v4377 = vmul.f32 %v4329, %v4371
    %v4378 = vmul.f32 %v4330, %v4372
    %v4379 = vmul.f32 %v4331, %v4373
    %v4380 = vlaneseq
    %v4381 = vshrl.u32 %v4380, 7
    %v4382 = vsub.s32 4, %v4381
    %v4383 = vrot.slane %v2502, %v4382
    %v4384 = vmul.f32 %v4374, %v4383
    %v4385 = vmul.f32 %v4375, %v4383
    %v4386 = vmul.f32 %v4376, %v4383
    %v4387 = vmul.f32 %v4377, %v4383
    %v4388 = vmul.f32 %v4378, %v4383
    %v4389 = vmul.f32 %v4379, %v4383
    %v4390 = vlaneseq
    %v4391 = vshrl.u32 %v4390, 7
    %v4392 = vsub.s32 5, %v4391
    %v4393 = vrot.slane %v2502, %v4392
    %v4394 = vadd.f32 %v4384, %v4393
    %v4395 = vadd.f32 %v4385, %v4393
    %v4396 = vadd.f32 %v4386, %v4393
    %v4397 = vadd.f32 %v4387, %v4393
    %v4398 = vadd.f32 %v4388, %v4393
    %v4399 = vadd.f32 %v4389, %v4393
    %v4400 = vpack.c.bf16 %v4395, %v4394
    %v4401 = vpack.c.bf16 %v4397, %v4396
    %v4402 = vpack.c.bf16 %v4399, %v4398
    %s4403 = scalar_lea.vmem %s6, 64
    %v4404 = vld [vmem:[%s4403] sm:$0xff]
    %v4405 = vld [vmem:[%s4403 + $0x8] sm:$0xff]
    %v4406 = vld [vmem:[%s4403 + $0x10] sm:$0xff]
    %v4407 = vld [vmem:[%s4403 + $0x18] sm:$0xff]
    %v4408 = vld [vmem:[%s4403 + $0x20] sm:$0xff]
    %v4409 = vld [vmem:[%s4403 + $0x28] sm:$0xff]
    %v4410 = vld [vmem:[%s4403 + $0x30] sm:$0xff]
    %v4411 = vld [vmem:[%s4403 + $0x38] sm:$0xff]
    %v4412 = vlaneseq
    %v4413 = vshrl.u32 %v4412, 7
    %v4414 = vsub.s32 6, %v4413
    %v4415 = vrot.slane %v2502, %v4414
    %v4416 = vlaneseq
    %v4417 = vshrl.u32 %v4416, 7
    %v4418 = vsub.s32 6, %v4417
    %v4419 = vrot.slane %v2503, %v4418
    %v4428 = vunpack.c.l.b16 %v4404
    %v4429 = vunpack.c.h.b16 %v4404
    %v4430 = vunpack.c.l.b16 %v4405
    %v4431 = vunpack.c.h.b16 %v4405
    %v4432 = vunpack.c.l.b16 %v4406
    %v4433 = vunpack.c.h.b16 %v4406
    %v4434 = vunpack.c.l.b16 %v4407
    %v4435 = vunpack.c.h.b16 %v4407
    %v4436 = vunpack.c.l.b16 %v4408
    %v4437 = vunpack.c.h.b16 %v4408
    %v4438 = vunpack.c.l.b16 %v4409
    %v4439 = vunpack.c.h.b16 %v4409
    %v4440 = vunpack.c.l.b16 %v4410
    %v4441 = vunpack.c.h.b16 %v4410
    %v4442 = vunpack.c.l.b16 %v4411
    %v4443 = vunpack.c.h.b16 %v4411
    %v4444 = vpack.c.b16 %v4430, %v4428
    %v4445 = vpack.c.b16 %v4431, %v4429
    %v4446 = vpack.c.b16 %v4434, %v4432
    %v4447 = vpack.c.b16 %v4435, %v4433
    %v4448 = vpack.c.b16 %v4438, %v4436
    %v4449 = vpack.c.b16 %v4439, %v4437
    %v4450 = vpack.c.b16 %v4442, %v4440
    %v4451 = vpack.c.b16 %v4443, %v4441
    %v4461 = vsel %vm123, %v4400, 0
    %v4464 = vsel %vm123, %v4401, 0
    %v4467 = vsel %vm123, %v4402, 0
    %4469 = vmatprep.subr.bf16.mxu0 %v4445
    %4470 = vmatpush1.bf16.msra.mxu0 %v4444
    %4471 = vmatprep.subr.bf16.mxu0 %v4447
    %4472 = vmatpush1.bf16.msra.mxu0 %v4446
    %4473 = vmatprep.subr.bf16.mxu0 %v4449
    %4474 = vmatpush1.bf16.msra.mxu0 %v4448
    %4475 = vmatprep.subr.bf16.mxu0 %v4451
    %4476 = vmatpush1.bf16.msra.mxu0 %v4450
    %4477 = vmatprep.subr.bf16.mxu0 0
    %4478 = vmatpush1.bf16.msra.mxu0 0
    %4479 = vmatprep.subr.bf16.mxu0 0
    %4480 = vmatpush1.bf16.msra.mxu0 0
    %4481 = vmatprep.subr.bf16.mxu0 0
    %4482 = vmatpush1.bf16.msra.mxu0 0
    %4483 = vmatprep.subr.bf16.mxu0 0
    %4484 = vmatpush1.bf16.msra.mxu0 0
    %4485 = vmatprep.subr.bf16.mxu0 0
    %4486 = vmatpush1.bf16.msra.mxu0 0
    %4487 = vmatprep.subr.bf16.mxu0 0
    %4488 = vmatpush1.bf16.msra.mxu0 0
    %4489 = vmatprep.subr.bf16.mxu0 0
    %4490 = vmatpush1.bf16.msra.mxu0 0
    %4491 = vmatprep.subr.bf16.mxu0 0
    %4492 = vmatpush1.bf16.msra.mxu0 0
    %4493 = vmatprep.subr.bf16.mxu0 0
    %4494 = vmatpush1.bf16.msra.mxu0 0
    %4495 = vmatprep.subr.bf16.mxu0 0
    %4496 = vmatpush1.bf16.msra.mxu0 0
    %4497 = vmatprep.subr.bf16.mxu0 0
    %4498 = vmatpush1.bf16.msra.mxu0 0
    %4499 = vmatprep.subr.bf16.mxu0 0
    %4500 = vmatpush1.bf16.msra.mxu0 0
    %4501 = vmatprep.mubr.bf16.mxu0 0
    %4502 = vmatmul.mubr.bf16.gmra.mrb[0].mxu0 %v4461
    %v4503 = vpop.f32.mrb[0].mxu0
    %v4504 = vadd.f32 %v4415, %v4503
    %v4505 = vpop.f32.mrb[0].mxu0
    %v4506 = vadd.f32 %v4419, %v4505
    %v4507 = vpop.f32.mrb[0].mxu0
    %v4508 = vadd.f32 %v4415, %v4507
    %v4509 = vpop.f32.mrb[0].mxu0
    %v4510 = vadd.f32 %v4419, %v4509
    %4511 = vmatprep.mubr.bf16.mxu0 0
    %4512 = vmatmul.mubr.bf16.gmra.mrb[0].mxu0 %v4464
    %v4513 = vpop.f32.mrb[0].mxu0
    %v4514 = vadd.f32 %v4415, %v4513
    %v4515 = vpop.f32.mrb[0].mxu0
    %v4516 = vadd.f32 %v4419, %v4515
    %v4517 = vpop.f32.mrb[0].mxu0
    %v4518 = vadd.f32 %v4415, %v4517
    %v4519 = vpop.f32.mrb[0].mxu0
    %v4520 = vadd.f32 %v4419, %v4519
    %4521 = vmatprep.mubr.bf16.mxu0 0
    %4522 = vmatmul.mubr.bf16.gmra.mrb[0].mxu0 %v4467
    %v4523 = vpop.f32.mrb[0].mxu0
    %v4524 = vadd.f32 %v4415, %v4523
    %v4525 = vpop.f32.mrb[0].mxu0
    %v4526 = vadd.f32 %v4419, %v4525
    %v4527 = vpop.f32.mrb[0].mxu0
    %v4528 = vadd.f32 %v4415, %v4527
    %v4529 = vpop.f32.mrb[0].mxu0
    %v4530 = vadd.f32 %v4419, %v4529
    %4531 = vdwg.mxu0
    %v4532 = vmul.f32 %v4504, 0.5
    %v4533 = vmul.f32 %v4506, 0.5
    %v4534 = vmul.f32 %v4508, 0.5
    %v4535 = vmul.f32 %v4510, 0.5
    %v4536 = vmul.f32 %v4514, 0.5
    %v4537 = vmul.f32 %v4516, 0.5
    %v4538 = vmul.f32 %v4518, 0.5
    %v4539 = vmul.f32 %v4520, 0.5
    %v4540 = vmul.f32 %v4524, 0.5
    %v4541 = vmul.f32 %v4526, 0.5
    %v4542 = vmul.f32 %v4528, 0.5
    %v4543 = vmul.f32 %v4530, 0.5
    %v4544 = vmul.f32 %v4504, 0.70710677
    %v4545 = vmul.f32 %v4506, 0.70710677
    %v4546 = vmul.f32 %v4508, 0.70710677
    %v4547 = vmul.f32 %v4510, 0.70710677
    %v4548 = vmul.f32 %v4514, 0.70710677
    %v4549 = vmul.f32 %v4516, 0.70710677
    %v4550 = vmul.f32 %v4518, 0.70710677
    %v4551 = vmul.f32 %v4520, 0.70710677
    %v4552 = vmul.f32 %v4524, 0.70710677
    %v4553 = vmul.f32 %v4526, 0.70710677
    %v4554 = vmul.f32 %v4528, 0.70710677
    %v4555 = vmul.f32 %v4530, 0.70710677
    %v4556 = verf.f32.pop %v4544
    %v4557 = verf.f32.pop %v4545
    %v4558 = verf.f32.pop %v4546
    %v4559 = verf.f32.pop %v4547
    %v4560 = verf.f32.pop %v4548
    %v4561 = verf.f32.pop %v4549
    %v4562 = verf.f32.pop %v4550
    %v4563 = verf.f32.pop %v4551
    %v4564 = verf.f32.pop %v4552
    %v4565 = verf.f32.pop %v4553
    %v4566 = verf.f32.pop %v4554
    %v4567 = verf.f32.pop %v4555
    %v4568 = vadd.f32 %v4556, 1.0
    %v4569 = vadd.f32 %v4557, 1.0
    %v4570 = vadd.f32 %v4558, 1.0
    %v4571 = vadd.f32 %v4559, 1.0
    %v4572 = vadd.f32 %v4560, 1.0
    %v4573 = vadd.f32 %v4561, 1.0
    %v4574 = vadd.f32 %v4562, 1.0
    %v4575 = vadd.f32 %v4563, 1.0
    %v4576 = vadd.f32 %v4564, 1.0
    %v4577 = vadd.f32 %v4565, 1.0
    %v4578 = vadd.f32 %v4566, 1.0
    %v4579 = vadd.f32 %v4567, 1.0
    %v4580 = vmul.f32 %v4532, %v4568
    %v4581 = vmul.f32 %v4533, %v4569
    %v4582 = vmul.f32 %v4534, %v4570
    %v4583 = vmul.f32 %v4535, %v4571
    %v4584 = vmul.f32 %v4536, %v4572
    %v4585 = vmul.f32 %v4537, %v4573
    %v4586 = vmul.f32 %v4538, %v4574
    %v4587 = vmul.f32 %v4539, %v4575
    %v4588 = vmul.f32 %v4540, %v4576
    %v4589 = vmul.f32 %v4541, %v4577
    %v4590 = vmul.f32 %v4542, %v4578
    %v4591 = vmul.f32 %v4543, %v4579
    %v4592 = vpack.c.bf16 %v4582, %v4580
    %v4593 = vpack.c.bf16 %v4583, %v4581
    %v4594 = vpack.c.bf16 %v4586, %v4584
    %v4595 = vpack.c.bf16 %v4587, %v4585
    %v4596 = vpack.c.bf16 %v4590, %v4588
    %v4597 = vpack.c.bf16 %v4591, %v4589
    %s4598 = scalar_lea.vmem %s7, 128
    %v4599 = vld [vmem:[%s4598] sm:$0xf]
    %v4600 = vld [vmem:[%s4598 + $0x4] sm:$0xf]
    %v4601 = vld [vmem:[%s4598 + $0x8] sm:$0xf]
    %v4602 = vld [vmem:[%s4598 + $0xc] sm:$0xf]
    %v4603 = vld [vmem:[%s4598 + $0x10] sm:$0xf]
    %v4604 = vld [vmem:[%s4598 + $0x14] sm:$0xf]
    %v4605 = vld [vmem:[%s4598 + $0x18] sm:$0xf]
    %v4606 = vld [vmem:[%s4598 + $0x1c] sm:$0xf]
    %v4607 = vld [vmem:[%s4598 + $0x20] sm:$0xf]
    %v4608 = vld [vmem:[%s4598 + $0x24] sm:$0xf]
    %v4609 = vld [vmem:[%s4598 + $0x28] sm:$0xf]
    %v4610 = vld [vmem:[%s4598 + $0x2c] sm:$0xf]
    %v4611 = vld [vmem:[%s4598 + $0x30] sm:$0xf]
    %v4612 = vld [vmem:[%s4598 + $0x34] sm:$0xf]
    %v4613 = vld [vmem:[%s4598 + $0x38] sm:$0xf]
    %v4614 = vld [vmem:[%s4598 + $0x3c] sm:$0xf]
    %v4615 = vld [vmem:[%s4598 + $0x40] sm:$0xf]
    %v4616 = vld [vmem:[%s4598 + $0x44] sm:$0xf]
    %v4617 = vld [vmem:[%s4598 + $0x48] sm:$0xf]
    %v4618 = vld [vmem:[%s4598 + $0x4c] sm:$0xf]
    %v4619 = vld [vmem:[%s4598 + $0x50] sm:$0xf]
    %v4620 = vld [vmem:[%s4598 + $0x54] sm:$0xf]
    %v4621 = vld [vmem:[%s4598 + $0x58] sm:$0xf]
    %v4622 = vld [vmem:[%s4598 + $0x5c] sm:$0xf]
    %v4623 = vld [vmem:[%s4598 + $0x60] sm:$0xf]
    %v4624 = vld [vmem:[%s4598 + $0x64] sm:$0xf]
    %v4625 = vld [vmem:[%s4598 + $0x68] sm:$0xf]
    %v4626 = vld [vmem:[%s4598 + $0x6c] sm:$0xf]
    %v4627 = vld [vmem:[%s4598 + $0x70] sm:$0xf]
    %v4628 = vld [vmem:[%s4598 + $0x74] sm:$0xf]
    %v4629 = vld [vmem:[%s4598 + $0x78] sm:$0xf]
    %v4630 = vld [vmem:[%s4598 + $0x7c] sm:$0xf]
    %v4631 = vlaneseq
    %v4632 = vshrl.u32 %v4631, 7
    %v4633 = vsub.s32 7, %v4632
    %v4634 = vrot.slane %v2502, %v4633
    %v4667 = vunpack.c.l.b16 %v4599
    %v4668 = vunpack.c.l.b16 %v4600
    %v4669 = vunpack.c.l.b16 %v4601
    %v4670 = vunpack.c.l.b16 %v4602
    %v4671 = vunpack.c.l.b16 %v4603
    %v4672 = vunpack.c.l.b16 %v4604
    %v4673 = vunpack.c.l.b16 %v4605
    %v4674 = vunpack.c.l.b16 %v4606
    %v4675 = vunpack.c.l.b16 %v4607
    %v4676 = vunpack.c.l.b16 %v4608
    %v4677 = vunpack.c.l.b16 %v4609
    %v4678 = vunpack.c.l.b16 %v4610
    %v4679 = vunpack.c.l.b16 %v4611
    %v4680 = vunpack.c.l.b16 %v4612
    %v4681 = vunpack.c.l.b16 %v4613
    %v4682 = vunpack.c.l.b16 %v4614
    %v4683 = vunpack.c.l.b16 %v4615
    %v4684 = vunpack.c.l.b16 %v4616
    %v4685 = vunpack.c.l.b16 %v4617
    %v4686 = vunpack.c.l.b16 %v4618
    %v4687 = vunpack.c.l.b16 %v4619
    %v4688 = vunpack.c.l.b16 %v4620
    %v4689 = vunpack.c.l.b16 %v4621
    %v4690 = vunpack.c.l.b16 %v4622
    %v4691 = vunpack.c.l.b16 %v4623
    %v4692 = vunpack.c.l.b16 %v4624
    %v4693 = vunpack.c.l.b16 %v4625
    %v4694 = vunpack.c.l.b16 %v4626
    %v4695 = vunpack.c.l.b16 %v4627
    %v4696 = vunpack.c.l.b16 %v4628
    %v4697 = vunpack.c.l.b16 %v4629
    %v4698 = vunpack.c.l.b16 %v4630
    %v4699 = vpack.c.b16 %v4668, %v4667
    %v4700 = vpack.c.b16 %v4670, %v4669
    %v4701 = vpack.c.b16 %v4672, %v4671
    %v4702 = vpack.c.b16 %v4674, %v4673
    %v4703 = vpack.c.b16 %v4676, %v4675
    %v4704 = vpack.c.b16 %v4678, %v4677
    %v4705 = vpack.c.b16 %v4680, %v4679
    %v4706 = vpack.c.b16 %v4682, %v4681
    %v4707 = vpack.c.b16 %v4684, %v4683
    %v4708 = vpack.c.b16 %v4686, %v4685
    %v4709 = vpack.c.b16 %v4688, %v4687
    %v4710 = vpack.c.b16 %v4690, %v4689
    %v4711 = vpack.c.b16 %v4692, %v4691
    %v4712 = vpack.c.b16 %v4694, %v4693
    %v4713 = vpack.c.b16 %v4696, %v4695
    %v4714 = vpack.c.b16 %v4698, %v4697
    %4731 = vmatprep.subr.bf16.mxu0 0
    %4732 = vmatpush1.bf16.msra.mxu0 %v4699
    %4733 = vmatprep.subr.bf16.mxu0 0
    %4734 = vmatpush1.bf16.msra.mxu0 %v4700
    %4735 = vmatprep.subr.bf16.mxu0 0
    %4736 = vmatpush1.bf16.msra.mxu0 %v4701
    %4737 = vmatprep.subr.bf16.mxu0 0
    %4738 = vmatpush1.bf16.msra.mxu0 %v4702
    %4739 = vmatprep.subr.bf16.mxu0 0
    %4740 = vmatpush1.bf16.msra.mxu0 %v4703
    %4741 = vmatprep.subr.bf16.mxu0 0
    %4742 = vmatpush1.bf16.msra.mxu0 %v4704
    %4743 = vmatprep.subr.bf16.mxu0 0
    %4744 = vmatpush1.bf16.msra.mxu0 %v4705
    %4745 = vmatprep.subr.bf16.mxu0 0
    %4746 = vmatpush1.bf16.msra.mxu0 %v4706
    %4747 = vmatprep.subr.bf16.mxu0 0
    %4748 = vmatpush1.bf16.msra.mxu0 %v4707
    %4749 = vmatprep.subr.bf16.mxu0 0
    %4750 = vmatpush1.bf16.msra.mxu0 %v4708
    %4751 = vmatprep.subr.bf16.mxu0 0
    %4752 = vmatpush1.bf16.msra.mxu0 %v4709
    %4753 = vmatprep.subr.bf16.mxu0 0
    %4754 = vmatpush1.bf16.msra.mxu0 %v4710
    %4755 = vmatprep.subr.bf16.mxu0 0
    %4756 = vmatpush1.bf16.msra.mxu0 %v4711
    %4757 = vmatprep.subr.bf16.mxu0 0
    %4758 = vmatpush1.bf16.msra.mxu0 %v4712
    %4759 = vmatprep.subr.bf16.mxu0 0
    %4760 = vmatpush1.bf16.msra.mxu0 %v4713
    %4761 = vmatprep.subr.bf16.mxu0 0
    %4762 = vmatpush1.bf16.msra.mxu0 %v4714
    %4763 = vmatprep.mubr.bf16.mxu0 %v4593
    %4764 = vmatmul.mubr.bf16.gmra.mrb[0].mxu0 %v4592
    %v4765 = vpop.f32.mrb[0].mxu0
    %v4766 = vadd.f32 %v4634, %v4765
    %v4767 = vpop.f32.mrb[0].mxu0
    %v4768 = vpop.f32.mrb[0].mxu0
    %v4769 = vadd.f32 %v4634, %v4768
    %v4770 = vpop.f32.mrb[0].mxu0
    %4771 = vmatprep.mubr.bf16.mxu0 %v4595
    %4772 = vmatmul.mubr.bf16.gmra.mrb[0].mxu0 %v4594
    %v4773 = vpop.f32.mrb[0].mxu0
    %v4774 = vadd.f32 %v4634, %v4773
    %v4775 = vpop.f32.mrb[0].mxu0
    %v4776 = vpop.f32.mrb[0].mxu0
    %v4777 = vadd.f32 %v4634, %v4776
    %v4778 = vpop.f32.mrb[0].mxu0
    %4779 = vmatprep.mubr.bf16.mxu0 %v4597
    %4780 = vmatmul.mubr.bf16.gmra.mrb[0].mxu0 %v4596
    %v4781 = vpop.f32.mrb[0].mxu0
    %v4782 = vadd.f32 %v4634, %v4781
    %v4783 = vpop.f32.mrb[0].mxu0
    %v4784 = vpop.f32.mrb[0].mxu0
    %v4785 = vadd.f32 %v4634, %v4784
    %v4786 = vpop.f32.mrb[0].mxu0
    %4787 = vdwg.mxu0
    %v4788 = vadd.f32 %v4296, %v4766
    %v4789 = vadd.f32 %v4297, %v4769
    %v4790 = vadd.f32 %v4298, %v4774
    %v4791 = vadd.f32 %v4299, %v4777
    %v4792 = vadd.f32 %v4300, %v4782
    %v4793 = vadd.f32 %v4301, %v4785
    %s4794 = scalar_lea.vmem %s8, 32
    %v4795 = vld [vmem:[%s4794] sm:$0xff]
    %v4796 = vld [vmem:[%s4794 + $0x8] sm:$0xff]
    %v4797 = vsel %vm123, %v4788, 0.0
    %4798 = vadd.xlane.f32.xlu0 %v4797
    %v4799 = vpop.xlane.xlu0 %4798
    %v4800 = vsel %vm123, %v4789, 0.0
    %4801 = vadd.xlane.f32.xlu0 %v4800
    %v4802 = vpop.xlane.xlu0 %4801
    %v4803 = vsel %vm123, %v4790, 0.0
    %4804 = vadd.xlane.f32.xlu0 %v4803
    %v4805 = vpop.xlane.xlu0 %4804
    %v4806 = vsel %vm123, %v4791, 0.0
    %4807 = vadd.xlane.f32.xlu0 %v4806
    %v4808 = vpop.xlane.xlu0 %4807
    %v4809 = vsel %vm123, %v4792, 0.0
    %4810 = vadd.xlane.f32.xlu0 %v4809
    %v4811 = vpop.xlane.xlu0 %4810
    %v4812 = vsel %vm123, %v4793, 0.0
    %4813 = vadd.xlane.f32.xlu0 %v4812
    %v4814 = vpop.xlane.xlu0 %4813
    %v4815 = vmul.f32 %v4799, %v227
    %v4816 = vmul.f32 %v4802, %v227
    %v4817 = vmul.f32 %v4805, %v227
    %v4818 = vmul.f32 %v4808, %v227
    %v4819 = vmul.f32 %v4811, %v227
    %v4820 = vmul.f32 %v4814, %v227
    %v4821 = vsub.f32 %v4788, %v4815
    %v4822 = vsub.f32 %v4789, %v4816
    %v4823 = vsub.f32 %v4790, %v4817
    %v4824 = vsub.f32 %v4791, %v4818
    %v4825 = vsub.f32 %v4792, %v4819
    %v4826 = vsub.f32 %v4793, %v4820
    %v4827 = vmul.f32 %v4821, %v4821
    %v4828 = vmul.f32 %v4822, %v4822
    %v4829 = vmul.f32 %v4823, %v4823
    %v4830 = vmul.f32 %v4824, %v4824
    %v4831 = vmul.f32 %v4825, %v4825
    %v4832 = vmul.f32 %v4826, %v4826
    %v4833 = vsel %vm123, %v4827, 0.0
    %4834 = vadd.xlane.f32.xlu0 %v4833
    %v4835 = vpop.xlane.xlu0 %4834
    %v4836 = vsel %vm123, %v4828, 0.0
    %4837 = vadd.xlane.f32.xlu0 %v4836
    %v4838 = vpop.xlane.xlu0 %4837
    %v4839 = vsel %vm123, %v4829, 0.0
    %4840 = vadd.xlane.f32.xlu0 %v4839
    %v4841 = vpop.xlane.xlu0 %4840
    %v4842 = vsel %vm123, %v4830, 0.0
    %4843 = vadd.xlane.f32.xlu0 %v4842
    %v4844 = vpop.xlane.xlu0 %4843
    %v4845 = vsel %vm123, %v4831, 0.0
    %4846 = vadd.xlane.f32.xlu0 %v4845
    %v4847 = vpop.xlane.xlu0 %4846
    %v4848 = vsel %vm123, %v4832, 0.0
    %4849 = vadd.xlane.f32.xlu0 %v4848
    %v4850 = vpop.xlane.xlu0 %4849
    %v4851 = vmul.f32 %v4835, %v227
    %v4852 = vmul.f32 %v4838, %v227
    %v4853 = vmul.f32 %v4841, %v227
    %v4854 = vmul.f32 %v4844, %v227
    %v4855 = vmul.f32 %v4847, %v227
    %v4856 = vmul.f32 %v4850, %v227
    %v4857 = vadd.f32 %v4851, 1e-05
    %v4858 = vadd.f32 %v4852, 1e-05
    %v4859 = vadd.f32 %v4853, 1e-05
    %v4860 = vadd.f32 %v4854, 1e-05
    %v4861 = vadd.f32 %v4855, 1e-05
    %v4862 = vadd.f32 %v4856, 1e-05
    %v4863 = vrsqrt.pop %v4857
    %v4864 = vrsqrt.pop %v4858
    %v4865 = vrsqrt.pop %v4859
    %v4866 = vrsqrt.pop %v4860
    %v4867 = vrsqrt.pop %v4861
    %v4868 = vrsqrt.pop %v4862
    %v4869 = vmul.f32 %v4821, %v4863
    %v4870 = vmul.f32 %v4822, %v4864
    %v4871 = vmul.f32 %v4823, %v4865
    %v4872 = vmul.f32 %v4824, %v4866
    %v4873 = vmul.f32 %v4825, %v4867
    %v4874 = vmul.f32 %v4826, %v4868
    %v4875 = vlaneseq
    %v4876 = vshrl.u32 %v4875, 7
    %v4877 = vsub.s32 0, %v4876
    %v4878 = vrot.slane %v4795, %v4877
    %v4879 = vmul.f32 %v4869, %v4878
    %v4880 = vmul.f32 %v4870, %v4878
    %v4881 = vmul.f32 %v4871, %v4878
    %v4882 = vmul.f32 %v4872, %v4878
    %v4883 = vmul.f32 %v4873, %v4878
    %v4884 = vmul.f32 %v4874, %v4878
    %v4885 = vlaneseq
    %v4886 = vshrl.u32 %v4885, 7
    %v4887 = vsub.s32 1, %v4886
    %v4888 = vrot.slane %v4795, %v4887
    %v4889 = vadd.f32 %v4879, %v4888
    %v4890 = vadd.f32 %v4880, %v4888
    %v4891 = vadd.f32 %v4881, %v4888
    %v4892 = vadd.f32 %v4882, %v4888
    %v4893 = vadd.f32 %v4883, %v4888
    %v4894 = vadd.f32 %v4884, %v4888
    %v4895 = vpack.c.bf16 %v4890, %v4889
    %v4896 = vpack.c.bf16 %v4892, %v4891
    %v4897 = vpack.c.bf16 %v4894, %v4893
    %s4898 = scalar_lea.vmem %s4, 128
    %v4899 = vld [vmem:[%s4898] sm:$0xff]
    %v4900 = vld [vmem:[%s4898 + $0x8] sm:$0xff]
    %v4901 = vld [vmem:[%s4898 + $0x10] sm:$0xff]
    %v4902 = vld [vmem:[%s4898 + $0x18] sm:$0xff]
    %v4903 = vld [vmem:[%s4898 + $0x20] sm:$0xff]
    %v4904 = vld [vmem:[%s4898 + $0x28] sm:$0xff]
    %v4905 = vld [vmem:[%s4898 + $0x30] sm:$0xff]
    %v4906 = vld [vmem:[%s4898 + $0x38] sm:$0xff]
    %v4907 = vlaneseq
    %v4908 = vshrl.u32 %v4907, 7
    %v4909 = vsub.s32 2, %v4908
    %v4910 = vrot.slane %v4795, %v4909
    %v4911 = vlaneseq
    %v4912 = vshrl.u32 %v4911, 7
    %v4913 = vsub.s32 2, %v4912
    %v4914 = vrot.slane %v4796, %v4913
    %v4923 = vunpack.c.l.b16 %v4899
    %v4924 = vunpack.c.h.b16 %v4899
    %v4925 = vunpack.c.l.b16 %v4900
    %v4926 = vunpack.c.h.b16 %v4900
    %v4927 = vunpack.c.l.b16 %v4901
    %v4928 = vunpack.c.h.b16 %v4901
    %v4929 = vunpack.c.l.b16 %v4902
    %v4930 = vunpack.c.h.b16 %v4902
    %v4931 = vunpack.c.l.b16 %v4903
    %v4932 = vunpack.c.h.b16 %v4903
    %v4933 = vunpack.c.l.b16 %v4904
    %v4934 = vunpack.c.h.b16 %v4904
    %v4935 = vunpack.c.l.b16 %v4905
    %v4936 = vunpack.c.h.b16 %v4905
    %v4937 = vunpack.c.l.b16 %v4906
    %v4938 = vunpack.c.h.b16 %v4906
    %v4939 = vpack.c.b16 %v4925, %v4923
    %v4940 = vpack.c.b16 %v4926, %v4924
    %v4941 = vpack.c.b16 %v4929, %v4927
    %v4942 = vpack.c.b16 %v4930, %v4928
    %v4943 = vpack.c.b16 %v4933, %v4931
    %v4944 = vpack.c.b16 %v4934, %v4932
    %v4945 = vpack.c.b16 %v4937, %v4935
    %v4946 = vpack.c.b16 %v4938, %v4936
    %v4956 = vsel %vm123, %v4895, 0
    %v4959 = vsel %vm123, %v4896, 0
    %v4962 = vsel %vm123, %v4897, 0
    %4964 = vmatprep.subr.bf16.mxu0 %v4940
    %4965 = vmatpush1.bf16.msra.mxu0 %v4939
    %4966 = vmatprep.subr.bf16.mxu0 %v4942
    %4967 = vmatpush1.bf16.msra.mxu0 %v4941
    %4968 = vmatprep.subr.bf16.mxu0 %v4944
    %4969 = vmatpush1.bf16.msra.mxu0 %v4943
    %4970 = vmatprep.subr.bf16.mxu0 %v4946
    %4971 = vmatpush1.bf16.msra.mxu0 %v4945
    %4972 = vmatprep.subr.bf16.mxu0 0
    %4973 = vmatpush1.bf16.msra.mxu0 0
    %4974 = vmatprep.subr.bf16.mxu0 0
    %4975 = vmatpush1.bf16.msra.mxu0 0
    %4976 = vmatprep.subr.bf16.mxu0 0
    %4977 = vmatpush1.bf16.msra.mxu0 0
    %4978 = vmatprep.subr.bf16.mxu0 0
    %4979 = vmatpush1.bf16.msra.mxu0 0
    %4980 = vmatprep.subr.bf16.mxu0 0
    %4981 = vmatpush1.bf16.msra.mxu0 0
    %4982 = vmatprep.subr.bf16.mxu0 0
    %4983 = vmatpush1.bf16.msra.mxu0 0
    %4984 = vmatprep.subr.bf16.mxu0 0
    %4985 = vmatpush1.bf16.msra.mxu0 0
    %4986 = vmatprep.subr.bf16.mxu0 0
    %4987 = vmatpush1.bf16.msra.mxu0 0
    %4988 = vmatprep.subr.bf16.mxu0 0
    %4989 = vmatpush1.bf16.msra.mxu0 0
    %4990 = vmatprep.subr.bf16.mxu0 0
    %4991 = vmatpush1.bf16.msra.mxu0 0
    %4992 = vmatprep.subr.bf16.mxu0 0
    %4993 = vmatpush1.bf16.msra.mxu0 0
    %4994 = vmatprep.subr.bf16.mxu0 0
    %4995 = vmatpush1.bf16.msra.mxu0 0
    %4996 = vmatprep.mubr.bf16.mxu0 0
    %4997 = vmatmul.mubr.bf16.gmra.mrb[0].mxu0 %v4956
    %v4998 = vpop.f32.mrb[0].mxu0
    %v4999 = vadd.f32 %v4910, %v4998
    %v5000 = vpop.f32.mrb[0].mxu0
    %v5001 = vadd.f32 %v4914, %v5000
    %v5002 = vpop.f32.mrb[0].mxu0
    %v5003 = vadd.f32 %v4910, %v5002
    %v5004 = vpop.f32.mrb[0].mxu0
    %v5005 = vadd.f32 %v4914, %v5004
    %5006 = vmatprep.mubr.bf16.mxu0 0
    %5007 = vmatmul.mubr.bf16.gmra.mrb[0].mxu0 %v4959
    %v5008 = vpop.f32.mrb[0].mxu0
    %v5009 = vadd.f32 %v4910, %v5008
    %v5010 = vpop.f32.mrb[0].mxu0
    %v5011 = vadd.f32 %v4914, %v5010
    %v5012 = vpop.f32.mrb[0].mxu0
    %v5013 = vadd.f32 %v4910, %v5012
    %v5014 = vpop.f32.mrb[0].mxu0
    %v5015 = vadd.f32 %v4914, %v5014
    %5016 = vmatprep.mubr.bf16.mxu0 0
    %5017 = vmatmul.mubr.bf16.gmra.mrb[0].mxu0 %v4962
    %v5018 = vpop.f32.mrb[0].mxu0
    %v5019 = vadd.f32 %v4910, %v5018
    %v5020 = vpop.f32.mrb[0].mxu0
    %v5021 = vadd.f32 %v4914, %v5020
    %v5022 = vpop.f32.mrb[0].mxu0
    %v5023 = vadd.f32 %v4910, %v5022
    %v5024 = vpop.f32.mrb[0].mxu0
    %v5025 = vadd.f32 %v4914, %v5024
    %5026 = vdwg.mxu0
    %v5027 = vpack.c.bf16 %v5003, %v4999
    %v5028 = vpack.c.bf16 %v5009, %v5009
    %v5029 = vpack.c.bf16 %v5019, %v5013
    %v5030 = vpack.c.bf16 %v5023, %v5023
    %v5031 = vpack.c.bf16 %v5005, %v5001
    %v5032 = vpack.c.bf16 %v5011, %v5011
    %v5033 = vpack.c.bf16 %v5021, %v5015
    %v5034 = vpack.c.bf16 %v5025, %v5025
    %5037 = vrot.lane.b32.xlu0 %v5027, 64
    %v5038 = vpop.permute.xlu0 %5037
    %5039 = vrot.lane.b32.xlu0 %v5028, 64
    %v5040 = vpop.permute.xlu0 %5039
    %v5042 = vsel %vm453, %v5027, 0
    %v5045 = vsel %vm453, %v5028, 0
    %v5048 = vsel %vm453, %v5038, 0
    %v5051 = vsel %vm453, %v5040, 0
    %5053 = vmatprep.subr.bf16.mxu0 0
    %5054 = vmatpush1.bf16.xpose.msra.mxu0 %v5048
    %5055 = vmatprep.subr.bf16.mxu0 0
    %5056 = vmatpush1.bf16.xpose.msra.mxu0 %v5051
    %5057 = vmatprep.subr.bf16.mxu0 0
    %5058 = vmatpush1.bf16.xpose.msra.mxu0 0
    %5059 = vmatprep.subr.bf16.mxu0 0
    %5060 = vmatpush1.bf16.xpose.msra.mxu0 0
    %5061 = vmatprep.subr.bf16.mxu0 0
    %5062 = vmatpush1.bf16.xpose.msra.mxu0 0
    %5063 = vmatprep.subr.bf16.mxu0 0
    %5064 = vmatpush1.bf16.xpose.msra.mxu0 0
    %5065 = vmatprep.subr.bf16.mxu0 0
    %5066 = vmatpush1.bf16.xpose.msra.mxu0 0
    %5067 = vmatprep.subr.bf16.mxu0 0
    %5068 = vmatpush1.bf16.xpose.msra.mxu0 0
    %5069 = vmatprep.subr.bf16.mxu0 0
    %5070 = vmatpush1.bf16.xpose.msra.mxu0 0
    %5071 = vmatprep.subr.bf16.mxu0 0
    %5072 = vmatpush1.bf16.xpose.msra.mxu0 0
    %5073 = vmatprep.subr.bf16.mxu0 0
    %5074 = vmatpush1.bf16.xpose.msra.mxu0 0
    %5075 = vmatprep.subr.bf16.mxu0 0
    %5076 = vmatpush1.bf16.xpose.msra.mxu0 0
    %5077 = vmatprep.subr.bf16.mxu0 0
    %5078 = vmatpush1.bf16.xpose.msra.mxu0 0
    %5079 = vmatprep.subr.bf16.mxu0 0
    %5080 = vmatpush1.bf16.xpose.msra.mxu0 0
    %5081 = vmatprep.subr.bf16.mxu0 0
    %5082 = vmatpush1.bf16.xpose.msra.mxu0 0
    %5083 = vmatprep.subr.bf16.mxu0 0
    %5084 = vmatpush1.bf16.xpose.msra.mxu0 0
    %5085 = vmatprep.mubr.bf16.mxu0 0
    %5086 = vmatmul.mubr.bf16.gmra.mrb[0].mxu0 %v5042
    %v5087 = vpop.f32.mrb[0].mxu0
    %v5088 = vadd.f32 0.0, %v5087
    %v5089 = vpop.f32.mrb[0].mxu0
    %v5090 = vpop.f32.mrb[0].mxu0
    %v5091 = vadd.f32 0.0, %v5090
    %v5092 = vpop.f32.mrb[0].mxu0
    %5093 = vmatprep.mubr.bf16.mxu0 0
    %5094 = vmatmul.mubr.bf16.gmra.mrb[0].mxu0 %v5045
    %v5095 = vpop.f32.mrb[0].mxu0
    %v5096 = vadd.f32 0.0, %v5095
    %v5097 = vpop.f32.mrb[0].mxu0
    %v5098 = vpop.f32.mrb[0].mxu0
    %v5099 = vpop.f32.mrb[0].mxu0
    %5100 = vdwg.mxu0
    %5103 = vrot.lane.b32.xlu0 %v5029, 64
    %v5104 = vpop.permute.xlu0 %5103
    %5105 = vrot.lane.b32.xlu0 %v5030, 64
    %v5106 = vpop.permute.xlu0 %5105
    %v5108 = vsel %vm453, %v5029, 0
    %v5111 = vsel %vm453, %v5030, 0
    %v5114 = vsel %vm453, %v5104, 0
    %v5117 = vsel %vm453, %v5106, 0
    %5119 = vmatprep.subr.bf16.mxu0 0
    %5120 = vmatpush1.bf16.xpose.msra.mxu0 %v5114
    %5121 = vmatprep.subr.bf16.mxu0 0
    %5122 = vmatpush1.bf16.xpose.msra.mxu0 %v5117
    %5123 = vmatprep.subr.bf16.mxu0 0
    %5124 = vmatpush1.bf16.xpose.msra.mxu0 0
    %5125 = vmatprep.subr.bf16.mxu0 0
    %5126 = vmatpush1.bf16.xpose.msra.mxu0 0
    %5127 = vmatprep.subr.bf16.mxu0 0
    %5128 = vmatpush1.bf16.xpose.msra.mxu0 0
    %5129 = vmatprep.subr.bf16.mxu0 0
    %5130 = vmatpush1.bf16.xpose.msra.mxu0 0
    %5131 = vmatprep.subr.bf16.mxu0 0
    %5132 = vmatpush1.bf16.xpose.msra.mxu0 0
    %5133 = vmatprep.subr.bf16.mxu0 0
    %5134 = vmatpush1.bf16.xpose.msra.mxu0 0
    %5135 = vmatprep.subr.bf16.mxu0 0
    %5136 = vmatpush1.bf16.xpose.msra.mxu0 0
    %5137 = vmatprep.subr.bf16.mxu0 0
    %5138 = vmatpush1.bf16.xpose.msra.mxu0 0
    %5139 = vmatprep.subr.bf16.mxu0 0
    %5140 = vmatpush1.bf16.xpose.msra.mxu0 0
    %5141 = vmatprep.subr.bf16.mxu0 0
    %5142 = vmatpush1.bf16.xpose.msra.mxu0 0
    %5143 = vmatprep.subr.bf16.mxu0 0
    %5144 = vmatpush1.bf16.xpose.msra.mxu0 0
    %5145 = vmatprep.subr.bf16.mxu0 0
    %5146 = vmatpush1.bf16.xpose.msra.mxu0 0
    %5147 = vmatprep.subr.bf16.mxu0 0
    %5148 = vmatpush1.bf16.xpose.msra.mxu0 0
    %5149 = vmatprep.subr.bf16.mxu0 0
    %5150 = vmatpush1.bf16.xpose.msra.mxu0 0
    %5151 = vmatprep.mubr.bf16.mxu0 0
    %5152 = vmatmul.mubr.bf16.gmra.mrb[0].mxu0 %v5108
    %v5153 = vpop.f32.mrb[0].mxu0
    %v5154 = vadd.f32 0.0, %v5153
    %v5155 = vpop.f32.mrb[0].mxu0
    %v5156 = vpop.f32.mrb[0].mxu0
    %v5157 = vadd.f32 0.0, %v5156
    %v5158 = vpop.f32.mrb[0].mxu0
    %5159 = vmatprep.mubr.bf16.mxu0 0
    %5160 = vmatmul.mubr.bf16.gmra.mrb[0].mxu0 %v5111
    %v5161 = vpop.f32.mrb[0].mxu0
    %v5162 = vadd.f32 0.0, %v5161
    %v5163 = vpop.f32.mrb[0].mxu0
    %v5164 = vpop.f32.mrb[0].mxu0
    %v5165 = vpop.f32.mrb[0].mxu0
    %5166 = vdwg.mxu0
    %v5167 = vmul.f32 %v5088, 0.25
    %v5168 = vmul.f32 %v5091, 0.25
    %v5169 = vmul.f32 %v5096, 0.25
    %v5170 = vmul.f32 %v5154, 0.25
    %v5171 = vmul.f32 %v5157, 0.25
    %v5172 = vmul.f32 %v5162, 0.25
    %v5173 = vadd.f32 %v5167, %v206
    %v5174 = vadd.f32 %v5168, %v206
    %v5175 = vadd.f32 %v5169, %v206
    %v5176 = vadd.f32 %v5170, %v206
    %v5177 = vadd.f32 %v5171, %v206
    %v5178 = vadd.f32 %v5172, %v206
    %v5179 = vsel %vm592, %v5173, -inf
    %5180 = vmax.xlane.f32.xlu0 %v5179
    %v5181 = vpop.xlane.xlu0 %5180
    %v5182 = vsel %vm592, %v5174, -inf
    %5183 = vmax.xlane.f32.xlu0 %v5182
    %v5184 = vpop.xlane.xlu0 %5183
    %v5185 = vsel %vm592, %v5175, -inf
    %5186 = vmax.xlane.f32.xlu0 %v5185
    %v5187 = vpop.xlane.xlu0 %5186
    %v5188 = vsel %vm592, %v5176, -inf
    %5189 = vmax.xlane.f32.xlu0 %v5188
    %v5190 = vpop.xlane.xlu0 %5189
    %v5191 = vsel %vm592, %v5177, -inf
    %5192 = vmax.xlane.f32.xlu0 %v5191
    %v5193 = vpop.xlane.xlu0 %5192
    %v5194 = vsel %vm592, %v5178, -inf
    %5195 = vmax.xlane.f32.xlu0 %v5194
    %v5196 = vpop.xlane.xlu0 %5195
    %v5197 = vsub.f32 %v5173, %v5181
    %v5198 = vsub.f32 %v5174, %v5184
    %v5199 = vsub.f32 %v5175, %v5187
    %v5200 = vsub.f32 %v5176, %v5190
    %v5201 = vsub.f32 %v5177, %v5193
    %v5202 = vsub.f32 %v5178, %v5196
    %v5203 = vmul.f32 %v5197, 1.442695
    %v5204 = vpow.pop %v5203
    %v5205 = vmul.f32 %v5198, 1.442695
    %v5206 = vpow.pop %v5205
    %v5207 = vmul.f32 %v5199, 1.442695
    %v5208 = vpow.pop %v5207
    %v5209 = vmul.f32 %v5200, 1.442695
    %v5210 = vpow.pop %v5209
    %v5211 = vmul.f32 %v5201, 1.442695
    %v5212 = vpow.pop %v5211
    %v5213 = vmul.f32 %v5202, 1.442695
    %v5214 = vpow.pop %v5213
    %v5215 = vsel %vm592, %v5204, 0.0
    %5216 = vadd.xlane.f32.xlu0 %v5215
    %v5217 = vpop.xlane.xlu0 %5216
    %v5218 = vsel %vm592, %v5206, 0.0
    %5219 = vadd.xlane.f32.xlu0 %v5218
    %v5220 = vpop.xlane.xlu0 %5219
    %v5221 = vsel %vm592, %v5208, 0.0
    %5222 = vadd.xlane.f32.xlu0 %v5221
    %v5223 = vpop.xlane.xlu0 %5222
    %v5224 = vsel %vm592, %v5210, 0.0
    %5225 = vadd.xlane.f32.xlu0 %v5224
    %v5226 = vpop.xlane.xlu0 %5225
    %v5227 = vsel %vm592, %v5212, 0.0
    %5228 = vadd.xlane.f32.xlu0 %v5227
    %v5229 = vpop.xlane.xlu0 %5228
    %v5230 = vsel %vm592, %v5214, 0.0
    %5231 = vadd.xlane.f32.xlu0 %v5230
    %v5232 = vpop.xlane.xlu0 %5231
    %v5233 = vrcp.pop %v5217
    %v5234 = vmul.f32 %v5204, %v5233
    %v5235 = vrcp.pop %v5220
    %v5236 = vmul.f32 %v5206, %v5235
    %v5237 = vrcp.pop %v5223
    %v5238 = vmul.f32 %v5208, %v5237
    %v5239 = vrcp.pop %v5226
    %v5240 = vmul.f32 %v5210, %v5239
    %v5241 = vrcp.pop %v5229
    %v5242 = vmul.f32 %v5212, %v5241
    %v5243 = vrcp.pop %v5232
    %v5244 = vmul.f32 %v5214, %v5243
    %v5245 = vpack.c.bf16 %v5236, %v5234
    %v5246 = vpack.c.bf16 %v5238, %v5238
    %v5247 = vpack.c.bf16 %v5242, %v5240
    %v5248 = vpack.c.bf16 %v5244, %v5244
    %v5250 = vsel %vm592, %v5245, 0
    %v5253 = vsel %vm592, %v5246, 0
    %v5256 = vsel %vm669, %v5032, 0
    %5258 = vmatprep.subr.bf16.mxu0 0
    %5259 = vmatpush1.bf16.msra.mxu0 %v5031
    %5260 = vmatprep.subr.bf16.mxu0 0
    %5261 = vmatpush1.bf16.msra.mxu0 %v5256
    %5262 = vmatprep.subr.bf16.mxu0 0
    %5263 = vmatpush1.bf16.msra.mxu0 0
    %5264 = vmatprep.subr.bf16.mxu0 0
    %5265 = vmatpush1.bf16.msra.mxu0 0
    %5266 = vmatprep.subr.bf16.mxu0 0
    %5267 = vmatpush1.bf16.msra.mxu0 0
    %5268 = vmatprep.subr.bf16.mxu0 0
    %5269 = vmatpush1.bf16.msra.mxu0 0
    %5270 = vmatprep.subr.bf16.mxu0 0
    %5271 = vmatpush1.bf16.msra.mxu0 0
    %5272 = vmatprep.subr.bf16.mxu0 0
    %5273 = vmatpush1.bf16.msra.mxu0 0
    %5274 = vmatprep.subr.bf16.mxu0 0
    %5275 = vmatpush1.bf16.msra.mxu0 0
    %5276 = vmatprep.subr.bf16.mxu0 0
    %5277 = vmatpush1.bf16.msra.mxu0 0
    %5278 = vmatprep.subr.bf16.mxu0 0
    %5279 = vmatpush1.bf16.msra.mxu0 0
    %5280 = vmatprep.subr.bf16.mxu0 0
    %5281 = vmatpush1.bf16.msra.mxu0 0
    %5282 = vmatprep.subr.bf16.mxu0 0
    %5283 = vmatpush1.bf16.msra.mxu0 0
    %5284 = vmatprep.subr.bf16.mxu0 0
    %5285 = vmatpush1.bf16.msra.mxu0 0
    %5286 = vmatprep.subr.bf16.mxu0 0
    %5287 = vmatpush1.bf16.msra.mxu0 0
    %5288 = vmatprep.subr.bf16.mxu0 0
    %5289 = vmatpush1.bf16.msra.mxu0 0
    %5290 = vmatprep.mubr.bf16.mxu0 0
    %5291 = vmatmul.mubr.bf16.gmra.mrb[0].mxu0 %v5250
    %v5292 = vpop.f32.mrb[0].mxu0
    %v5293 = vadd.f32 0.0, %v5292
    %v5294 = vpop.f32.mrb[0].mxu0
    %v5295 = vpop.f32.mrb[0].mxu0
    %v5296 = vadd.f32 0.0, %v5295
    %v5297 = vpop.f32.mrb[0].mxu0
    %5298 = vmatprep.mubr.bf16.mxu0 0
    %5299 = vmatmul.mubr.bf16.gmra.mrb[0].mxu0 %v5253
    %v5300 = vpop.f32.mrb[0].mxu0
    %v5301 = vadd.f32 0.0, %v5300
    %v5302 = vpop.f32.mrb[0].mxu0
    %v5303 = vpop.f32.mrb[0].mxu0
    %v5304 = vpop.f32.mrb[0].mxu0
    %5305 = vdwg.mxu0
    %v5307 = vsel %vm592, %v5247, 0
    %v5310 = vsel %vm592, %v5248, 0
    %v5313 = vsel %vm669, %v5034, 0
    %5315 = vmatprep.subr.bf16.mxu0 0
    %5316 = vmatpush1.bf16.msra.mxu0 %v5033
    %5317 = vmatprep.subr.bf16.mxu0 0
    %5318 = vmatpush1.bf16.msra.mxu0 %v5313
    %5319 = vmatprep.subr.bf16.mxu0 0
    %5320 = vmatpush1.bf16.msra.mxu0 0
    %5321 = vmatprep.subr.bf16.mxu0 0
    %5322 = vmatpush1.bf16.msra.mxu0 0
    %5323 = vmatprep.subr.bf16.mxu0 0
    %5324 = vmatpush1.bf16.msra.mxu0 0
    %5325 = vmatprep.subr.bf16.mxu0 0
    %5326 = vmatpush1.bf16.msra.mxu0 0
    %5327 = vmatprep.subr.bf16.mxu0 0
    %5328 = vmatpush1.bf16.msra.mxu0 0
    %5329 = vmatprep.subr.bf16.mxu0 0
    %5330 = vmatpush1.bf16.msra.mxu0 0
    %5331 = vmatprep.subr.bf16.mxu0 0
    %5332 = vmatpush1.bf16.msra.mxu0 0
    %5333 = vmatprep.subr.bf16.mxu0 0
    %5334 = vmatpush1.bf16.msra.mxu0 0
    %5335 = vmatprep.subr.bf16.mxu0 0
    %5336 = vmatpush1.bf16.msra.mxu0 0
    %5337 = vmatprep.subr.bf16.mxu0 0
    %5338 = vmatpush1.bf16.msra.mxu0 0
    %5339 = vmatprep.subr.bf16.mxu0 0
    %5340 = vmatpush1.bf16.msra.mxu0 0
    %5341 = vmatprep.subr.bf16.mxu0 0
    %5342 = vmatpush1.bf16.msra.mxu0 0
    %5343 = vmatprep.subr.bf16.mxu0 0
    %5344 = vmatpush1.bf16.msra.mxu0 0
    %5345 = vmatprep.subr.bf16.mxu0 0
    %5346 = vmatpush1.bf16.msra.mxu0 0
    %5347 = vmatprep.mubr.bf16.mxu0 0
    %5348 = vmatmul.mubr.bf16.gmra.mrb[0].mxu0 %v5307
    %v5349 = vpop.f32.mrb[0].mxu0
    %v5350 = vadd.f32 0.0, %v5349
    %v5351 = vpop.f32.mrb[0].mxu0
    %v5352 = vpop.f32.mrb[0].mxu0
    %v5353 = vadd.f32 0.0, %v5352
    %v5354 = vpop.f32.mrb[0].mxu0
    %5355 = vmatprep.mubr.bf16.mxu0 0
    %5356 = vmatmul.mubr.bf16.gmra.mrb[0].mxu0 %v5310
    %v5357 = vpop.f32.mrb[0].mxu0
    %v5358 = vadd.f32 0.0, %v5357
    %v5359 = vpop.f32.mrb[0].mxu0
    %v5360 = vpop.f32.mrb[0].mxu0
    %v5361 = vpop.f32.mrb[0].mxu0
    %5362 = vdwg.mxu0
    %5363 = vrot.lane.b32.xlu0 %v5027, 112
    %v5364 = vpop.permute.xlu0 %5363
    %5365 = vrot.lane.b32.xlu0 %v5028, 112
    %v5366 = vpop.permute.xlu0 %5365
    %5367 = vrot.lane.b32.xlu0 %v5027, 48
    %v5368 = vpop.permute.xlu0 %5367
    %5369 = vrot.lane.b32.xlu0 %v5028, 48
    %v5370 = vpop.permute.xlu0 %5369
    %v5372 = vsel %vm453, %v5364, 0
    %v5375 = vsel %vm453, %v5366, 0
    %v5378 = vsel %vm453, %v5368, 0
    %v5381 = vsel %vm453, %v5370, 0
    %5383 = vmatprep.subr.bf16.mxu0 0
    %5384 = vmatpush1.bf16.xpose.msra.mxu0 %v5378
    %5385 = vmatprep.subr.bf16.mxu0 0
    %5386 = vmatpush1.bf16.xpose.msra.mxu0 %v5381
    %5387 = vmatprep.subr.bf16.mxu0 0
    %5388 = vmatpush1.bf16.xpose.msra.mxu0 0
    %5389 = vmatprep.subr.bf16.mxu0 0
    %5390 = vmatpush1.bf16.xpose.msra.mxu0 0
    %5391 = vmatprep.subr.bf16.mxu0 0
    %5392 = vmatpush1.bf16.xpose.msra.mxu0 0
    %5393 = vmatprep.subr.bf16.mxu0 0
    %5394 = vmatpush1.bf16.xpose.msra.mxu0 0
    %5395 = vmatprep.subr.bf16.mxu0 0
    %5396 = vmatpush1.bf16.xpose.msra.mxu0 0
    %5397 = vmatprep.subr.bf16.mxu0 0
    %5398 = vmatpush1.bf16.xpose.msra.mxu0 0
    %5399 = vmatprep.subr.bf16.mxu0 0
    %5400 = vmatpush1.bf16.xpose.msra.mxu0 0
    %5401 = vmatprep.subr.bf16.mxu0 0
    %5402 = vmatpush1.bf16.xpose.msra.mxu0 0
    %5403 = vmatprep.subr.bf16.mxu0 0
    %5404 = vmatpush1.bf16.xpose.msra.mxu0 0
    %5405 = vmatprep.subr.bf16.mxu0 0
    %5406 = vmatpush1.bf16.xpose.msra.mxu0 0
    %5407 = vmatprep.subr.bf16.mxu0 0
    %5408 = vmatpush1.bf16.xpose.msra.mxu0 0
    %5409 = vmatprep.subr.bf16.mxu0 0
    %5410 = vmatpush1.bf16.xpose.msra.mxu0 0
    %5411 = vmatprep.subr.bf16.mxu0 0
    %5412 = vmatpush1.bf16.xpose.msra.mxu0 0
    %5413 = vmatprep.subr.bf16.mxu0 0
    %5414 = vmatpush1.bf16.xpose.msra.mxu0 0
    %5415 = vmatprep.mubr.bf16.mxu0 0
    %5416 = vmatmul.mubr.bf16.gmra.mrb[0].mxu0 %v5372
    %v5417 = vpop.f32.mrb[0].mxu0
    %v5418 = vadd.f32 0.0, %v5417
    %v5419 = vpop.f32.mrb[0].mxu0
    %v5420 = vpop.f32.mrb[0].mxu0
    %v5421 = vadd.f32 0.0, %v5420
    %v5422 = vpop.f32.mrb[0].mxu0
    %5423 = vmatprep.mubr.bf16.mxu0 0
    %5424 = vmatmul.mubr.bf16.gmra.mrb[0].mxu0 %v5375
    %v5425 = vpop.f32.mrb[0].mxu0
    %v5426 = vadd.f32 0.0, %v5425
    %v5427 = vpop.f32.mrb[0].mxu0
    %v5428 = vpop.f32.mrb[0].mxu0
    %v5429 = vpop.f32.mrb[0].mxu0
    %5430 = vdwg.mxu0
    %5431 = vrot.lane.b32.xlu0 %v5029, 112
    %v5432 = vpop.permute.xlu0 %5431
    %5433 = vrot.lane.b32.xlu0 %v5030, 112
    %v5434 = vpop.permute.xlu0 %5433
    %5435 = vrot.lane.b32.xlu0 %v5029, 48
    %v5436 = vpop.permute.xlu0 %5435
    %5437 = vrot.lane.b32.xlu0 %v5030, 48
    %v5438 = vpop.permute.xlu0 %5437
    %v5440 = vsel %vm453, %v5432, 0
    %v5443 = vsel %vm453, %v5434, 0
    %v5446 = vsel %vm453, %v5436, 0
    %v5449 = vsel %vm453, %v5438, 0
    %5451 = vmatprep.subr.bf16.mxu0 0
    %5452 = vmatpush1.bf16.xpose.msra.mxu0 %v5446
    %5453 = vmatprep.subr.bf16.mxu0 0
    %5454 = vmatpush1.bf16.xpose.msra.mxu0 %v5449
    %5455 = vmatprep.subr.bf16.mxu0 0
    %5456 = vmatpush1.bf16.xpose.msra.mxu0 0
    %5457 = vmatprep.subr.bf16.mxu0 0
    %5458 = vmatpush1.bf16.xpose.msra.mxu0 0
    %5459 = vmatprep.subr.bf16.mxu0 0
    %5460 = vmatpush1.bf16.xpose.msra.mxu0 0
    %5461 = vmatprep.subr.bf16.mxu0 0
    %5462 = vmatpush1.bf16.xpose.msra.mxu0 0
    %5463 = vmatprep.subr.bf16.mxu0 0
    %5464 = vmatpush1.bf16.xpose.msra.mxu0 0
    %5465 = vmatprep.subr.bf16.mxu0 0
    %5466 = vmatpush1.bf16.xpose.msra.mxu0 0
    %5467 = vmatprep.subr.bf16.mxu0 0
    %5468 = vmatpush1.bf16.xpose.msra.mxu0 0
    %5469 = vmatprep.subr.bf16.mxu0 0
    %5470 = vmatpush1.bf16.xpose.msra.mxu0 0
    %5471 = vmatprep.subr.bf16.mxu0 0
    %5472 = vmatpush1.bf16.xpose.msra.mxu0 0
    %5473 = vmatprep.subr.bf16.mxu0 0
    %5474 = vmatpush1.bf16.xpose.msra.mxu0 0
    %5475 = vmatprep.subr.bf16.mxu0 0
    %5476 = vmatpush1.bf16.xpose.msra.mxu0 0
    %5477 = vmatprep.subr.bf16.mxu0 0
    %5478 = vmatpush1.bf16.xpose.msra.mxu0 0
    %5479 = vmatprep.subr.bf16.mxu0 0
    %5480 = vmatpush1.bf16.xpose.msra.mxu0 0
    %5481 = vmatprep.subr.bf16.mxu0 0
    %5482 = vmatpush1.bf16.xpose.msra.mxu0 0
    %5483 = vmatprep.mubr.bf16.mxu0 0
    %5484 = vmatmul.mubr.bf16.gmra.mrb[0].mxu0 %v5440
    %v5485 = vpop.f32.mrb[0].mxu0
    %v5486 = vadd.f32 0.0, %v5485
    %v5487 = vpop.f32.mrb[0].mxu0
    %v5488 = vpop.f32.mrb[0].mxu0
    %v5489 = vadd.f32 0.0, %v5488
    %v5490 = vpop.f32.mrb[0].mxu0
    %5491 = vmatprep.mubr.bf16.mxu0 0
    %5492 = vmatmul.mubr.bf16.gmra.mrb[0].mxu0 %v5443
    %v5493 = vpop.f32.mrb[0].mxu0
    %v5494 = vadd.f32 0.0, %v5493
    %v5495 = vpop.f32.mrb[0].mxu0
    %v5496 = vpop.f32.mrb[0].mxu0
    %v5497 = vpop.f32.mrb[0].mxu0
    %5498 = vdwg.mxu0
    %v5499 = vmul.f32 %v5418, 0.25
    %v5500 = vmul.f32 %v5421, 0.25
    %v5501 = vmul.f32 %v5426, 0.25
    %v5502 = vmul.f32 %v5486, 0.25
    %v5503 = vmul.f32 %v5489, 0.25
    %v5504 = vmul.f32 %v5494, 0.25
    %v5505 = vadd.f32 %v5499, %v206
    %v5506 = vadd.f32 %v5500, %v206
    %v5507 = vadd.f32 %v5501, %v206
    %v5508 = vadd.f32 %v5502, %v206
    %v5509 = vadd.f32 %v5503, %v206
    %v5510 = vadd.f32 %v5504, %v206
    %v5511 = vsel %vm592, %v5505, -inf
    %5512 = vmax.xlane.f32.xlu0 %v5511
    %v5513 = vpop.xlane.xlu0 %5512
    %v5514 = vsel %vm592, %v5506, -inf
    %5515 = vmax.xlane.f32.xlu0 %v5514
    %v5516 = vpop.xlane.xlu0 %5515
    %v5517 = vsel %vm592, %v5507, -inf
    %5518 = vmax.xlane.f32.xlu0 %v5517
    %v5519 = vpop.xlane.xlu0 %5518
    %v5520 = vsel %vm592, %v5508, -inf
    %5521 = vmax.xlane.f32.xlu0 %v5520
    %v5522 = vpop.xlane.xlu0 %5521
    %v5523 = vsel %vm592, %v5509, -inf
    %5524 = vmax.xlane.f32.xlu0 %v5523
    %v5525 = vpop.xlane.xlu0 %5524
    %v5526 = vsel %vm592, %v5510, -inf
    %5527 = vmax.xlane.f32.xlu0 %v5526
    %v5528 = vpop.xlane.xlu0 %5527
    %v5529 = vsub.f32 %v5505, %v5513
    %v5530 = vsub.f32 %v5506, %v5516
    %v5531 = vsub.f32 %v5507, %v5519
    %v5532 = vsub.f32 %v5508, %v5522
    %v5533 = vsub.f32 %v5509, %v5525
    %v5534 = vsub.f32 %v5510, %v5528
    %v5535 = vmul.f32 %v5529, 1.442695
    %v5536 = vpow.pop %v5535
    %v5537 = vmul.f32 %v5530, 1.442695
    %v5538 = vpow.pop %v5537
    %v5539 = vmul.f32 %v5531, 1.442695
    %v5540 = vpow.pop %v5539
    %v5541 = vmul.f32 %v5532, 1.442695
    %v5542 = vpow.pop %v5541
    %v5543 = vmul.f32 %v5533, 1.442695
    %v5544 = vpow.pop %v5543
    %v5545 = vmul.f32 %v5534, 1.442695
    %v5546 = vpow.pop %v5545
    %v5547 = vsel %vm592, %v5536, 0.0
    %5548 = vadd.xlane.f32.xlu0 %v5547
    %v5549 = vpop.xlane.xlu0 %5548
    %v5550 = vsel %vm592, %v5538, 0.0
    %5551 = vadd.xlane.f32.xlu0 %v5550
    %v5552 = vpop.xlane.xlu0 %5551
    %v5553 = vsel %vm592, %v5540, 0.0
    %5554 = vadd.xlane.f32.xlu0 %v5553
    %v5555 = vpop.xlane.xlu0 %5554
    %v5556 = vsel %vm592, %v5542, 0.0
    %5557 = vadd.xlane.f32.xlu0 %v5556
    %v5558 = vpop.xlane.xlu0 %5557
    %v5559 = vsel %vm592, %v5544, 0.0
    %5560 = vadd.xlane.f32.xlu0 %v5559
    %v5561 = vpop.xlane.xlu0 %5560
    %v5562 = vsel %vm592, %v5546, 0.0
    %5563 = vadd.xlane.f32.xlu0 %v5562
    %v5564 = vpop.xlane.xlu0 %5563
    %v5565 = vrcp.pop %v5549
    %v5566 = vmul.f32 %v5536, %v5565
    %v5567 = vrcp.pop %v5552
    %v5568 = vmul.f32 %v5538, %v5567
    %v5569 = vrcp.pop %v5555
    %v5570 = vmul.f32 %v5540, %v5569
    %v5571 = vrcp.pop %v5558
    %v5572 = vmul.f32 %v5542, %v5571
    %v5573 = vrcp.pop %v5561
    %v5574 = vmul.f32 %v5544, %v5573
    %v5575 = vrcp.pop %v5564
    %v5576 = vmul.f32 %v5546, %v5575
    %v5577 = vpack.c.bf16 %v5568, %v5566
    %v5578 = vpack.c.bf16 %v5570, %v5570
    %v5579 = vpack.c.bf16 %v5574, %v5572
    %v5580 = vpack.c.bf16 %v5576, %v5576
    %5583 = vrot.lane.b32.xlu0 %v5031, 112
    %v5584 = vpop.permute.xlu0 %5583
    %5585 = vrot.lane.b32.xlu0 %v5032, 112
    %v5586 = vpop.permute.xlu0 %5585
    %v5589 = vsel %vm592, %v5577, 0
    %v5592 = vsel %vm592, %v5578, 0
    %v5595 = vsel %vm669, %v5586, 0
    %5597 = vmatprep.subr.bf16.mxu0 0
    %5598 = vmatpush1.bf16.msra.mxu0 %v5584
    %5599 = vmatprep.subr.bf16.mxu0 0
    %5600 = vmatpush1.bf16.msra.mxu0 %v5595
    %5601 = vmatprep.subr.bf16.mxu0 0
    %5602 = vmatpush1.bf16.msra.mxu0 0
    %5603 = vmatprep.subr.bf16.mxu0 0
    %5604 = vmatpush1.bf16.msra.mxu0 0
    %5605 = vmatprep.subr.bf16.mxu0 0
    %5606 = vmatpush1.bf16.msra.mxu0 0
    %5607 = vmatprep.subr.bf16.mxu0 0
    %5608 = vmatpush1.bf16.msra.mxu0 0
    %5609 = vmatprep.subr.bf16.mxu0 0
    %5610 = vmatpush1.bf16.msra.mxu0 0
    %5611 = vmatprep.subr.bf16.mxu0 0
    %5612 = vmatpush1.bf16.msra.mxu0 0
    %5613 = vmatprep.subr.bf16.mxu0 0
    %5614 = vmatpush1.bf16.msra.mxu0 0
    %5615 = vmatprep.subr.bf16.mxu0 0
    %5616 = vmatpush1.bf16.msra.mxu0 0
    %5617 = vmatprep.subr.bf16.mxu0 0
    %5618 = vmatpush1.bf16.msra.mxu0 0
    %5619 = vmatprep.subr.bf16.mxu0 0
    %5620 = vmatpush1.bf16.msra.mxu0 0
    %5621 = vmatprep.subr.bf16.mxu0 0
    %5622 = vmatpush1.bf16.msra.mxu0 0
    %5623 = vmatprep.subr.bf16.mxu0 0
    %5624 = vmatpush1.bf16.msra.mxu0 0
    %5625 = vmatprep.subr.bf16.mxu0 0
    %5626 = vmatpush1.bf16.msra.mxu0 0
    %5627 = vmatprep.subr.bf16.mxu0 0
    %5628 = vmatpush1.bf16.msra.mxu0 0
    %5629 = vmatprep.mubr.bf16.mxu0 0
    %5630 = vmatmul.mubr.bf16.gmra.mrb[0].mxu0 %v5589
    %v5631 = vpop.f32.mrb[0].mxu0
    %v5632 = vadd.f32 0.0, %v5631
    %v5633 = vpop.f32.mrb[0].mxu0
    %v5634 = vpop.f32.mrb[0].mxu0
    %v5635 = vadd.f32 0.0, %v5634
    %v5636 = vpop.f32.mrb[0].mxu0
    %5637 = vmatprep.mubr.bf16.mxu0 0
    %5638 = vmatmul.mubr.bf16.gmra.mrb[0].mxu0 %v5592
    %v5639 = vpop.f32.mrb[0].mxu0
    %v5640 = vadd.f32 0.0, %v5639
    %v5641 = vpop.f32.mrb[0].mxu0
    %v5642 = vpop.f32.mrb[0].mxu0
    %v5643 = vpop.f32.mrb[0].mxu0
    %5644 = vdwg.mxu0
    %5647 = vrot.lane.b32.xlu0 %v5033, 112
    %v5648 = vpop.permute.xlu0 %5647
    %5649 = vrot.lane.b32.xlu0 %v5034, 112
    %v5650 = vpop.permute.xlu0 %5649
    %v5653 = vsel %vm592, %v5579, 0
    %v5656 = vsel %vm592, %v5580, 0
    %v5659 = vsel %vm669, %v5650, 0
    %5661 = vmatprep.subr.bf16.mxu0 0
    %5662 = vmatpush1.bf16.msra.mxu0 %v5648
    %5663 = vmatprep.subr.bf16.mxu0 0
    %5664 = vmatpush1.bf16.msra.mxu0 %v5659
    %5665 = vmatprep.subr.bf16.mxu0 0
    %5666 = vmatpush1.bf16.msra.mxu0 0
    %5667 = vmatprep.subr.bf16.mxu0 0
    %5668 = vmatpush1.bf16.msra.mxu0 0
    %5669 = vmatprep.subr.bf16.mxu0 0
    %5670 = vmatpush1.bf16.msra.mxu0 0
    %5671 = vmatprep.subr.bf16.mxu0 0
    %5672 = vmatpush1.bf16.msra.mxu0 0
    %5673 = vmatprep.subr.bf16.mxu0 0
    %5674 = vmatpush1.bf16.msra.mxu0 0
    %5675 = vmatprep.subr.bf16.mxu0 0
    %5676 = vmatpush1.bf16.msra.mxu0 0
    %5677 = vmatprep.subr.bf16.mxu0 0
    %5678 = vmatpush1.bf16.msra.mxu0 0
    %5679 = vmatprep.subr.bf16.mxu0 0
    %5680 = vmatpush1.bf16.msra.mxu0 0
    %5681 = vmatprep.subr.bf16.mxu0 0
    %5682 = vmatpush1.bf16.msra.mxu0 0
    %5683 = vmatprep.subr.bf16.mxu0 0
    %5684 = vmatpush1.bf16.msra.mxu0 0
    %5685 = vmatprep.subr.bf16.mxu0 0
    %5686 = vmatpush1.bf16.msra.mxu0 0
    %5687 = vmatprep.subr.bf16.mxu0 0
    %5688 = vmatpush1.bf16.msra.mxu0 0
    %5689 = vmatprep.subr.bf16.mxu0 0
    %5690 = vmatpush1.bf16.msra.mxu0 0
    %5691 = vmatprep.subr.bf16.mxu0 0
    %5692 = vmatpush1.bf16.msra.mxu0 0
    %5693 = vmatprep.mubr.bf16.mxu0 0
    %5694 = vmatmul.mubr.bf16.gmra.mrb[0].mxu0 %v5653
    %v5695 = vpop.f32.mrb[0].mxu0
    %v5696 = vadd.f32 0.0, %v5695
    %v5697 = vpop.f32.mrb[0].mxu0
    %v5698 = vpop.f32.mrb[0].mxu0
    %v5699 = vadd.f32 0.0, %v5698
    %v5700 = vpop.f32.mrb[0].mxu0
    %5701 = vmatprep.mubr.bf16.mxu0 0
    %5702 = vmatmul.mubr.bf16.gmra.mrb[0].mxu0 %v5656
    %v5703 = vpop.f32.mrb[0].mxu0
    %v5704 = vadd.f32 0.0, %v5703
    %v5705 = vpop.f32.mrb[0].mxu0
    %v5706 = vpop.f32.mrb[0].mxu0
    %v5707 = vpop.f32.mrb[0].mxu0
    %5708 = vdwg.mxu0
    %5709 = vrot.lane.b32.xlu0 %v5027, 96
    %v5710 = vpop.permute.xlu0 %5709
    %5711 = vrot.lane.b32.xlu0 %v5028, 96
    %v5712 = vpop.permute.xlu0 %5711
    %5713 = vrot.lane.b32.xlu0 %v5027, 32
    %v5714 = vpop.permute.xlu0 %5713
    %5715 = vrot.lane.b32.xlu0 %v5028, 32
    %v5716 = vpop.permute.xlu0 %5715
    %v5718 = vsel %vm453, %v5710, 0
    %v5721 = vsel %vm453, %v5712, 0
    %v5724 = vsel %vm453, %v5714, 0
    %v5727 = vsel %vm453, %v5716, 0
    %5729 = vmatprep.subr.bf16.mxu0 0
    %5730 = vmatpush1.bf16.xpose.msra.mxu0 %v5724
    %5731 = vmatprep.subr.bf16.mxu0 0
    %5732 = vmatpush1.bf16.xpose.msra.mxu0 %v5727
    %5733 = vmatprep.subr.bf16.mxu0 0
    %5734 = vmatpush1.bf16.xpose.msra.mxu0 0
    %5735 = vmatprep.subr.bf16.mxu0 0
    %5736 = vmatpush1.bf16.xpose.msra.mxu0 0
    %5737 = vmatprep.subr.bf16.mxu0 0
    %5738 = vmatpush1.bf16.xpose.msra.mxu0 0
    %5739 = vmatprep.subr.bf16.mxu0 0
    %5740 = vmatpush1.bf16.xpose.msra.mxu0 0
    %5741 = vmatprep.subr.bf16.mxu0 0
    %5742 = vmatpush1.bf16.xpose.msra.mxu0 0
    %5743 = vmatprep.subr.bf16.mxu0 0
    %5744 = vmatpush1.bf16.xpose.msra.mxu0 0
    %5745 = vmatprep.subr.bf16.mxu0 0
    %5746 = vmatpush1.bf16.xpose.msra.mxu0 0
    %5747 = vmatprep.subr.bf16.mxu0 0
    %5748 = vmatpush1.bf16.xpose.msra.mxu0 0
    %5749 = vmatprep.subr.bf16.mxu0 0
    %5750 = vmatpush1.bf16.xpose.msra.mxu0 0
    %5751 = vmatprep.subr.bf16.mxu0 0
    %5752 = vmatpush1.bf16.xpose.msra.mxu0 0
    %5753 = vmatprep.subr.bf16.mxu0 0
    %5754 = vmatpush1.bf16.xpose.msra.mxu0 0
    %5755 = vmatprep.subr.bf16.mxu0 0
    %5756 = vmatpush1.bf16.xpose.msra.mxu0 0
    %5757 = vmatprep.subr.bf16.mxu0 0
    %5758 = vmatpush1.bf16.xpose.msra.mxu0 0
    %5759 = vmatprep.subr.bf16.mxu0 0
    %5760 = vmatpush1.bf16.xpose.msra.mxu0 0
    %5761 = vmatprep.mubr.bf16.mxu0 0
    %5762 = vmatmul.mubr.bf16.gmra.mrb[0].mxu0 %v5718
    %v5763 = vpop.f32.mrb[0].mxu0
    %v5764 = vadd.f32 0.0, %v5763
    %v5765 = vpop.f32.mrb[0].mxu0
    %v5766 = vpop.f32.mrb[0].mxu0
    %v5767 = vadd.f32 0.0, %v5766
    %v5768 = vpop.f32.mrb[0].mxu0
    %5769 = vmatprep.mubr.bf16.mxu0 0
    %5770 = vmatmul.mubr.bf16.gmra.mrb[0].mxu0 %v5721
    %v5771 = vpop.f32.mrb[0].mxu0
    %v5772 = vadd.f32 0.0, %v5771
    %v5773 = vpop.f32.mrb[0].mxu0
    %v5774 = vpop.f32.mrb[0].mxu0
    %v5775 = vpop.f32.mrb[0].mxu0
    %5776 = vdwg.mxu0
    %5777 = vrot.lane.b32.xlu0 %v5029, 96
    %v5778 = vpop.permute.xlu0 %5777
    %5779 = vrot.lane.b32.xlu0 %v5030, 96
    %v5780 = vpop.permute.xlu0 %5779
    %5781 = vrot.lane.b32.xlu0 %v5029, 32
    %v5782 = vpop.permute.xlu0 %5781
    %5783 = vrot.lane.b32.xlu0 %v5030, 32
    %v5784 = vpop.permute.xlu0 %5783
    %v5786 = vsel %vm453, %v5778, 0
    %v5789 = vsel %vm453, %v5780, 0
    %v5792 = vsel %vm453, %v5782, 0
    %v5795 = vsel %vm453, %v5784, 0
    %5797 = vmatprep.subr.bf16.mxu0 0
    %5798 = vmatpush1.bf16.xpose.msra.mxu0 %v5792
    %5799 = vmatprep.subr.bf16.mxu0 0
    %5800 = vmatpush1.bf16.xpose.msra.mxu0 %v5795
    %5801 = vmatprep.subr.bf16.mxu0 0
    %5802 = vmatpush1.bf16.xpose.msra.mxu0 0
    %5803 = vmatprep.subr.bf16.mxu0 0
    %5804 = vmatpush1.bf16.xpose.msra.mxu0 0
    %5805 = vmatprep.subr.bf16.mxu0 0
    %5806 = vmatpush1.bf16.xpose.msra.mxu0 0
    %5807 = vmatprep.subr.bf16.mxu0 0
    %5808 = vmatpush1.bf16.xpose.msra.mxu0 0
    %5809 = vmatprep.subr.bf16.mxu0 0
    %5810 = vmatpush1.bf16.xpose.msra.mxu0 0
    %5811 = vmatprep.subr.bf16.mxu0 0
    %5812 = vmatpush1.bf16.xpose.msra.mxu0 0
    %5813 = vmatprep.subr.bf16.mxu0 0
    %5814 = vmatpush1.bf16.xpose.msra.mxu0 0
    %5815 = vmatprep.subr.bf16.mxu0 0
    %5816 = vmatpush1.bf16.xpose.msra.mxu0 0
    %5817 = vmatprep.subr.bf16.mxu0 0
    %5818 = vmatpush1.bf16.xpose.msra.mxu0 0
    %5819 = vmatprep.subr.bf16.mxu0 0
    %5820 = vmatpush1.bf16.xpose.msra.mxu0 0
    %5821 = vmatprep.subr.bf16.mxu0 0
    %5822 = vmatpush1.bf16.xpose.msra.mxu0 0
    %5823 = vmatprep.subr.bf16.mxu0 0
    %5824 = vmatpush1.bf16.xpose.msra.mxu0 0
    %5825 = vmatprep.subr.bf16.mxu0 0
    %5826 = vmatpush1.bf16.xpose.msra.mxu0 0
    %5827 = vmatprep.subr.bf16.mxu0 0
    %5828 = vmatpush1.bf16.xpose.msra.mxu0 0
    %5829 = vmatprep.mubr.bf16.mxu0 0
    %5830 = vmatmul.mubr.bf16.gmra.mrb[0].mxu0 %v5786
    %v5831 = vpop.f32.mrb[0].mxu0
    %v5832 = vadd.f32 0.0, %v5831
    %v5833 = vpop.f32.mrb[0].mxu0
    %v5834 = vpop.f32.mrb[0].mxu0
    %v5835 = vadd.f32 0.0, %v5834
    %v5836 = vpop.f32.mrb[0].mxu0
    %5837 = vmatprep.mubr.bf16.mxu0 0
    %5838 = vmatmul.mubr.bf16.gmra.mrb[0].mxu0 %v5789
    %v5839 = vpop.f32.mrb[0].mxu0
    %v5840 = vadd.f32 0.0, %v5839
    %v5841 = vpop.f32.mrb[0].mxu0
    %v5842 = vpop.f32.mrb[0].mxu0
    %v5843 = vpop.f32.mrb[0].mxu0
    %5844 = vdwg.mxu0
    %v5845 = vmul.f32 %v5764, 0.25
    %v5846 = vmul.f32 %v5767, 0.25
    %v5847 = vmul.f32 %v5772, 0.25
    %v5848 = vmul.f32 %v5832, 0.25
    %v5849 = vmul.f32 %v5835, 0.25
    %v5850 = vmul.f32 %v5840, 0.25
    %v5851 = vadd.f32 %v5845, %v206
    %v5852 = vadd.f32 %v5846, %v206
    %v5853 = vadd.f32 %v5847, %v206
    %v5854 = vadd.f32 %v5848, %v206
    %v5855 = vadd.f32 %v5849, %v206
    %v5856 = vadd.f32 %v5850, %v206
    %v5857 = vsel %vm592, %v5851, -inf
    %5858 = vmax.xlane.f32.xlu0 %v5857
    %v5859 = vpop.xlane.xlu0 %5858
    %v5860 = vsel %vm592, %v5852, -inf
    %5861 = vmax.xlane.f32.xlu0 %v5860
    %v5862 = vpop.xlane.xlu0 %5861
    %v5863 = vsel %vm592, %v5853, -inf
    %5864 = vmax.xlane.f32.xlu0 %v5863
    %v5865 = vpop.xlane.xlu0 %5864
    %v5866 = vsel %vm592, %v5854, -inf
    %5867 = vmax.xlane.f32.xlu0 %v5866
    %v5868 = vpop.xlane.xlu0 %5867
    %v5869 = vsel %vm592, %v5855, -inf
    %5870 = vmax.xlane.f32.xlu0 %v5869
    %v5871 = vpop.xlane.xlu0 %5870
    %v5872 = vsel %vm592, %v5856, -inf
    %5873 = vmax.xlane.f32.xlu0 %v5872
    %v5874 = vpop.xlane.xlu0 %5873
    %v5875 = vsub.f32 %v5851, %v5859
    %v5876 = vsub.f32 %v5852, %v5862
    %v5877 = vsub.f32 %v5853, %v5865
    %v5878 = vsub.f32 %v5854, %v5868
    %v5879 = vsub.f32 %v5855, %v5871
    %v5880 = vsub.f32 %v5856, %v5874
    %v5881 = vmul.f32 %v5875, 1.442695
    %v5882 = vpow.pop %v5881
    %v5883 = vmul.f32 %v5876, 1.442695
    %v5884 = vpow.pop %v5883
    %v5885 = vmul.f32 %v5877, 1.442695
    %v5886 = vpow.pop %v5885
    %v5887 = vmul.f32 %v5878, 1.442695
    %v5888 = vpow.pop %v5887
    %v5889 = vmul.f32 %v5879, 1.442695
    %v5890 = vpow.pop %v5889
    %v5891 = vmul.f32 %v5880, 1.442695
    %v5892 = vpow.pop %v5891
    %v5893 = vsel %vm592, %v5882, 0.0
    %5894 = vadd.xlane.f32.xlu0 %v5893
    %v5895 = vpop.xlane.xlu0 %5894
    %v5896 = vsel %vm592, %v5884, 0.0
    %5897 = vadd.xlane.f32.xlu0 %v5896
    %v5898 = vpop.xlane.xlu0 %5897
    %v5899 = vsel %vm592, %v5886, 0.0
    %5900 = vadd.xlane.f32.xlu0 %v5899
    %v5901 = vpop.xlane.xlu0 %5900
    %v5902 = vsel %vm592, %v5888, 0.0
    %5903 = vadd.xlane.f32.xlu0 %v5902
    %v5904 = vpop.xlane.xlu0 %5903
    %v5905 = vsel %vm592, %v5890, 0.0
    %5906 = vadd.xlane.f32.xlu0 %v5905
    %v5907 = vpop.xlane.xlu0 %5906
    %v5908 = vsel %vm592, %v5892, 0.0
    %5909 = vadd.xlane.f32.xlu0 %v5908
    %v5910 = vpop.xlane.xlu0 %5909
    %v5911 = vrcp.pop %v5895
    %v5912 = vmul.f32 %v5882, %v5911
    %v5913 = vrcp.pop %v5898
    %v5914 = vmul.f32 %v5884, %v5913
    %v5915 = vrcp.pop %v5901
    %v5916 = vmul.f32 %v5886, %v5915
    %v5917 = vrcp.pop %v5904
    %v5918 = vmul.f32 %v5888, %v5917
    %v5919 = vrcp.pop %v5907
    %v5920 = vmul.f32 %v5890, %v5919
    %v5921 = vrcp.pop %v5910
    %v5922 = vmul.f32 %v5892, %v5921
    %v5923 = vpack.c.bf16 %v5914, %v5912
    %v5924 = vpack.c.bf16 %v5916, %v5916
    %v5925 = vpack.c.bf16 %v5920, %v5918
    %v5926 = vpack.c.bf16 %v5922, %v5922
    %5927 = vrot.lane.b32.xlu0 %v5031, 96
    %v5928 = vpop.permute.xlu0 %5927
    %5929 = vrot.lane.b32.xlu0 %v5032, 96
    %v5930 = vpop.permute.xlu0 %5929
    %v5933 = vsel %vm592, %v5923, 0
    %v5936 = vsel %vm592, %v5924, 0
    %v5939 = vsel %vm669, %v5930, 0
    %5941 = vmatprep.subr.bf16.mxu0 0
    %5942 = vmatpush1.bf16.msra.mxu0 %v5928
    %5943 = vmatprep.subr.bf16.mxu0 0
    %5944 = vmatpush1.bf16.msra.mxu0 %v5939
    %5945 = vmatprep.subr.bf16.mxu0 0
    %5946 = vmatpush1.bf16.msra.mxu0 0
    %5947 = vmatprep.subr.bf16.mxu0 0
    %5948 = vmatpush1.bf16.msra.mxu0 0
    %5949 = vmatprep.subr.bf16.mxu0 0
    %5950 = vmatpush1.bf16.msra.mxu0 0
    %5951 = vmatprep.subr.bf16.mxu0 0
    %5952 = vmatpush1.bf16.msra.mxu0 0
    %5953 = vmatprep.subr.bf16.mxu0 0
    %5954 = vmatpush1.bf16.msra.mxu0 0
    %5955 = vmatprep.subr.bf16.mxu0 0
    %5956 = vmatpush1.bf16.msra.mxu0 0
    %5957 = vmatprep.subr.bf16.mxu0 0
    %5958 = vmatpush1.bf16.msra.mxu0 0
    %5959 = vmatprep.subr.bf16.mxu0 0
    %5960 = vmatpush1.bf16.msra.mxu0 0
    %5961 = vmatprep.subr.bf16.mxu0 0
    %5962 = vmatpush1.bf16.msra.mxu0 0
    %5963 = vmatprep.subr.bf16.mxu0 0
    %5964 = vmatpush1.bf16.msra.mxu0 0
    %5965 = vmatprep.subr.bf16.mxu0 0
    %5966 = vmatpush1.bf16.msra.mxu0 0
    %5967 = vmatprep.subr.bf16.mxu0 0
    %5968 = vmatpush1.bf16.msra.mxu0 0
    %5969 = vmatprep.subr.bf16.mxu0 0
    %5970 = vmatpush1.bf16.msra.mxu0 0
    %5971 = vmatprep.subr.bf16.mxu0 0
    %5972 = vmatpush1.bf16.msra.mxu0 0
    %5973 = vmatprep.mubr.bf16.mxu0 0
    %5974 = vmatmul.mubr.bf16.gmra.mrb[0].mxu0 %v5933
    %v5975 = vpop.f32.mrb[0].mxu0
    %v5976 = vadd.f32 0.0, %v5975
    %v5977 = vpop.f32.mrb[0].mxu0
    %v5978 = vpop.f32.mrb[0].mxu0
    %v5979 = vadd.f32 0.0, %v5978
    %v5980 = vpop.f32.mrb[0].mxu0
    %5981 = vmatprep.mubr.bf16.mxu0 0
    %5982 = vmatmul.mubr.bf16.gmra.mrb[0].mxu0 %v5936
    %v5983 = vpop.f32.mrb[0].mxu0
    %v5984 = vadd.f32 0.0, %v5983
    %v5985 = vpop.f32.mrb[0].mxu0
    %v5986 = vpop.f32.mrb[0].mxu0
    %v5987 = vpop.f32.mrb[0].mxu0
    %5988 = vdwg.mxu0
    %5989 = vrot.lane.b32.xlu0 %v5033, 96
    %v5990 = vpop.permute.xlu0 %5989
    %5991 = vrot.lane.b32.xlu0 %v5034, 96
    %v5992 = vpop.permute.xlu0 %5991
    %v5995 = vsel %vm592, %v5925, 0
    %v5998 = vsel %vm592, %v5926, 0
    %v6001 = vsel %vm669, %v5992, 0
    %6003 = vmatprep.subr.bf16.mxu0 0
    %6004 = vmatpush1.bf16.msra.mxu0 %v5990
    %6005 = vmatprep.subr.bf16.mxu0 0
    %6006 = vmatpush1.bf16.msra.mxu0 %v6001
    %6007 = vmatprep.subr.bf16.mxu0 0
    %6008 = vmatpush1.bf16.msra.mxu0 0
    %6009 = vmatprep.subr.bf16.mxu0 0
    %6010 = vmatpush1.bf16.msra.mxu0 0
    %6011 = vmatprep.subr.bf16.mxu0 0
    %6012 = vmatpush1.bf16.msra.mxu0 0
    %6013 = vmatprep.subr.bf16.mxu0 0
    %6014 = vmatpush1.bf16.msra.mxu0 0
    %6015 = vmatprep.subr.bf16.mxu0 0
    %6016 = vmatpush1.bf16.msra.mxu0 0
    %6017 = vmatprep.subr.bf16.mxu0 0
    %6018 = vmatpush1.bf16.msra.mxu0 0
    %6019 = vmatprep.subr.bf16.mxu0 0
    %6020 = vmatpush1.bf16.msra.mxu0 0
    %6021 = vmatprep.subr.bf16.mxu0 0
    %6022 = vmatpush1.bf16.msra.mxu0 0
    %6023 = vmatprep.subr.bf16.mxu0 0
    %6024 = vmatpush1.bf16.msra.mxu0 0
    %6025 = vmatprep.subr.bf16.mxu0 0
    %6026 = vmatpush1.bf16.msra.mxu0 0
    %6027 = vmatprep.subr.bf16.mxu0 0
    %6028 = vmatpush1.bf16.msra.mxu0 0
    %6029 = vmatprep.subr.bf16.mxu0 0
    %6030 = vmatpush1.bf16.msra.mxu0 0
    %6031 = vmatprep.subr.bf16.mxu0 0
    %6032 = vmatpush1.bf16.msra.mxu0 0
    %6033 = vmatprep.subr.bf16.mxu0 0
    %6034 = vmatpush1.bf16.msra.mxu0 0
    %6035 = vmatprep.mubr.bf16.mxu0 0
    %6036 = vmatmul.mubr.bf16.gmra.mrb[0].mxu0 %v5995
    %v6037 = vpop.f32.mrb[0].mxu0
    %v6038 = vadd.f32 0.0, %v6037
    %v6039 = vpop.f32.mrb[0].mxu0
    %v6040 = vpop.f32.mrb[0].mxu0
    %v6041 = vadd.f32 0.0, %v6040
    %v6042 = vpop.f32.mrb[0].mxu0
    %6043 = vmatprep.mubr.bf16.mxu0 0
    %6044 = vmatmul.mubr.bf16.gmra.mrb[0].mxu0 %v5998
    %v6045 = vpop.f32.mrb[0].mxu0
    %v6046 = vadd.f32 0.0, %v6045
    %v6047 = vpop.f32.mrb[0].mxu0
    %v6048 = vpop.f32.mrb[0].mxu0
    %v6049 = vpop.f32.mrb[0].mxu0
    %6050 = vdwg.mxu0
    %6051 = vrot.lane.b32.xlu0 %v5027, 80
    %v6052 = vpop.permute.xlu0 %6051
    %6053 = vrot.lane.b32.xlu0 %v5028, 80
    %v6054 = vpop.permute.xlu0 %6053
    %6055 = vrot.lane.b32.xlu0 %v5027, 16
    %v6056 = vpop.permute.xlu0 %6055
    %6057 = vrot.lane.b32.xlu0 %v5028, 16
    %v6058 = vpop.permute.xlu0 %6057
    %v6060 = vsel %vm453, %v6052, 0
    %v6063 = vsel %vm453, %v6054, 0
    %v6066 = vsel %vm453, %v6056, 0
    %v6069 = vsel %vm453, %v6058, 0
    %6071 = vmatprep.subr.bf16.mxu0 0
    %6072 = vmatpush1.bf16.xpose.msra.mxu0 %v6066
    %6073 = vmatprep.subr.bf16.mxu0 0
    %6074 = vmatpush1.bf16.xpose.msra.mxu0 %v6069
    %6075 = vmatprep.subr.bf16.mxu0 0
    %6076 = vmatpush1.bf16.xpose.msra.mxu0 0
    %6077 = vmatprep.subr.bf16.mxu0 0
    %6078 = vmatpush1.bf16.xpose.msra.mxu0 0
    %6079 = vmatprep.subr.bf16.mxu0 0
    %6080 = vmatpush1.bf16.xpose.msra.mxu0 0
    %6081 = vmatprep.subr.bf16.mxu0 0
    %6082 = vmatpush1.bf16.xpose.msra.mxu0 0
    %6083 = vmatprep.subr.bf16.mxu0 0
    %6084 = vmatpush1.bf16.xpose.msra.mxu0 0
    %6085 = vmatprep.subr.bf16.mxu0 0
    %6086 = vmatpush1.bf16.xpose.msra.mxu0 0
    %6087 = vmatprep.subr.bf16.mxu0 0
    %6088 = vmatpush1.bf16.xpose.msra.mxu0 0
    %6089 = vmatprep.subr.bf16.mxu0 0
    %6090 = vmatpush1.bf16.xpose.msra.mxu0 0
    %6091 = vmatprep.subr.bf16.mxu0 0
    %6092 = vmatpush1.bf16.xpose.msra.mxu0 0
    %6093 = vmatprep.subr.bf16.mxu0 0
    %6094 = vmatpush1.bf16.xpose.msra.mxu0 0
    %6095 = vmatprep.subr.bf16.mxu0 0
    %6096 = vmatpush1.bf16.xpose.msra.mxu0 0
    %6097 = vmatprep.subr.bf16.mxu0 0
    %6098 = vmatpush1.bf16.xpose.msra.mxu0 0
    %6099 = vmatprep.subr.bf16.mxu0 0
    %6100 = vmatpush1.bf16.xpose.msra.mxu0 0
    %6101 = vmatprep.subr.bf16.mxu0 0
    %6102 = vmatpush1.bf16.xpose.msra.mxu0 0
    %6103 = vmatprep.mubr.bf16.mxu0 0
    %6104 = vmatmul.mubr.bf16.gmra.mrb[0].mxu0 %v6060
    %v6105 = vpop.f32.mrb[0].mxu0
    %v6106 = vadd.f32 0.0, %v6105
    %v6107 = vpop.f32.mrb[0].mxu0
    %v6108 = vpop.f32.mrb[0].mxu0
    %v6109 = vadd.f32 0.0, %v6108
    %v6110 = vpop.f32.mrb[0].mxu0
    %6111 = vmatprep.mubr.bf16.mxu0 0
    %6112 = vmatmul.mubr.bf16.gmra.mrb[0].mxu0 %v6063
    %v6113 = vpop.f32.mrb[0].mxu0
    %v6114 = vadd.f32 0.0, %v6113
    %v6115 = vpop.f32.mrb[0].mxu0
    %v6116 = vpop.f32.mrb[0].mxu0
    %v6117 = vpop.f32.mrb[0].mxu0
    %6118 = vdwg.mxu0
    %6119 = vrot.lane.b32.xlu0 %v5029, 80
    %v6120 = vpop.permute.xlu0 %6119
    %6121 = vrot.lane.b32.xlu0 %v5030, 80
    %v6122 = vpop.permute.xlu0 %6121
    %6123 = vrot.lane.b32.xlu0 %v5029, 16
    %v6124 = vpop.permute.xlu0 %6123
    %6125 = vrot.lane.b32.xlu0 %v5030, 16
    %v6126 = vpop.permute.xlu0 %6125
    %v6128 = vsel %vm453, %v6120, 0
    %v6131 = vsel %vm453, %v6122, 0
    %v6134 = vsel %vm453, %v6124, 0
    %v6137 = vsel %vm453, %v6126, 0
    %6139 = vmatprep.subr.bf16.mxu0 0
    %6140 = vmatpush1.bf16.xpose.msra.mxu0 %v6134
    %6141 = vmatprep.subr.bf16.mxu0 0
    %6142 = vmatpush1.bf16.xpose.msra.mxu0 %v6137
    %6143 = vmatprep.subr.bf16.mxu0 0
    %6144 = vmatpush1.bf16.xpose.msra.mxu0 0
    %6145 = vmatprep.subr.bf16.mxu0 0
    %6146 = vmatpush1.bf16.xpose.msra.mxu0 0
    %6147 = vmatprep.subr.bf16.mxu0 0
    %6148 = vmatpush1.bf16.xpose.msra.mxu0 0
    %6149 = vmatprep.subr.bf16.mxu0 0
    %6150 = vmatpush1.bf16.xpose.msra.mxu0 0
    %6151 = vmatprep.subr.bf16.mxu0 0
    %6152 = vmatpush1.bf16.xpose.msra.mxu0 0
    %6153 = vmatprep.subr.bf16.mxu0 0
    %6154 = vmatpush1.bf16.xpose.msra.mxu0 0
    %6155 = vmatprep.subr.bf16.mxu0 0
    %6156 = vmatpush1.bf16.xpose.msra.mxu0 0
    %6157 = vmatprep.subr.bf16.mxu0 0
    %6158 = vmatpush1.bf16.xpose.msra.mxu0 0
    %6159 = vmatprep.subr.bf16.mxu0 0
    %6160 = vmatpush1.bf16.xpose.msra.mxu0 0
    %6161 = vmatprep.subr.bf16.mxu0 0
    %6162 = vmatpush1.bf16.xpose.msra.mxu0 0
    %6163 = vmatprep.subr.bf16.mxu0 0
    %6164 = vmatpush1.bf16.xpose.msra.mxu0 0
    %6165 = vmatprep.subr.bf16.mxu0 0
    %6166 = vmatpush1.bf16.xpose.msra.mxu0 0
    %6167 = vmatprep.subr.bf16.mxu0 0
    %6168 = vmatpush1.bf16.xpose.msra.mxu0 0
    %6169 = vmatprep.subr.bf16.mxu0 0
    %6170 = vmatpush1.bf16.xpose.msra.mxu0 0
    %6171 = vmatprep.mubr.bf16.mxu0 0
    %6172 = vmatmul.mubr.bf16.gmra.mrb[0].mxu0 %v6128
    %v6173 = vpop.f32.mrb[0].mxu0
    %v6174 = vadd.f32 0.0, %v6173
    %v6175 = vpop.f32.mrb[0].mxu0
    %v6176 = vpop.f32.mrb[0].mxu0
    %v6177 = vadd.f32 0.0, %v6176
    %v6178 = vpop.f32.mrb[0].mxu0
    %6179 = vmatprep.mubr.bf16.mxu0 0
    %6180 = vmatmul.mubr.bf16.gmra.mrb[0].mxu0 %v6131
    %v6181 = vpop.f32.mrb[0].mxu0
    %v6182 = vadd.f32 0.0, %v6181
    %v6183 = vpop.f32.mrb[0].mxu0
    %v6184 = vpop.f32.mrb[0].mxu0
    %v6185 = vpop.f32.mrb[0].mxu0
    %6186 = vdwg.mxu0
    %v6187 = vmul.f32 %v6106, 0.25
    %v6188 = vmul.f32 %v6109, 0.25
    %v6189 = vmul.f32 %v6114, 0.25
    %v6190 = vmul.f32 %v6174, 0.25
    %v6191 = vmul.f32 %v6177, 0.25
    %v6192 = vmul.f32 %v6182, 0.25
    %v6193 = vadd.f32 %v6187, %v206
    %v6194 = vadd.f32 %v6188, %v206
    %v6195 = vadd.f32 %v6189, %v206
    %v6196 = vadd.f32 %v6190, %v206
    %v6197 = vadd.f32 %v6191, %v206
    %v6198 = vadd.f32 %v6192, %v206
    %v6199 = vsel %vm592, %v6193, -inf
    %6200 = vmax.xlane.f32.xlu0 %v6199
    %v6201 = vpop.xlane.xlu0 %6200
    %v6202 = vsel %vm592, %v6194, -inf
    %6203 = vmax.xlane.f32.xlu0 %v6202
    %v6204 = vpop.xlane.xlu0 %6203
    %v6205 = vsel %vm592, %v6195, -inf
    %6206 = vmax.xlane.f32.xlu0 %v6205
    %v6207 = vpop.xlane.xlu0 %6206
    %v6208 = vsel %vm592, %v6196, -inf
    %6209 = vmax.xlane.f32.xlu0 %v6208
    %v6210 = vpop.xlane.xlu0 %6209
    %v6211 = vsel %vm592, %v6197, -inf
    %6212 = vmax.xlane.f32.xlu0 %v6211
    %v6213 = vpop.xlane.xlu0 %6212
    %v6214 = vsel %vm592, %v6198, -inf
    %6215 = vmax.xlane.f32.xlu0 %v6214
    %v6216 = vpop.xlane.xlu0 %6215
    %v6217 = vsub.f32 %v6193, %v6201
    %v6218 = vsub.f32 %v6194, %v6204
    %v6219 = vsub.f32 %v6195, %v6207
    %v6220 = vsub.f32 %v6196, %v6210
    %v6221 = vsub.f32 %v6197, %v6213
    %v6222 = vsub.f32 %v6198, %v6216
    %v6223 = vmul.f32 %v6217, 1.442695
    %v6224 = vpow.pop %v6223
    %v6225 = vmul.f32 %v6218, 1.442695
    %v6226 = vpow.pop %v6225
    %v6227 = vmul.f32 %v6219, 1.442695
    %v6228 = vpow.pop %v6227
    %v6229 = vmul.f32 %v6220, 1.442695
    %v6230 = vpow.pop %v6229
    %v6231 = vmul.f32 %v6221, 1.442695
    %v6232 = vpow.pop %v6231
    %v6233 = vmul.f32 %v6222, 1.442695
    %v6234 = vpow.pop %v6233
    %v6235 = vsel %vm592, %v6224, 0.0
    %6236 = vadd.xlane.f32.xlu0 %v6235
    %v6237 = vpop.xlane.xlu0 %6236
    %v6238 = vsel %vm592, %v6226, 0.0
    %6239 = vadd.xlane.f32.xlu0 %v6238
    %v6240 = vpop.xlane.xlu0 %6239
    %v6241 = vsel %vm592, %v6228, 0.0
    %6242 = vadd.xlane.f32.xlu0 %v6241
    %v6243 = vpop.xlane.xlu0 %6242
    %v6244 = vsel %vm592, %v6230, 0.0
    %6245 = vadd.xlane.f32.xlu0 %v6244
    %v6246 = vpop.xlane.xlu0 %6245
    %v6247 = vsel %vm592, %v6232, 0.0
    %6248 = vadd.xlane.f32.xlu0 %v6247
    %v6249 = vpop.xlane.xlu0 %6248
    %v6250 = vsel %vm592, %v6234, 0.0
    %6251 = vadd.xlane.f32.xlu0 %v6250
    %v6252 = vpop.xlane.xlu0 %6251
    %v6253 = vrcp.pop %v6237
    %v6254 = vmul.f32 %v6224, %v6253
    %v6255 = vrcp.pop %v6240
    %v6256 = vmul.f32 %v6226, %v6255
    %v6257 = vrcp.pop %v6243
    %v6258 = vmul.f32 %v6228, %v6257
    %v6259 = vrcp.pop %v6246
    %v6260 = vmul.f32 %v6230, %v6259
    %v6261 = vrcp.pop %v6249
    %v6262 = vmul.f32 %v6232, %v6261
    %v6263 = vrcp.pop %v6252
    %v6264 = vmul.f32 %v6234, %v6263
    %v6265 = vpack.c.bf16 %v6256, %v6254
    %v6266 = vpack.c.bf16 %v6258, %v6258
    %v6267 = vpack.c.bf16 %v6262, %v6260
    %v6268 = vpack.c.bf16 %v6264, %v6264
    %6269 = vrot.lane.b32.xlu0 %v5031, 80
    %v6270 = vpop.permute.xlu0 %6269
    %6271 = vrot.lane.b32.xlu0 %v5032, 80
    %v6272 = vpop.permute.xlu0 %6271
    %v6275 = vsel %vm592, %v6265, 0
    %v6278 = vsel %vm592, %v6266, 0
    %v6281 = vsel %vm669, %v6272, 0
    %6283 = vmatprep.subr.bf16.mxu0 0
    %6284 = vmatpush1.bf16.msra.mxu0 %v6270
    %6285 = vmatprep.subr.bf16.mxu0 0
    %6286 = vmatpush1.bf16.msra.mxu0 %v6281
    %6287 = vmatprep.subr.bf16.mxu0 0
    %6288 = vmatpush1.bf16.msra.mxu0 0
    %6289 = vmatprep.subr.bf16.mxu0 0
    %6290 = vmatpush1.bf16.msra.mxu0 0
    %6291 = vmatprep.subr.bf16.mxu0 0
    %6292 = vmatpush1.bf16.msra.mxu0 0
    %6293 = vmatprep.subr.bf16.mxu0 0
    %6294 = vmatpush1.bf16.msra.mxu0 0
    %6295 = vmatprep.subr.bf16.mxu0 0
    %6296 = vmatpush1.bf16.msra.mxu0 0
    %6297 = vmatprep.subr.bf16.mxu0 0
    %6298 = vmatpush1.bf16.msra.mxu0 0
    %6299 = vmatprep.subr.bf16.mxu0 0
    %6300 = vmatpush1.bf16.msra.mxu0 0
    %6301 = vmatprep.subr.bf16.mxu0 0
    %6302 = vmatpush1.bf16.msra.mxu0 0
    %6303 = vmatprep.subr.bf16.mxu0 0
    %6304 = vmatpush1.bf16.msra.mxu0 0
    %6305 = vmatprep.subr.bf16.mxu0 0
    %6306 = vmatpush1.bf16.msra.mxu0 0
    %6307 = vmatprep.subr.bf16.mxu0 0
    %6308 = vmatpush1.bf16.msra.mxu0 0
    %6309 = vmatprep.subr.bf16.mxu0 0
    %6310 = vmatpush1.bf16.msra.mxu0 0
    %6311 = vmatprep.subr.bf16.mxu0 0
    %6312 = vmatpush1.bf16.msra.mxu0 0
    %6313 = vmatprep.subr.bf16.mxu0 0
    %6314 = vmatpush1.bf16.msra.mxu0 0
    %6315 = vmatprep.mubr.bf16.mxu0 0
    %6316 = vmatmul.mubr.bf16.gmra.mrb[0].mxu0 %v6275
    %v6317 = vpop.f32.mrb[0].mxu0
    %v6318 = vadd.f32 0.0, %v6317
    %v6319 = vpop.f32.mrb[0].mxu0
    %v6320 = vpop.f32.mrb[0].mxu0
    %v6321 = vadd.f32 0.0, %v6320
    %v6322 = vpop.f32.mrb[0].mxu0
    %6323 = vmatprep.mubr.bf16.mxu0 0
    %6324 = vmatmul.mubr.bf16.gmra.mrb[0].mxu0 %v6278
    %v6325 = vpop.f32.mrb[0].mxu0
    %v6326 = vadd.f32 0.0, %v6325
    %v6327 = vpop.f32.mrb[0].mxu0
    %v6328 = vpop.f32.mrb[0].mxu0
    %v6329 = vpop.f32.mrb[0].mxu0
    %6330 = vdwg.mxu0
    %6331 = vrot.lane.b32.xlu0 %v5033, 80
    %v6332 = vpop.permute.xlu0 %6331
    %6333 = vrot.lane.b32.xlu0 %v5034, 80
    %v6334 = vpop.permute.xlu0 %6333
    %v6337 = vsel %vm592, %v6267, 0
    %v6340 = vsel %vm592, %v6268, 0
    %v6343 = vsel %vm669, %v6334, 0
    %6345 = vmatprep.subr.bf16.mxu0 0
    %6346 = vmatpush1.bf16.msra.mxu0 %v6332
    %6347 = vmatprep.subr.bf16.mxu0 0
    %6348 = vmatpush1.bf16.msra.mxu0 %v6343
    %6349 = vmatprep.subr.bf16.mxu0 0
    %6350 = vmatpush1.bf16.msra.mxu0 0
    %6351 = vmatprep.subr.bf16.mxu0 0
    %6352 = vmatpush1.bf16.msra.mxu0 0
    %6353 = vmatprep.subr.bf16.mxu0 0
    %6354 = vmatpush1.bf16.msra.mxu0 0
    %6355 = vmatprep.subr.bf16.mxu0 0
    %6356 = vmatpush1.bf16.msra.mxu0 0
    %6357 = vmatprep.subr.bf16.mxu0 0
    %6358 = vmatpush1.bf16.msra.mxu0 0
    %6359 = vmatprep.subr.bf16.mxu0 0
    %6360 = vmatpush1.bf16.msra.mxu0 0
    %6361 = vmatprep.subr.bf16.mxu0 0
    %6362 = vmatpush1.bf16.msra.mxu0 0
    %6363 = vmatprep.subr.bf16.mxu0 0
    %6364 = vmatpush1.bf16.msra.mxu0 0
    %6365 = vmatprep.subr.bf16.mxu0 0
    %6366 = vmatpush1.bf16.msra.mxu0 0
    %6367 = vmatprep.subr.bf16.mxu0 0
    %6368 = vmatpush1.bf16.msra.mxu0 0
    %6369 = vmatprep.subr.bf16.mxu0 0
    %6370 = vmatpush1.bf16.msra.mxu0 0
    %6371 = vmatprep.subr.bf16.mxu0 0
    %6372 = vmatpush1.bf16.msra.mxu0 0
    %6373 = vmatprep.subr.bf16.mxu0 0
    %6374 = vmatpush1.bf16.msra.mxu0 0
    %6375 = vmatprep.subr.bf16.mxu0 0
    %6376 = vmatpush1.bf16.msra.mxu0 0
    %6377 = vmatprep.mubr.bf16.mxu0 0
    %6378 = vmatmul.mubr.bf16.gmra.mrb[0].mxu0 %v6337
    %v6379 = vpop.f32.mrb[0].mxu0
    %v6380 = vadd.f32 0.0, %v6379
    %v6381 = vpop.f32.mrb[0].mxu0
    %v6382 = vpop.f32.mrb[0].mxu0
    %v6383 = vadd.f32 0.0, %v6382
    %v6384 = vpop.f32.mrb[0].mxu0
    %6385 = vmatprep.mubr.bf16.mxu0 0
    %6386 = vmatmul.mubr.bf16.gmra.mrb[0].mxu0 %v6340
    %v6387 = vpop.f32.mrb[0].mxu0
    %v6388 = vadd.f32 0.0, %v6387
    %v6389 = vpop.f32.mrb[0].mxu0
    %v6390 = vpop.f32.mrb[0].mxu0
    %v6391 = vpop.f32.mrb[0].mxu0
    %6392 = vdwg.mxu0
    %6399 = vrot.lane.b32.xlu0 %v5632, 16
    %v6400 = vpop.permute.xlu0 %6399
    %6401 = vrot.lane.b32.xlu0 %v5635, 16
    %v6402 = vpop.permute.xlu0 %6401
    %6403 = vrot.lane.b32.xlu0 %v5640, 16
    %v6404 = vpop.permute.xlu0 %6403
    %6405 = vrot.lane.b32.xlu0 %v5696, 16
    %v6406 = vpop.permute.xlu0 %6405
    %6407 = vrot.lane.b32.xlu0 %v5699, 16
    %v6408 = vpop.permute.xlu0 %6407
    %6409 = vrot.lane.b32.xlu0 %v5704, 16
    %v6410 = vpop.permute.xlu0 %6409
    %6423 = vrot.lane.b32.xlu0 %v5976, 32
    %v6424 = vpop.permute.xlu0 %6423
    %6425 = vrot.lane.b32.xlu0 %v5979, 32
    %v6426 = vpop.permute.xlu0 %6425
    %6427 = vrot.lane.b32.xlu0 %v5984, 32
    %v6428 = vpop.permute.xlu0 %6427
    %6429 = vrot.lane.b32.xlu0 %v6038, 32
    %v6430 = vpop.permute.xlu0 %6429
    %6431 = vrot.lane.b32.xlu0 %v6041, 32
    %v6432 = vpop.permute.xlu0 %6431
    %6433 = vrot.lane.b32.xlu0 %v6046, 32
    %v6434 = vpop.permute.xlu0 %6433
    %6447 = vrot.lane.b32.xlu0 %v6318, 48
    %v6448 = vpop.permute.xlu0 %6447
    %6449 = vrot.lane.b32.xlu0 %v6321, 48
    %v6450 = vpop.permute.xlu0 %6449
    %6451 = vrot.lane.b32.xlu0 %v6326, 48
    %v6452 = vpop.permute.xlu0 %6451
    %6453 = vrot.lane.b32.xlu0 %v6380, 48
    %v6454 = vpop.permute.xlu0 %6453
    %6455 = vrot.lane.b32.xlu0 %v6383, 48
    %v6456 = vpop.permute.xlu0 %6455
    %6457 = vrot.lane.b32.xlu0 %v6388, 48
    %v6458 = vpop.permute.xlu0 %6457
    %v6465 = vsel %vm453, %v5293, %v6400
    %v6466 = vsel %vm453, %v5296, %v6402
    %v6467 = vsel %vm453, %v5301, %v6404
    %v6468 = vsel %vm453, %v5350, %v6406
    %v6469 = vsel %vm453, %v5353, %v6408
    %v6470 = vsel %vm453, %v5358, %v6410
    %v6471 = vsel %vm1886, %v6465, %v6424
    %v6472 = vsel %vm1886, %v6466, %v6426
    %v6473 = vsel %vm1886, %v6467, %v6428
    %v6474 = vsel %vm1886, %v6468, %v6430
    %v6475 = vsel %vm1886, %v6469, %v6432
    %v6476 = vsel %vm1886, %v6470, %v6434
    %v6477 = vsel %vm1893, %v6471, %v6448
    %v6478 = vsel %vm1893, %v6472, %v6450
    %v6479 = vsel %vm1893, %v6473, %v6452
    %v6480 = vsel %vm1893, %v6474, %v6454
    %v6481 = vsel %vm1893, %v6475, %v6456
    %v6482 = vsel %vm1893, %v6476, %v6458
    %v6483 = vpack.c.bf16 %v6478, %v6477
    %v6484 = vpack.c.bf16 %v6480, %v6479
    %v6485 = vpack.c.bf16 %v6482, %v6481
    %s6486 = scalar_lea.vmem %s5, 64
    %v6487 = vld [vmem:[%s6486] sm:$0xf]
    %v6488 = vld [vmem:[%s6486 + $0x4] sm:$0xf]
    %v6489 = vld [vmem:[%s6486 + $0x8] sm:$0xf]
    %v6490 = vld [vmem:[%s6486 + $0xc] sm:$0xf]
    %v6491 = vld [vmem:[%s6486 + $0x10] sm:$0xf]
    %v6492 = vld [vmem:[%s6486 + $0x14] sm:$0xf]
    %v6493 = vld [vmem:[%s6486 + $0x18] sm:$0xf]
    %v6494 = vld [vmem:[%s6486 + $0x1c] sm:$0xf]
    %v6495 = vlaneseq
    %v6496 = vshrl.u32 %v6495, 7
    %v6497 = vsub.s32 3, %v6496
    %v6498 = vrot.slane %v4795, %v6497
    %v6507 = vunpack.c.l.b16 %v6487
    %v6508 = vunpack.c.l.b16 %v6488
    %v6509 = vunpack.c.l.b16 %v6489
    %v6510 = vunpack.c.l.b16 %v6490
    %v6511 = vunpack.c.l.b16 %v6491
    %v6512 = vunpack.c.l.b16 %v6492
    %v6513 = vunpack.c.l.b16 %v6493
    %v6514 = vunpack.c.l.b16 %v6494
    %v6515 = vpack.c.b16 %v6508, %v6507
    %v6516 = vpack.c.b16 %v6510, %v6509
    %v6517 = vpack.c.b16 %v6512, %v6511
    %v6518 = vpack.c.b16 %v6514, %v6513
    %v6524 = vsel %vm123, %v6483, 0
    %v6527 = vsel %vm123, %v6484, 0
    %v6530 = vsel %vm123, %v6485, 0
    %6532 = vmatprep.subr.bf16.mxu0 0
    %6533 = vmatpush1.bf16.msra.mxu0 %v6515
    %6534 = vmatprep.subr.bf16.mxu0 0
    %6535 = vmatpush1.bf16.msra.mxu0 %v6516
    %6536 = vmatprep.subr.bf16.mxu0 0
    %6537 = vmatpush1.bf16.msra.mxu0 %v6517
    %6538 = vmatprep.subr.bf16.mxu0 0
    %6539 = vmatpush1.bf16.msra.mxu0 %v6518
    %6540 = vmatprep.subr.bf16.mxu0 0
    %6541 = vmatpush1.bf16.msra.mxu0 0
    %6542 = vmatprep.subr.bf16.mxu0 0
    %6543 = vmatpush1.bf16.msra.mxu0 0
    %6544 = vmatprep.subr.bf16.mxu0 0
    %6545 = vmatpush1.bf16.msra.mxu0 0
    %6546 = vmatprep.subr.bf16.mxu0 0
    %6547 = vmatpush1.bf16.msra.mxu0 0
    %6548 = vmatprep.subr.bf16.mxu0 0
    %6549 = vmatpush1.bf16.msra.mxu0 0
    %6550 = vmatprep.subr.bf16.mxu0 0
    %6551 = vmatpush1.bf16.msra.mxu0 0
    %6552 = vmatprep.subr.bf16.mxu0 0
    %6553 = vmatpush1.bf16.msra.mxu0 0
    %6554 = vmatprep.subr.bf16.mxu0 0
    %6555 = vmatpush1.bf16.msra.mxu0 0
    %6556 = vmatprep.subr.bf16.mxu0 0
    %6557 = vmatpush1.bf16.msra.mxu0 0
    %6558 = vmatprep.subr.bf16.mxu0 0
    %6559 = vmatpush1.bf16.msra.mxu0 0
    %6560 = vmatprep.subr.bf16.mxu0 0
    %6561 = vmatpush1.bf16.msra.mxu0 0
    %6562 = vmatprep.subr.bf16.mxu0 0
    %6563 = vmatpush1.bf16.msra.mxu0 0
    %6564 = vmatprep.mubr.bf16.mxu0 0
    %6565 = vmatmul.mubr.bf16.gmra.mrb[0].mxu0 %v6524
    %v6566 = vpop.f32.mrb[0].mxu0
    %v6567 = vadd.f32 %v6498, %v6566
    %v6568 = vpop.f32.mrb[0].mxu0
    %v6569 = vpop.f32.mrb[0].mxu0
    %v6570 = vadd.f32 %v6498, %v6569
    %v6571 = vpop.f32.mrb[0].mxu0
    %6572 = vmatprep.mubr.bf16.mxu0 0
    %6573 = vmatmul.mubr.bf16.gmra.mrb[0].mxu0 %v6527
    %v6574 = vpop.f32.mrb[0].mxu0
    %v6575 = vadd.f32 %v6498, %v6574
    %v6576 = vpop.f32.mrb[0].mxu0
    %v6577 = vpop.f32.mrb[0].mxu0
    %v6578 = vadd.f32 %v6498, %v6577
    %v6579 = vpop.f32.mrb[0].mxu0
    %6580 = vmatprep.mubr.bf16.mxu0 0
    %6581 = vmatmul.mubr.bf16.gmra.mrb[0].mxu0 %v6530
    %v6582 = vpop.f32.mrb[0].mxu0
    %v6583 = vadd.f32 %v6498, %v6582
    %v6584 = vpop.f32.mrb[0].mxu0
    %v6585 = vpop.f32.mrb[0].mxu0
    %v6586 = vadd.f32 %v6498, %v6585
    %v6587 = vpop.f32.mrb[0].mxu0
    %6588 = vdwg.mxu0
    %v6589 = vadd.f32 %v4788, %v6567
    %v6590 = vadd.f32 %v4789, %v6570
    %v6591 = vadd.f32 %v4790, %v6575
    %v6592 = vadd.f32 %v4791, %v6578
    %v6593 = vadd.f32 %v4792, %v6583
    %v6594 = vadd.f32 %v4793, %v6586
    %v6595 = vsel %vm123, %v6589, 0.0
    %6596 = vadd.xlane.f32.xlu0 %v6595
    %v6597 = vpop.xlane.xlu0 %6596
    %v6598 = vsel %vm123, %v6590, 0.0
    %6599 = vadd.xlane.f32.xlu0 %v6598
    %v6600 = vpop.xlane.xlu0 %6599
    %v6601 = vsel %vm123, %v6591, 0.0
    %6602 = vadd.xlane.f32.xlu0 %v6601
    %v6603 = vpop.xlane.xlu0 %6602
    %v6604 = vsel %vm123, %v6592, 0.0
    %6605 = vadd.xlane.f32.xlu0 %v6604
    %v6606 = vpop.xlane.xlu0 %6605
    %v6607 = vsel %vm123, %v6593, 0.0
    %6608 = vadd.xlane.f32.xlu0 %v6607
    %v6609 = vpop.xlane.xlu0 %6608
    %v6610 = vsel %vm123, %v6594, 0.0
    %6611 = vadd.xlane.f32.xlu0 %v6610
    %v6612 = vpop.xlane.xlu0 %6611
    %v6613 = vmul.f32 %v6597, %v227
    %v6614 = vmul.f32 %v6600, %v227
    %v6615 = vmul.f32 %v6603, %v227
    %v6616 = vmul.f32 %v6606, %v227
    %v6617 = vmul.f32 %v6609, %v227
    %v6618 = vmul.f32 %v6612, %v227
    %v6619 = vsub.f32 %v6589, %v6613
    %v6620 = vsub.f32 %v6590, %v6614
    %v6621 = vsub.f32 %v6591, %v6615
    %v6622 = vsub.f32 %v6592, %v6616
    %v6623 = vsub.f32 %v6593, %v6617
    %v6624 = vsub.f32 %v6594, %v6618
    %v6625 = vmul.f32 %v6619, %v6619
    %v6626 = vmul.f32 %v6620, %v6620
    %v6627 = vmul.f32 %v6621, %v6621
    %v6628 = vmul.f32 %v6622, %v6622
    %v6629 = vmul.f32 %v6623, %v6623
    %v6630 = vmul.f32 %v6624, %v6624
    %v6631 = vsel %vm123, %v6625, 0.0
    %6632 = vadd.xlane.f32.xlu0 %v6631
    %v6633 = vpop.xlane.xlu0 %6632
    %v6634 = vsel %vm123, %v6626, 0.0
    %6635 = vadd.xlane.f32.xlu0 %v6634
    %v6636 = vpop.xlane.xlu0 %6635
    %v6637 = vsel %vm123, %v6627, 0.0
    %6638 = vadd.xlane.f32.xlu0 %v6637
    %v6639 = vpop.xlane.xlu0 %6638
    %v6640 = vsel %vm123, %v6628, 0.0
    %6641 = vadd.xlane.f32.xlu0 %v6640
    %v6642 = vpop.xlane.xlu0 %6641
    %v6643 = vsel %vm123, %v6629, 0.0
    %6644 = vadd.xlane.f32.xlu0 %v6643
    %v6645 = vpop.xlane.xlu0 %6644
    %v6646 = vsel %vm123, %v6630, 0.0
    %6647 = vadd.xlane.f32.xlu0 %v6646
    %v6648 = vpop.xlane.xlu0 %6647
    %v6649 = vmul.f32 %v6633, %v227
    %v6650 = vmul.f32 %v6636, %v227
    %v6651 = vmul.f32 %v6639, %v227
    %v6652 = vmul.f32 %v6642, %v227
    %v6653 = vmul.f32 %v6645, %v227
    %v6654 = vmul.f32 %v6648, %v227
    %v6655 = vadd.f32 %v6649, 1e-05
    %v6656 = vadd.f32 %v6650, 1e-05
    %v6657 = vadd.f32 %v6651, 1e-05
    %v6658 = vadd.f32 %v6652, 1e-05
    %v6659 = vadd.f32 %v6653, 1e-05
    %v6660 = vadd.f32 %v6654, 1e-05
    %v6661 = vrsqrt.pop %v6655
    %v6662 = vrsqrt.pop %v6656
    %v6663 = vrsqrt.pop %v6657
    %v6664 = vrsqrt.pop %v6658
    %v6665 = vrsqrt.pop %v6659
    %v6666 = vrsqrt.pop %v6660
    %v6667 = vmul.f32 %v6619, %v6661
    %v6668 = vmul.f32 %v6620, %v6662
    %v6669 = vmul.f32 %v6621, %v6663
    %v6670 = vmul.f32 %v6622, %v6664
    %v6671 = vmul.f32 %v6623, %v6665
    %v6672 = vmul.f32 %v6624, %v6666
    %v6673 = vlaneseq
    %v6674 = vshrl.u32 %v6673, 7
    %v6675 = vsub.s32 4, %v6674
    %v6676 = vrot.slane %v4795, %v6675
    %v6677 = vmul.f32 %v6667, %v6676
    %v6678 = vmul.f32 %v6668, %v6676
    %v6679 = vmul.f32 %v6669, %v6676
    %v6680 = vmul.f32 %v6670, %v6676
    %v6681 = vmul.f32 %v6671, %v6676
    %v6682 = vmul.f32 %v6672, %v6676
    %v6683 = vlaneseq
    %v6684 = vshrl.u32 %v6683, 7
    %v6685 = vsub.s32 5, %v6684
    %v6686 = vrot.slane %v4795, %v6685
    %v6687 = vadd.f32 %v6677, %v6686
    %v6688 = vadd.f32 %v6678, %v6686
    %v6689 = vadd.f32 %v6679, %v6686
    %v6690 = vadd.f32 %v6680, %v6686
    %v6691 = vadd.f32 %v6681, %v6686
    %v6692 = vadd.f32 %v6682, %v6686
    %v6693 = vpack.c.bf16 %v6688, %v6687
    %v6694 = vpack.c.bf16 %v6690, %v6689
    %v6695 = vpack.c.bf16 %v6692, %v6691
    %s6696 = scalar_lea.vmem %s6, 128
    %v6697 = vld [vmem:[%s6696] sm:$0xff]
    %v6698 = vld [vmem:[%s6696 + $0x8] sm:$0xff]
    %v6699 = vld [vmem:[%s6696 + $0x10] sm:$0xff]
    %v6700 = vld [vmem:[%s6696 + $0x18] sm:$0xff]
    %v6701 = vld [vmem:[%s6696 + $0x20] sm:$0xff]
    %v6702 = vld [vmem:[%s6696 + $0x28] sm:$0xff]
    %v6703 = vld [vmem:[%s6696 + $0x30] sm:$0xff]
    %v6704 = vld [vmem:[%s6696 + $0x38] sm:$0xff]
    %v6705 = vlaneseq
    %v6706 = vshrl.u32 %v6705, 7
    %v6707 = vsub.s32 6, %v6706
    %v6708 = vrot.slane %v4795, %v6707
    %v6709 = vlaneseq
    %v6710 = vshrl.u32 %v6709, 7
    %v6711 = vsub.s32 6, %v6710
    %v6712 = vrot.slane %v4796, %v6711
    %v6721 = vunpack.c.l.b16 %v6697
    %v6722 = vunpack.c.h.b16 %v6697
    %v6723 = vunpack.c.l.b16 %v6698
    %v6724 = vunpack.c.h.b16 %v6698
    %v6725 = vunpack.c.l.b16 %v6699
    %v6726 = vunpack.c.h.b16 %v6699
    %v6727 = vunpack.c.l.b16 %v6700
    %v6728 = vunpack.c.h.b16 %v6700
    %v6729 = vunpack.c.l.b16 %v6701
    %v6730 = vunpack.c.h.b16 %v6701
    %v6731 = vunpack.c.l.b16 %v6702
    %v6732 = vunpack.c.h.b16 %v6702
    %v6733 = vunpack.c.l.b16 %v6703
    %v6734 = vunpack.c.h.b16 %v6703
    %v6735 = vunpack.c.l.b16 %v6704
    %v6736 = vunpack.c.h.b16 %v6704
    %v6737 = vpack.c.b16 %v6723, %v6721
    %v6738 = vpack.c.b16 %v6724, %v6722
    %v6739 = vpack.c.b16 %v6727, %v6725
    %v6740 = vpack.c.b16 %v6728, %v6726
    %v6741 = vpack.c.b16 %v6731, %v6729
    %v6742 = vpack.c.b16 %v6732, %v6730
    %v6743 = vpack.c.b16 %v6735, %v6733
    %v6744 = vpack.c.b16 %v6736, %v6734
    %v6754 = vsel %vm123, %v6693, 0
    %v6757 = vsel %vm123, %v6694, 0
    %v6760 = vsel %vm123, %v6695, 0
    %6762 = vmatprep.subr.bf16.mxu0 %v6738
    %6763 = vmatpush1.bf16.msra.mxu0 %v6737
    %6764 = vmatprep.subr.bf16.mxu0 %v6740
    %6765 = vmatpush1.bf16.msra.mxu0 %v6739
    %6766 = vmatprep.subr.bf16.mxu0 %v6742
    %6767 = vmatpush1.bf16.msra.mxu0 %v6741
    %6768 = vmatprep.subr.bf16.mxu0 %v6744
    %6769 = vmatpush1.bf16.msra.mxu0 %v6743
    %6770 = vmatprep.subr.bf16.mxu0 0
    %6771 = vmatpush1.bf16.msra.mxu0 0
    %6772 = vmatprep.subr.bf16.mxu0 0
    %6773 = vmatpush1.bf16.msra.mxu0 0
    %6774 = vmatprep.subr.bf16.mxu0 0
    %6775 = vmatpush1.bf16.msra.mxu0 0
    %6776 = vmatprep.subr.bf16.mxu0 0
    %6777 = vmatpush1.bf16.msra.mxu0 0
    %6778 = vmatprep.subr.bf16.mxu0 0
    %6779 = vmatpush1.bf16.msra.mxu0 0
    %6780 = vmatprep.subr.bf16.mxu0 0
    %6781 = vmatpush1.bf16.msra.mxu0 0
    %6782 = vmatprep.subr.bf16.mxu0 0
    %6783 = vmatpush1.bf16.msra.mxu0 0
    %6784 = vmatprep.subr.bf16.mxu0 0
    %6785 = vmatpush1.bf16.msra.mxu0 0
    %6786 = vmatprep.subr.bf16.mxu0 0
    %6787 = vmatpush1.bf16.msra.mxu0 0
    %6788 = vmatprep.subr.bf16.mxu0 0
    %6789 = vmatpush1.bf16.msra.mxu0 0
    %6790 = vmatprep.subr.bf16.mxu0 0
    %6791 = vmatpush1.bf16.msra.mxu0 0
    %6792 = vmatprep.subr.bf16.mxu0 0
    %6793 = vmatpush1.bf16.msra.mxu0 0
    %6794 = vmatprep.mubr.bf16.mxu0 0
    %6795 = vmatmul.mubr.bf16.gmra.mrb[0].mxu0 %v6754
    %v6796 = vpop.f32.mrb[0].mxu0
    %v6797 = vadd.f32 %v6708, %v6796
    %v6798 = vpop.f32.mrb[0].mxu0
    %v6799 = vadd.f32 %v6712, %v6798
    %v6800 = vpop.f32.mrb[0].mxu0
    %v6801 = vadd.f32 %v6708, %v6800
    %v6802 = vpop.f32.mrb[0].mxu0
    %v6803 = vadd.f32 %v6712, %v6802
    %6804 = vmatprep.mubr.bf16.mxu0 0
    %6805 = vmatmul.mubr.bf16.gmra.mrb[0].mxu0 %v6757
    %v6806 = vpop.f32.mrb[0].mxu0
    %v6807 = vadd.f32 %v6708, %v6806
    %v6808 = vpop.f32.mrb[0].mxu0
    %v6809 = vadd.f32 %v6712, %v6808
    %v6810 = vpop.f32.mrb[0].mxu0
    %v6811 = vadd.f32 %v6708, %v6810
    %v6812 = vpop.f32.mrb[0].mxu0
    %v6813 = vadd.f32 %v6712, %v6812
    %6814 = vmatprep.mubr.bf16.mxu0 0
    %6815 = vmatmul.mubr.bf16.gmra.mrb[0].mxu0 %v6760
    %v6816 = vpop.f32.mrb[0].mxu0
    %v6817 = vadd.f32 %v6708, %v6816
    %v6818 = vpop.f32.mrb[0].mxu0
    %v6819 = vadd.f32 %v6712, %v6818
    %v6820 = vpop.f32.mrb[0].mxu0
    %v6821 = vadd.f32 %v6708, %v6820
    %v6822 = vpop.f32.mrb[0].mxu0
    %v6823 = vadd.f32 %v6712, %v6822
    %6824 = vdwg.mxu0
    %v6825 = vmul.f32 %v6797, 0.5
    %v6826 = vmul.f32 %v6799, 0.5
    %v6827 = vmul.f32 %v6801, 0.5
    %v6828 = vmul.f32 %v6803, 0.5
    %v6829 = vmul.f32 %v6807, 0.5
    %v6830 = vmul.f32 %v6809, 0.5
    %v6831 = vmul.f32 %v6811, 0.5
    %v6832 = vmul.f32 %v6813, 0.5
    %v6833 = vmul.f32 %v6817, 0.5
    %v6834 = vmul.f32 %v6819, 0.5
    %v6835 = vmul.f32 %v6821, 0.5
    %v6836 = vmul.f32 %v6823, 0.5
    %v6837 = vmul.f32 %v6797, 0.70710677
    %v6838 = vmul.f32 %v6799, 0.70710677
    %v6839 = vmul.f32 %v6801, 0.70710677
    %v6840 = vmul.f32 %v6803, 0.70710677
    %v6841 = vmul.f32 %v6807, 0.70710677
    %v6842 = vmul.f32 %v6809, 0.70710677
    %v6843 = vmul.f32 %v6811, 0.70710677
    %v6844 = vmul.f32 %v6813, 0.70710677
    %v6845 = vmul.f32 %v6817, 0.70710677
    %v6846 = vmul.f32 %v6819, 0.70710677
    %v6847 = vmul.f32 %v6821, 0.70710677
    %v6848 = vmul.f32 %v6823, 0.70710677
    %v6849 = verf.f32.pop %v6837
    %v6850 = verf.f32.pop %v6838
    %v6851 = verf.f32.pop %v6839
    %v6852 = verf.f32.pop %v6840
    %v6853 = verf.f32.pop %v6841
    %v6854 = verf.f32.pop %v6842
    %v6855 = verf.f32.pop %v6843
    %v6856 = verf.f32.pop %v6844
    %v6857 = verf.f32.pop %v6845
    %v6858 = verf.f32.pop %v6846
    %v6859 = verf.f32.pop %v6847
    %v6860 = verf.f32.pop %v6848
    %v6861 = vadd.f32 %v6849, 1.0
    %v6862 = vadd.f32 %v6850, 1.0
    %v6863 = vadd.f32 %v6851, 1.0
    %v6864 = vadd.f32 %v6852, 1.0
    %v6865 = vadd.f32 %v6853, 1.0
    %v6866 = vadd.f32 %v6854, 1.0
    %v6867 = vadd.f32 %v6855, 1.0
    %v6868 = vadd.f32 %v6856, 1.0
    %v6869 = vadd.f32 %v6857, 1.0
    %v6870 = vadd.f32 %v6858, 1.0
    %v6871 = vadd.f32 %v6859, 1.0
    %v6872 = vadd.f32 %v6860, 1.0
    %v6873 = vmul.f32 %v6825, %v6861
    %v6874 = vmul.f32 %v6826, %v6862
    %v6875 = vmul.f32 %v6827, %v6863
    %v6876 = vmul.f32 %v6828, %v6864
    %v6877 = vmul.f32 %v6829, %v6865
    %v6878 = vmul.f32 %v6830, %v6866
    %v6879 = vmul.f32 %v6831, %v6867
    %v6880 = vmul.f32 %v6832, %v6868
    %v6881 = vmul.f32 %v6833, %v6869
    %v6882 = vmul.f32 %v6834, %v6870
    %v6883 = vmul.f32 %v6835, %v6871
    %v6884 = vmul.f32 %v6836, %v6872
    %v6885 = vpack.c.bf16 %v6875, %v6873
    %v6886 = vpack.c.bf16 %v6876, %v6874
    %v6887 = vpack.c.bf16 %v6879, %v6877
    %v6888 = vpack.c.bf16 %v6880, %v6878
    %v6889 = vpack.c.bf16 %v6883, %v6881
    %v6890 = vpack.c.bf16 %v6884, %v6882
    %s6891 = scalar_lea.vmem %s7, 256
    %v6892 = vld [vmem:[%s6891] sm:$0xf]
    %v6893 = vld [vmem:[%s6891 + $0x4] sm:$0xf]
    %v6894 = vld [vmem:[%s6891 + $0x8] sm:$0xf]
    %v6895 = vld [vmem:[%s6891 + $0xc] sm:$0xf]
    %v6896 = vld [vmem:[%s6891 + $0x10] sm:$0xf]
    %v6897 = vld [vmem:[%s6891 + $0x14] sm:$0xf]
    %v6898 = vld [vmem:[%s6891 + $0x18] sm:$0xf]
    %v6899 = vld [vmem:[%s6891 + $0x1c] sm:$0xf]
    %v6900 = vld [vmem:[%s6891 + $0x20] sm:$0xf]
    %v6901 = vld [vmem:[%s6891 + $0x24] sm:$0xf]
    %v6902 = vld [vmem:[%s6891 + $0x28] sm:$0xf]
    %v6903 = vld [vmem:[%s6891 + $0x2c] sm:$0xf]
    %v6904 = vld [vmem:[%s6891 + $0x30] sm:$0xf]
    %v6905 = vld [vmem:[%s6891 + $0x34] sm:$0xf]
    %v6906 = vld [vmem:[%s6891 + $0x38] sm:$0xf]
    %v6907 = vld [vmem:[%s6891 + $0x3c] sm:$0xf]
    %v6908 = vld [vmem:[%s6891 + $0x40] sm:$0xf]
    %v6909 = vld [vmem:[%s6891 + $0x44] sm:$0xf]
    %v6910 = vld [vmem:[%s6891 + $0x48] sm:$0xf]
    %v6911 = vld [vmem:[%s6891 + $0x4c] sm:$0xf]
    %v6912 = vld [vmem:[%s6891 + $0x50] sm:$0xf]
    %v6913 = vld [vmem:[%s6891 + $0x54] sm:$0xf]
    %v6914 = vld [vmem:[%s6891 + $0x58] sm:$0xf]
    %v6915 = vld [vmem:[%s6891 + $0x5c] sm:$0xf]
    %v6916 = vld [vmem:[%s6891 + $0x60] sm:$0xf]
    %v6917 = vld [vmem:[%s6891 + $0x64] sm:$0xf]
    %v6918 = vld [vmem:[%s6891 + $0x68] sm:$0xf]
    %v6919 = vld [vmem:[%s6891 + $0x6c] sm:$0xf]
    %v6920 = vld [vmem:[%s6891 + $0x70] sm:$0xf]
    %v6921 = vld [vmem:[%s6891 + $0x74] sm:$0xf]
    %v6922 = vld [vmem:[%s6891 + $0x78] sm:$0xf]
    %v6923 = vld [vmem:[%s6891 + $0x7c] sm:$0xf]
    %v6924 = vlaneseq
    %v6925 = vshrl.u32 %v6924, 7
    %v6926 = vsub.s32 7, %v6925
    %v6927 = vrot.slane %v4795, %v6926
    %v6960 = vunpack.c.l.b16 %v6892
    %v6961 = vunpack.c.l.b16 %v6893
    %v6962 = vunpack.c.l.b16 %v6894
    %v6963 = vunpack.c.l.b16 %v6895
    %v6964 = vunpack.c.l.b16 %v6896
    %v6965 = vunpack.c.l.b16 %v6897
    %v6966 = vunpack.c.l.b16 %v6898
    %v6967 = vunpack.c.l.b16 %v6899
    %v6968 = vunpack.c.l.b16 %v6900
    %v6969 = vunpack.c.l.b16 %v6901
    %v6970 = vunpack.c.l.b16 %v6902
    %v6971 = vunpack.c.l.b16 %v6903
    %v6972 = vunpack.c.l.b16 %v6904
    %v6973 = vunpack.c.l.b16 %v6905
    %v6974 = vunpack.c.l.b16 %v6906
    %v6975 = vunpack.c.l.b16 %v6907
    %v6976 = vunpack.c.l.b16 %v6908
    %v6977 = vunpack.c.l.b16 %v6909
    %v6978 = vunpack.c.l.b16 %v6910
    %v6979 = vunpack.c.l.b16 %v6911
    %v6980 = vunpack.c.l.b16 %v6912
    %v6981 = vunpack.c.l.b16 %v6913
    %v6982 = vunpack.c.l.b16 %v6914
    %v6983 = vunpack.c.l.b16 %v6915
    %v6984 = vunpack.c.l.b16 %v6916
    %v6985 = vunpack.c.l.b16 %v6917
    %v6986 = vunpack.c.l.b16 %v6918
    %v6987 = vunpack.c.l.b16 %v6919
    %v6988 = vunpack.c.l.b16 %v6920
    %v6989 = vunpack.c.l.b16 %v6921
    %v6990 = vunpack.c.l.b16 %v6922
    %v6991 = vunpack.c.l.b16 %v6923
    %v6992 = vpack.c.b16 %v6961, %v6960
    %v6993 = vpack.c.b16 %v6963, %v6962
    %v6994 = vpack.c.b16 %v6965, %v6964
    %v6995 = vpack.c.b16 %v6967, %v6966
    %v6996 = vpack.c.b16 %v6969, %v6968
    %v6997 = vpack.c.b16 %v6971, %v6970
    %v6998 = vpack.c.b16 %v6973, %v6972
    %v6999 = vpack.c.b16 %v6975, %v6974
    %v7000 = vpack.c.b16 %v6977, %v6976
    %v7001 = vpack.c.b16 %v6979, %v6978
    %v7002 = vpack.c.b16 %v6981, %v6980
    %v7003 = vpack.c.b16 %v6983, %v6982
    %v7004 = vpack.c.b16 %v6985, %v6984
    %v7005 = vpack.c.b16 %v6987, %v6986
    %v7006 = vpack.c.b16 %v6989, %v6988
    %v7007 = vpack.c.b16 %v6991, %v6990
    %7024 = vmatprep.subr.bf16.mxu0 0
    %7025 = vmatpush1.bf16.msra.mxu0 %v6992
    %7026 = vmatprep.subr.bf16.mxu0 0
    %7027 = vmatpush1.bf16.msra.mxu0 %v6993
    %7028 = vmatprep.subr.bf16.mxu0 0
    %7029 = vmatpush1.bf16.msra.mxu0 %v6994
    %7030 = vmatprep.subr.bf16.mxu0 0
    %7031 = vmatpush1.bf16.msra.mxu0 %v6995
    %7032 = vmatprep.subr.bf16.mxu0 0
    %7033 = vmatpush1.bf16.msra.mxu0 %v6996
    %7034 = vmatprep.subr.bf16.mxu0 0
    %7035 = vmatpush1.bf16.msra.mxu0 %v6997
    %7036 = vmatprep.subr.bf16.mxu0 0
    %7037 = vmatpush1.bf16.msra.mxu0 %v6998
    %7038 = vmatprep.subr.bf16.mxu0 0
    %7039 = vmatpush1.bf16.msra.mxu0 %v6999
    %7040 = vmatprep.subr.bf16.mxu0 0
    %7041 = vmatpush1.bf16.msra.mxu0 %v7000
    %7042 = vmatprep.subr.bf16.mxu0 0
    %7043 = vmatpush1.bf16.msra.mxu0 %v7001
    %7044 = vmatprep.subr.bf16.mxu0 0
    %7045 = vmatpush1.bf16.msra.mxu0 %v7002
    %7046 = vmatprep.subr.bf16.mxu0 0
    %7047 = vmatpush1.bf16.msra.mxu0 %v7003
    %7048 = vmatprep.subr.bf16.mxu0 0
    %7049 = vmatpush1.bf16.msra.mxu0 %v7004
    %7050 = vmatprep.subr.bf16.mxu0 0
    %7051 = vmatpush1.bf16.msra.mxu0 %v7005
    %7052 = vmatprep.subr.bf16.mxu0 0
    %7053 = vmatpush1.bf16.msra.mxu0 %v7006
    %7054 = vmatprep.subr.bf16.mxu0 0
    %7055 = vmatpush1.bf16.msra.mxu0 %v7007
    %7056 = vmatprep.mubr.bf16.mxu0 %v6886
    %7057 = vmatmul.mubr.bf16.gmra.mrb[0].mxu0 %v6885
    %v7058 = vpop.f32.mrb[0].mxu0
    %v7059 = vadd.f32 %v6927, %v7058
    %v7060 = vpop.f32.mrb[0].mxu0
    %v7061 = vpop.f32.mrb[0].mxu0
    %v7062 = vadd.f32 %v6927, %v7061
    %v7063 = vpop.f32.mrb[0].mxu0
    %7064 = vmatprep.mubr.bf16.mxu0 %v6888
    %7065 = vmatmul.mubr.bf16.gmra.mrb[0].mxu0 %v6887
    %v7066 = vpop.f32.mrb[0].mxu0
    %v7067 = vadd.f32 %v6927, %v7066
    %v7068 = vpop.f32.mrb[0].mxu0
    %v7069 = vpop.f32.mrb[0].mxu0
    %v7070 = vadd.f32 %v6927, %v7069
    %v7071 = vpop.f32.mrb[0].mxu0
    %7072 = vmatprep.mubr.bf16.mxu0 %v6890
    %7073 = vmatmul.mubr.bf16.gmra.mrb[0].mxu0 %v6889
    %v7074 = vpop.f32.mrb[0].mxu0
    %v7075 = vadd.f32 %v6927, %v7074
    %v7076 = vpop.f32.mrb[0].mxu0
    %v7077 = vpop.f32.mrb[0].mxu0
    %v7078 = vadd.f32 %v6927, %v7077
    %v7079 = vpop.f32.mrb[0].mxu0
    %7080 = vdwg.mxu0
    %v7081 = vadd.f32 %v6589, %v7059
    %v7082 = vadd.f32 %v6590, %v7062
    %v7083 = vadd.f32 %v6591, %v7067
    %v7084 = vadd.f32 %v6592, %v7070
    %v7085 = vadd.f32 %v6593, %v7075
    %v7086 = vadd.f32 %v6594, %v7078
    %v7087 = vsel %vm123, %v7081, 0.0
    %7088 = vadd.xlane.f32.xlu0 %v7087
    %v7089 = vpop.xlane.xlu0 %7088
    %v7090 = vsel %vm123, %v7082, 0.0
    %7091 = vadd.xlane.f32.xlu0 %v7090
    %v7092 = vpop.xlane.xlu0 %7091
    %v7093 = vsel %vm123, %v7083, 0.0
    %7094 = vadd.xlane.f32.xlu0 %v7093
    %v7095 = vpop.xlane.xlu0 %7094
    %v7096 = vsel %vm123, %v7084, 0.0
    %7097 = vadd.xlane.f32.xlu0 %v7096
    %v7098 = vpop.xlane.xlu0 %7097
    %v7099 = vsel %vm123, %v7085, 0.0
    %7100 = vadd.xlane.f32.xlu0 %v7099
    %v7101 = vpop.xlane.xlu0 %7100
    %v7102 = vsel %vm123, %v7086, 0.0
    %7103 = vadd.xlane.f32.xlu0 %v7102
    %v7104 = vpop.xlane.xlu0 %7103
    %v7105 = vmul.f32 %v7089, %v227
    %v7106 = vmul.f32 %v7092, %v227
    %v7107 = vmul.f32 %v7095, %v227
    %v7108 = vmul.f32 %v7098, %v227
    %v7109 = vmul.f32 %v7101, %v227
    %v7110 = vmul.f32 %v7104, %v227
    %v7111 = vsub.f32 %v7081, %v7105
    %v7112 = vsub.f32 %v7082, %v7106
    %v7113 = vsub.f32 %v7083, %v7107
    %v7114 = vsub.f32 %v7084, %v7108
    %v7115 = vsub.f32 %v7085, %v7109
    %v7116 = vsub.f32 %v7086, %v7110
    %v7117 = vmul.f32 %v7111, %v7111
    %v7118 = vmul.f32 %v7112, %v7112
    %v7119 = vmul.f32 %v7113, %v7113
    %v7120 = vmul.f32 %v7114, %v7114
    %v7121 = vmul.f32 %v7115, %v7115
    %v7122 = vmul.f32 %v7116, %v7116
    %v7123 = vsel %vm123, %v7117, 0.0
    %7124 = vadd.xlane.f32.xlu0 %v7123
    %v7125 = vpop.xlane.xlu0 %7124
    %v7126 = vsel %vm123, %v7118, 0.0
    %7127 = vadd.xlane.f32.xlu0 %v7126
    %v7128 = vpop.xlane.xlu0 %7127
    %v7129 = vsel %vm123, %v7119, 0.0
    %7130 = vadd.xlane.f32.xlu0 %v7129
    %v7131 = vpop.xlane.xlu0 %7130
    %v7132 = vsel %vm123, %v7120, 0.0
    %7133 = vadd.xlane.f32.xlu0 %v7132
    %v7134 = vpop.xlane.xlu0 %7133
    %v7135 = vsel %vm123, %v7121, 0.0
    %7136 = vadd.xlane.f32.xlu0 %v7135
    %v7137 = vpop.xlane.xlu0 %7136
    %v7138 = vsel %vm123, %v7122, 0.0
    %7139 = vadd.xlane.f32.xlu0 %v7138
    %v7140 = vpop.xlane.xlu0 %7139
    %v7141 = vmul.f32 %v7125, %v227
    %v7142 = vmul.f32 %v7128, %v227
    %v7143 = vmul.f32 %v7131, %v227
    %v7144 = vmul.f32 %v7134, %v227
    %v7145 = vmul.f32 %v7137, %v227
    %v7146 = vmul.f32 %v7140, %v227
    %v7147 = vadd.f32 %v7141, 1e-05
    %v7148 = vadd.f32 %v7142, 1e-05
    %v7149 = vadd.f32 %v7143, 1e-05
    %v7150 = vadd.f32 %v7144, 1e-05
    %v7151 = vadd.f32 %v7145, 1e-05
    %v7152 = vadd.f32 %v7146, 1e-05
    %v7153 = vrsqrt.pop %v7147
    %v7154 = vrsqrt.pop %v7148
    %v7155 = vrsqrt.pop %v7149
    %v7156 = vrsqrt.pop %v7150
    %v7157 = vrsqrt.pop %v7151
    %v7158 = vrsqrt.pop %v7152
    %v7159 = vmul.f32 %v7111, %v7153
    %v7160 = vmul.f32 %v7112, %v7154
    %v7161 = vmul.f32 %v7113, %v7155
    %v7162 = vmul.f32 %v7114, %v7156
    %v7163 = vmul.f32 %v7115, %v7157
    %v7164 = vmul.f32 %v7116, %v7158
    %v7165 = vlaneseq
    %v7166 = vshrl.u32 %v7165, 7
    %v7167 = vsub.s32 0, %v7166
    %v7168 = vrot.slane %v78, %v7167
    %v7169 = vmul.f32 %v7159, %v7168
    %v7170 = vmul.f32 %v7160, %v7168
    %v7171 = vmul.f32 %v7161, %v7168
    %v7172 = vmul.f32 %v7162, %v7168
    %v7173 = vmul.f32 %v7163, %v7168
    %v7174 = vmul.f32 %v7164, %v7168
    %v7175 = vlaneseq
    %v7176 = vshrl.u32 %v7175, 7
    %v7177 = vsub.s32 0, %v7176
    %v7178 = vrot.slane %v79, %v7177
    %v7179 = vadd.f32 %v7169, %v7178
    %v7180 = vadd.f32 %v7170, %v7178
    %v7181 = vadd.f32 %v7171, %v7178
    %v7182 = vadd.f32 %v7172, %v7178
    %v7183 = vadd.f32 %v7173, %v7178
    %v7184 = vadd.f32 %v7174, %v7178
    %v7185 = vpack.c.bf16 %v7180, %v7179
    %v7186 = vpack.c.bf16 %v7182, %v7181
    %v7187 = vpack.c.bf16 %v7184, %v7183
    %v7188 = vld [vmem:[%s9] sm:$0xf]
    %v7189 = vld [vmem:[%s9 + $0x4] sm:$0xf]
    %v7190 = vld [vmem:[%s9 + $0x8] sm:$0xf]
    %v7191 = vld [vmem:[%s9 + $0xc] sm:$0xf]
    %v7192 = vld [vmem:[%s9 + $0x10] sm:$0xf]
    %v7193 = vld [vmem:[%s9 + $0x14] sm:$0xf]
    %v7194 = vld [vmem:[%s9 + $0x18] sm:$0xf]
    %v7195 = vld [vmem:[%s9 + $0x1c] sm:$0xf]
    %v7196 = vlaneseq
    %v7197 = vshrl.u32 %v7196, 7
    %v7198 = vsub.s32 0, %v7197
    %v7199 = vrot.slane %v80, %v7198
    %v7208 = vunpack.c.l.b16 %v7188
    %v7209 = vunpack.c.l.b16 %v7189
    %v7210 = vunpack.c.l.b16 %v7190
    %v7211 = vunpack.c.l.b16 %v7191
    %v7212 = vunpack.c.l.b16 %v7192
    %v7213 = vunpack.c.l.b16 %v7193
    %v7214 = vunpack.c.l.b16 %v7194
    %v7215 = vunpack.c.l.b16 %v7195
    %v7216 = vpack.c.b16 %v7209, %v7208
    %v7217 = vpack.c.b16 %v7211, %v7210
    %v7218 = vpack.c.b16 %v7213, %v7212
    %v7219 = vpack.c.b16 %v7215, %v7214
    %v7225 = vsel %vm123, %v7185, 0
    %v7228 = vsel %vm123, %v7186, 0
    %v7231 = vsel %vm123, %v7187, 0
    %7233 = vmatprep.subr.bf16.mxu0 0
    %7234 = vmatpush1.bf16.msra.mxu0 %v7216
    %7235 = vmatprep.subr.bf16.mxu0 0
    %7236 = vmatpush1.bf16.msra.mxu0 %v7217
    %7237 = vmatprep.subr.bf16.mxu0 0
    %7238 = vmatpush1.bf16.msra.mxu0 %v7218
    %7239 = vmatprep.subr.bf16.mxu0 0
    %7240 = vmatpush1.bf16.msra.mxu0 %v7219
    %7241 = vmatprep.subr.bf16.mxu0 0
    %7242 = vmatpush1.bf16.msra.mxu0 0
    %7243 = vmatprep.subr.bf16.mxu0 0
    %7244 = vmatpush1.bf16.msra.mxu0 0
    %7245 = vmatprep.subr.bf16.mxu0 0
    %7246 = vmatpush1.bf16.msra.mxu0 0
    %7247 = vmatprep.subr.bf16.mxu0 0
    %7248 = vmatpush1.bf16.msra.mxu0 0
    %7249 = vmatprep.subr.bf16.mxu0 0
    %7250 = vmatpush1.bf16.msra.mxu0 0
    %7251 = vmatprep.subr.bf16.mxu0 0
    %7252 = vmatpush1.bf16.msra.mxu0 0
    %7253 = vmatprep.subr.bf16.mxu0 0
    %7254 = vmatpush1.bf16.msra.mxu0 0
    %7255 = vmatprep.subr.bf16.mxu0 0
    %7256 = vmatpush1.bf16.msra.mxu0 0
    %7257 = vmatprep.subr.bf16.mxu0 0
    %7258 = vmatpush1.bf16.msra.mxu0 0
    %7259 = vmatprep.subr.bf16.mxu0 0
    %7260 = vmatpush1.bf16.msra.mxu0 0
    %7261 = vmatprep.subr.bf16.mxu0 0
    %7262 = vmatpush1.bf16.msra.mxu0 0
    %7263 = vmatprep.subr.bf16.mxu0 0
    %7264 = vmatpush1.bf16.msra.mxu0 0
    %7265 = vmatprep.mubr.bf16.mxu0 0
    %7266 = vmatmul.mubr.bf16.gmra.mrb[0].mxu0 %v7225
    %v7267 = vpop.f32.mrb[0].mxu0
    %v7268 = vadd.f32 %v7199, %v7267
    %v7269 = vpop.f32.mrb[0].mxu0
    %v7270 = vpop.f32.mrb[0].mxu0
    %v7271 = vadd.f32 %v7199, %v7270
    %v7272 = vpop.f32.mrb[0].mxu0
    %7273 = vmatprep.mubr.bf16.mxu0 0
    %7274 = vmatmul.mubr.bf16.gmra.mrb[0].mxu0 %v7228
    %v7275 = vpop.f32.mrb[0].mxu0
    %v7276 = vadd.f32 %v7199, %v7275
    %v7277 = vpop.f32.mrb[0].mxu0
    %v7278 = vpop.f32.mrb[0].mxu0
    %v7279 = vadd.f32 %v7199, %v7278
    %v7280 = vpop.f32.mrb[0].mxu0
    %7281 = vmatprep.mubr.bf16.mxu0 0
    %7282 = vmatmul.mubr.bf16.gmra.mrb[0].mxu0 %v7231
    %v7283 = vpop.f32.mrb[0].mxu0
    %v7284 = vadd.f32 %v7199, %v7283
    %v7285 = vpop.f32.mrb[0].mxu0
    %v7286 = vpop.f32.mrb[0].mxu0
    %v7287 = vadd.f32 %v7199, %v7286
    %v7288 = vpop.f32.mrb[0].mxu0
    %7289 = vdwg.mxu0
    %7290 = vst [vmem:[#allocation9] sm:$0xff] %v7268
    %7291 = vst [vmem:[#allocation9 + $0x8] sm:$0xff] %v7271
    %7292 = vst [vmem:[#allocation9 + $0x10] sm:$0xff] %v7276
    %7293 = vst [vmem:[#allocation9 + $0x18] sm:$0xff] %v7279
    %7294 = vst [vmem:[#allocation9 + $0x20] sm:$0xff] %v7284
    %7295 = vst [vmem:[#allocation9 + $0x28] sm:$0xff] %v7287
    // Predicated region
    $region54: #{tpu_custom_call.1} parent=1 // pred_check
      _
    $region55: #{tpu_custom_call.1} parent=1 // pred_check_branch
      %7297 = sbr.rel (0) target = $region57
    $region56: #{tpu_custom_call.1} parent=1 // pred_region
      %s7299 = ssub.s32 768, 768
      %7300 = vsyncadd [#allocation5], %s7299
      %s7301 = sshll.u32 [#allocation9], 4
      %s7302 = int_to_ptr.vmem [resolvable:$true] %s7301
      %7307 = dma.vmem_to_hbm [thread:$0]  %s7302, 768, %s10, [#allocation5], 128, 128, 8
    $region57: #{tpu_custom_call.1} parent=1 // pred_fallthru
      _
    // Predicated region
    $region58: #{tpu_custom_call.1} parent=1 // pred_check
      _
    $region59: #{tpu_custom_call.1} parent=1 // pred_check_branch
      %7309 = sbr.rel (0) target = $region61
    $region60: #{tpu_custom_call.1} parent=1 // pred_region
      %7310 = dma.done [#allocation5], 768
    $region61: #{tpu_custom_call.1} parent=1 // pred_fallthru
      _
    %7311 = vsyncpa [#allocation4], 1
    %7312 = vsyncpa [#allocation7], 1
    %7313 = vsyncpa [#allocation5], 1

</llo_original>
